<compile_context>
chip_gen: v6e
topology: v6e:2x2x1
jax: 0.10.0
libtpu: 0.0.40
codegen_flags: <defaults>
</compile_context>

<pallas_src>
import jax
import jax.numpy as jnp
from jax.experimental import pallas as pl
from jax.experimental.pallas import tpu as pltpu


def _k_generator_kernel(pts_ref, def_ref, w1_ref, b1_ref, w2_ref, b2_ref,
                        w3_ref, b3_ref, gs_ref, out_ref):
    """One (batch, point-tile) grid cell; loops over all templates in-kernel.

    Shapes (TP = tile_p):
      pts_ref : (1, 3, TP)              def_ref : (T, 1, 3, TP)
      w1_ref  : (T, H1, 3)  b1_ref : (T, H1, 1)
      w2_ref  : (T, H2, H1) b2_ref : (T, H2, 1)
      w3_ref  : (T, H2, 1)  b3_ref : (T, 1, 1)
      gs_ref  : (1, T, TP)  out_ref : (1, 1, TP)
    """
    num_template = def_ref.shape[0]

    pts = pts_ref[0]                                         # (3, TP), loaded once

    gs_rows = []
    running_max = None
    for t in range(num_template):                            # static unroll (T small)
        # homeo = clamp(points + deformations[t], -0.5, 0.5)
        homeo = jnp.clip(pts + def_ref[t, 0], -0.5, 0.5)     # (3, TP)

        # layer1 + leaky_relu(0.01) as three rank-1 VPU FMAs:
        #   (H1,1) ⊗ (1,TP) summed over the 3 input features -> (H1, TP).
        # (A K=3 MXU matmul would drain one vmatmul per OUTPUT tile — as many
        #  pushes as the real layer-2 matmul — so keep it off the MXU.)
        w1t = w1_ref[t]                                      # (H1, 3)
        h1 = (w1t[:, 0:1] * homeo[0:1, :]
              + w1t[:, 1:2] * homeo[1:2, :]
              + w1t[:, 2:3] * homeo[2:3, :]
              + b1_ref[t])                                   # (H1, TP)
        h1 = jnp.where(h1 > 0, h1, 0.01 * h1)

        # layer2 + leaky_relu(0.01): the one real MXU matmul.
        #   (H2, H1) @ (H1, TP) -> (H2, TP)
        h2 = jnp.dot(w2_ref[t], h1,
                     preferred_element_type=jnp.float32) + b2_ref[t]
        h2 = jnp.where(h2 > 0, h2, 0.01 * h2)

        # layer3 + sigmoid on VPU/XLU (avoid an N=1 MXU matmul):
        #   (H2, TP) * (H2, 1) summed over H2 -> (1, TP)
        h3 = jnp.sum(h2 * w3_ref[t], axis=0, keepdims=True) + b3_ref[t]
        g = jax.nn.sigmoid(h3)                               # (1, TP), lane-dense

        gs_rows.append(g)
        running_max = g if running_max is None else jnp.maximum(running_max, g)

    # Single lane-dense store per output, once per point tile.
    gs_ref[0] = jnp.concatenate(gs_rows, axis=0)             # (T, TP)
    out_ref[0] = running_max                                  # (1, TP)


def k_generator_forward(points, ins_codes, com_codes, deformations, params,
                        *, tile_p=512):
    # ins_codes / com_codes do not affect the returned tensors in the reference
    # forward (the repeat_interleave result is unused).
    del ins_codes, com_codes

    w1, b1 = params["w1"], params["b1"]
    w2, b2 = params["w2"], params["b2"]
    w3, b3 = params["w3"], params["b3"]

    bs, num_points, _ = points.shape
    num_template, _, _ = w1.shape

    tile_p = min(tile_p, num_points)
    assert num_points % tile_p == 0
    assert tile_p % 128 == 0 or tile_p == num_points

    # Put the point axis last (lane axis) so compute + stores are lane-dense.
    points_t = jnp.transpose(points, (0, 2, 1))              # (bs, 3, P)
    def_t = jnp.transpose(deformations, (0, 1, 3, 2))        # (T, bs, 3, P)

    grid = (bs, num_points // tile_p)

    gs_k, out_k = pl.pallas_call(
        _k_generator_kernel,
        out_shape=(
            jax.ShapeDtypeStruct((bs, num_template, num_points), jnp.float32),
            jax.ShapeDtypeStruct((bs, 1, num_points), jnp.float32),
        ),
        grid_spec=pltpu.PrefetchScalarGridSpec(
            num_scalar_prefetch=0,
            grid=grid,
            in_specs=[
                pl.BlockSpec((1, 3, tile_p), lambda b, p: (b, 0, p)),              # points_t
                pl.BlockSpec((num_template, 1, 3, tile_p),
                             lambda b, p: (0, b, 0, p)),                           # def_t
                # Weights: full arrays, constant index_map -> resident in VMEM.
                pl.BlockSpec(w1.shape, lambda b, p: (0, 0, 0)),                    # w1
                pl.BlockSpec(b1.shape, lambda b, p: (0, 0, 0)),                    # b1
                pl.BlockSpec(w2.shape, lambda b, p: (0, 0, 0)),                    # w2
                pl.BlockSpec(b2.shape, lambda b, p: (0, 0, 0)),                    # b2
                pl.BlockSpec(w3.shape, lambda b, p: (0, 0, 0)),                    # w3
                pl.BlockSpec(b3.shape, lambda b, p: (0, 0, 0)),                    # b3
            ],
            out_specs=[
                pl.BlockSpec((1, num_template, tile_p), lambda b, p: (b, 0, p)),   # Gs (bs,T,P)
                pl.BlockSpec((1, 1, tile_p), lambda b, p: (b, 0, p)),              # max (bs,1,P)
            ],
        ),
        compiler_params=pltpu.CompilerParams(
            dimension_semantics=("parallel", "parallel")),
    )(points_t, def_t, w1, b1, w2, b2, w3, b3)

    # Match the PyTorch return layout.  (A consumer that accepts the kernel's
    # native lane-dense (bs, T, P) layout can skip this transpose.)
    Gs = jnp.transpose(gs_k, (0, 2, 1))                      # (bs, P, T)
    out = jnp.transpose(out_k, (0, 2, 1))                    # (bs, P, 1)  (size-1 dim: free)
    return Gs, out


def init_params(key, *, num_template=4, gf_dim=64):
    """Synthetic params matching the module's shapes (PyTorch (out,in) layout).
    layer1: 3 -> gf_dim*4, layer2: gf_dim*4 -> gf_dim, layer3: gf_dim -> 1
    (gf_split=1), one set per template.  Biases are small-random here (the
    module inits them to 0) so the bias-add path is actually verified."""
    H1 = gf_dim * 4
    H2 = gf_dim

    def xavier(k, shape):
        fa, fb = shape[-2], shape[-1]
        limit = (6.0 / (fa + fb)) ** 0.5
        return jax.random.uniform(k, shape, jnp.float32, -limit, limit)

    ks = jax.random.split(key, 7)
    return {
        "w1": xavier(ks[0], (num_template, H1, 3)),
        "b1": 0.01 * jax.random.normal(ks[1], (num_template, H1, 1), jnp.float32),
        "w2": xavier(ks[2], (num_template, H2, H1)),
        "b2": 0.01 * jax.random.normal(ks[3], (num_template, H2, 1), jnp.float32),
        "w3": xavier(ks[4], (num_template, H2, 1)),
        "b3": 0.01 * jax.random.normal(ks[5], (num_template, 1, 1), jnp.float32),
        # k_generator.W ~ N(1e-5, 0.02), shape (num_template, 1); unused in forward.
        "W": 1e-5 + 0.02 * jax.random.normal(ks[6], (num_template, 1), jnp.float32),
    }


def _reference_forward(points, deformations, params):
    """Pure-JAX reference of the PyTorch forward for correctness checking.
    Layer1 is written as the same rank-1 FMA expansion as the kernel so both
    sides take the exact-f32 VPU path (layer2 uses the default matmul path on
    both sides)."""
    w1, b1 = params["w1"], params["b1"]
    w2, b2 = params["w2"], params["b2"]
    w3, b3 = params["w3"], params["b3"]
    gs = []
    for t in range(w1.shape[0]):
        homeo = jnp.clip(points + deformations[t], -0.5, 0.5)          # (bs, P, 3)
        h1 = (homeo[..., 0:1] * w1[t][:, 0]
              + homeo[..., 1:2] * w1[t][:, 1]
              + homeo[..., 2:3] * w1[t][:, 2]
              + b1[t][:, 0])                                           # (bs, P, H1)
        h1 = jnp.where(h1 > 0, h1, 0.01 * h1)
        h2 = jnp.einsum("bpi,oi->bpo", h1, w2[t]) + b2[t][:, 0]
        h2 = jnp.where(h2 > 0, h2, 0.01 * h2)
        h3 = h2 @ w3[t] + b3[t][:, 0]                                  # (bs, P, 1)
        gs.append(jax.nn.sigmoid(h3))
    Gs = jnp.concatenate(gs, axis=-1)
    out = jnp.max(Gs, axis=2, keepdims=True)
    return Gs, out


if __name__ == "__main__":
    bs = 2
    num_points = 512
    num_template = 4
    gf_dim = 64

    key = jax.random.PRNGKey(0)
    k_pts, k_def, k_ins, k_com, k_par = jax.random.split(key, 5)

    points = jax.random.uniform(k_pts, (bs, num_points, 3), jnp.float32, -0.5, 0.5)
    deformations = 0.2 * jax.random.normal(k_def, (num_template, bs, num_points, 3),
                                           jnp.float32)
    ins_codes = jax.random.normal(k_ins, (bs, 32), jnp.float32)   # unused by forward
    com_codes = jax.random.normal(k_com, (1, 32), jnp.float32)    # unused by forward
    params = init_params(k_par, num_template=num_template, gf_dim=gf_dim)

    # tile_p=256 here so the point-tile grid axis is actually exercised (grid 2x2).
    Gs, out = k_generator_forward(points, ins_codes, com_codes, deformations, params,
                                  tile_p=256)
    jax.block_until_ready((Gs, out))

    Gs_ref, out_ref = _reference_forward(points, deformations, params)
    assert Gs.shape == (bs, num_points, num_template)
    assert out.shape == (bs, num_points, 1)
    assert jnp.allclose(Gs, Gs_ref, atol=1e-5, rtol=1e-5)
    assert jnp.allclose(out, out_ref, atol=1e-5, rtol=1e-5)

    print("KERNEL_OK")
</pallas_src>

<mosaic_0001>
module attributes {stable_mosaic.version = 11 : i64} {
  func.func @_k_generator_kernel(%arg0: i32, %arg1: i32, %arg2: memref<1x3x256xf32, #tpu.memory_space<vmem>>, %arg3: memref<4x1x3x256xf32, #tpu.memory_space<vmem>>, %arg4: memref<4x256x3xf32, #tpu.memory_space<vmem>>, %arg5: memref<4x256x1xf32, #tpu.memory_space<vmem>>, %arg6: memref<4x64x256xf32, #tpu.memory_space<vmem>>, %arg7: memref<4x64x1xf32, #tpu.memory_space<vmem>>, %arg8: memref<4x64x1xf32, #tpu.memory_space<vmem>>, %arg9: memref<4x1x1xf32, #tpu.memory_space<vmem>>, %arg10: memref<1x4x256xf32, #tpu.memory_space<vmem>>, %arg11: memref<1x1x256xf32, #tpu.memory_space<vmem>>) attributes {dimension_semantics = [#tpu.dimension_semantics<parallel>, #tpu.dimension_semantics<parallel>], iteration_bounds = array<i64: 2, 2>, scalar_prefetch = 0 : i64, scratch_operands = 0 : i64, tpu.core_type = #tpu.core_type<tc>, window_params = [{transform_indices = @transform_0, window_bounds = array<i64: 1, 3, 256>}, {transform_indices = @transform_1, window_bounds = array<i64: 4, 1, 3, 256>}, {pipeline_mode = #tpu.pipeline_mode<synchronous>, transform_indices = @transform_2, window_bounds = array<i64: 4, 256, 3>}, {pipeline_mode = #tpu.pipeline_mode<synchronous>, transform_indices = @transform_3, window_bounds = array<i64: 4, 256, 1>}, {pipeline_mode = #tpu.pipeline_mode<synchronous>, transform_indices = @transform_4, window_bounds = array<i64: 4, 64, 256>}, {pipeline_mode = #tpu.pipeline_mode<synchronous>, transform_indices = @transform_5, window_bounds = array<i64: 4, 64, 1>}, {pipeline_mode = #tpu.pipeline_mode<synchronous>, transform_indices = @transform_6, window_bounds = array<i64: 4, 64, 1>}, {pipeline_mode = #tpu.pipeline_mode<synchronous>, transform_indices = @transform_7, window_bounds = array<i64: 4, 1, 1>}, {transform_indices = @transform_8, window_bounds = array<i64: 1, 4, 256>}, {transform_indices = @transform_9, window_bounds = array<i64: 1, 1, 256>}]} {
    %c0 = arith.constant 0 : index
    %c0_0 = arith.constant 0 : index
    %c0_1 = arith.constant 0 : index
    %0 = vector.load %arg2[%c0, %c0_0, %c0_1] : memref<1x3x256xf32, #tpu.memory_space<vmem>>, vector<1x3x256xf32>
    %1 = vector.shape_cast %0 : vector<1x3x256xf32> to vector<3x256xf32>
    %c0_2 = arith.constant 0 : index
    %c0_3 = arith.constant 0 : index
    %c0_4 = arith.constant 0 : index
    %c0_5 = arith.constant 0 : index
    %2 = vector.load %arg3[%c0_2, %c0_3, %c0_4, %c0_5] : memref<4x1x3x256xf32, #tpu.memory_space<vmem>>, vector<1x1x3x256xf32>
    %3 = vector.shape_cast %2 : vector<1x1x3x256xf32> to vector<3x256xf32>
    %4 = arith.addf %1, %3 : vector<3x256xf32>
    %cst = arith.constant -5.000000e-01 : f32
    %cst_6 = arith.constant 5.000000e-01 : f32
    %5 = vector.broadcast %cst : f32 to vector<3x256xf32>
    %6 = arith.maximumf %5, %4 : vector<3x256xf32>
    %7 = vector.broadcast %cst_6 : f32 to vector<3x256xf32>
    %8 = arith.minimumf %7, %6 : vector<3x256xf32>
    %c0_7 = arith.constant 0 : index
    %c0_8 = arith.constant 0 : index
    %c0_9 = arith.constant 0 : index
    %9 = vector.load %arg4[%c0_7, %c0_8, %c0_9] : memref<4x256x3xf32, #tpu.memory_space<vmem>>, vector<1x256x3xf32>
    %10 = vector.shape_cast %9 : vector<1x256x3xf32> to vector<256x3xf32>
    %11 = vector.extract_strided_slice %10 {offsets = [0, 0], sizes = [256, 1], strides = [1, 1]} : vector<256x3xf32> to vector<256x1xf32>
    %12 = vector.extract_strided_slice %8 {offsets = [0, 0], sizes = [1, 256], strides = [1, 1]} : vector<3x256xf32> to vector<1x256xf32>
    %13 = vector.broadcast %11 : vector<256x1xf32> to vector<256x256xf32>
    %14 = vector.broadcast %12 : vector<1x256xf32> to vector<256x256xf32>
    %15 = arith.mulf %13, %14 : vector<256x256xf32>
    %16 = vector.extract_strided_slice %10 {offsets = [0, 1], sizes = [256, 1], strides = [1, 1]} : vector<256x3xf32> to vector<256x1xf32>
    %17 = vector.extract_strided_slice %8 {offsets = [1, 0], sizes = [1, 256], strides = [1, 1]} : vector<3x256xf32> to vector<1x256xf32>
    %18 = vector.broadcast %16 : vector<256x1xf32> to vector<256x256xf32>
    %19 = vector.broadcast %17 : vector<1x256xf32> to vector<256x256xf32>
    %20 = arith.mulf %18, %19 : vector<256x256xf32>
    %21 = arith.addf %15, %20 : vector<256x256xf32>
    %22 = vector.extract_strided_slice %10 {offsets = [0, 2], sizes = [256, 1], strides = [1, 1]} : vector<256x3xf32> to vector<256x1xf32>
    %23 = vector.extract_strided_slice %8 {offsets = [2, 0], sizes = [1, 256], strides = [1, 1]} : vector<3x256xf32> to vector<1x256xf32>
    %24 = vector.broadcast %22 : vector<256x1xf32> to vector<256x256xf32>
    %25 = vector.broadcast %23 : vector<1x256xf32> to vector<256x256xf32>
    %26 = arith.mulf %24, %25 : vector<256x256xf32>
    %27 = arith.addf %21, %26 : vector<256x256xf32>
    %c0_10 = arith.constant 0 : index
    %c0_11 = arith.constant 0 : index
    %c0_12 = arith.constant 0 : index
    %28 = vector.load %arg5[%c0_10, %c0_11, %c0_12] : memref<4x256x1xf32, #tpu.memory_space<vmem>>, vector<1x256x1xf32>
    %29 = vector.shape_cast %28 : vector<1x256x1xf32> to vector<256x1xf32>
    %30 = vector.broadcast %29 : vector<256x1xf32> to vector<256x256xf32>
    %31 = arith.addf %27, %30 : vector<256x256xf32>
    %cst_13 = arith.constant 0.000000e+00 : f32
    %32 = vector.broadcast %cst_13 : f32 to vector<256x256xf32>
    %33 = arith.cmpf ogt, %31, %32 : vector<256x256xf32>
    %cst_14 = arith.constant 0.00999999977 : f32
    %34 = vector.broadcast %cst_14 : f32 to vector<256x256xf32>
    %35 = arith.mulf %34, %31 : vector<256x256xf32>
    %36 = arith.select %33, %31, %35 : vector<256x256xi1>, vector<256x256xf32>
    %c0_15 = arith.constant 0 : index
    %c0_16 = arith.constant 0 : index
    %c0_17 = arith.constant 0 : index
    %37 = vector.load %arg6[%c0_15, %c0_16, %c0_17] : memref<4x64x256xf32, #tpu.memory_space<vmem>>, vector<1x64x256xf32>
    %38 = vector.shape_cast %37 : vector<1x64x256xf32> to vector<64x256xf32>
    %cst_18 = arith.constant dense<0.000000e+00> : vector<64x256xf32>
    %39 = tpu.matmul %38, %36, %cst_18 {dimension_numbers = #tpu.dot_dimension_numbers<[1], [0], [0], [1], [0, 0, 1, 1], [], []>} : vector<64x256xf32>, vector<256x256xf32>, vector<64x256xf32> -> vector<64x256xf32>
    %c0_19 = arith.constant 0 : index
    %c0_20 = arith.constant 0 : index
    %c0_21 = arith.constant 0 : index
    %40 = vector.load %arg7[%c0_19, %c0_20, %c0_21] : memref<4x64x1xf32, #tpu.memory_space<vmem>>, vector<1x64x1xf32>
    %41 = vector.shape_cast %40 : vector<1x64x1xf32> to vector<64x1xf32>
    %42 = vector.broadcast %41 : vector<64x1xf32> to vector<64x256xf32>
    %43 = arith.addf %39, %42 : vector<64x256xf32>
    %cst_22 = arith.constant 0.000000e+00 : f32
    %44 = vector.broadcast %cst_22 : f32 to vector<64x256xf32>
    %45 = arith.cmpf ogt, %43, %44 : vector<64x256xf32>
    %cst_23 = arith.constant 0.00999999977 : f32
    %46 = vector.broadcast %cst_23 : f32 to vector<64x256xf32>
    %47 = arith.mulf %46, %43 : vector<64x256xf32>
    %48 = arith.select %45, %43, %47 : vector<64x256xi1>, vector<64x256xf32>
    %c0_24 = arith.constant 0 : index
    %c0_25 = arith.constant 0 : index
    %c0_26 = arith.constant 0 : index
    %49 = vector.load %arg8[%c0_24, %c0_25, %c0_26] : memref<4x64x1xf32, #tpu.memory_space<vmem>>, vector<1x64x1xf32>
    %50 = vector.shape_cast %49 : vector<1x64x1xf32> to vector<64x1xf32>
    %51 = vector.broadcast %50 : vector<64x1xf32> to vector<64x256xf32>
    %52 = arith.mulf %48, %51 : vector<64x256xf32>
    %cst_27 = arith.constant dense<0.000000e+00> : vector<256xf32>
    %53 = vector.multi_reduction <add>, %52, %cst_27 [0] : vector<64x256xf32> to vector<256xf32>
    %54 = vector.shape_cast %53 : vector<256xf32> to vector<1x256xf32>
    %c0_28 = arith.constant 0 : index
    %c0_29 = arith.constant 0 : index
    %c0_30 = arith.constant 0 : index
    %55 = vector.load %arg9[%c0_28, %c0_29, %c0_30] : memref<4x1x1xf32, #tpu.memory_space<vmem>>, vector<1x1x1xf32>
    %56 = vector.shape_cast %55 : vector<1x1x1xf32> to vector<1x1xf32>
    %57 = vector.broadcast %56 : vector<1x1xf32> to vector<1x256xf32>
    %58 = arith.addf %54, %57 : vector<1x256xf32>
    %59 = arith.negf %58 : vector<1x256xf32>
    %60 = math.exp %59 : vector<1x256xf32>
    %cst_31 = arith.constant 1.000000e+00 : f32
    %61 = vector.broadcast %cst_31 : f32 to vector<1x256xf32>
    %62 = arith.addf %61, %60 : vector<1x256xf32>
    %63 = arith.divf %61, %62 : vector<1x256xf32>
    %c1 = arith.constant 1 : index
    %c0_32 = arith.constant 0 : index
    %c0_33 = arith.constant 0 : index
    %c0_34 = arith.constant 0 : index
    %64 = vector.load %arg3[%c1, %c0_32, %c0_33, %c0_34] : memref<4x1x3x256xf32, #tpu.memory_space<vmem>>, vector<1x1x3x256xf32>
    %65 = vector.shape_cast %64 : vector<1x1x3x256xf32> to vector<3x256xf32>
    %66 = arith.addf %1, %65 : vector<3x256xf32>
    %cst_35 = arith.constant -5.000000e-01 : f32
    %cst_36 = arith.constant 5.000000e-01 : f32
    %67 = vector.broadcast %cst_35 : f32 to vector<3x256xf32>
    %68 = arith.maximumf %67, %66 : vector<3x256xf32>
    %69 = vector.broadcast %cst_36 : f32 to vector<3x256xf32>
    %70 = arith.minimumf %69, %68 : vector<3x256xf32>
    %c1_37 = arith.constant 1 : index
    %c0_38 = arith.constant 0 : index
    %c0_39 = arith.constant 0 : index
    %71 = vector.load %arg4[%c1_37, %c0_38, %c0_39] : memref<4x256x3xf32, #tpu.memory_space<vmem>>, vector<1x256x3xf32>
    %72 = vector.shape_cast %71 : vector<1x256x3xf32> to vector<256x3xf32>
    %73 = vector.extract_strided_slice %72 {offsets = [0, 0], sizes = [256, 1], strides = [1, 1]} : vector<256x3xf32> to vector<256x1xf32>
    %74 = vector.extract_strided_slice %70 {offsets = [0, 0], sizes = [1, 256], strides = [1, 1]} : vector<3x256xf32> to vector<1x256xf32>
    %75 = vector.broadcast %73 : vector<256x1xf32> to vector<256x256xf32>
    %76 = vector.broadcast %74 : vector<1x256xf32> to vector<256x256xf32>
    %77 = arith.mulf %75, %76 : vector<256x256xf32>
    %78 = vector.extract_strided_slice %72 {offsets = [0, 1], sizes = [256, 1], strides = [1, 1]} : vector<256x3xf32> to vector<256x1xf32>
    %79 = vector.extract_strided_slice %70 {offsets = [1, 0], sizes = [1, 256], strides = [1, 1]} : vector<3x256xf32> to vector<1x256xf32>
    %80 = vector.broadcast %78 : vector<256x1xf32> to vector<256x256xf32>
    %81 = vector.broadcast %79 : vector<1x256xf32> to vector<256x256xf32>
    %82 = arith.mulf %80, %81 : vector<256x256xf32>
    %83 = arith.addf %77, %82 : vector<256x256xf32>
    %84 = vector.extract_strided_slice %72 {offsets = [0, 2], sizes = [256, 1], strides = [1, 1]} : vector<256x3xf32> to vector<256x1xf32>
    %85 = vector.extract_strided_slice %70 {offsets = [2, 0], sizes = [1, 256], strides = [1, 1]} : vector<3x256xf32> to vector<1x256xf32>
    %86 = vector.broadcast %84 : vector<256x1xf32> to vector<256x256xf32>
    %87 = vector.broadcast %85 : vector<1x256xf32> to vector<256x256xf32>
    %88 = arith.mulf %86, %87 : vector<256x256xf32>
    %89 = arith.addf %83, %88 : vector<256x256xf32>
    %c1_40 = arith.constant 1 : index
    %c0_41 = arith.constant 0 : index
    %c0_42 = arith.constant 0 : index
    %90 = vector.load %arg5[%c1_40, %c0_41, %c0_42] : memref<4x256x1xf32, #tpu.memory_space<vmem>>, vector<1x256x1xf32>
    %91 = vector.shape_cast %90 : vector<1x256x1xf32> to vector<256x1xf32>
    %92 = vector.broadcast %91 : vector<256x1xf32> to vector<256x256xf32>
    %93 = arith.addf %89, %92 : vector<256x256xf32>
    %cst_43 = arith.constant 0.000000e+00 : f32
    %94 = vector.broadcast %cst_43 : f32 to vector<256x256xf32>
    %95 = arith.cmpf ogt, %93, %94 : vector<256x256xf32>
    %cst_44 = arith.constant 0.00999999977 : f32
    %96 = vector.broadcast %cst_44 : f32 to vector<256x256xf32>
    %97 = arith.mulf %96, %93 : vector<256x256xf32>
    %98 = arith.select %95, %93, %97 : vector<256x256xi1>, vector<256x256xf32>
    %c1_45 = arith.constant 1 : index
    %c0_46 = arith.constant 0 : index
    %c0_47 = arith.constant 0 : index
    %99 = vector.load %arg6[%c1_45, %c0_46, %c0_47] : memref<4x64x256xf32, #tpu.memory_space<vmem>>, vector<1x64x256xf32>
    %100 = vector.shape_cast %99 : vector<1x64x256xf32> to vector<64x256xf32>
    %cst_48 = arith.constant dense<0.000000e+00> : vector<64x256xf32>
    %101 = tpu.matmul %100, %98, %cst_48 {dimension_numbers = #tpu.dot_dimension_numbers<[1], [0], [0], [1], [0, 0, 1, 1], [], []>} : vector<64x256xf32>, vector<256x256xf32>, vector<64x256xf32> -> vector<64x256xf32>
    %c1_49 = arith.constant 1 : index
    %c0_50 = arith.constant 0 : index
    %c0_51 = arith.constant 0 : index
    %102 = vector.load %arg7[%c1_49, %c0_50, %c0_51] : memref<4x64x1xf32, #tpu.memory_space<vmem>>, vector<1x64x1xf32>
    %103 = vector.shape_cast %102 : vector<1x64x1xf32> to vector<64x1xf32>
    %104 = vector.broadcast %103 : vector<64x1xf32> to vector<64x256xf32>
    %105 = arith.addf %101, %104 : vector<64x256xf32>
    %cst_52 = arith.constant 0.000000e+00 : f32
    %106 = vector.broadcast %cst_52 : f32 to vector<64x256xf32>
    %107 = arith.cmpf ogt, %105, %106 : vector<64x256xf32>
    %cst_53 = arith.constant 0.00999999977 : f32
    %108 = vector.broadcast %cst_53 : f32 to vector<64x256xf32>
    %109 = arith.mulf %108, %105 : vector<64x256xf32>
    %110 = arith.select %107, %105, %109 : vector<64x256xi1>, vector<64x256xf32>
    %c1_54 = arith.constant 1 : index
    %c0_55 = arith.constant 0 : index
    %c0_56 = arith.constant 0 : index
    %111 = vector.load %arg8[%c1_54, %c0_55, %c0_56] : memref<4x64x1xf32, #tpu.memory_space<vmem>>, vector<1x64x1xf32>
    %112 = vector.shape_cast %111 : vector<1x64x1xf32> to vector<64x1xf32>
    %113 = vector.broadcast %112 : vector<64x1xf32> to vector<64x256xf32>
    %114 = arith.mulf %110, %113 : vector<64x256xf32>
    %cst_57 = arith.constant dense<0.000000e+00> : vector<256xf32>
    %115 = vector.multi_reduction <add>, %114, %cst_57 [0] : vector<64x256xf32> to vector<256xf32>
    %116 = vector.shape_cast %115 : vector<256xf32> to vector<1x256xf32>
    %c1_58 = arith.constant 1 : index
    %c0_59 = arith.constant 0 : index
    %c0_60 = arith.constant 0 : index
    %117 = vector.load %arg9[%c1_58, %c0_59, %c0_60] : memref<4x1x1xf32, #tpu.memory_space<vmem>>, vector<1x1x1xf32>
    %118 = vector.shape_cast %117 : vector<1x1x1xf32> to vector<1x1xf32>
    %119 = vector.broadcast %118 : vector<1x1xf32> to vector<1x256xf32>
    %120 = arith.addf %116, %119 : vector<1x256xf32>
    %121 = arith.negf %120 : vector<1x256xf32>
    %122 = math.exp %121 : vector<1x256xf32>
    %cst_61 = arith.constant 1.000000e+00 : f32
    %123 = vector.broadcast %cst_61 : f32 to vector<1x256xf32>
    %124 = arith.addf %123, %122 : vector<1x256xf32>
    %125 = arith.divf %123, %124 : vector<1x256xf32>
    %126 = arith.maximumf %63, %125 : vector<1x256xf32>
    %c2 = arith.constant 2 : index
    %c0_62 = arith.constant 0 : index
    %c0_63 = arith.constant 0 : index
    %c0_64 = arith.constant 0 : index
    %127 = vector.load %arg3[%c2, %c0_62, %c0_63, %c0_64] : memref<4x1x3x256xf32, #tpu.memory_space<vmem>>, vector<1x1x3x256xf32>
    %128 = vector.shape_cast %127 : vector<1x1x3x256xf32> to vector<3x256xf32>
    %129 = arith.addf %1, %128 : vector<3x256xf32>
    %cst_65 = arith.constant -5.000000e-01 : f32
    %cst_66 = arith.constant 5.000000e-01 : f32
    %130 = vector.broadcast %cst_65 : f32 to vector<3x256xf32>
    %131 = arith.maximumf %130, %129 : vector<3x256xf32>
    %132 = vector.broadcast %cst_66 : f32 to vector<3x256xf32>
    %133 = arith.minimumf %132, %131 : vector<3x256xf32>
    %c2_67 = arith.constant 2 : index
    %c0_68 = arith.constant 0 : index
    %c0_69 = arith.constant 0 : index
    %134 = vector.load %arg4[%c2_67, %c0_68, %c0_69] : memref<4x256x3xf32, #tpu.memory_space<vmem>>, vector<1x256x3xf32>
    %135 = vector.shape_cast %134 : vector<1x256x3xf32> to vector<256x3xf32>
    %136 = vector.extract_strided_slice %135 {offsets = [0, 0], sizes = [256, 1], strides = [1, 1]} : vector<256x3xf32> to vector<256x1xf32>
    %137 = vector.extract_strided_slice %133 {offsets = [0, 0], sizes = [1, 256], strides = [1, 1]} : vector<3x256xf32> to vector<1x256xf32>
    %138 = vector.broadcast %136 : vector<256x1xf32> to vector<256x256xf32>
    %139 = vector.broadcast %137 : vector<1x256xf32> to vector<256x256xf32>
    %140 = arith.mulf %138, %139 : vector<256x256xf32>
    %141 = vector.extract_strided_slice %135 {offsets = [0, 1], sizes = [256, 1], strides = [1, 1]} : vector<256x3xf32> to vector<256x1xf32>
    %142 = vector.extract_strided_slice %133 {offsets = [1, 0], sizes = [1, 256], strides = [1, 1]} : vector<3x256xf32> to vector<1x256xf32>
    %143 = vector.broadcast %141 : vector<256x1xf32> to vector<256x256xf32>
    %144 = vector.broadcast %142 : vector<1x256xf32> to vector<256x256xf32>
    %145 = arith.mulf %143, %144 : vector<256x256xf32>
    %146 = arith.addf %140, %145 : vector<256x256xf32>
    %147 = vector.extract_strided_slice %135 {offsets = [0, 2], sizes = [256, 1], strides = [1, 1]} : vector<256x3xf32> to vector<256x1xf32>
    %148 = vector.extract_strided_slice %133 {offsets = [2, 0], sizes = [1, 256], strides = [1, 1]} : vector<3x256xf32> to vector<1x256xf32>
    %149 = vector.broadcast %147 : vector<256x1xf32> to vector<256x256xf32>
    %150 = vector.broadcast %148 : vector<1x256xf32> to vector<256x256xf32>
    %151 = arith.mulf %149, %150 : vector<256x256xf32>
    %152 = arith.addf %146, %151 : vector<256x256xf32>
    %c2_70 = arith.constant 2 : index
    %c0_71 = arith.constant 0 : index
    %c0_72 = arith.constant 0 : index
    %153 = vector.load %arg5[%c2_70, %c0_71, %c0_72] : memref<4x256x1xf32, #tpu.memory_space<vmem>>, vector<1x256x1xf32>
    %154 = vector.shape_cast %153 : vector<1x256x1xf32> to vector<256x1xf32>
    %155 = vector.broadcast %154 : vector<256x1xf32> to vector<256x256xf32>
    %156 = arith.addf %152, %155 : vector<256x256xf32>
    %cst_73 = arith.constant 0.000000e+00 : f32
    %157 = vector.broadcast %cst_73 : f32 to vector<256x256xf32>
    %158 = arith.cmpf ogt, %156, %157 : vector<256x256xf32>
    %cst_74 = arith.constant 0.00999999977 : f32
    %159 = vector.broadcast %cst_74 : f32 to vector<256x256xf32>
    %160 = arith.mulf %159, %156 : vector<256x256xf32>
    %161 = arith.select %158, %156, %160 : vector<256x256xi1>, vector<256x256xf32>
    %c2_75 = arith.constant 2 : index
    %c0_76 = arith.constant 0 : index
    %c0_77 = arith.constant 0 : index
    %162 = vector.load %arg6[%c2_75, %c0_76, %c0_77] : memref<4x64x256xf32, #tpu.memory_space<vmem>>, vector<1x64x256xf32>
    %163 = vector.shape_cast %162 : vector<1x64x256xf32> to vector<64x256xf32>
    %cst_78 = arith.constant dense<0.000000e+00> : vector<64x256xf32>
    %164 = tpu.matmul %163, %161, %cst_78 {dimension_numbers = #tpu.dot_dimension_numbers<[1], [0], [0], [1], [0, 0, 1, 1], [], []>} : vector<64x256xf32>, vector<256x256xf32>, vector<64x256xf32> -> vector<64x256xf32>
    %c2_79 = arith.constant 2 : index
    %c0_80 = arith.constant 0 : index
    %c0_81 = arith.constant 0 : index
    %165 = vector.load %arg7[%c2_79, %c0_80, %c0_81] : memref<4x64x1xf32, #tpu.memory_space<vmem>>, vector<1x64x1xf32>
    %166 = vector.shape_cast %165 : vector<1x64x1xf32> to vector<64x1xf32>
    %167 = vector.broadcast %166 : vector<64x1xf32> to vector<64x256xf32>
    %168 = arith.addf %164, %167 : vector<64x256xf32>
    %cst_82 = arith.constant 0.000000e+00 : f32
    %169 = vector.broadcast %cst_82 : f32 to vector<64x256xf32>
    %170 = arith.cmpf ogt, %168, %169 : vector<64x256xf32>
    %cst_83 = arith.constant 0.00999999977 : f32
    %171 = vector.broadcast %cst_83 : f32 to vector<64x256xf32>
    %172 = arith.mulf %171, %168 : vector<64x256xf32>
    %173 = arith.select %170, %168, %172 : vector<64x256xi1>, vector<64x256xf32>
    %c2_84 = arith.constant 2 : index
    %c0_85 = arith.constant 0 : index
    %c0_86 = arith.constant 0 : index
    %174 = vector.load %arg8[%c2_84, %c0_85, %c0_86] : memref<4x64x1xf32, #tpu.memory_space<vmem>>, vector<1x64x1xf32>
    %175 = vector.shape_cast %174 : vector<1x64x1xf32> to vector<64x1xf32>
    %176 = vector.broadcast %175 : vector<64x1xf32> to vector<64x256xf32>
    %177 = arith.mulf %173, %176 : vector<64x256xf32>
    %cst_87 = arith.constant dense<0.000000e+00> : vector<256xf32>
    %178 = vector.multi_reduction <add>, %177, %cst_87 [0] : vector<64x256xf32> to vector<256xf32>
    %179 = vector.shape_cast %178 : vector<256xf32> to vector<1x256xf32>
    %c2_88 = arith.constant 2 : index
    %c0_89 = arith.constant 0 : index
    %c0_90 = arith.constant 0 : index
    %180 = vector.load %arg9[%c2_88, %c0_89, %c0_90] : memref<4x1x1xf32, #tpu.memory_space<vmem>>, vector<1x1x1xf32>
    %181 = vector.shape_cast %180 : vector<1x1x1xf32> to vector<1x1xf32>
    %182 = vector.broadcast %181 : vector<1x1xf32> to vector<1x256xf32>
    %183 = arith.addf %179, %182 : vector<1x256xf32>
    %184 = arith.negf %183 : vector<1x256xf32>
    %185 = math.exp %184 : vector<1x256xf32>
    %cst_91 = arith.constant 1.000000e+00 : f32
    %186 = vector.broadcast %cst_91 : f32 to vector<1x256xf32>
    %187 = arith.addf %186, %185 : vector<1x256xf32>
    %188 = arith.divf %186, %187 : vector<1x256xf32>
    %189 = arith.maximumf %126, %188 : vector<1x256xf32>
    %c3 = arith.constant 3 : index
    %c0_92 = arith.constant 0 : index
    %c0_93 = arith.constant 0 : index
    %c0_94 = arith.constant 0 : index
    %190 = vector.load %arg3[%c3, %c0_92, %c0_93, %c0_94] : memref<4x1x3x256xf32, #tpu.memory_space<vmem>>, vector<1x1x3x256xf32>
    %191 = vector.shape_cast %190 : vector<1x1x3x256xf32> to vector<3x256xf32>
    %192 = arith.addf %1, %191 : vector<3x256xf32>
    %cst_95 = arith.constant -5.000000e-01 : f32
    %cst_96 = arith.constant 5.000000e-01 : f32
    %193 = vector.broadcast %cst_95 : f32 to vector<3x256xf32>
    %194 = arith.maximumf %193, %192 : vector<3x256xf32>
    %195 = vector.broadcast %cst_96 : f32 to vector<3x256xf32>
    %196 = arith.minimumf %195, %194 : vector<3x256xf32>
    %c3_97 = arith.constant 3 : index
    %c0_98 = arith.constant 0 : index
    %c0_99 = arith.constant 0 : index
    %197 = vector.load %arg4[%c3_97, %c0_98, %c0_99] : memref<4x256x3xf32, #tpu.memory_space<vmem>>, vector<1x256x3xf32>
    %198 = vector.shape_cast %197 : vector<1x256x3xf32> to vector<256x3xf32>
    %199 = vector.extract_strided_slice %198 {offsets = [0, 0], sizes = [256, 1], strides = [1, 1]} : vector<256x3xf32> to vector<256x1xf32>
    %200 = vector.extract_strided_slice %196 {offsets = [0, 0], sizes = [1, 256], strides = [1, 1]} : vector<3x256xf32> to vector<1x256xf32>
    %201 = vector.broadcast %199 : vector<256x1xf32> to vector<256x256xf32>
    %202 = vector.broadcast %200 : vector<1x256xf32> to vector<256x256xf32>
    %203 = arith.mulf %201, %202 : vector<256x256xf32>
    %204 = vector.extract_strided_slice %198 {offsets = [0, 1], sizes = [256, 1], strides = [1, 1]} : vector<256x3xf32> to vector<256x1xf32>
    %205 = vector.extract_strided_slice %196 {offsets = [1, 0], sizes = [1, 256], strides = [1, 1]} : vector<3x256xf32> to vector<1x256xf32>
    %206 = vector.broadcast %204 : vector<256x1xf32> to vector<256x256xf32>
    %207 = vector.broadcast %205 : vector<1x256xf32> to vector<256x256xf32>
    %208 = arith.mulf %206, %207 : vector<256x256xf32>
    %209 = arith.addf %203, %208 : vector<256x256xf32>
    %210 = vector.extract_strided_slice %198 {offsets = [0, 2], sizes = [256, 1], strides = [1, 1]} : vector<256x3xf32> to vector<256x1xf32>
    %211 = vector.extract_strided_slice %196 {offsets = [2, 0], sizes = [1, 256], strides = [1, 1]} : vector<3x256xf32> to vector<1x256xf32>
    %212 = vector.broadcast %210 : vector<256x1xf32> to vector<256x256xf32>
    %213 = vector.broadcast %211 : vector<1x256xf32> to vector<256x256xf32>
    %214 = arith.mulf %212, %213 : vector<256x256xf32>
    %215 = arith.addf %209, %214 : vector<256x256xf32>
    %c3_100 = arith.constant 3 : index
    %c0_101 = arith.constant 0 : index
    %c0_102 = arith.constant 0 : index
    %216 = vector.load %arg5[%c3_100, %c0_101, %c0_102] : memref<4x256x1xf32, #tpu.memory_space<vmem>>, vector<1x256x1xf32>
    %217 = vector.shape_cast %216 : vector<1x256x1xf32> to vector<256x1xf32>
    %218 = vector.broadcast %217 : vector<256x1xf32> to vector<256x256xf32>
    %219 = arith.addf %215, %218 : vector<256x256xf32>
    %cst_103 = arith.constant 0.000000e+00 : f32
    %220 = vector.broadcast %cst_103 : f32 to vector<256x256xf32>
    %221 = arith.cmpf ogt, %219, %220 : vector<256x256xf32>
    %cst_104 = arith.constant 0.00999999977 : f32
    %222 = vector.broadcast %cst_104 : f32 to vector<256x256xf32>
    %223 = arith.mulf %222, %219 : vector<256x256xf32>
    %224 = arith.select %221, %219, %223 : vector<256x256xi1>, vector<256x256xf32>
    %c3_105 = arith.constant 3 : index
    %c0_106 = arith.constant 0 : index
    %c0_107 = arith.constant 0 : index
    %225 = vector.load %arg6[%c3_105, %c0_106, %c0_107] : memref<4x64x256xf32, #tpu.memory_space<vmem>>, vector<1x64x256xf32>
    %226 = vector.shape_cast %225 : vector<1x64x256xf32> to vector<64x256xf32>
    %cst_108 = arith.constant dense<0.000000e+00> : vector<64x256xf32>
    %227 = tpu.matmul %226, %224, %cst_108 {dimension_numbers = #tpu.dot_dimension_numbers<[1], [0], [0], [1], [0, 0, 1, 1], [], []>} : vector<64x256xf32>, vector<256x256xf32>, vector<64x256xf32> -> vector<64x256xf32>
    %c3_109 = arith.constant 3 : index
    %c0_110 = arith.constant 0 : index
    %c0_111 = arith.constant 0 : index
    %228 = vector.load %arg7[%c3_109, %c0_110, %c0_111] : memref<4x64x1xf32, #tpu.memory_space<vmem>>, vector<1x64x1xf32>
    %229 = vector.shape_cast %228 : vector<1x64x1xf32> to vector<64x1xf32>
    %230 = vector.broadcast %229 : vector<64x1xf32> to vector<64x256xf32>
    %231 = arith.addf %227, %230 : vector<64x256xf32>
    %cst_112 = arith.constant 0.000000e+00 : f32
    %232 = vector.broadcast %cst_112 : f32 to vector<64x256xf32>
    %233 = arith.cmpf ogt, %231, %232 : vector<64x256xf32>
    %cst_113 = arith.constant 0.00999999977 : f32
    %234 = vector.broadcast %cst_113 : f32 to vector<64x256xf32>
    %235 = arith.mulf %234, %231 : vector<64x256xf32>
    %236 = arith.select %233, %231, %235 : vector<64x256xi1>, vector<64x256xf32>
    %c3_114 = arith.constant 3 : index
    %c0_115 = arith.constant 0 : index
    %c0_116 = arith.constant 0 : index
    %237 = vector.load %arg8[%c3_114, %c0_115, %c0_116] : memref<4x64x1xf32, #tpu.memory_space<vmem>>, vector<1x64x1xf32>
    %238 = vector.shape_cast %237 : vector<1x64x1xf32> to vector<64x1xf32>
    %239 = vector.broadcast %238 : vector<64x1xf32> to vector<64x256xf32>
    %240 = arith.mulf %236, %239 : vector<64x256xf32>
    %cst_117 = arith.constant dense<0.000000e+00> : vector<256xf32>
    %241 = vector.multi_reduction <add>, %240, %cst_117 [0] : vector<64x256xf32> to vector<256xf32>
    %242 = vector.shape_cast %241 : vector<256xf32> to vector<1x256xf32>
    %c3_118 = arith.constant 3 : index
    %c0_119 = arith.constant 0 : index
    %c0_120 = arith.constant 0 : index
    %243 = vector.load %arg9[%c3_118, %c0_119, %c0_120] : memref<4x1x1xf32, #tpu.memory_space<vmem>>, vector<1x1x1xf32>
    %244 = vector.shape_cast %243 : vector<1x1x1xf32> to vector<1x1xf32>
    %245 = vector.broadcast %244 : vector<1x1xf32> to vector<1x256xf32>
    %246 = arith.addf %242, %245 : vector<1x256xf32>
    %247 = arith.negf %246 : vector<1x256xf32>
    %248 = math.exp %247 : vector<1x256xf32>
    %cst_121 = arith.constant 1.000000e+00 : f32
    %249 = vector.broadcast %cst_121 : f32 to vector<1x256xf32>
    %250 = arith.addf %249, %248 : vector<1x256xf32>
    %251 = arith.divf %249, %250 : vector<1x256xf32>
    %252 = arith.maximumf %189, %251 : vector<1x256xf32>
    %253 = tpu.concatenate %63, %125, %188, %251 in 0 : vector<1x256xf32>, vector<1x256xf32>, vector<1x256xf32>, vector<1x256xf32> -> vector<4x256xf32>
    %c0_122 = arith.constant 0 : index
    %c0_123 = arith.constant 0 : index
    %c0_124 = arith.constant 0 : index
    %254 = vector.load %arg10[%c0_122, %c0_123, %c0_124] : memref<1x4x256xf32, #tpu.memory_space<vmem>>, vector<1x4x256xf32>
    %255 = vector.shape_cast %254 : vector<1x4x256xf32> to vector<4x256xf32>
    %256 = vector.shape_cast %253 : vector<4x256xf32> to vector<1x4x256xf32>
    tpu.vector_store %arg10[%c0_122, %c0_123, %c0_124], %256 {strides = array<i32>} : memref<1x4x256xf32, #tpu.memory_space<vmem>>, vector<1x4x256xf32>,
    %c0_125 = arith.constant 0 : index
    %c0_126 = arith.constant 0 : index
    %c0_127 = arith.constant 0 : index
    %257 = vector.load %arg11[%c0_125, %c0_126, %c0_127] : memref<1x1x256xf32, #tpu.memory_space<vmem>>, vector<1x1x256xf32>
    %258 = vector.shape_cast %257 : vector<1x1x256xf32> to vector<1x256xf32>
    %259 = vector.shape_cast %252 : vector<1x256xf32> to vector<1x1x256xf32>
    tpu.vector_store %arg11[%c0_125, %c0_126, %c0_127], %259 {strides = array<i32>} : memref<1x1x256xf32, #tpu.memory_space<vmem>>, vector<1x1x256xf32>,
    return
  }
  func.func @transform_0(%arg0: i32, %arg1: i32) -> (i32, i32, i32) {
    %c0_i32 = arith.constant 0 : i32
    %c0_i32_0 = arith.constant 0 : i32
    return %arg0, %c0_i32, %arg1 : i32, i32, i32
  }
  func.func @transform_1(%arg0: i32, %arg1: i32) -> (i32, i32, i32, i32) {
    %c0_i32 = arith.constant 0 : i32
    %c0_i32_0 = arith.constant 0 : i32
    %c0_i32_1 = arith.constant 0 : i32
    return %c0_i32, %arg0, %c0_i32_0, %arg1 : i32, i32, i32, i32
  }
  func.func @transform_2(%arg0: i32, %arg1: i32) -> (i32, i32, i32) {
    %c0_i32 = arith.constant 0 : i32
    %c0_i32_0 = arith.constant 0 : i32
    %c0_i32_1 = arith.constant 0 : i32
    %c0_i32_2 = arith.constant 0 : i32
    return %c0_i32, %c0_i32_0, %c0_i32_1 : i32, i32, i32
  }
  func.func @transform_3(%arg0: i32, %arg1: i32) -> (i32, i32, i32) {
    %c0_i32 = arith.constant 0 : i32
    %c0_i32_0 = arith.constant 0 : i32
    %c0_i32_1 = arith.constant 0 : i32
    %c0_i32_2 = arith.constant 0 : i32
    return %c0_i32, %c0_i32_0, %c0_i32_1 : i32, i32, i32
  }
  func.func @transform_4(%arg0: i32, %arg1: i32) -> (i32, i32, i32) {
    %c0_i32 = arith.constant 0 : i32
    %c0_i32_0 = arith.constant 0 : i32
    %c0_i32_1 = arith.constant 0 : i32
    %c0_i32_2 = arith.constant 0 : i32
    return %c0_i32, %c0_i32_0, %c0_i32_1 : i32, i32, i32
  }
  func.func @transform_5(%arg0: i32, %arg1: i32) -> (i32, i32, i32) {
    %c0_i32 = arith.constant 0 : i32
    %c0_i32_0 = arith.constant 0 : i32
    %c0_i32_1 = arith.constant 0 : i32
    %c0_i32_2 = arith.constant 0 : i32
    return %c0_i32, %c0_i32_0, %c0_i32_1 : i32, i32, i32
  }
  func.func @transform_6(%arg0: i32, %arg1: i32) -> (i32, i32, i32) {
    %c0_i32 = arith.constant 0 : i32
    %c0_i32_0 = arith.constant 0 : i32
    %c0_i32_1 = arith.constant 0 : i32
    %c0_i32_2 = arith.constant 0 : i32
    return %c0_i32, %c0_i32_0, %c0_i32_1 : i32, i32, i32
  }
  func.func @transform_7(%arg0: i32, %arg1: i32) -> (i32, i32, i32) {
    %c0_i32 = arith.constant 0 : i32
    %c0_i32_0 = arith.constant 0 : i32
    %c0_i32_1 = arith.constant 0 : i32
    %c0_i32_2 = arith.constant 0 : i32
    return %c0_i32, %c0_i32_0, %c0_i32_1 : i32, i32, i32
  }
  func.func @transform_8(%arg0: i32, %arg1: i32) -> (i32, i32, i32) {
    %c0_i32 = arith.constant 0 : i32
    %c0_i32_0 = arith.constant 0 : i32
    return %arg0, %c0_i32, %arg1 : i32, i32, i32
  }
  func.func @transform_9(%arg0: i32, %arg1: i32) -> (i32, i32, i32) {
    %c0_i32 = arith.constant 0 : i32
    %c0_i32_0 = arith.constant 0 : i32
    return %arg0, %c0_i32, %arg1 : i32, i32, i32
  }
}

</mosaic_0001>

<llo_original>
// kernel: tpu_custom_call.1
$region0: #{tpu_custom_call.1}
  #allocation0 [shape = 'u32[]', space=smem, size = 0x4, offset = 0x4, fixed_abs, tag = 'smem constant byte address 0x4 - core index']
  #allocation1 [shape = 'u32[144,128]{1,0:T(1,128)}', space=vmem, size = 0x12000, scoped, tag = 'internal scratch']
  %s0 = inlined_call_operand.vmem [shape: f32[2,3,512], index: 0, kind: input, shape index: {}]
  %s1 = inlined_call_operand.vmem [shape: f32[4,2,3,512], index: 1, kind: input, shape index: {}]
  %s2 = inlined_call_operand.vmem [shape: f32[4,256,3], index: 2, kind: input, shape index: {}]
  %s3 = inlined_call_operand.vmem [shape: f32[4,256,1], index: 3, kind: input, shape index: {}]
  %s4 = inlined_call_operand.vmem [shape: f32[4,64,256], index: 4, kind: input, shape index: {}]
  %s5 = inlined_call_operand.vmem [shape: f32[4,64,1], index: 5, kind: input, shape index: {}]
  %s6 = inlined_call_operand.vmem [shape: f32[4,64,1], index: 6, kind: input, shape index: {}]
  %s7 = inlined_call_operand.vmem [shape: f32[4,1,1], index: 7, kind: input, shape index: {}]
  %s8 = inlined_call_operand.hbm [shape: f32[2,4,512], index: 8, kind: output, shape index: {0}]
  %s9 = inlined_call_operand.hbm [shape: f32[2,1,512], index: 9, kind: output, shape index: {1}]
  %10 = xla_tuple %s8, %s9
  %s11 = sld [smem:[#allocation0]]
  $region111: #{tpu_custom_call.1} parent=0
    _
  %s13 = ssub.s32 1, %s11
  %s14 = scalar_select 0, %s13, %s11
  $region1: #{tpu_custom_call.1} parent=0
    #allocation2 [shape = 'u8[32768]{0}', space=vmem, size = 0x8000, scoped, tag = 'input window, operand 1']
    #allocation3 [shape = 'u8[8192]{0}', space=vmem, size = 0x2000, scoped, tag = 'output window, operand 0']
    #allocation4 [shape = 's32[2]{0}', space=sflag, size = 0x8, scoped, tag = 'scoped memory for tpu_custom_call.1']
    #allocation5 [shape = 'u8[2048]{0}', space=vmem, size = 0x800, scoped, tag = 'output window, operand 1']
    #allocation6 [shape = 's32[2]{0}', space=sflag, size = 0x8, scoped, tag = 'scoped memory for tpu_custom_call.1']
    %15 = vsyncpa [#allocation4], 0
    %s16 = scalar_lea.sflag [#allocation4], 1
    %17 = vsyncpa %s16, 0
    %18 = vsyncpa [#allocation6], 0
    %s19 = scalar_lea.sflag [#allocation6], 1
    %20 = vsyncpa %s19, 0
    loop: start=0, step=1, limit=6
    $region2: #{tpu_custom_call.1} parent=1 // loop_pre_header
      _
    $region3: #{tpu_custom_call.1} parent=1 // loop_header
      %s22 = sphi 0, %s26
      %p23 = scmp.ge.s32.totalorder %s22, 6
      %s29 = sphi 0, %s41
      %s30 = sphi 0, %s37
      %s31 = sphi 0, %s29
      %s32 = sphi 0, %s30
      %s33 = sphi 0, %s31
      %s34 = sphi 0, %s32
      %s46 = sphi 0, %s48
      %s49 = sphi 0, %s46
      %s50 = sphi 0, %s49
      %s66 = sphi 0, %s50
      %s74 = sphi 0, %s76
      %s77 = sphi 0, %s74
      %s78 = sphi 0, %s77
      %s94 = sphi 0, %s78
      %s98 = sphi 0, %s98
      %s100 = sphi 0, %s98
      %s101 = sphi 0, %s100
      %s115 = sphi 0, %s101
      %s119 = sphi 0, %s119
      %s121 = sphi 0, %s119
      %s122 = sphi 0, %s121
      %s136 = sphi 0, %s122
      %s140 = sphi 0, %s140
      %s142 = sphi 0, %s140
      %s143 = sphi 0, %s142
      %s157 = sphi 0, %s143
      %s161 = sphi 0, %s161
      %s163 = sphi 0, %s161
      %s164 = sphi 0, %s163
      %s178 = sphi 0, %s164
      %s182 = sphi 0, %s182
      %s184 = sphi 0, %s182
      %s185 = sphi 0, %s184
      %s199 = sphi 0, %s185
      %s203 = sphi 0, %s203
      %s205 = sphi 0, %s203
      %s206 = sphi 0, %s205
      %s220 = sphi 0, %s206
      %s228 = sphi 0, %s230
      %s231 = sphi 0, %s228
      %s232 = sphi 0, %s231
      %s248 = sphi 0, %s232
      %s256 = sphi 0, %s258
      %s259 = sphi 0, %s256
      %s260 = sphi 0, %s259
      %s276 = sphi 0, %s260
    $region4: #{tpu_custom_call.1} parent=1 // loop_header_branch
      %25 = sbr.rel (%p23) target = $region8
    $region5: #{tpu_custom_call.1} parent=1 // loop_body
      %s27 = ssub.s32 %s22, 1
      %s28 = ssub.s32 %s22, 2
      %s35 = sadd.s32 1, %s30
      %p36 = scmp.ge.s32.totalorder %s35, 2
      %s37 = scalar_select %p36, 0, %s35
      %s38 = sadd.s32 1, %s29
      %s39 = scalar_select %p36, %s38, %s29
      %p40 = scmp.ge.s32.totalorder %s39, 2
      %s41 = scalar_select %p40, 0, %s39
      %s42 = ssub.s32 %s29, %s41
      %s43 = ssub.s32 %s30, %s37
      %s44 = sor.u32 %s42, %s43
      %p45 = scmp.eq.s32.totalorder %s44, 0
      %s47 = sadd.s32 %s46, 1
      %s48 = scalar_select %p45, %s46, %s47
      %p51 = pneg %p45
      %p52 = scmp.eq.s32.totalorder %s22, 3
      %p53 = por %p51, %p52
      %p54 = scmp.ne.s32.totalorder %s46, %s49
      %p55 = scmp.eq.s32.totalorder %s22, 0
      %p56 = por %p54, %p55
      %p57 = scmp.ne.s32.totalorder %s46, %s49
      %p58 = scmp.eq.s32.totalorder %s27, 3
      %p59 = por %p57, %p58
      %p60 = scmp.ne.s32.totalorder %s49, %s50
      %p61 = scmp.eq.s32.totalorder %s27, 0
      %p62 = por %p60, %p61
      %p63 = scmp.ne.s32.totalorder %s49, %s50
      %p64 = scmp.eq.s32.totalorder %s28, 3
      %p65 = por %p63, %p64
      %p67 = scmp.ne.s32.totalorder %s50, %s66
      %p68 = scmp.eq.s32.totalorder %s28, 0
      %p69 = por %p67, %p68
      %s70 = ssub.s32 %s29, %s41
      %s71 = ssub.s32 %s30, %s37
      %s72 = sor.u32 %s70, %s71
      %p73 = scmp.eq.s32.totalorder %s72, 0
      %s75 = sadd.s32 %s74, 1
      %s76 = scalar_select %p73, %s74, %s75
      %p79 = pneg %p73
      %p80 = scmp.eq.s32.totalorder %s22, 3
      %p81 = por %p79, %p80
      %p82 = scmp.ne.s32.totalorder %s74, %s77
      %p83 = scmp.eq.s32.totalorder %s22, 0
      %p84 = por %p82, %p83
      %p85 = scmp.ne.s32.totalorder %s74, %s77
      %p86 = scmp.eq.s32.totalorder %s27, 3
      %p87 = por %p85, %p86
      %p88 = scmp.ne.s32.totalorder %s77, %s78
      %p89 = scmp.eq.s32.totalorder %s27, 0
      %p90 = por %p88, %p89
      %p91 = scmp.ne.s32.totalorder %s77, %s78
      %p92 = scmp.eq.s32.totalorder %s28, 3
      %p93 = por %p91, %p92
      %p95 = scmp.ne.s32.totalorder %s78, %s94
      %p96 = scmp.eq.s32.totalorder %s28, 0
      %p97 = por %p95, %p96
      %s99 = sadd.s32 %s98, 1
      %p102 = scmp.eq.s32.totalorder %s22, 3
      %p103 = scmp.ne.s32.totalorder %s98, %s100
      %p104 = scmp.eq.s32.totalorder %s22, 0
      %p105 = por %p103, %p104
      %p106 = scmp.ne.s32.totalorder %s98, %s100
      %p107 = scmp.eq.s32.totalorder %s27, 3
      %p108 = por %p106, %p107
      %p109 = scmp.ne.s32.totalorder %s100, %s101
      %p110 = scmp.eq.s32.totalorder %s27, 0
      %p111 = por %p109, %p110
      %p112 = scmp.ne.s32.totalorder %s100, %s101
      %p113 = scmp.eq.s32.totalorder %s28, 3
      %p114 = por %p112, %p113
      %p116 = scmp.ne.s32.totalorder %s101, %s115
      %p117 = scmp.eq.s32.totalorder %s28, 0
      %p118 = por %p116, %p117
      %s120 = sadd.s32 %s119, 1
      %p123 = scmp.eq.s32.totalorder %s22, 3
      %p124 = scmp.ne.s32.totalorder %s119, %s121
      %p125 = scmp.eq.s32.totalorder %s22, 0
      %p126 = por %p124, %p125
      %p127 = scmp.ne.s32.totalorder %s119, %s121
      %p128 = scmp.eq.s32.totalorder %s27, 3
      %p129 = por %p127, %p128
      %p130 = scmp.ne.s32.totalorder %s121, %s122
      %p131 = scmp.eq.s32.totalorder %s27, 0
      %p132 = por %p130, %p131
      %p133 = scmp.ne.s32.totalorder %s121, %s122
      %p134 = scmp.eq.s32.totalorder %s28, 3
      %p135 = por %p133, %p134
      %p137 = scmp.ne.s32.totalorder %s122, %s136
      %p138 = scmp.eq.s32.totalorder %s28, 0
      %p139 = por %p137, %p138
      %s141 = sadd.s32 %s140, 1
      %p144 = scmp.eq.s32.totalorder %s22, 3
      %p145 = scmp.ne.s32.totalorder %s140, %s142
      %p146 = scmp.eq.s32.totalorder %s22, 0
      %p147 = por %p145, %p146
      %p148 = scmp.ne.s32.totalorder %s140, %s142
      %p149 = scmp.eq.s32.totalorder %s27, 3
      %p150 = por %p148, %p149
      %p151 = scmp.ne.s32.totalorder %s142, %s143
      %p152 = scmp.eq.s32.totalorder %s27, 0
      %p153 = por %p151, %p152
      %p154 = scmp.ne.s32.totalorder %s142, %s143
      %p155 = scmp.eq.s32.totalorder %s28, 3
      %p156 = por %p154, %p155
      %p158 = scmp.ne.s32.totalorder %s143, %s157
      %p159 = scmp.eq.s32.totalorder %s28, 0
      %p160 = por %p158, %p159
      %s162 = sadd.s32 %s161, 1
      %p165 = scmp.eq.s32.totalorder %s22, 3
      %p166 = scmp.ne.s32.totalorder %s161, %s163
      %p167 = scmp.eq.s32.totalorder %s22, 0
      %p168 = por %p166, %p167
      %p169 = scmp.ne.s32.totalorder %s161, %s163
      %p170 = scmp.eq.s32.totalorder %s27, 3
      %p171 = por %p169, %p170
      %p172 = scmp.ne.s32.totalorder %s163, %s164
      %p173 = scmp.eq.s32.totalorder %s27, 0
      %p174 = por %p172, %p173
      %p175 = scmp.ne.s32.totalorder %s163, %s164
      %p176 = scmp.eq.s32.totalorder %s28, 3
      %p177 = por %p175, %p176
      %p179 = scmp.ne.s32.totalorder %s164, %s178
      %p180 = scmp.eq.s32.totalorder %s28, 0
      %p181 = por %p179, %p180
      %s183 = sadd.s32 %s182, 1
      %p186 = scmp.eq.s32.totalorder %s22, 3
      %p187 = scmp.ne.s32.totalorder %s182, %s184
      %p188 = scmp.eq.s32.totalorder %s22, 0
      %p189 = por %p187, %p188
      %p190 = scmp.ne.s32.totalorder %s182, %s184
      %p191 = scmp.eq.s32.totalorder %s27, 3
      %p192 = por %p190, %p191
      %p193 = scmp.ne.s32.totalorder %s184, %s185
      %p194 = scmp.eq.s32.totalorder %s27, 0
      %p195 = por %p193, %p194
      %p196 = scmp.ne.s32.totalorder %s184, %s185
      %p197 = scmp.eq.s32.totalorder %s28, 3
      %p198 = por %p196, %p197
      %p200 = scmp.ne.s32.totalorder %s185, %s199
      %p201 = scmp.eq.s32.totalorder %s28, 0
      %p202 = por %p200, %p201
      %s204 = sadd.s32 %s203, 1
      %p207 = scmp.eq.s32.totalorder %s22, 3
      %p208 = scmp.ne.s32.totalorder %s203, %s205
      %p209 = scmp.eq.s32.totalorder %s22, 0
      %p210 = por %p208, %p209
      %p211 = scmp.ne.s32.totalorder %s203, %s205
      %p212 = scmp.eq.s32.totalorder %s27, 3
      %p213 = por %p211, %p212
      %p214 = scmp.ne.s32.totalorder %s205, %s206
      %p215 = scmp.eq.s32.totalorder %s27, 0
      %p216 = por %p214, %p215
      %p217 = scmp.ne.s32.totalorder %s205, %s206
      %p218 = scmp.eq.s32.totalorder %s28, 3
      %p219 = por %p217, %p218
      %p221 = scmp.ne.s32.totalorder %s206, %s220
      %p222 = scmp.eq.s32.totalorder %s28, 0
      %p223 = por %p221, %p222
      %s224 = ssub.s32 %s29, %s41
      %s225 = ssub.s32 %s30, %s37
      %s226 = sor.u32 %s224, %s225
      %p227 = scmp.eq.s32.totalorder %s226, 0
      %s229 = sadd.s32 %s228, 1
      %s230 = scalar_select %p227, %s228, %s229
      %p233 = pneg %p227
      %p234 = scmp.eq.s32.totalorder %s22, 3
      %p235 = por %p233, %p234
      %p236 = scmp.ne.s32.totalorder %s228, %s231
      %p237 = scmp.eq.s32.totalorder %s22, 0
      %p238 = por %p236, %p237
      %p239 = scmp.ne.s32.totalorder %s228, %s231
      %p240 = scmp.eq.s32.totalorder %s27, 3
      %p241 = por %p239, %p240
      %p242 = scmp.ne.s32.totalorder %s231, %s232
      %p243 = scmp.eq.s32.totalorder %s27, 0
      %p244 = por %p242, %p243
      %p245 = scmp.ne.s32.totalorder %s231, %s232
      %p246 = scmp.eq.s32.totalorder %s28, 3
      %p247 = por %p245, %p246
      %p249 = scmp.ne.s32.totalorder %s232, %s248
      %p250 = scmp.eq.s32.totalorder %s28, 0
      %p251 = por %p249, %p250
      %s252 = ssub.s32 %s29, %s41
      %s253 = ssub.s32 %s30, %s37
      %s254 = sor.u32 %s252, %s253
      %p255 = scmp.eq.s32.totalorder %s254, 0
      %s257 = sadd.s32 %s256, 1
      %s258 = scalar_select %p255, %s256, %s257
      %p261 = pneg %p255
      %p262 = scmp.eq.s32.totalorder %s22, 3
      %p263 = por %p261, %p262
      %p264 = scmp.ne.s32.totalorder %s256, %s259
      %p265 = scmp.eq.s32.totalorder %s22, 0
      %p266 = por %p264, %p265
      %p267 = scmp.ne.s32.totalorder %s256, %s259
      %p268 = scmp.eq.s32.totalorder %s27, 3
      %p269 = por %p267, %p268
      %p270 = scmp.ne.s32.totalorder %s259, %s260
      %p271 = scmp.eq.s32.totalorder %s27, 0
      %p272 = por %p270, %p271
      %p273 = scmp.ne.s32.totalorder %s259, %s260
      %p274 = scmp.eq.s32.totalorder %s28, 3
      %p275 = por %p273, %p274
      %p277 = scmp.ne.s32.totalorder %s260, %s276
      %p278 = scmp.eq.s32.totalorder %s28, 0
      %p279 = por %p277, %p278
      %p280 = scmp.le.s32.totalorder 1, %s22
      %p281 = scmp.lt.s32.totalorder %s22, 5
      %p282 = pnand %p280, %p281
      %p283 = pneg %p282
      // Predicated region
      $region9: #{tpu_custom_call.1} parent=5 // pred_check
        _
      $region10: #{tpu_custom_call.1} parent=5 // pred_check_branch
        %285 = sbr.rel (%p282) target = $region12
      $region11: #{tpu_custom_call.1} parent=5 // pred_region
        %s286 = ssub.s32 %s22, 1
        // Predicated region
        $region13: #{tpu_custom_call.1} parent=11 // pred_check
          %p287 = pneg %p111
        $region14: #{tpu_custom_call.1} parent=11 // pred_check_branch
          %289 = sbr.rel (%p287) target = $region16
        $region15: #{tpu_custom_call.1} parent=11 // pred_region
          _
        $region16: #{tpu_custom_call.1} parent=11 // pred_fallthru
          _
        // Predicated region
        $region17: #{tpu_custom_call.1} parent=11 // pred_check
          %p290 = pneg %p132
        $region18: #{tpu_custom_call.1} parent=11 // pred_check_branch
          %292 = sbr.rel (%p290) target = $region20
        $region19: #{tpu_custom_call.1} parent=11 // pred_region
          _
        $region20: #{tpu_custom_call.1} parent=11 // pred_fallthru
          _
        // Predicated region
        $region21: #{tpu_custom_call.1} parent=11 // pred_check
          %p293 = pneg %p153
        $region22: #{tpu_custom_call.1} parent=11 // pred_check_branch
          %295 = sbr.rel (%p293) target = $region24
        $region23: #{tpu_custom_call.1} parent=11 // pred_region
          _
        $region24: #{tpu_custom_call.1} parent=11 // pred_fallthru
          _
        // Predicated region
        $region25: #{tpu_custom_call.1} parent=11 // pred_check
          %p296 = pneg %p174
        $region26: #{tpu_custom_call.1} parent=11 // pred_check_branch
          %298 = sbr.rel (%p296) target = $region28
        $region27: #{tpu_custom_call.1} parent=11 // pred_region
          _
        $region28: #{tpu_custom_call.1} parent=11 // pred_fallthru
          _
        // Predicated region
        $region29: #{tpu_custom_call.1} parent=11 // pred_check
          %p299 = pneg %p195
        $region30: #{tpu_custom_call.1} parent=11 // pred_check_branch
          %301 = sbr.rel (%p299) target = $region32
        $region31: #{tpu_custom_call.1} parent=11 // pred_region
          _
        $region32: #{tpu_custom_call.1} parent=11 // pred_fallthru
          _
        // Predicated region
        $region33: #{tpu_custom_call.1} parent=11 // pred_check
          %p302 = pneg %p216
        $region34: #{tpu_custom_call.1} parent=11 // pred_check_branch
          %304 = sbr.rel (%p302) target = $region36
        $region35: #{tpu_custom_call.1} parent=11 // pred_region
          _
        $region36: #{tpu_custom_call.1} parent=11 // pred_fallthru
          _
      $region12: #{tpu_custom_call.1} parent=5 // pred_fallthru
        _
      %p305 = scmp.lt.s32.totalorder %s22, 4
      // Predicated region
      $region37: #{tpu_custom_call.1} parent=5 // pred_check
        %p306 = pneg %p305
      $region38: #{tpu_custom_call.1} parent=5 // pred_check_branch
        %308 = sbr.rel (%p306) target = $region40
      $region39: #{tpu_custom_call.1} parent=5 // pred_region
        // Predicated region
        $region41: #{tpu_custom_call.1} parent=39 // pred_check
          %p309 = pneg %p56
        $region42: #{tpu_custom_call.1} parent=39 // pred_check_branch
          %311 = sbr.rel (%p309) target = $region44
        $region43: #{tpu_custom_call.1} parent=39 // pred_region
          %s312 = smul.u32 2, %s30
          %p313 = scmp.lt.s32.totalorder %s29, 1
          %s314 = scalar_select %p313, %s29, 1
          %p315 = scmp.lt.s32.totalorder %s312, 3
          %s316 = scalar_select %p315, %s312, 3
          %s317 = smul.addr %s314, 4
          %s318 = sadd.s32 %s316, %s317
          %s319 = smul.addr %s318, 4
          %s320 = scalar_lea.vmem %s0, %s319
          %s321 = smul.u32 2, %s30
        $region44: #{tpu_custom_call.1} parent=39 // pred_fallthru
          _
        // Predicated region
        $region45: #{tpu_custom_call.1} parent=39 // pred_check
          %p322 = pneg %p84
        $region46: #{tpu_custom_call.1} parent=39 // pred_check_branch
          %324 = sbr.rel (%p322) target = $region48
        $region47: #{tpu_custom_call.1} parent=39 // pred_region
          %s325 = sand.u32 %s74, 1
          %s326 = sand.u32 %s74, 1
          %s327 = smul.addr %s326, 32
          %s328 = scalar_lea.vmem [#allocation2], %s327
          %s329 = smul.u32 2, %s30
          %s330 = smul.addr %s29, 4
          %s331 = sadd.s32 %s329, %s330
          %s332 = smul.addr %s331, 4
          %s333 = scalar_lea.vmem %s1, %s332
          // Predicated region
          $region49: #{tpu_custom_call.1} parent=47 // pred_check
            _
          $region50: #{tpu_custom_call.1} parent=47 // pred_check_branch
            %335 = sbr.rel (0) target = $region52
          $region51: #{tpu_custom_call.1} parent=47 // pred_region
            // Predicated region
            $region53: #{tpu_custom_call.1} parent=51 // pred_check
              _
            $region54: #{tpu_custom_call.1} parent=51 // pred_check_branch
              %337 = sbr.rel (0) target = $region56
            $region55: #{tpu_custom_call.1} parent=51 // pred_region
              // Predicated region
              $region68: #{tpu_custom_call.1} parent=55 // pred_check
                _
              $region69: #{tpu_custom_call.1} parent=55 // pred_check_branch
                %359 = sbr.rel (0) target = $region71
              $region70: #{tpu_custom_call.1} parent=55 // pred_region
                loop: start=0, step=1, limit=1
                $region72: #{tpu_custom_call.1} parent=70 // loop_pre_header
                  _
                $region73: #{tpu_custom_call.1} parent=70 // loop_header
                  %s361 = sphi 0, %s365
                  %p362 = scmp.ge.s32.totalorder %s361, 1
                  %s366 = sphi %s333, %s333
                  %s367 = sphi %s328, %s328
                $region74: #{tpu_custom_call.1} parent=70 // loop_header_branch
                  %364 = sbr.rel (%p362) target = $region78
                $region75: #{tpu_custom_call.1} parent=70 // loop_body
                  %v368 = vld [vmem:[%s366] sm:$0xff]
                  %369 = vst [vmem:[%s367] sm:$0xff] %v368
                  %v370 = vld [vmem:[%s366 + $0x20] sm:$0xff]
                  %371 = vst [vmem:[%s367 + $0x8] sm:$0xff] %v370
                  %v372 = vld [vmem:[%s366 + $0x40] sm:$0xff]
                  %373 = vst [vmem:[%s367 + $0x10] sm:$0xff] %v372
                  %v374 = vld [vmem:[%s366 + $0x60] sm:$0xff]
                  %375 = vst [vmem:[%s367 + $0x18] sm:$0xff] %v374
                $region76: #{tpu_custom_call.1} parent=70 // loop_footer
                  %s365 = sadd.s32 1, %s361
                $region77: #{tpu_custom_call.1} parent=70 // loop_footer_branch
                  %360 = sbr.rel target = $region73
                $region78: #{tpu_custom_call.1} parent=70 // loop_exit
                  _
              $region71: #{tpu_custom_call.1} parent=55 // pred_fallthru
                _
              // Predicated region
              $region79: #{tpu_custom_call.1} parent=55 // pred_check
                _
              $region80: #{tpu_custom_call.1} parent=55 // pred_check_branch
                %377 = sbr.rel target = $region82
              $region81: #{tpu_custom_call.1} parent=55 // pred_region
                _
              $region82: #{tpu_custom_call.1} parent=55 // pred_fallthru
                _
            $region56: #{tpu_custom_call.1} parent=51 // pred_fallthru
              _
            // Predicated region
            $region57: #{tpu_custom_call.1} parent=51 // pred_check
              _
            $region58: #{tpu_custom_call.1} parent=51 // pred_check_branch
              %339 = sbr.rel target = $region60
            $region59: #{tpu_custom_call.1} parent=51 // pred_region
              %s341 = ssub.s32 256, 1
              loop: start=0, step=1, limit=1
              $region61: #{tpu_custom_call.1} parent=59 // loop_pre_header
                _
              $region62: #{tpu_custom_call.1} parent=59 // loop_header
                %s343 = sphi 0, %s347
                %p344 = scmp.ge.s32.totalorder %s343, 1
                %s348 = sphi %s333, %s333
                %s349 = sphi %s328, %s328
              $region63: #{tpu_custom_call.1} parent=59 // loop_header_branch
                %346 = sbr.rel (%p344) target = $region67
              $region64: #{tpu_custom_call.1} parent=59 // loop_body
                %v350 = vld [vmem:[%s348] sm:%s341]
                %351 = vst [vmem:[%s349] sm:%s341] %v350
                %v352 = vld [vmem:[%s348 + $0x20] sm:%s341]
                %353 = vst [vmem:[%s349 + $0x8] sm:%s341] %v352
                %v354 = vld [vmem:[%s348 + $0x40] sm:%s341]
                %355 = vst [vmem:[%s349 + $0x10] sm:%s341] %v354
                %v356 = vld [vmem:[%s348 + $0x60] sm:%s341]
                %357 = vst [vmem:[%s349 + $0x18] sm:%s341] %v356
              $region65: #{tpu_custom_call.1} parent=59 // loop_footer
                %s347 = sadd.s32 1, %s343
              $region66: #{tpu_custom_call.1} parent=59 // loop_footer_branch
                %342 = sbr.rel target = $region62
              $region67: #{tpu_custom_call.1} parent=59 // loop_exit
                _
            $region60: #{tpu_custom_call.1} parent=51 // pred_fallthru
              _
          $region52: #{tpu_custom_call.1} parent=47 // pred_fallthru
            _
          %378 = vnop
        $region48: #{tpu_custom_call.1} parent=39 // pred_fallthru
          _
      $region40: #{tpu_custom_call.1} parent=5 // pred_fallthru
        _
      %p379 = scmp.le.s32.totalorder 1, %s22
      %p380 = scmp.lt.s32.totalorder %s22, 5
      %p381 = pnand %p379, %p380
      %p382 = pneg %p381
      // Predicated region
      $region83: #{tpu_custom_call.1} parent=5 // pred_check
        _
      $region84: #{tpu_custom_call.1} parent=5 // pred_check_branch
        %384 = sbr.rel (%p381) target = $region86
      $region85: #{tpu_custom_call.1} parent=5 // pred_region
        %s385 = ssub.s32 %s22, 1
        %s386 = sand.u32 %s77, 1
        %s387 = sand.u32 %s77, 1
        %s388 = smul.addr %s387, 32
        %s389 = scalar_lea.vmem [#allocation2], %s388
        // Predicated region
        $region87: #{tpu_custom_call.1} parent=85 // pred_check
          %p390 = pneg %p90
        $region88: #{tpu_custom_call.1} parent=85 // pred_check_branch
          %392 = sbr.rel (%p390) target = $region90
        $region89: #{tpu_custom_call.1} parent=85 // pred_region
          _
        $region90: #{tpu_custom_call.1} parent=85 // pred_fallthru
          _
        %s393 = smul.u32 2, %s32
        %p394 = scmp.lt.s32.totalorder %s31, 1
        %s395 = scalar_select %p394, %s31, 1
        %p396 = scmp.lt.s32.totalorder %s393, 3
        %s397 = scalar_select %p396, %s393, 3
        %s398 = smul.addr %s395, 4
        %s399 = sadd.s32 %s397, %s398
        %s400 = smul.addr %s399, 4
        %s401 = scalar_lea.vmem %s0, %s400
        %p402 = pneg %p62
        %p403 = pneg %p59
        %s404 = sand.u32 %s77, 1
        %s405 = sand.u32 %s77, 1
        %s406 = smul.addr %s405, 32
        %s407 = scalar_lea.vmem [#allocation2], %s406
        %p408 = pneg %p90
        %p409 = pneg %p87
        %p410 = pneg %p111
        %p411 = pneg %p108
        %p412 = pneg %p132
        %p413 = pneg %p129
        %p414 = pneg %p153
        %p415 = pneg %p150
        %p416 = pneg %p174
        %p417 = pneg %p171
        %p418 = pneg %p195
        %p419 = pneg %p192
        %p420 = pneg %p216
        %p421 = pneg %p213
        %p422 = pneg %p244
        %p423 = pneg %p241
        %s424 = sand.u32 %s231, 1
        %s425 = scalar_lea.sflag [#allocation4], %s424
        %s426 = sand.u32 %s231, 1
        %s427 = smul.addr %s426, 8
        %s428 = scalar_lea.vmem [#allocation3], %s427
        %p429 = pneg %p272
        %p430 = pneg %p269
        %s431 = sand.u32 %s259, 1
        %s432 = scalar_lea.sflag [#allocation6], %s431
        %s433 = sand.u32 %s259, 1
        %s434 = smul.addr %s433, 2
        %s435 = scalar_lea.vmem [#allocation5], %s434
        %s436 = smul.u32 2, %s32
        %p437 = scmp.lt.s32.totalorder %s31, 1
        %s438 = scalar_select %p437, %s31, 1
        %p439 = scmp.lt.s32.totalorder %s436, 3
        %s440 = scalar_select %p439, %s436, 3
        %s441 = smul.addr %s438, 4
        %s442 = sadd.s32 %s440, %s441
        %s443 = smul.addr %s442, 4
        %s444 = scalar_lea.vmem %s0, %s443
        %s445 = smul.u32 2, %s32
        %s446 = smul.u32 2, %s32
        %s447 = smul.u32 2, %s32
        %s448 = smul.u32 2, %s32
        %v449 = vld [vmem:[%s444] sm:$0x77]
        %v450 = vld [vmem:[%s389] sm:$0x77]
        %v451 = vadd.f32 %v449, %v450
        %v452 = vmax.f32 %v451, -0.5
        %v453 = vmin.f32 %v452, 0.5
        %v454 = vld [vmem:[%s2] sm:$0xff]
        %v455 = vld [vmem:[%s2 + $0x8] sm:$0xff]
        %v456 = vld [vmem:[%s2 + $0x10] sm:$0xff]
        %v457 = vld [vmem:[%s2 + $0x18] sm:$0xff]
        %v458 = vld [vmem:[%s2 + $0x20] sm:$0xff]
        %v459 = vld [vmem:[%s2 + $0x28] sm:$0xff]
        %v460 = vld [vmem:[%s2 + $0x30] sm:$0xff]
        %v461 = vld [vmem:[%s2 + $0x38] sm:$0xff]
        %v462 = vld [vmem:[%s2 + $0x40] sm:$0xff]
        %v463 = vld [vmem:[%s2 + $0x48] sm:$0xff]
        %v464 = vld [vmem:[%s2 + $0x50] sm:$0xff]
        %v465 = vld [vmem:[%s2 + $0x58] sm:$0xff]
        %v466 = vld [vmem:[%s2 + $0x60] sm:$0xff]
        %v467 = vld [vmem:[%s2 + $0x68] sm:$0xff]
        %v468 = vld [vmem:[%s2 + $0x70] sm:$0xff]
        %v469 = vld [vmem:[%s2 + $0x78] sm:$0xff]
        %v470 = vld [vmem:[%s2 + $0x80] sm:$0xff]
        %v471 = vld [vmem:[%s2 + $0x88] sm:$0xff]
        %v472 = vld [vmem:[%s2 + $0x90] sm:$0xff]
        %v473 = vld [vmem:[%s2 + $0x98] sm:$0xff]
        %v474 = vld [vmem:[%s2 + $0xa0] sm:$0xff]
        %v475 = vld [vmem:[%s2 + $0xa8] sm:$0xff]
        %v476 = vld [vmem:[%s2 + $0xb0] sm:$0xff]
        %v477 = vld [vmem:[%s2 + $0xb8] sm:$0xff]
        %v478 = vld [vmem:[%s2 + $0xc0] sm:$0xff]
        %v479 = vld [vmem:[%s2 + $0xc8] sm:$0xff]
        %v480 = vld [vmem:[%s2 + $0xd0] sm:$0xff]
        %v481 = vld [vmem:[%s2 + $0xd8] sm:$0xff]
        %v482 = vld [vmem:[%s2 + $0xe0] sm:$0xff]
        %v483 = vld [vmem:[%s2 + $0xe8] sm:$0xff]
        %v484 = vld [vmem:[%s2 + $0xf0] sm:$0xff]
        %v485 = vld [vmem:[%s2 + $0xf8] sm:$0xff]
        %487 = vset.pattern.permute.xlu0 0
        %488 = vperm.xlu0 %487, %v454
        %v489 = vpop.permute.xlu0 %488
        %492 = vset.pattern.permute.xlu0 0
        %493 = vperm.xlu0 %492, %v455
        %v494 = vpop.permute.xlu0 %493
        %497 = vset.pattern.permute.xlu0 0
        %498 = vperm.xlu0 %497, %v456
        %v499 = vpop.permute.xlu0 %498
        %502 = vset.pattern.permute.xlu0 0
        %503 = vperm.xlu0 %502, %v457
        %v504 = vpop.permute.xlu0 %503
        %507 = vset.pattern.permute.xlu0 0
        %508 = vperm.xlu0 %507, %v458
        %v509 = vpop.permute.xlu0 %508
        %512 = vset.pattern.permute.xlu0 0
        %513 = vperm.xlu0 %512, %v459
        %v514 = vpop.permute.xlu0 %513
        %517 = vset.pattern.permute.xlu0 0
        %518 = vperm.xlu0 %517, %v460
        %v519 = vpop.permute.xlu0 %518
        %522 = vset.pattern.permute.xlu0 0
        %523 = vperm.xlu0 %522, %v461
        %v524 = vpop.permute.xlu0 %523
        %527 = vset.pattern.permute.xlu0 0
        %528 = vperm.xlu0 %527, %v462
        %v529 = vpop.permute.xlu0 %528
        %532 = vset.pattern.permute.xlu0 0
        %533 = vperm.xlu0 %532, %v463
        %v534 = vpop.permute.xlu0 %533
        %537 = vset.pattern.permute.xlu0 0
        %538 = vperm.xlu0 %537, %v464
        %v539 = vpop.permute.xlu0 %538
        %542 = vset.pattern.permute.xlu0 0
        %543 = vperm.xlu0 %542, %v465
        %v544 = vpop.permute.xlu0 %543
        %547 = vset.pattern.permute.xlu0 0
        %548 = vperm.xlu0 %547, %v466
        %v549 = vpop.permute.xlu0 %548
        %552 = vset.pattern.permute.xlu0 0
        %553 = vperm.xlu0 %552, %v467
        %v554 = vpop.permute.xlu0 %553
        %557 = vset.pattern.permute.xlu0 0
        %558 = vperm.xlu0 %557, %v468
        %v559 = vpop.permute.xlu0 %558
        %562 = vset.pattern.permute.xlu0 0
        %563 = vperm.xlu0 %562, %v469
        %v564 = vpop.permute.xlu0 %563
        %567 = vset.pattern.permute.xlu0 0
        %568 = vperm.xlu0 %567, %v470
        %v569 = vpop.permute.xlu0 %568
        %572 = vset.pattern.permute.xlu0 0
        %573 = vperm.xlu0 %572, %v471
        %v574 = vpop.permute.xlu0 %573
        %577 = vset.pattern.permute.xlu0 0
        %578 = vperm.xlu0 %577, %v472
        %v579 = vpop.permute.xlu0 %578
        %582 = vset.pattern.permute.xlu0 0
        %583 = vperm.xlu0 %582, %v473
        %v584 = vpop.permute.xlu0 %583
        %587 = vset.pattern.permute.xlu0 0
        %588 = vperm.xlu0 %587, %v474
        %v589 = vpop.permute.xlu0 %588
        %592 = vset.pattern.permute.xlu0 0
        %593 = vperm.xlu0 %592, %v475
        %v594 = vpop.permute.xlu0 %593
        %597 = vset.pattern.permute.xlu0 0
        %598 = vperm.xlu0 %597, %v476
        %v599 = vpop.permute.xlu0 %598
        %602 = vset.pattern.permute.xlu0 0
        %603 = vperm.xlu0 %602, %v477
        %v604 = vpop.permute.xlu0 %603
        %607 = vset.pattern.permute.xlu0 0
        %608 = vperm.xlu0 %607, %v478
        %v609 = vpop.permute.xlu0 %608
        %612 = vset.pattern.permute.xlu0 0
        %613 = vperm.xlu0 %612, %v479
        %v614 = vpop.permute.xlu0 %613
        %617 = vset.pattern.permute.xlu0 0
        %618 = vperm.xlu0 %617, %v480
        %v619 = vpop.permute.xlu0 %618
        %622 = vset.pattern.permute.xlu0 0
        %623 = vperm.xlu0 %622, %v481
        %v624 = vpop.permute.xlu0 %623
        %627 = vset.pattern.permute.xlu0 0
        %628 = vperm.xlu0 %627, %v482
        %v629 = vpop.permute.xlu0 %628
        %632 = vset.pattern.permute.xlu0 0
        %633 = vperm.xlu0 %632, %v483
        %v634 = vpop.permute.xlu0 %633
        %637 = vset.pattern.permute.xlu0 0
        %638 = vperm.xlu0 %637, %v484
        %v639 = vpop.permute.xlu0 %638
        %642 = vset.pattern.permute.xlu0 0
        %643 = vperm.xlu0 %642, %v485
        %v644 = vpop.permute.xlu0 %643
        %v647 = vlaneseq
        %v648 = vshrl.u32 %v647, 7
        %v649 = vsub.s32 0, %v648
        %v650 = vrot.slane %v453, %v649
        %v651 = vlaneseq
        %v652 = vshrl.u32 %v651, 7
        %v653 = vsub.s32 4, %v652
        %v654 = vrot.slane %v453, %v653
        %v657 = vlaneseq
        %v658 = vshrl.u32 %v657, 7
        %v659 = vsub.s32 0, %v658
        %v660 = vrot.slane %v650, %v659
        %v661 = vlaneseq
        %v662 = vshrl.u32 %v661, 7
        %v663 = vsub.s32 0, %v662
        %v664 = vrot.slane %v654, %v663
        %v665 = vmul.f32 %v489, %v660
        %v666 = vmul.f32 %v489, %v664
        %v667 = vmul.f32 %v494, %v660
        %v668 = vmul.f32 %v494, %v664
        %v669 = vmul.f32 %v499, %v660
        %v670 = vmul.f32 %v499, %v664
        %v671 = vmul.f32 %v504, %v660
        %v672 = vmul.f32 %v504, %v664
        %v673 = vmul.f32 %v509, %v660
        %v674 = vmul.f32 %v509, %v664
        %v675 = vmul.f32 %v514, %v660
        %v676 = vmul.f32 %v514, %v664
        %v677 = vmul.f32 %v519, %v660
        %v678 = vmul.f32 %v519, %v664
        %v679 = vmul.f32 %v524, %v660
        %v680 = vmul.f32 %v524, %v664
        %v681 = vmul.f32 %v529, %v660
        %v682 = vmul.f32 %v529, %v664
        %v683 = vmul.f32 %v534, %v660
        %v684 = vmul.f32 %v534, %v664
        %v685 = vmul.f32 %v539, %v660
        %v686 = vmul.f32 %v539, %v664
        %v687 = vmul.f32 %v544, %v660
        %v688 = vmul.f32 %v544, %v664
        %v689 = vmul.f32 %v549, %v660
        %v690 = vmul.f32 %v549, %v664
        %v691 = vmul.f32 %v554, %v660
        %v692 = vmul.f32 %v554, %v664
        %v693 = vmul.f32 %v559, %v660
        %v694 = vmul.f32 %v559, %v664
        %v695 = vmul.f32 %v564, %v660
        %v696 = vmul.f32 %v564, %v664
        %v697 = vmul.f32 %v569, %v660
        %v698 = vmul.f32 %v569, %v664
        %v699 = vmul.f32 %v574, %v660
        %v700 = vmul.f32 %v574, %v664
        %v701 = vmul.f32 %v579, %v660
        %v702 = vmul.f32 %v579, %v664
        %v703 = vmul.f32 %v584, %v660
        %v704 = vmul.f32 %v584, %v664
        %v705 = vmul.f32 %v589, %v660
        %v706 = vmul.f32 %v589, %v664
        %v707 = vmul.f32 %v594, %v660
        %v708 = vmul.f32 %v594, %v664
        %v709 = vmul.f32 %v599, %v660
        %v710 = vmul.f32 %v599, %v664
        %v711 = vmul.f32 %v604, %v660
        %v712 = vmul.f32 %v604, %v664
        %v713 = vmul.f32 %v609, %v660
        %v714 = vmul.f32 %v609, %v664
        %v715 = vmul.f32 %v614, %v660
        %v716 = vmul.f32 %v614, %v664
        %v717 = vmul.f32 %v619, %v660
        %v718 = vmul.f32 %v619, %v664
        %v719 = vmul.f32 %v624, %v660
        %v720 = vmul.f32 %v624, %v664
        %v721 = vmul.f32 %v629, %v660
        %v722 = vmul.f32 %v629, %v664
        %v723 = vmul.f32 %v634, %v660
        %v724 = vmul.f32 %v634, %v664
        %v725 = vmul.f32 %v639, %v660
        %v726 = vmul.f32 %v639, %v664
        %v727 = vmul.f32 %v644, %v660
        %v728 = vmul.f32 %v644, %v664
        %729 = vset.pattern.permute.xlu0 1
        %730 = vperm.xlu0 %729, %v454
        %v731 = vpop.permute.xlu0 %730
        %733 = vset.pattern.permute.xlu0 1
        %734 = vperm.xlu0 %733, %v455
        %v735 = vpop.permute.xlu0 %734
        %737 = vset.pattern.permute.xlu0 1
        %738 = vperm.xlu0 %737, %v456
        %v739 = vpop.permute.xlu0 %738
        %741 = vset.pattern.permute.xlu0 1
        %742 = vperm.xlu0 %741, %v457
        %v743 = vpop.permute.xlu0 %742
        %745 = vset.pattern.permute.xlu0 1
        %746 = vperm.xlu0 %745, %v458
        %v747 = vpop.permute.xlu0 %746
        %749 = vset.pattern.permute.xlu0 1
        %750 = vperm.xlu0 %749, %v459
        %v751 = vpop.permute.xlu0 %750
        %753 = vset.pattern.permute.xlu0 1
        %754 = vperm.xlu0 %753, %v460
        %v755 = vpop.permute.xlu0 %754
        %757 = vset.pattern.permute.xlu0 1
        %758 = vperm.xlu0 %757, %v461
        %v759 = vpop.permute.xlu0 %758
        %761 = vset.pattern.permute.xlu0 1
        %762 = vperm.xlu0 %761, %v462
        %v763 = vpop.permute.xlu0 %762
        %765 = vset.pattern.permute.xlu0 1
        %766 = vperm.xlu0 %765, %v463
        %v767 = vpop.permute.xlu0 %766
        %769 = vset.pattern.permute.xlu0 1
        %770 = vperm.xlu0 %769, %v464
        %v771 = vpop.permute.xlu0 %770
        %773 = vset.pattern.permute.xlu0 1
        %774 = vperm.xlu0 %773, %v465
        %v775 = vpop.permute.xlu0 %774
        %777 = vset.pattern.permute.xlu0 1
        %778 = vperm.xlu0 %777, %v466
        %v779 = vpop.permute.xlu0 %778
        %781 = vset.pattern.permute.xlu0 1
        %782 = vperm.xlu0 %781, %v467
        %v783 = vpop.permute.xlu0 %782
        %785 = vset.pattern.permute.xlu0 1
        %786 = vperm.xlu0 %785, %v468
        %v787 = vpop.permute.xlu0 %786
        %789 = vset.pattern.permute.xlu0 1
        %790 = vperm.xlu0 %789, %v469
        %v791 = vpop.permute.xlu0 %790
        %793 = vset.pattern.permute.xlu0 1
        %794 = vperm.xlu0 %793, %v470
        %v795 = vpop.permute.xlu0 %794
        %797 = vset.pattern.permute.xlu0 1
        %798 = vperm.xlu0 %797, %v471
        %v799 = vpop.permute.xlu0 %798
        %801 = vset.pattern.permute.xlu0 1
        %802 = vperm.xlu0 %801, %v472
        %v803 = vpop.permute.xlu0 %802
        %805 = vset.pattern.permute.xlu0 1
        %806 = vperm.xlu0 %805, %v473
        %v807 = vpop.permute.xlu0 %806
        %809 = vset.pattern.permute.xlu0 1
        %810 = vperm.xlu0 %809, %v474
        %v811 = vpop.permute.xlu0 %810
        %813 = vset.pattern.permute.xlu0 1
        %814 = vperm.xlu0 %813, %v475
        %v815 = vpop.permute.xlu0 %814
        %817 = vset.pattern.permute.xlu0 1
        %818 = vperm.xlu0 %817, %v476
        %v819 = vpop.permute.xlu0 %818
        %821 = vset.pattern.permute.xlu0 1
        %822 = vperm.xlu0 %821, %v477
        %v823 = vpop.permute.xlu0 %822
        %825 = vset.pattern.permute.xlu0 1
        %826 = vperm.xlu0 %825, %v478
        %v827 = vpop.permute.xlu0 %826
        %829 = vset.pattern.permute.xlu0 1
        %830 = vperm.xlu0 %829, %v479
        %v831 = vpop.permute.xlu0 %830
        %833 = vset.pattern.permute.xlu0 1
        %834 = vperm.xlu0 %833, %v480
        %v835 = vpop.permute.xlu0 %834
        %837 = vset.pattern.permute.xlu0 1
        %838 = vperm.xlu0 %837, %v481
        %v839 = vpop.permute.xlu0 %838
        %841 = vset.pattern.permute.xlu0 1
        %842 = vperm.xlu0 %841, %v482
        %v843 = vpop.permute.xlu0 %842
        %845 = vset.pattern.permute.xlu0 1
        %846 = vperm.xlu0 %845, %v483
        %v847 = vpop.permute.xlu0 %846
        %849 = vset.pattern.permute.xlu0 1
        %850 = vperm.xlu0 %849, %v484
        %v851 = vpop.permute.xlu0 %850
        %853 = vset.pattern.permute.xlu0 1
        %854 = vperm.xlu0 %853, %v485
        %v855 = vpop.permute.xlu0 %854
        %v857 = vlaneseq
        %v858 = vshrl.u32 %v857, 7
        %v859 = vsub.s32 1, %v858
        %v860 = vrot.slane %v453, %v859
        %v861 = vlaneseq
        %v862 = vshrl.u32 %v861, 7
        %v863 = vsub.s32 5, %v862
        %v864 = vrot.slane %v453, %v863
        %v867 = vlaneseq
        %v868 = vshrl.u32 %v867, 7
        %v869 = vsub.s32 1, %v868
        %v870 = vrot.slane %v860, %v869
        %v871 = vlaneseq
        %v872 = vshrl.u32 %v871, 7
        %v873 = vsub.s32 1, %v872
        %v874 = vrot.slane %v864, %v873
        %v875 = vmul.f32 %v731, %v870
        %v876 = vmul.f32 %v731, %v874
        %v877 = vmul.f32 %v735, %v870
        %v878 = vmul.f32 %v735, %v874
        %v879 = vmul.f32 %v739, %v870
        %v880 = vmul.f32 %v739, %v874
        %v881 = vmul.f32 %v743, %v870
        %v882 = vmul.f32 %v743, %v874
        %v883 = vmul.f32 %v747, %v870
        %v884 = vmul.f32 %v747, %v874
        %v885 = vmul.f32 %v751, %v870
        %v886 = vmul.f32 %v751, %v874
        %v887 = vmul.f32 %v755, %v870
        %v888 = vmul.f32 %v755, %v874
        %v889 = vmul.f32 %v759, %v870
        %v890 = vmul.f32 %v759, %v874
        %v891 = vmul.f32 %v763, %v870
        %v892 = vmul.f32 %v763, %v874
        %v893 = vmul.f32 %v767, %v870
        %v894 = vmul.f32 %v767, %v874
        %v895 = vmul.f32 %v771, %v870
        %v896 = vmul.f32 %v771, %v874
        %v897 = vmul.f32 %v775, %v870
        %v898 = vmul.f32 %v775, %v874
        %v899 = vmul.f32 %v779, %v870
        %v900 = vmul.f32 %v779, %v874
        %v901 = vmul.f32 %v783, %v870
        %v902 = vmul.f32 %v783, %v874
        %v903 = vmul.f32 %v787, %v870
        %v904 = vmul.f32 %v787, %v874
        %v905 = vmul.f32 %v791, %v870
        %v906 = vmul.f32 %v791, %v874
        %v907 = vmul.f32 %v795, %v870
        %v908 = vmul.f32 %v795, %v874
        %v909 = vmul.f32 %v799, %v870
        %v910 = vmul.f32 %v799, %v874
        %v911 = vmul.f32 %v803, %v870
        %v912 = vmul.f32 %v803, %v874
        %v913 = vmul.f32 %v807, %v870
        %v914 = vmul.f32 %v807, %v874
        %v915 = vmul.f32 %v811, %v870
        %v916 = vmul.f32 %v811, %v874
        %v917 = vmul.f32 %v815, %v870
        %v918 = vmul.f32 %v815, %v874
        %v919 = vmul.f32 %v819, %v870
        %v920 = vmul.f32 %v819, %v874
        %v921 = vmul.f32 %v823, %v870
        %v922 = vmul.f32 %v823, %v874
        %v923 = vmul.f32 %v827, %v870
        %v924 = vmul.f32 %v827, %v874
        %v925 = vmul.f32 %v831, %v870
        %v926 = vmul.f32 %v831, %v874
        %v927 = vmul.f32 %v835, %v870
        %v928 = vmul.f32 %v835, %v874
        %v929 = vmul.f32 %v839, %v870
        %v930 = vmul.f32 %v839, %v874
        %v931 = vmul.f32 %v843, %v870
        %v932 = vmul.f32 %v843, %v874
        %v933 = vmul.f32 %v847, %v870
        %v934 = vmul.f32 %v847, %v874
        %v935 = vmul.f32 %v851, %v870
        %v936 = vmul.f32 %v851, %v874
        %v937 = vmul.f32 %v855, %v870
        %v938 = vmul.f32 %v855, %v874
        %v939 = vadd.f32 %v665, %v875
        %v940 = vadd.f32 %v666, %v876
        %v941 = vadd.f32 %v667, %v877
        %v942 = vadd.f32 %v668, %v878
        %v943 = vadd.f32 %v669, %v879
        %v944 = vadd.f32 %v670, %v880
        %v945 = vadd.f32 %v671, %v881
        %v946 = vadd.f32 %v672, %v882
        %v947 = vadd.f32 %v673, %v883
        %v948 = vadd.f32 %v674, %v884
        %v949 = vadd.f32 %v675, %v885
        %v950 = vadd.f32 %v676, %v886
        %v951 = vadd.f32 %v677, %v887
        %v952 = vadd.f32 %v678, %v888
        %v953 = vadd.f32 %v679, %v889
        %v954 = vadd.f32 %v680, %v890
        %v955 = vadd.f32 %v681, %v891
        %v956 = vadd.f32 %v682, %v892
        %v957 = vadd.f32 %v683, %v893
        %v958 = vadd.f32 %v684, %v894
        %v959 = vadd.f32 %v685, %v895
        %v960 = vadd.f32 %v686, %v896
        %v961 = vadd.f32 %v687, %v897
        %v962 = vadd.f32 %v688, %v898
        %v963 = vadd.f32 %v689, %v899
        %v964 = vadd.f32 %v690, %v900
        %v965 = vadd.f32 %v691, %v901
        %v966 = vadd.f32 %v692, %v902
        %v967 = vadd.f32 %v693, %v903
        %v968 = vadd.f32 %v694, %v904
        %v969 = vadd.f32 %v695, %v905
        %v970 = vadd.f32 %v696, %v906
        %v971 = vadd.f32 %v697, %v907
        %v972 = vadd.f32 %v698, %v908
        %v973 = vadd.f32 %v699, %v909
        %v974 = vadd.f32 %v700, %v910
        %v975 = vadd.f32 %v701, %v911
        %v976 = vadd.f32 %v702, %v912
        %v977 = vadd.f32 %v703, %v913
        %v978 = vadd.f32 %v704, %v914
        %v979 = vadd.f32 %v705, %v915
        %v980 = vadd.f32 %v706, %v916
        %v981 = vadd.f32 %v707, %v917
        %v982 = vadd.f32 %v708, %v918
        %v983 = vadd.f32 %v709, %v919
        %v984 = vadd.f32 %v710, %v920
        %v985 = vadd.f32 %v711, %v921
        %v986 = vadd.f32 %v712, %v922
        %v987 = vadd.f32 %v713, %v923
        %v988 = vadd.f32 %v714, %v924
        %v989 = vadd.f32 %v715, %v925
        %v990 = vadd.f32 %v716, %v926
        %v991 = vadd.f32 %v717, %v927
        %v992 = vadd.f32 %v718, %v928
        %v993 = vadd.f32 %v719, %v929
        %v994 = vadd.f32 %v720, %v930
        %v995 = vadd.f32 %v721, %v931
        %v996 = vadd.f32 %v722, %v932
        %v997 = vadd.f32 %v723, %v933
        %v998 = vadd.f32 %v724, %v934
        %v999 = vadd.f32 %v725, %v935
        %v1000 = vadd.f32 %v726, %v936
        %v1001 = vadd.f32 %v727, %v937
        %v1002 = vadd.f32 %v728, %v938
        %1003 = vset.pattern.permute.xlu0 2
        %1004 = vperm.xlu0 %1003, %v454
        %v1005 = vpop.permute.xlu0 %1004
        %1007 = vset.pattern.permute.xlu0 2
        %1008 = vperm.xlu0 %1007, %v455
        %v1009 = vpop.permute.xlu0 %1008
        %1011 = vset.pattern.permute.xlu0 2
        %1012 = vperm.xlu0 %1011, %v456
        %v1013 = vpop.permute.xlu0 %1012
        %1015 = vset.pattern.permute.xlu0 2
        %1016 = vperm.xlu0 %1015, %v457
        %v1017 = vpop.permute.xlu0 %1016
        %1019 = vset.pattern.permute.xlu0 2
        %1020 = vperm.xlu0 %1019, %v458
        %v1021 = vpop.permute.xlu0 %1020
        %1023 = vset.pattern.permute.xlu0 2
        %1024 = vperm.xlu0 %1023, %v459
        %v1025 = vpop.permute.xlu0 %1024
        %1027 = vset.pattern.permute.xlu0 2
        %1028 = vperm.xlu0 %1027, %v460
        %v1029 = vpop.permute.xlu0 %1028
        %1031 = vset.pattern.permute.xlu0 2
        %1032 = vperm.xlu0 %1031, %v461
        %v1033 = vpop.permute.xlu0 %1032
        %1035 = vset.pattern.permute.xlu0 2
        %1036 = vperm.xlu0 %1035, %v462
        %v1037 = vpop.permute.xlu0 %1036
        %1039 = vset.pattern.permute.xlu0 2
        %1040 = vperm.xlu0 %1039, %v463
        %v1041 = vpop.permute.xlu0 %1040
        %1043 = vset.pattern.permute.xlu0 2
        %1044 = vperm.xlu0 %1043, %v464
        %v1045 = vpop.permute.xlu0 %1044
        %1047 = vset.pattern.permute.xlu0 2
        %1048 = vperm.xlu0 %1047, %v465
        %v1049 = vpop.permute.xlu0 %1048
        %1051 = vset.pattern.permute.xlu0 2
        %1052 = vperm.xlu0 %1051, %v466
        %v1053 = vpop.permute.xlu0 %1052
        %1055 = vset.pattern.permute.xlu0 2
        %1056 = vperm.xlu0 %1055, %v467
        %v1057 = vpop.permute.xlu0 %1056
        %1059 = vset.pattern.permute.xlu0 2
        %1060 = vperm.xlu0 %1059, %v468
        %v1061 = vpop.permute.xlu0 %1060
        %1063 = vset.pattern.permute.xlu0 2
        %1064 = vperm.xlu0 %1063, %v469
        %v1065 = vpop.permute.xlu0 %1064
        %1067 = vset.pattern.permute.xlu0 2
        %1068 = vperm.xlu0 %1067, %v470
        %v1069 = vpop.permute.xlu0 %1068
        %1071 = vset.pattern.permute.xlu0 2
        %1072 = vperm.xlu0 %1071, %v471
        %v1073 = vpop.permute.xlu0 %1072
        %1075 = vset.pattern.permute.xlu0 2
        %1076 = vperm.xlu0 %1075, %v472
        %v1077 = vpop.permute.xlu0 %1076
        %1079 = vset.pattern.permute.xlu0 2
        %1080 = vperm.xlu0 %1079, %v473
        %v1081 = vpop.permute.xlu0 %1080
        %1083 = vset.pattern.permute.xlu0 2
        %1084 = vperm.xlu0 %1083, %v474
        %v1085 = vpop.permute.xlu0 %1084
        %1087 = vset.pattern.permute.xlu0 2
        %1088 = vperm.xlu0 %1087, %v475
        %v1089 = vpop.permute.xlu0 %1088
        %1091 = vset.pattern.permute.xlu0 2
        %1092 = vperm.xlu0 %1091, %v476
        %v1093 = vpop.permute.xlu0 %1092
        %1095 = vset.pattern.permute.xlu0 2
        %1096 = vperm.xlu0 %1095, %v477
        %v1097 = vpop.permute.xlu0 %1096
        %1099 = vset.pattern.permute.xlu0 2
        %1100 = vperm.xlu0 %1099, %v478
        %v1101 = vpop.permute.xlu0 %1100
        %1103 = vset.pattern.permute.xlu0 2
        %1104 = vperm.xlu0 %1103, %v479
        %v1105 = vpop.permute.xlu0 %1104
        %1107 = vset.pattern.permute.xlu0 2
        %1108 = vperm.xlu0 %1107, %v480
        %v1109 = vpop.permute.xlu0 %1108
        %1111 = vset.pattern.permute.xlu0 2
        %1112 = vperm.xlu0 %1111, %v481
        %v1113 = vpop.permute.xlu0 %1112
        %1115 = vset.pattern.permute.xlu0 2
        %1116 = vperm.xlu0 %1115, %v482
        %v1117 = vpop.permute.xlu0 %1116
        %1119 = vset.pattern.permute.xlu0 2
        %1120 = vperm.xlu0 %1119, %v483
        %v1121 = vpop.permute.xlu0 %1120
        %1123 = vset.pattern.permute.xlu0 2
        %1124 = vperm.xlu0 %1123, %v484
        %v1125 = vpop.permute.xlu0 %1124
        %1127 = vset.pattern.permute.xlu0 2
        %1128 = vperm.xlu0 %1127, %v485
        %v1129 = vpop.permute.xlu0 %1128
        %v1131 = vlaneseq
        %v1132 = vshrl.u32 %v1131, 7
        %v1133 = vsub.s32 2, %v1132
        %v1134 = vrot.slane %v453, %v1133
        %v1135 = vlaneseq
        %v1136 = vshrl.u32 %v1135, 7
        %v1137 = vsub.s32 6, %v1136
        %v1138 = vrot.slane %v453, %v1137
        %v1141 = vlaneseq
        %v1142 = vshrl.u32 %v1141, 7
        %v1143 = vsub.s32 2, %v1142
        %v1144 = vrot.slane %v1134, %v1143
        %v1145 = vlaneseq
        %v1146 = vshrl.u32 %v1145, 7
        %v1147 = vsub.s32 2, %v1146
        %v1148 = vrot.slane %v1138, %v1147
        %v1149 = vmul.f32 %v1005, %v1144
        %v1150 = vmul.f32 %v1005, %v1148
        %v1151 = vmul.f32 %v1009, %v1144
        %v1152 = vmul.f32 %v1009, %v1148
        %v1153 = vmul.f32 %v1013, %v1144
        %v1154 = vmul.f32 %v1013, %v1148
        %v1155 = vmul.f32 %v1017, %v1144
        %v1156 = vmul.f32 %v1017, %v1148
        %v1157 = vmul.f32 %v1021, %v1144
        %v1158 = vmul.f32 %v1021, %v1148
        %v1159 = vmul.f32 %v1025, %v1144
        %v1160 = vmul.f32 %v1025, %v1148
        %v1161 = vmul.f32 %v1029, %v1144
        %v1162 = vmul.f32 %v1029, %v1148
        %v1163 = vmul.f32 %v1033, %v1144
        %v1164 = vmul.f32 %v1033, %v1148
        %v1165 = vmul.f32 %v1037, %v1144
        %v1166 = vmul.f32 %v1037, %v1148
        %v1167 = vmul.f32 %v1041, %v1144
        %v1168 = vmul.f32 %v1041, %v1148
        %v1169 = vmul.f32 %v1045, %v1144
        %v1170 = vmul.f32 %v1045, %v1148
        %v1171 = vmul.f32 %v1049, %v1144
        %v1172 = vmul.f32 %v1049, %v1148
        %v1173 = vmul.f32 %v1053, %v1144
        %v1174 = vmul.f32 %v1053, %v1148
        %v1175 = vmul.f32 %v1057, %v1144
        %v1176 = vmul.f32 %v1057, %v1148
        %v1177 = vmul.f32 %v1061, %v1144
        %v1178 = vmul.f32 %v1061, %v1148
        %v1179 = vmul.f32 %v1065, %v1144
        %v1180 = vmul.f32 %v1065, %v1148
        %v1181 = vmul.f32 %v1069, %v1144
        %v1182 = vmul.f32 %v1069, %v1148
        %v1183 = vmul.f32 %v1073, %v1144
        %v1184 = vmul.f32 %v1073, %v1148
        %v1185 = vmul.f32 %v1077, %v1144
        %v1186 = vmul.f32 %v1077, %v1148
        %v1187 = vmul.f32 %v1081, %v1144
        %v1188 = vmul.f32 %v1081, %v1148
        %v1189 = vmul.f32 %v1085, %v1144
        %v1190 = vmul.f32 %v1085, %v1148
        %v1191 = vmul.f32 %v1089, %v1144
        %v1192 = vmul.f32 %v1089, %v1148
        %v1193 = vmul.f32 %v1093, %v1144
        %v1194 = vmul.f32 %v1093, %v1148
        %v1195 = vmul.f32 %v1097, %v1144
        %v1196 = vmul.f32 %v1097, %v1148
        %v1197 = vmul.f32 %v1101, %v1144
        %v1198 = vmul.f32 %v1101, %v1148
        %v1199 = vmul.f32 %v1105, %v1144
        %v1200 = vmul.f32 %v1105, %v1148
        %v1201 = vmul.f32 %v1109, %v1144
        %v1202 = vmul.f32 %v1109, %v1148
        %v1203 = vmul.f32 %v1113, %v1144
        %v1204 = vmul.f32 %v1113, %v1148
        %v1205 = vmul.f32 %v1117, %v1144
        %v1206 = vmul.f32 %v1117, %v1148
        %v1207 = vmul.f32 %v1121, %v1144
        %v1208 = vmul.f32 %v1121, %v1148
        %v1209 = vmul.f32 %v1125, %v1144
        %v1210 = vmul.f32 %v1125, %v1148
        %v1211 = vmul.f32 %v1129, %v1144
        %v1212 = vmul.f32 %v1129, %v1148
        %v1213 = vadd.f32 %v939, %v1149
        %v1214 = vadd.f32 %v940, %v1150
        %v1215 = vadd.f32 %v941, %v1151
        %v1216 = vadd.f32 %v942, %v1152
        %v1217 = vadd.f32 %v943, %v1153
        %v1218 = vadd.f32 %v944, %v1154
        %v1219 = vadd.f32 %v945, %v1155
        %v1220 = vadd.f32 %v946, %v1156
        %v1221 = vadd.f32 %v947, %v1157
        %v1222 = vadd.f32 %v948, %v1158
        %v1223 = vadd.f32 %v949, %v1159
        %v1224 = vadd.f32 %v950, %v1160
        %v1225 = vadd.f32 %v951, %v1161
        %v1226 = vadd.f32 %v952, %v1162
        %v1227 = vadd.f32 %v953, %v1163
        %v1228 = vadd.f32 %v954, %v1164
        %v1229 = vadd.f32 %v955, %v1165
        %v1230 = vadd.f32 %v956, %v1166
        %v1231 = vadd.f32 %v957, %v1167
        %v1232 = vadd.f32 %v958, %v1168
        %v1233 = vadd.f32 %v959, %v1169
        %v1234 = vadd.f32 %v960, %v1170
        %v1235 = vadd.f32 %v961, %v1171
        %v1236 = vadd.f32 %v962, %v1172
        %v1237 = vadd.f32 %v963, %v1173
        %v1238 = vadd.f32 %v964, %v1174
        %v1239 = vadd.f32 %v965, %v1175
        %v1240 = vadd.f32 %v966, %v1176
        %v1241 = vadd.f32 %v967, %v1177
        %v1242 = vadd.f32 %v968, %v1178
        %v1243 = vadd.f32 %v969, %v1179
        %v1244 = vadd.f32 %v970, %v1180
        %v1245 = vadd.f32 %v971, %v1181
        %v1246 = vadd.f32 %v972, %v1182
        %v1247 = vadd.f32 %v973, %v1183
        %v1248 = vadd.f32 %v974, %v1184
        %v1249 = vadd.f32 %v975, %v1185
        %v1250 = vadd.f32 %v976, %v1186
        %v1251 = vadd.f32 %v977, %v1187
        %v1252 = vadd.f32 %v978, %v1188
        %v1253 = vadd.f32 %v979, %v1189
        %v1254 = vadd.f32 %v980, %v1190
        %v1255 = vadd.f32 %v981, %v1191
        %v1256 = vadd.f32 %v982, %v1192
        %v1257 = vadd.f32 %v983, %v1193
        %v1258 = vadd.f32 %v984, %v1194
        %v1259 = vadd.f32 %v985, %v1195
        %v1260 = vadd.f32 %v986, %v1196
        %v1261 = vadd.f32 %v987, %v1197
        %v1262 = vadd.f32 %v988, %v1198
        %v1263 = vadd.f32 %v989, %v1199
        %v1264 = vadd.f32 %v990, %v1200
        %v1265 = vadd.f32 %v991, %v1201
        %v1266 = vadd.f32 %v992, %v1202
        %v1267 = vadd.f32 %v993, %v1203
        %v1268 = vadd.f32 %v994, %v1204
        %v1269 = vadd.f32 %v995, %v1205
        %v1270 = vadd.f32 %v996, %v1206
        %v1271 = vadd.f32 %v997, %v1207
        %v1272 = vadd.f32 %v998, %v1208
        %v1273 = vadd.f32 %v999, %v1209
        %v1274 = vadd.f32 %v1000, %v1210
        %v1275 = vadd.f32 %v1001, %v1211
        %v1276 = vadd.f32 %v1002, %v1212
        %v1277 = vld [vmem:[%s3] sm:$0xff]
        %v1278 = vld [vmem:[%s3 + $0x8] sm:$0xff]
        %v1279 = vld [vmem:[%s3 + $0x10] sm:$0xff]
        %v1280 = vld [vmem:[%s3 + $0x18] sm:$0xff]
        %v1281 = vld [vmem:[%s3 + $0x20] sm:$0xff]
        %v1282 = vld [vmem:[%s3 + $0x28] sm:$0xff]
        %v1283 = vld [vmem:[%s3 + $0x30] sm:$0xff]
        %v1284 = vld [vmem:[%s3 + $0x38] sm:$0xff]
        %v1285 = vld [vmem:[%s3 + $0x40] sm:$0xff]
        %v1286 = vld [vmem:[%s3 + $0x48] sm:$0xff]
        %v1287 = vld [vmem:[%s3 + $0x50] sm:$0xff]
        %v1288 = vld [vmem:[%s3 + $0x58] sm:$0xff]
        %v1289 = vld [vmem:[%s3 + $0x60] sm:$0xff]
        %v1290 = vld [vmem:[%s3 + $0x68] sm:$0xff]
        %v1291 = vld [vmem:[%s3 + $0x70] sm:$0xff]
        %v1292 = vld [vmem:[%s3 + $0x78] sm:$0xff]
        %v1293 = vld [vmem:[%s3 + $0x80] sm:$0xff]
        %v1294 = vld [vmem:[%s3 + $0x88] sm:$0xff]
        %v1295 = vld [vmem:[%s3 + $0x90] sm:$0xff]
        %v1296 = vld [vmem:[%s3 + $0x98] sm:$0xff]
        %v1297 = vld [vmem:[%s3 + $0xa0] sm:$0xff]
        %v1298 = vld [vmem:[%s3 + $0xa8] sm:$0xff]
        %v1299 = vld [vmem:[%s3 + $0xb0] sm:$0xff]
        %v1300 = vld [vmem:[%s3 + $0xb8] sm:$0xff]
        %v1301 = vld [vmem:[%s3 + $0xc0] sm:$0xff]
        %v1302 = vld [vmem:[%s3 + $0xc8] sm:$0xff]
        %v1303 = vld [vmem:[%s3 + $0xd0] sm:$0xff]
        %v1304 = vld [vmem:[%s3 + $0xd8] sm:$0xff]
        %v1305 = vld [vmem:[%s3 + $0xe0] sm:$0xff]
        %v1306 = vld [vmem:[%s3 + $0xe8] sm:$0xff]
        %v1307 = vld [vmem:[%s3 + $0xf0] sm:$0xff]
        %v1308 = vld [vmem:[%s3 + $0xf8] sm:$0xff]
        %1310 = vset.pattern.permute.xlu0 0
        %1311 = vperm.xlu0 %1310, %v1277
        %v1312 = vpop.permute.xlu0 %1311
        %1315 = vset.pattern.permute.xlu0 0
        %1316 = vperm.xlu0 %1315, %v1278
        %v1317 = vpop.permute.xlu0 %1316
        %1320 = vset.pattern.permute.xlu0 0
        %1321 = vperm.xlu0 %1320, %v1279
        %v1322 = vpop.permute.xlu0 %1321
        %1325 = vset.pattern.permute.xlu0 0
        %1326 = vperm.xlu0 %1325, %v1280
        %v1327 = vpop.permute.xlu0 %1326
        %1330 = vset.pattern.permute.xlu0 0
        %1331 = vperm.xlu0 %1330, %v1281
        %v1332 = vpop.permute.xlu0 %1331
        %1335 = vset.pattern.permute.xlu0 0
        %1336 = vperm.xlu0 %1335, %v1282
        %v1337 = vpop.permute.xlu0 %1336
        %1340 = vset.pattern.permute.xlu0 0
        %1341 = vperm.xlu0 %1340, %v1283
        %v1342 = vpop.permute.xlu0 %1341
        %1345 = vset.pattern.permute.xlu0 0
        %1346 = vperm.xlu0 %1345, %v1284
        %v1347 = vpop.permute.xlu0 %1346
        %1350 = vset.pattern.permute.xlu0 0
        %1351 = vperm.xlu0 %1350, %v1285
        %v1352 = vpop.permute.xlu0 %1351
        %1355 = vset.pattern.permute.xlu0 0
        %1356 = vperm.xlu0 %1355, %v1286
        %v1357 = vpop.permute.xlu0 %1356
        %1360 = vset.pattern.permute.xlu0 0
        %1361 = vperm.xlu0 %1360, %v1287
        %v1362 = vpop.permute.xlu0 %1361
        %1365 = vset.pattern.permute.xlu0 0
        %1366 = vperm.xlu0 %1365, %v1288
        %v1367 = vpop.permute.xlu0 %1366
        %1370 = vset.pattern.permute.xlu0 0
        %1371 = vperm.xlu0 %1370, %v1289
        %v1372 = vpop.permute.xlu0 %1371
        %1375 = vset.pattern.permute.xlu0 0
        %1376 = vperm.xlu0 %1375, %v1290
        %v1377 = vpop.permute.xlu0 %1376
        %1380 = vset.pattern.permute.xlu0 0
        %1381 = vperm.xlu0 %1380, %v1291
        %v1382 = vpop.permute.xlu0 %1381
        %1385 = vset.pattern.permute.xlu0 0
        %1386 = vperm.xlu0 %1385, %v1292
        %v1387 = vpop.permute.xlu0 %1386
        %1390 = vset.pattern.permute.xlu0 0
        %1391 = vperm.xlu0 %1390, %v1293
        %v1392 = vpop.permute.xlu0 %1391
        %1395 = vset.pattern.permute.xlu0 0
        %1396 = vperm.xlu0 %1395, %v1294
        %v1397 = vpop.permute.xlu0 %1396
        %1400 = vset.pattern.permute.xlu0 0
        %1401 = vperm.xlu0 %1400, %v1295
        %v1402 = vpop.permute.xlu0 %1401
        %1405 = vset.pattern.permute.xlu0 0
        %1406 = vperm.xlu0 %1405, %v1296
        %v1407 = vpop.permute.xlu0 %1406
        %1410 = vset.pattern.permute.xlu0 0
        %1411 = vperm.xlu0 %1410, %v1297
        %v1412 = vpop.permute.xlu0 %1411
        %1415 = vset.pattern.permute.xlu0 0
        %1416 = vperm.xlu0 %1415, %v1298
        %v1417 = vpop.permute.xlu0 %1416
        %1420 = vset.pattern.permute.xlu0 0
        %1421 = vperm.xlu0 %1420, %v1299
        %v1422 = vpop.permute.xlu0 %1421
        %1425 = vset.pattern.permute.xlu0 0
        %1426 = vperm.xlu0 %1425, %v1300
        %v1427 = vpop.permute.xlu0 %1426
        %1430 = vset.pattern.permute.xlu0 0
        %1431 = vperm.xlu0 %1430, %v1301
        %v1432 = vpop.permute.xlu0 %1431
        %1435 = vset.pattern.permute.xlu0 0
        %1436 = vperm.xlu0 %1435, %v1302
        %v1437 = vpop.permute.xlu0 %1436
        %1440 = vset.pattern.permute.xlu0 0
        %1441 = vperm.xlu0 %1440, %v1303
        %v1442 = vpop.permute.xlu0 %1441
        %1445 = vset.pattern.permute.xlu0 0
        %1446 = vperm.xlu0 %1445, %v1304
        %v1447 = vpop.permute.xlu0 %1446
        %1450 = vset.pattern.permute.xlu0 0
        %1451 = vperm.xlu0 %1450, %v1305
        %v1452 = vpop.permute.xlu0 %1451
        %1455 = vset.pattern.permute.xlu0 0
        %1456 = vperm.xlu0 %1455, %v1306
        %v1457 = vpop.permute.xlu0 %1456
        %1460 = vset.pattern.permute.xlu0 0
        %1461 = vperm.xlu0 %1460, %v1307
        %v1462 = vpop.permute.xlu0 %1461
        %1465 = vset.pattern.permute.xlu0 0
        %1466 = vperm.xlu0 %1465, %v1308
        %v1467 = vpop.permute.xlu0 %1466
        %v1469 = vadd.f32 %v1213, %v1312
        %v1470 = vadd.f32 %v1214, %v1312
        %v1471 = vadd.f32 %v1215, %v1317
        %v1472 = vadd.f32 %v1216, %v1317
        %v1473 = vadd.f32 %v1217, %v1322
        %v1474 = vadd.f32 %v1218, %v1322
        %v1475 = vadd.f32 %v1219, %v1327
        %v1476 = vadd.f32 %v1220, %v1327
        %v1477 = vadd.f32 %v1221, %v1332
        %v1478 = vadd.f32 %v1222, %v1332
        %v1479 = vadd.f32 %v1223, %v1337
        %v1480 = vadd.f32 %v1224, %v1337
        %v1481 = vadd.f32 %v1225, %v1342
        %v1482 = vadd.f32 %v1226, %v1342
        %v1483 = vadd.f32 %v1227, %v1347
        %v1484 = vadd.f32 %v1228, %v1347
        %v1485 = vadd.f32 %v1229, %v1352
        %v1486 = vadd.f32 %v1230, %v1352
        %v1487 = vadd.f32 %v1231, %v1357
        %v1488 = vadd.f32 %v1232, %v1357
        %v1489 = vadd.f32 %v1233, %v1362
        %v1490 = vadd.f32 %v1234, %v1362
        %v1491 = vadd.f32 %v1235, %v1367
        %v1492 = vadd.f32 %v1236, %v1367
        %v1493 = vadd.f32 %v1237, %v1372
        %v1494 = vadd.f32 %v1238, %v1372
        %v1495 = vadd.f32 %v1239, %v1377
        %v1496 = vadd.f32 %v1240, %v1377
        %v1497 = vadd.f32 %v1241, %v1382
        %v1498 = vadd.f32 %v1242, %v1382
        %v1499 = vadd.f32 %v1243, %v1387
        %v1500 = vadd.f32 %v1244, %v1387
        %v1501 = vadd.f32 %v1245, %v1392
        %v1502 = vadd.f32 %v1246, %v1392
        %v1503 = vadd.f32 %v1247, %v1397
        %v1504 = vadd.f32 %v1248, %v1397
        %v1505 = vadd.f32 %v1249, %v1402
        %v1506 = vadd.f32 %v1250, %v1402
        %v1507 = vadd.f32 %v1251, %v1407
        %v1508 = vadd.f32 %v1252, %v1407
        %v1509 = vadd.f32 %v1253, %v1412
        %v1510 = vadd.f32 %v1254, %v1412
        %v1511 = vadd.f32 %v1255, %v1417
        %v1512 = vadd.f32 %v1256, %v1417
        %v1513 = vadd.f32 %v1257, %v1422
        %v1514 = vadd.f32 %v1258, %v1422
        %v1515 = vadd.f32 %v1259, %v1427
        %v1516 = vadd.f32 %v1260, %v1427
        %v1517 = vadd.f32 %v1261, %v1432
        %v1518 = vadd.f32 %v1262, %v1432
        %v1519 = vadd.f32 %v1263, %v1437
        %v1520 = vadd.f32 %v1264, %v1437
        %v1521 = vadd.f32 %v1265, %v1442
        %v1522 = vadd.f32 %v1266, %v1442
        %v1523 = vadd.f32 %v1267, %v1447
        %v1524 = vadd.f32 %v1268, %v1447
        %v1525 = vadd.f32 %v1269, %v1452
        %v1526 = vadd.f32 %v1270, %v1452
        %v1527 = vadd.f32 %v1271, %v1457
        %v1528 = vadd.f32 %v1272, %v1457
        %v1529 = vadd.f32 %v1273, %v1462
        %v1530 = vadd.f32 %v1274, %v1462
        %v1531 = vadd.f32 %v1275, %v1467
        %v1532 = vadd.f32 %v1276, %v1467
        %vm1533 = vcmp.gt.f32.partialorder %v1469, 0.0
        %vm1534 = vcmp.gt.f32.partialorder %v1470, 0.0
        %vm1535 = vcmp.gt.f32.partialorder %v1471, 0.0
        %vm1536 = vcmp.gt.f32.partialorder %v1472, 0.0
        %vm1537 = vcmp.gt.f32.partialorder %v1473, 0.0
        %vm1538 = vcmp.gt.f32.partialorder %v1474, 0.0
        %vm1539 = vcmp.gt.f32.partialorder %v1475, 0.0
        %vm1540 = vcmp.gt.f32.partialorder %v1476, 0.0
        %vm1541 = vcmp.gt.f32.partialorder %v1477, 0.0
        %vm1542 = vcmp.gt.f32.partialorder %v1478, 0.0
        %vm1543 = vcmp.gt.f32.partialorder %v1479, 0.0
        %vm1544 = vcmp.gt.f32.partialorder %v1480, 0.0
        %vm1545 = vcmp.gt.f32.partialorder %v1481, 0.0
        %vm1546 = vcmp.gt.f32.partialorder %v1482, 0.0
        %vm1547 = vcmp.gt.f32.partialorder %v1483, 0.0
        %vm1548 = vcmp.gt.f32.partialorder %v1484, 0.0
        %vm1549 = vcmp.gt.f32.partialorder %v1485, 0.0
        %vm1550 = vcmp.gt.f32.partialorder %v1486, 0.0
        %vm1551 = vcmp.gt.f32.partialorder %v1487, 0.0
        %vm1552 = vcmp.gt.f32.partialorder %v1488, 0.0
        %vm1553 = vcmp.gt.f32.partialorder %v1489, 0.0
        %vm1554 = vcmp.gt.f32.partialorder %v1490, 0.0
        %vm1555 = vcmp.gt.f32.partialorder %v1491, 0.0
        %vm1556 = vcmp.gt.f32.partialorder %v1492, 0.0
        %vm1557 = vcmp.gt.f32.partialorder %v1493, 0.0
        %vm1558 = vcmp.gt.f32.partialorder %v1494, 0.0
        %vm1559 = vcmp.gt.f32.partialorder %v1495, 0.0
        %vm1560 = vcmp.gt.f32.partialorder %v1496, 0.0
        %vm1561 = vcmp.gt.f32.partialorder %v1497, 0.0
        %vm1562 = vcmp.gt.f32.partialorder %v1498, 0.0
        %vm1563 = vcmp.gt.f32.partialorder %v1499, 0.0
        %vm1564 = vcmp.gt.f32.partialorder %v1500, 0.0
        %vm1565 = vcmp.gt.f32.partialorder %v1501, 0.0
        %vm1566 = vcmp.gt.f32.partialorder %v1502, 0.0
        %vm1567 = vcmp.gt.f32.partialorder %v1503, 0.0
        %vm1568 = vcmp.gt.f32.partialorder %v1504, 0.0
        %vm1569 = vcmp.gt.f32.partialorder %v1505, 0.0
        %vm1570 = vcmp.gt.f32.partialorder %v1506, 0.0
        %vm1571 = vcmp.gt.f32.partialorder %v1507, 0.0
        %vm1572 = vcmp.gt.f32.partialorder %v1508, 0.0
        %vm1573 = vcmp.gt.f32.partialorder %v1509, 0.0
        %vm1574 = vcmp.gt.f32.partialorder %v1510, 0.0
        %vm1575 = vcmp.gt.f32.partialorder %v1511, 0.0
        %vm1576 = vcmp.gt.f32.partialorder %v1512, 0.0
        %vm1577 = vcmp.gt.f32.partialorder %v1513, 0.0
        %vm1578 = vcmp.gt.f32.partialorder %v1514, 0.0
        %vm1579 = vcmp.gt.f32.partialorder %v1515, 0.0
        %vm1580 = vcmp.gt.f32.partialorder %v1516, 0.0
        %vm1581 = vcmp.gt.f32.partialorder %v1517, 0.0
        %vm1582 = vcmp.gt.f32.partialorder %v1518, 0.0
        %vm1583 = vcmp.gt.f32.partialorder %v1519, 0.0
        %vm1584 = vcmp.gt.f32.partialorder %v1520, 0.0
        %vm1585 = vcmp.gt.f32.partialorder %v1521, 0.0
        %vm1586 = vcmp.gt.f32.partialorder %v1522, 0.0
        %vm1587 = vcmp.gt.f32.partialorder %v1523, 0.0
        %vm1588 = vcmp.gt.f32.partialorder %v1524, 0.0
        %vm1589 = vcmp.gt.f32.partialorder %v1525, 0.0
        %vm1590 = vcmp.gt.f32.partialorder %v1526, 0.0
        %vm1591 = vcmp.gt.f32.partialorder %v1527, 0.0
        %vm1592 = vcmp.gt.f32.partialorder %v1528, 0.0
        %vm1593 = vcmp.gt.f32.partialorder %v1529, 0.0
        %vm1594 = vcmp.gt.f32.partialorder %v1530, 0.0
        %vm1595 = vcmp.gt.f32.partialorder %v1531, 0.0
        %vm1596 = vcmp.gt.f32.partialorder %v1532, 0.0
        %v1597 = vmul.f32 %v1469, 0.01
        %v1598 = vmul.f32 %v1470, 0.01
        %v1599 = vmul.f32 %v1471, 0.01
        %v1600 = vmul.f32 %v1472, 0.01
        %v1601 = vmul.f32 %v1473, 0.01
        %v1602 = vmul.f32 %v1474, 0.01
        %v1603 = vmul.f32 %v1475, 0.01
        %v1604 = vmul.f32 %v1476, 0.01
        %v1605 = vmul.f32 %v1477, 0.01
        %v1606 = vmul.f32 %v1478, 0.01
        %v1607 = vmul.f32 %v1479, 0.01
        %v1608 = vmul.f32 %v1480, 0.01
        %v1609 = vmul.f32 %v1481, 0.01
        %v1610 = vmul.f32 %v1482, 0.01
        %v1611 = vmul.f32 %v1483, 0.01
        %v1612 = vmul.f32 %v1484, 0.01
        %v1613 = vmul.f32 %v1485, 0.01
        %v1614 = vmul.f32 %v1486, 0.01
        %v1615 = vmul.f32 %v1487, 0.01
        %v1616 = vmul.f32 %v1488, 0.01
        %v1617 = vmul.f32 %v1489, 0.01
        %v1618 = vmul.f32 %v1490, 0.01
        %v1619 = vmul.f32 %v1491, 0.01
        %v1620 = vmul.f32 %v1492, 0.01
        %v1621 = vmul.f32 %v1493, 0.01
        %v1622 = vmul.f32 %v1494, 0.01
        %v1623 = vmul.f32 %v1495, 0.01
        %v1624 = vmul.f32 %v1496, 0.01
        %v1625 = vmul.f32 %v1497, 0.01
        %v1626 = vmul.f32 %v1498, 0.01
        %v1627 = vmul.f32 %v1499, 0.01
        %v1628 = vmul.f32 %v1500, 0.01
        %v1629 = vmul.f32 %v1501, 0.01
        %v1630 = vmul.f32 %v1502, 0.01
        %v1631 = vmul.f32 %v1503, 0.01
        %v1632 = vmul.f32 %v1504, 0.01
        %v1633 = vmul.f32 %v1505, 0.01
        %v1634 = vmul.f32 %v1506, 0.01
        %v1635 = vmul.f32 %v1507, 0.01
        %v1636 = vmul.f32 %v1508, 0.01
        %v1637 = vmul.f32 %v1509, 0.01
        %v1638 = vmul.f32 %v1510, 0.01
        %v1639 = vmul.f32 %v1511, 0.01
        %v1640 = vmul.f32 %v1512, 0.01
        %v1641 = vmul.f32 %v1513, 0.01
        %v1642 = vmul.f32 %v1514, 0.01
        %v1643 = vmul.f32 %v1515, 0.01
        %v1644 = vmul.f32 %v1516, 0.01
        %v1645 = vmul.f32 %v1517, 0.01
        %v1646 = vmul.f32 %v1518, 0.01
        %v1647 = vmul.f32 %v1519, 0.01
        %v1648 = vmul.f32 %v1520, 0.01
        %v1649 = vmul.f32 %v1521, 0.01
        %v1650 = vmul.f32 %v1522, 0.01
        %v1651 = vmul.f32 %v1523, 0.01
        %v1652 = vmul.f32 %v1524, 0.01
        %v1653 = vmul.f32 %v1525, 0.01
        %v1654 = vmul.f32 %v1526, 0.01
        %v1655 = vmul.f32 %v1527, 0.01
        %v1656 = vmul.f32 %v1528, 0.01
        %v1657 = vmul.f32 %v1529, 0.01
        %v1658 = vmul.f32 %v1530, 0.01
        %v1659 = vmul.f32 %v1531, 0.01
        %v1660 = vmul.f32 %v1532, 0.01
        %v1661 = vsel %vm1533, %v1469, %v1597
        %v1662 = vsel %vm1534, %v1470, %v1598
        %v1663 = vsel %vm1535, %v1471, %v1599
        %v1664 = vsel %vm1536, %v1472, %v1600
        %v1665 = vsel %vm1537, %v1473, %v1601
        %v1666 = vsel %vm1538, %v1474, %v1602
        %v1667 = vsel %vm1539, %v1475, %v1603
        %v1668 = vsel %vm1540, %v1476, %v1604
        %v1669 = vsel %vm1541, %v1477, %v1605
        %v1670 = vsel %vm1542, %v1478, %v1606
        %v1671 = vsel %vm1543, %v1479, %v1607
        %v1672 = vsel %vm1544, %v1480, %v1608
        %v1673 = vsel %vm1545, %v1481, %v1609
        %v1674 = vsel %vm1546, %v1482, %v1610
        %v1675 = vsel %vm1547, %v1483, %v1611
        %v1676 = vsel %vm1548, %v1484, %v1612
        %v1677 = vsel %vm1549, %v1485, %v1613
        %v1678 = vsel %vm1550, %v1486, %v1614
        %v1679 = vsel %vm1551, %v1487, %v1615
        %v1680 = vsel %vm1552, %v1488, %v1616
        %v1681 = vsel %vm1553, %v1489, %v1617
        %v1682 = vsel %vm1554, %v1490, %v1618
        %v1683 = vsel %vm1555, %v1491, %v1619
        %v1684 = vsel %vm1556, %v1492, %v1620
        %v1685 = vsel %vm1557, %v1493, %v1621
        %v1686 = vsel %vm1558, %v1494, %v1622
        %v1687 = vsel %vm1559, %v1495, %v1623
        %v1688 = vsel %vm1560, %v1496, %v1624
        %v1689 = vsel %vm1561, %v1497, %v1625
        %v1690 = vsel %vm1562, %v1498, %v1626
        %v1691 = vsel %vm1563, %v1499, %v1627
        %v1692 = vsel %vm1564, %v1500, %v1628
        %v1693 = vsel %vm1565, %v1501, %v1629
        %v1694 = vsel %vm1566, %v1502, %v1630
        %v1695 = vsel %vm1567, %v1503, %v1631
        %v1696 = vsel %vm1568, %v1504, %v1632
        %v1697 = vsel %vm1569, %v1505, %v1633
        %v1698 = vsel %vm1570, %v1506, %v1634
        %v1699 = vsel %vm1571, %v1507, %v1635
        %v1700 = vsel %vm1572, %v1508, %v1636
        %v1701 = vsel %vm1573, %v1509, %v1637
        %v1702 = vsel %vm1574, %v1510, %v1638
        %v1703 = vsel %vm1575, %v1511, %v1639
        %v1704 = vsel %vm1576, %v1512, %v1640
        %v1705 = vsel %vm1577, %v1513, %v1641
        %v1706 = vsel %vm1578, %v1514, %v1642
        %v1707 = vsel %vm1579, %v1515, %v1643
        %v1708 = vsel %vm1580, %v1516, %v1644
        %v1709 = vsel %vm1581, %v1517, %v1645
        %v1710 = vsel %vm1582, %v1518, %v1646
        %v1711 = vsel %vm1583, %v1519, %v1647
        %v1712 = vsel %vm1584, %v1520, %v1648
        %v1713 = vsel %vm1585, %v1521, %v1649
        %v1714 = vsel %vm1586, %v1522, %v1650
        %v1715 = vsel %vm1587, %v1523, %v1651
        %v1716 = vsel %vm1588, %v1524, %v1652
        %v1717 = vsel %vm1589, %v1525, %v1653
        %v1718 = vsel %vm1590, %v1526, %v1654
        %v1719 = vsel %vm1591, %v1527, %v1655
        %v1720 = vsel %vm1592, %v1528, %v1656
        %v1721 = vsel %vm1593, %v1529, %v1657
        %v1722 = vsel %vm1594, %v1530, %v1658
        %v1723 = vsel %vm1595, %v1531, %v1659
        %v1724 = vsel %vm1596, %v1532, %v1660
        %v1725 = vld [vmem:[%s4] sm:$0xff]
        %v1726 = vld [vmem:[%s4 + $0x8] sm:$0xff]
        %v1727 = vld [vmem:[%s4 + $0x10] sm:$0xff]
        %v1728 = vld [vmem:[%s4 + $0x18] sm:$0xff]
        %v1729 = vld [vmem:[%s4 + $0x20] sm:$0xff]
        %v1730 = vld [vmem:[%s4 + $0x28] sm:$0xff]
        %v1731 = vld [vmem:[%s4 + $0x30] sm:$0xff]
        %v1732 = vld [vmem:[%s4 + $0x38] sm:$0xff]
        %v1733 = vld [vmem:[%s4 + $0x40] sm:$0xff]
        %v1734 = vld [vmem:[%s4 + $0x48] sm:$0xff]
        %v1735 = vld [vmem:[%s4 + $0x50] sm:$0xff]
        %v1736 = vld [vmem:[%s4 + $0x58] sm:$0xff]
        %v1737 = vld [vmem:[%s4 + $0x60] sm:$0xff]
        %v1738 = vld [vmem:[%s4 + $0x68] sm:$0xff]
        %v1739 = vld [vmem:[%s4 + $0x70] sm:$0xff]
        %v1740 = vld [vmem:[%s4 + $0x78] sm:$0xff]
        %v1741 = vld [vmem:[%s5] sm:$0xff]
        %v1742 = vld [vmem:[%s5 + $0x8] sm:$0xff]
        %v1743 = vld [vmem:[%s5 + $0x10] sm:$0xff]
        %v1744 = vld [vmem:[%s5 + $0x18] sm:$0xff]
        %v1745 = vld [vmem:[%s5 + $0x20] sm:$0xff]
        %v1746 = vld [vmem:[%s5 + $0x28] sm:$0xff]
        %v1747 = vld [vmem:[%s5 + $0x30] sm:$0xff]
        %v1748 = vld [vmem:[%s5 + $0x38] sm:$0xff]
        %1750 = vset.pattern.permute.xlu0 0
        %1751 = vperm.xlu0 %1750, %v1741
        %v1752 = vpop.permute.xlu0 %1751
        %1755 = vset.pattern.permute.xlu0 0
        %1756 = vperm.xlu0 %1755, %v1742
        %v1757 = vpop.permute.xlu0 %1756
        %1760 = vset.pattern.permute.xlu0 0
        %1761 = vperm.xlu0 %1760, %v1743
        %v1762 = vpop.permute.xlu0 %1761
        %1765 = vset.pattern.permute.xlu0 0
        %1766 = vperm.xlu0 %1765, %v1744
        %v1767 = vpop.permute.xlu0 %1766
        %1770 = vset.pattern.permute.xlu0 0
        %1771 = vperm.xlu0 %1770, %v1745
        %v1772 = vpop.permute.xlu0 %1771
        %1775 = vset.pattern.permute.xlu0 0
        %1776 = vperm.xlu0 %1775, %v1746
        %v1777 = vpop.permute.xlu0 %1776
        %1780 = vset.pattern.permute.xlu0 0
        %1781 = vperm.xlu0 %1780, %v1747
        %v1782 = vpop.permute.xlu0 %1781
        %1785 = vset.pattern.permute.xlu0 0
        %1786 = vperm.xlu0 %1785, %v1748
        %v1787 = vpop.permute.xlu0 %1786
        %1789 = vmatprep.subr.mxu0 %v1692
        %1790 = vmatpush1.msra.mxu0 %v1691
        %1791 = vmatprep.subr.mxu0 %v1690
        %1792 = vmatpush1.msra.mxu0 %v1689
        %1793 = vmatprep.subr.mxu0 %v1688
        %1794 = vmatpush1.msra.mxu0 %v1687
        %1795 = vmatprep.subr.mxu0 %v1686
        %1796 = vmatpush1.msra.mxu0 %v1685
        %1797 = vmatprep.subr.mxu0 %v1684
        %1798 = vmatpush1.msra.mxu0 %v1683
        %1799 = vmatprep.subr.mxu0 %v1682
        %1800 = vmatpush1.msra.mxu0 %v1681
        %1801 = vmatprep.subr.mxu0 %v1680
        %1802 = vmatpush1.msra.mxu0 %v1679
        %1803 = vmatprep.subr.mxu0 %v1678
        %1804 = vmatpush1.msra.mxu0 %v1677
        %1805 = vmatprep.subr.mxu0 %v1676
        %1806 = vmatpush1.msra.mxu0 %v1675
        %1807 = vmatprep.subr.mxu0 %v1674
        %1808 = vmatpush1.msra.mxu0 %v1673
        %1809 = vmatprep.subr.mxu0 %v1672
        %1810 = vmatpush1.msra.mxu0 %v1671
        %1811 = vmatprep.subr.mxu0 %v1670
        %1812 = vmatpush1.msra.mxu0 %v1669
        %1813 = vmatprep.subr.mxu0 %v1668
        %1814 = vmatpush1.msra.mxu0 %v1667
        %1815 = vmatprep.subr.mxu0 %v1666
        %1816 = vmatpush1.msra.mxu0 %v1665
        %1817 = vmatprep.subr.mxu0 %v1664
        %1818 = vmatpush1.msra.mxu0 %v1663
        %1819 = vmatprep.subr.mxu0 %v1662
        %1820 = vmatpush1.msra.mxu0 %v1661
        %1821 = vmatprep.subr.mxu0 %v1724
        %1822 = vmatpush2.msra.mxu0 %v1723
        %1823 = vmatprep.subr.mxu0 %v1722
        %1824 = vmatpush2.msra.mxu0 %v1721
        %1825 = vmatprep.subr.mxu0 %v1720
        %1826 = vmatpush2.msra.mxu0 %v1719
        %1827 = vmatprep.subr.mxu0 %v1718
        %1828 = vmatpush2.msra.mxu0 %v1717
        %1829 = vmatprep.subr.mxu0 %v1716
        %1830 = vmatpush2.msra.mxu0 %v1715
        %1831 = vmatprep.subr.mxu0 %v1714
        %1832 = vmatpush2.msra.mxu0 %v1713
        %1833 = vmatprep.subr.mxu0 %v1712
        %1834 = vmatpush2.msra.mxu0 %v1711
        %1835 = vmatprep.subr.mxu0 %v1710
        %1836 = vmatpush2.msra.mxu0 %v1709
        %1837 = vmatprep.subr.mxu0 %v1708
        %1838 = vmatpush2.msra.mxu0 %v1707
        %1839 = vmatprep.subr.mxu0 %v1706
        %1840 = vmatpush2.msra.mxu0 %v1705
        %1841 = vmatprep.subr.mxu0 %v1704
        %1842 = vmatpush2.msra.mxu0 %v1703
        %1843 = vmatprep.subr.mxu0 %v1702
        %1844 = vmatpush2.msra.mxu0 %v1701
        %1845 = vmatprep.subr.mxu0 %v1700
        %1846 = vmatpush2.msra.mxu0 %v1699
        %1847 = vmatprep.subr.mxu0 %v1698
        %1848 = vmatpush2.msra.mxu0 %v1697
        %1849 = vmatprep.subr.mxu0 %v1696
        %1850 = vmatpush2.msra.mxu0 %v1695
        %1851 = vmatprep.subr.mxu0 %v1694
        %1852 = vmatpush2.msra.mxu0 %v1693
        %1853 = vmatprep.mubr.f32.mxu0 %v1726
        %1854 = vmatmul.mubr.f32.gmra.mxu0 %v1725
        %v1855 = vpop.f32.mrf.mxu0
        %v1856 = vadd.f32 %v1752, %v1855
        %v1857 = vpop.f32.mrf.mxu0
        %v1858 = vadd.f32 %v1752, %v1857
        %1859 = vmatprep.mubr.f32.mxu0 %v1728
        %1860 = vmatmul.mubr.f32.gmra.mxu0 %v1727
        %v1861 = vpop.f32.mrf.mxu0
        %v1862 = vadd.f32 %v1757, %v1861
        %v1863 = vpop.f32.mrf.mxu0
        %v1864 = vadd.f32 %v1757, %v1863
        %1865 = vmatprep.mubr.f32.mxu0 %v1730
        %1866 = vmatmul.mubr.f32.gmra.mxu0 %v1729
        %v1867 = vpop.f32.mrf.mxu0
        %v1868 = vadd.f32 %v1762, %v1867
        %v1869 = vpop.f32.mrf.mxu0
        %v1870 = vadd.f32 %v1762, %v1869
        %1871 = vmatprep.mubr.f32.mxu0 %v1732
        %1872 = vmatmul.mubr.f32.gmra.mxu0 %v1731
        %v1873 = vpop.f32.mrf.mxu0
        %v1874 = vadd.f32 %v1767, %v1873
        %v1875 = vpop.f32.mrf.mxu0
        %v1876 = vadd.f32 %v1767, %v1875
        %1877 = vmatprep.mubr.f32.mxu0 %v1734
        %1878 = vmatmul.mubr.f32.gmra.mxu0 %v1733
        %v1879 = vpop.f32.mrf.mxu0
        %v1880 = vadd.f32 %v1772, %v1879
        %v1881 = vpop.f32.mrf.mxu0
        %v1882 = vadd.f32 %v1772, %v1881
        %1883 = vmatprep.mubr.f32.mxu0 %v1736
        %1884 = vmatmul.mubr.f32.gmra.mxu0 %v1735
        %v1885 = vpop.f32.mrf.mxu0
        %v1886 = vadd.f32 %v1777, %v1885
        %v1887 = vpop.f32.mrf.mxu0
        %v1888 = vadd.f32 %v1777, %v1887
        %1889 = vmatprep.mubr.f32.mxu0 %v1738
        %1890 = vmatmul.mubr.f32.gmra.mxu0 %v1737
        %v1891 = vpop.f32.mrf.mxu0
        %v1892 = vadd.f32 %v1782, %v1891
        %v1893 = vpop.f32.mrf.mxu0
        %v1894 = vadd.f32 %v1782, %v1893
        %1895 = vmatprep.mubr.f32.mxu0 %v1740
        %1896 = vmatmul.mubr.f32.gmra.mxu0 %v1739
        %v1897 = vpop.f32.mrf.mxu0
        %v1898 = vadd.f32 %v1787, %v1897
        %v1899 = vpop.f32.mrf.mxu0
        %v1900 = vadd.f32 %v1787, %v1899
        %1901 = vdwg.mxu0
        %vm1902 = vcmp.gt.f32.partialorder %v1856, 0.0
        %vm1903 = vcmp.gt.f32.partialorder %v1858, 0.0
        %vm1904 = vcmp.gt.f32.partialorder %v1862, 0.0
        %vm1905 = vcmp.gt.f32.partialorder %v1864, 0.0
        %vm1906 = vcmp.gt.f32.partialorder %v1868, 0.0
        %vm1907 = vcmp.gt.f32.partialorder %v1870, 0.0
        %vm1908 = vcmp.gt.f32.partialorder %v1874, 0.0
        %vm1909 = vcmp.gt.f32.partialorder %v1876, 0.0
        %vm1910 = vcmp.gt.f32.partialorder %v1880, 0.0
        %vm1911 = vcmp.gt.f32.partialorder %v1882, 0.0
        %vm1912 = vcmp.gt.f32.partialorder %v1886, 0.0
        %vm1913 = vcmp.gt.f32.partialorder %v1888, 0.0
        %vm1914 = vcmp.gt.f32.partialorder %v1892, 0.0
        %vm1915 = vcmp.gt.f32.partialorder %v1894, 0.0
        %vm1916 = vcmp.gt.f32.partialorder %v1898, 0.0
        %vm1917 = vcmp.gt.f32.partialorder %v1900, 0.0
        %v1918 = vmul.f32 %v1856, 0.01
        %v1919 = vmul.f32 %v1858, 0.01
        %v1920 = vmul.f32 %v1862, 0.01
        %v1921 = vmul.f32 %v1864, 0.01
        %v1922 = vmul.f32 %v1868, 0.01
        %v1923 = vmul.f32 %v1870, 0.01
        %v1924 = vmul.f32 %v1874, 0.01
        %v1925 = vmul.f32 %v1876, 0.01
        %v1926 = vmul.f32 %v1880, 0.01
        %v1927 = vmul.f32 %v1882, 0.01
        %v1928 = vmul.f32 %v1886, 0.01
        %v1929 = vmul.f32 %v1888, 0.01
        %v1930 = vmul.f32 %v1892, 0.01
        %v1931 = vmul.f32 %v1894, 0.01
        %v1932 = vmul.f32 %v1898, 0.01
        %v1933 = vmul.f32 %v1900, 0.01
        %v1934 = vsel %vm1902, %v1856, %v1918
        %v1935 = vsel %vm1903, %v1858, %v1919
        %v1936 = vsel %vm1904, %v1862, %v1920
        %v1937 = vsel %vm1905, %v1864, %v1921
        %v1938 = vsel %vm1906, %v1868, %v1922
        %v1939 = vsel %vm1907, %v1870, %v1923
        %v1940 = vsel %vm1908, %v1874, %v1924
        %v1941 = vsel %vm1909, %v1876, %v1925
        %v1942 = vsel %vm1910, %v1880, %v1926
        %v1943 = vsel %vm1911, %v1882, %v1927
        %v1944 = vsel %vm1912, %v1886, %v1928
        %v1945 = vsel %vm1913, %v1888, %v1929
        %v1946 = vsel %vm1914, %v1892, %v1930
        %v1947 = vsel %vm1915, %v1894, %v1931
        %v1948 = vsel %vm1916, %v1898, %v1932
        %v1949 = vsel %vm1917, %v1900, %v1933
        %v1950 = vld [vmem:[%s6] sm:$0xff]
        %v1951 = vld [vmem:[%s6 + $0x8] sm:$0xff]
        %v1952 = vld [vmem:[%s6 + $0x10] sm:$0xff]
        %v1953 = vld [vmem:[%s6 + $0x18] sm:$0xff]
        %v1954 = vld [vmem:[%s6 + $0x20] sm:$0xff]
        %v1955 = vld [vmem:[%s6 + $0x28] sm:$0xff]
        %v1956 = vld [vmem:[%s6 + $0x30] sm:$0xff]
        %v1957 = vld [vmem:[%s6 + $0x38] sm:$0xff]
        %1959 = vset.pattern.permute.xlu0 0
        %1960 = vperm.xlu0 %1959, %v1950
        %v1961 = vpop.permute.xlu0 %1960
        %1964 = vset.pattern.permute.xlu0 0
        %1965 = vperm.xlu0 %1964, %v1951
        %v1966 = vpop.permute.xlu0 %1965
        %1969 = vset.pattern.permute.xlu0 0
        %1970 = vperm.xlu0 %1969, %v1952
        %v1971 = vpop.permute.xlu0 %1970
        %1974 = vset.pattern.permute.xlu0 0
        %1975 = vperm.xlu0 %1974, %v1953
        %v1976 = vpop.permute.xlu0 %1975
        %1979 = vset.pattern.permute.xlu0 0
        %1980 = vperm.xlu0 %1979, %v1954
        %v1981 = vpop.permute.xlu0 %1980
        %1984 = vset.pattern.permute.xlu0 0
        %1985 = vperm.xlu0 %1984, %v1955
        %v1986 = vpop.permute.xlu0 %1985
        %1989 = vset.pattern.permute.xlu0 0
        %1990 = vperm.xlu0 %1989, %v1956
        %v1991 = vpop.permute.xlu0 %1990
        %1994 = vset.pattern.permute.xlu0 0
        %1995 = vperm.xlu0 %1994, %v1957
        %v1996 = vpop.permute.xlu0 %1995
        %v1998 = vmul.f32 %v1934, %v1961
        %v1999 = vmul.f32 %v1935, %v1961
        %v2000 = vmul.f32 %v1936, %v1966
        %v2001 = vmul.f32 %v1937, %v1966
        %v2002 = vmul.f32 %v1938, %v1971
        %v2003 = vmul.f32 %v1939, %v1971
        %v2004 = vmul.f32 %v1940, %v1976
        %v2005 = vmul.f32 %v1941, %v1976
        %v2006 = vmul.f32 %v1942, %v1981
        %v2007 = vmul.f32 %v1943, %v1981
        %v2008 = vmul.f32 %v1944, %v1986
        %v2009 = vmul.f32 %v1945, %v1986
        %v2010 = vmul.f32 %v1946, %v1991
        %v2011 = vmul.f32 %v1947, %v1991
        %v2012 = vmul.f32 %v1948, %v1996
        %v2013 = vmul.f32 %v1949, %v1996
        %v2014 = vadd.f32 %v1998, %v2000
        %v2015 = vadd.f32 %v2014, %v2002
        %v2016 = vadd.f32 %v2015, %v2004
        %v2017 = vadd.f32 %v2016, %v2006
        %v2018 = vadd.f32 %v2017, %v2008
        %v2019 = vadd.f32 %v2018, %v2010
        %v2020 = vadd.f32 %v2019, %v2012
        %v2021 = vrot.slane %v2020, 4
        %v2022 = vadd.f32 %v2020, %v2021
        %v2023 = vrot.slane %v2022, 2
        %v2024 = vadd.f32 %v2022, %v2023
        %v2025 = vrot.slane %v2024, 1
        %v2026 = vadd.f32 %v2024, %v2025
        %v2027 = vadd.f32 %v1999, %v2001
        %v2028 = vadd.f32 %v2027, %v2003
        %v2029 = vadd.f32 %v2028, %v2005
        %v2030 = vadd.f32 %v2029, %v2007
        %v2031 = vadd.f32 %v2030, %v2009
        %v2032 = vadd.f32 %v2031, %v2011
        %v2033 = vadd.f32 %v2032, %v2013
        %v2034 = vrot.slane %v2033, 4
        %v2035 = vadd.f32 %v2033, %v2034
        %v2036 = vrot.slane %v2035, 2
        %v2037 = vadd.f32 %v2035, %v2036
        %v2038 = vrot.slane %v2037, 1
        %v2039 = vadd.f32 %v2037, %v2038
        %v2040 = vld [vmem:[%s7] sm:$0x1]
        %2042 = vset.pattern.permute.xlu0 0
        %2043 = vperm.xlu0 %2042, %v2040
        %v2044 = vpop.permute.xlu0 %2043
        %v2046 = vlaneseq
        %v2047 = vshrl.u32 %v2046, 7
        %v2048 = vsub.s32 0, %v2047
        %v2049 = vrot.slane %v2044, %v2048
        %v2050 = vadd.f32 %v2026, %v2049
        %v2051 = vadd.f32 %v2039, %v2049
        %v2052 = vxor.u32 %v2050, 2147483648
        %v2053 = vxor.u32 %v2051, 2147483648
        %v2054 = vmul.f32 %v2052, 1.442695
        %v2055 = vpow.pop %v2054
        %v2056 = vmul.f32 %v2053, 1.442695
        %v2057 = vpow.pop %v2056
        %v2058 = vadd.f32 %v2055, 1.0
        %v2059 = vadd.f32 %v2057, 1.0
        %v2060 = vrcp.pop %v2058
        %v2061 = vmul.f32 1.0, %v2060
        %v2062 = vrcp.pop %v2059
        %v2063 = vmul.f32 1.0, %v2062
        %s2064 = scalar_lea.vmem %s389, 8 [#allocation2]
        %v2065 = vld [vmem:[%s2064] sm:$0x77]
        %v2066 = vadd.f32 %v449, %v2065
        %v2067 = vmax.f32 %v2066, -0.5
        %v2068 = vmin.f32 %v2067, 0.5
        %s2069 = scalar_lea.vmem %s2, 256
        %v2070 = vld [vmem:[%s2069] sm:$0xff]
        %v2071 = vld [vmem:[%s2069 + $0x8] sm:$0xff]
        %v2072 = vld [vmem:[%s2069 + $0x10] sm:$0xff]
        %v2073 = vld [vmem:[%s2069 + $0x18] sm:$0xff]
        %v2074 = vld [vmem:[%s2069 + $0x20] sm:$0xff]
        %v2075 = vld [vmem:[%s2069 + $0x28] sm:$0xff]
        %v2076 = vld [vmem:[%s2069 + $0x30] sm:$0xff]
        %v2077 = vld [vmem:[%s2069 + $0x38] sm:$0xff]
        %v2078 = vld [vmem:[%s2069 + $0x40] sm:$0xff]
        %v2079 = vld [vmem:[%s2069 + $0x48] sm:$0xff]
        %v2080 = vld [vmem:[%s2069 + $0x50] sm:$0xff]
        %v2081 = vld [vmem:[%s2069 + $0x58] sm:$0xff]
        %v2082 = vld [vmem:[%s2069 + $0x60] sm:$0xff]
        %v2083 = vld [vmem:[%s2069 + $0x68] sm:$0xff]
        %v2084 = vld [vmem:[%s2069 + $0x70] sm:$0xff]
        %v2085 = vld [vmem:[%s2069 + $0x78] sm:$0xff]
        %v2086 = vld [vmem:[%s2069 + $0x80] sm:$0xff]
        %v2087 = vld [vmem:[%s2069 + $0x88] sm:$0xff]
        %v2088 = vld [vmem:[%s2069 + $0x90] sm:$0xff]
        %v2089 = vld [vmem:[%s2069 + $0x98] sm:$0xff]
        %v2090 = vld [vmem:[%s2069 + $0xa0] sm:$0xff]
        %v2091 = vld [vmem:[%s2069 + $0xa8] sm:$0xff]
        %v2092 = vld [vmem:[%s2069 + $0xb0] sm:$0xff]
        %v2093 = vld [vmem:[%s2069 + $0xb8] sm:$0xff]
        %v2094 = vld [vmem:[%s2069 + $0xc0] sm:$0xff]
        %v2095 = vld [vmem:[%s2069 + $0xc8] sm:$0xff]
        %v2096 = vld [vmem:[%s2069 + $0xd0] sm:$0xff]
        %v2097 = vld [vmem:[%s2069 + $0xd8] sm:$0xff]
        %v2098 = vld [vmem:[%s2069 + $0xe0] sm:$0xff]
        %v2099 = vld [vmem:[%s2069 + $0xe8] sm:$0xff]
        %v2100 = vld [vmem:[%s2069 + $0xf0] sm:$0xff]
        %v2101 = vld [vmem:[%s2069 + $0xf8] sm:$0xff]
        %2103 = vset.pattern.permute.xlu0 0
        %2104 = vperm.xlu0 %2103, %v2070
        %v2105 = vpop.permute.xlu0 %2104
        %2108 = vset.pattern.permute.xlu0 0
        %2109 = vperm.xlu0 %2108, %v2071
        %v2110 = vpop.permute.xlu0 %2109
        %2113 = vset.pattern.permute.xlu0 0
        %2114 = vperm.xlu0 %2113, %v2072
        %v2115 = vpop.permute.xlu0 %2114
        %2118 = vset.pattern.permute.xlu0 0
        %2119 = vperm.xlu0 %2118, %v2073
        %v2120 = vpop.permute.xlu0 %2119
        %2123 = vset.pattern.permute.xlu0 0
        %2124 = vperm.xlu0 %2123, %v2074
        %v2125 = vpop.permute.xlu0 %2124
        %2128 = vset.pattern.permute.xlu0 0
        %2129 = vperm.xlu0 %2128, %v2075
        %v2130 = vpop.permute.xlu0 %2129
        %2133 = vset.pattern.permute.xlu0 0
        %2134 = vperm.xlu0 %2133, %v2076
        %v2135 = vpop.permute.xlu0 %2134
        %2138 = vset.pattern.permute.xlu0 0
        %2139 = vperm.xlu0 %2138, %v2077
        %v2140 = vpop.permute.xlu0 %2139
        %2143 = vset.pattern.permute.xlu0 0
        %2144 = vperm.xlu0 %2143, %v2078
        %v2145 = vpop.permute.xlu0 %2144
        %2148 = vset.pattern.permute.xlu0 0
        %2149 = vperm.xlu0 %2148, %v2079
        %v2150 = vpop.permute.xlu0 %2149
        %2153 = vset.pattern.permute.xlu0 0
        %2154 = vperm.xlu0 %2153, %v2080
        %v2155 = vpop.permute.xlu0 %2154
        %2158 = vset.pattern.permute.xlu0 0
        %2159 = vperm.xlu0 %2158, %v2081
        %v2160 = vpop.permute.xlu0 %2159
        %2163 = vset.pattern.permute.xlu0 0
        %2164 = vperm.xlu0 %2163, %v2082
        %v2165 = vpop.permute.xlu0 %2164
        %2168 = vset.pattern.permute.xlu0 0
        %2169 = vperm.xlu0 %2168, %v2083
        %v2170 = vpop.permute.xlu0 %2169
        %2173 = vset.pattern.permute.xlu0 0
        %2174 = vperm.xlu0 %2173, %v2084
        %v2175 = vpop.permute.xlu0 %2174
        %2178 = vset.pattern.permute.xlu0 0
        %2179 = vperm.xlu0 %2178, %v2085
        %v2180 = vpop.permute.xlu0 %2179
        %2183 = vset.pattern.permute.xlu0 0
        %2184 = vperm.xlu0 %2183, %v2086
        %v2185 = vpop.permute.xlu0 %2184
        %2188 = vset.pattern.permute.xlu0 0
        %2189 = vperm.xlu0 %2188, %v2087
        %v2190 = vpop.permute.xlu0 %2189
        %2193 = vset.pattern.permute.xlu0 0
        %2194 = vperm.xlu0 %2193, %v2088
        %v2195 = vpop.permute.xlu0 %2194
        %2198 = vset.pattern.permute.xlu0 0
        %2199 = vperm.xlu0 %2198, %v2089
        %v2200 = vpop.permute.xlu0 %2199
        %2203 = vset.pattern.permute.xlu0 0
        %2204 = vperm.xlu0 %2203, %v2090
        %v2205 = vpop.permute.xlu0 %2204
        %2208 = vset.pattern.permute.xlu0 0
        %2209 = vperm.xlu0 %2208, %v2091
        %v2210 = vpop.permute.xlu0 %2209
        %2213 = vset.pattern.permute.xlu0 0
        %2214 = vperm.xlu0 %2213, %v2092
        %v2215 = vpop.permute.xlu0 %2214
        %2218 = vset.pattern.permute.xlu0 0
        %2219 = vperm.xlu0 %2218, %v2093
        %v2220 = vpop.permute.xlu0 %2219
        %2223 = vset.pattern.permute.xlu0 0
        %2224 = vperm.xlu0 %2223, %v2094
        %v2225 = vpop.permute.xlu0 %2224
        %2228 = vset.pattern.permute.xlu0 0
        %2229 = vperm.xlu0 %2228, %v2095
        %v2230 = vpop.permute.xlu0 %2229
        %2233 = vset.pattern.permute.xlu0 0
        %2234 = vperm.xlu0 %2233, %v2096
        %v2235 = vpop.permute.xlu0 %2234
        %2238 = vset.pattern.permute.xlu0 0
        %2239 = vperm.xlu0 %2238, %v2097
        %v2240 = vpop.permute.xlu0 %2239
        %2243 = vset.pattern.permute.xlu0 0
        %2244 = vperm.xlu0 %2243, %v2098
        %v2245 = vpop.permute.xlu0 %2244
        %2248 = vset.pattern.permute.xlu0 0
        %2249 = vperm.xlu0 %2248, %v2099
        %v2250 = vpop.permute.xlu0 %2249
        %2253 = vset.pattern.permute.xlu0 0
        %2254 = vperm.xlu0 %2253, %v2100
        %v2255 = vpop.permute.xlu0 %2254
        %2258 = vset.pattern.permute.xlu0 0
        %2259 = vperm.xlu0 %2258, %v2101
        %v2260 = vpop.permute.xlu0 %2259
        %v2263 = vlaneseq
        %v2264 = vshrl.u32 %v2263, 7
        %v2265 = vsub.s32 0, %v2264
        %v2266 = vrot.slane %v2068, %v2265
        %v2267 = vlaneseq
        %v2268 = vshrl.u32 %v2267, 7
        %v2269 = vsub.s32 4, %v2268
        %v2270 = vrot.slane %v2068, %v2269
        %v2273 = vlaneseq
        %v2274 = vshrl.u32 %v2273, 7
        %v2275 = vsub.s32 0, %v2274
        %v2276 = vrot.slane %v2266, %v2275
        %v2277 = vlaneseq
        %v2278 = vshrl.u32 %v2277, 7
        %v2279 = vsub.s32 0, %v2278
        %v2280 = vrot.slane %v2270, %v2279
        %v2281 = vmul.f32 %v2105, %v2276
        %v2282 = vmul.f32 %v2105, %v2280
        %v2283 = vmul.f32 %v2110, %v2276
        %v2284 = vmul.f32 %v2110, %v2280
        %v2285 = vmul.f32 %v2115, %v2276
        %v2286 = vmul.f32 %v2115, %v2280
        %v2287 = vmul.f32 %v2120, %v2276
        %v2288 = vmul.f32 %v2120, %v2280
        %v2289 = vmul.f32 %v2125, %v2276
        %v2290 = vmul.f32 %v2125, %v2280
        %v2291 = vmul.f32 %v2130, %v2276
        %v2292 = vmul.f32 %v2130, %v2280
        %v2293 = vmul.f32 %v2135, %v2276
        %v2294 = vmul.f32 %v2135, %v2280
        %v2295 = vmul.f32 %v2140, %v2276
        %v2296 = vmul.f32 %v2140, %v2280
        %v2297 = vmul.f32 %v2145, %v2276
        %v2298 = vmul.f32 %v2145, %v2280
        %v2299 = vmul.f32 %v2150, %v2276
        %v2300 = vmul.f32 %v2150, %v2280
        %v2301 = vmul.f32 %v2155, %v2276
        %v2302 = vmul.f32 %v2155, %v2280
        %v2303 = vmul.f32 %v2160, %v2276
        %v2304 = vmul.f32 %v2160, %v2280
        %v2305 = vmul.f32 %v2165, %v2276
        %v2306 = vmul.f32 %v2165, %v2280
        %v2307 = vmul.f32 %v2170, %v2276
        %v2308 = vmul.f32 %v2170, %v2280
        %v2309 = vmul.f32 %v2175, %v2276
        %v2310 = vmul.f32 %v2175, %v2280
        %v2311 = vmul.f32 %v2180, %v2276
        %v2312 = vmul.f32 %v2180, %v2280
        %v2313 = vmul.f32 %v2185, %v2276
        %v2314 = vmul.f32 %v2185, %v2280
        %v2315 = vmul.f32 %v2190, %v2276
        %v2316 = vmul.f32 %v2190, %v2280
        %v2317 = vmul.f32 %v2195, %v2276
        %v2318 = vmul.f32 %v2195, %v2280
        %v2319 = vmul.f32 %v2200, %v2276
        %v2320 = vmul.f32 %v2200, %v2280
        %v2321 = vmul.f32 %v2205, %v2276
        %v2322 = vmul.f32 %v2205, %v2280
        %v2323 = vmul.f32 %v2210, %v2276
        %v2324 = vmul.f32 %v2210, %v2280
        %v2325 = vmul.f32 %v2215, %v2276
        %v2326 = vmul.f32 %v2215, %v2280
        %v2327 = vmul.f32 %v2220, %v2276
        %v2328 = vmul.f32 %v2220, %v2280
        %v2329 = vmul.f32 %v2225, %v2276
        %v2330 = vmul.f32 %v2225, %v2280
        %v2331 = vmul.f32 %v2230, %v2276
        %v2332 = vmul.f32 %v2230, %v2280
        %v2333 = vmul.f32 %v2235, %v2276
        %v2334 = vmul.f32 %v2235, %v2280
        %v2335 = vmul.f32 %v2240, %v2276
        %v2336 = vmul.f32 %v2240, %v2280
        %v2337 = vmul.f32 %v2245, %v2276
        %v2338 = vmul.f32 %v2245, %v2280
        %v2339 = vmul.f32 %v2250, %v2276
        %v2340 = vmul.f32 %v2250, %v2280
        %v2341 = vmul.f32 %v2255, %v2276
        %v2342 = vmul.f32 %v2255, %v2280
        %v2343 = vmul.f32 %v2260, %v2276
        %v2344 = vmul.f32 %v2260, %v2280
        %2345 = vset.pattern.permute.xlu0 1
        %2346 = vperm.xlu0 %2345, %v2070
        %v2347 = vpop.permute.xlu0 %2346
        %2349 = vset.pattern.permute.xlu0 1
        %2350 = vperm.xlu0 %2349, %v2071
        %v2351 = vpop.permute.xlu0 %2350
        %2353 = vset.pattern.permute.xlu0 1
        %2354 = vperm.xlu0 %2353, %v2072
        %v2355 = vpop.permute.xlu0 %2354
        %2357 = vset.pattern.permute.xlu0 1
        %2358 = vperm.xlu0 %2357, %v2073
        %v2359 = vpop.permute.xlu0 %2358
        %2361 = vset.pattern.permute.xlu0 1
        %2362 = vperm.xlu0 %2361, %v2074
        %v2363 = vpop.permute.xlu0 %2362
        %2365 = vset.pattern.permute.xlu0 1
        %2366 = vperm.xlu0 %2365, %v2075
        %v2367 = vpop.permute.xlu0 %2366
        %2369 = vset.pattern.permute.xlu0 1
        %2370 = vperm.xlu0 %2369, %v2076
        %v2371 = vpop.permute.xlu0 %2370
        %2373 = vset.pattern.permute.xlu0 1
        %2374 = vperm.xlu0 %2373, %v2077
        %v2375 = vpop.permute.xlu0 %2374
        %2377 = vset.pattern.permute.xlu0 1
        %2378 = vperm.xlu0 %2377, %v2078
        %v2379 = vpop.permute.xlu0 %2378
        %2381 = vset.pattern.permute.xlu0 1
        %2382 = vperm.xlu0 %2381, %v2079
        %v2383 = vpop.permute.xlu0 %2382
        %2385 = vset.pattern.permute.xlu0 1
        %2386 = vperm.xlu0 %2385, %v2080
        %v2387 = vpop.permute.xlu0 %2386
        %2389 = vset.pattern.permute.xlu0 1
        %2390 = vperm.xlu0 %2389, %v2081
        %v2391 = vpop.permute.xlu0 %2390
        %2393 = vset.pattern.permute.xlu0 1
        %2394 = vperm.xlu0 %2393, %v2082
        %v2395 = vpop.permute.xlu0 %2394
        %2397 = vset.pattern.permute.xlu0 1
        %2398 = vperm.xlu0 %2397, %v2083
        %v2399 = vpop.permute.xlu0 %2398
        %2401 = vset.pattern.permute.xlu0 1
        %2402 = vperm.xlu0 %2401, %v2084
        %v2403 = vpop.permute.xlu0 %2402
        %2405 = vset.pattern.permute.xlu0 1
        %2406 = vperm.xlu0 %2405, %v2085
        %v2407 = vpop.permute.xlu0 %2406
        %2409 = vset.pattern.permute.xlu0 1
        %2410 = vperm.xlu0 %2409, %v2086
        %v2411 = vpop.permute.xlu0 %2410
        %2413 = vset.pattern.permute.xlu0 1
        %2414 = vperm.xlu0 %2413, %v2087
        %v2415 = vpop.permute.xlu0 %2414
        %2417 = vset.pattern.permute.xlu0 1
        %2418 = vperm.xlu0 %2417, %v2088
        %v2419 = vpop.permute.xlu0 %2418
        %2421 = vset.pattern.permute.xlu0 1
        %2422 = vperm.xlu0 %2421, %v2089
        %v2423 = vpop.permute.xlu0 %2422
        %2425 = vset.pattern.permute.xlu0 1
        %2426 = vperm.xlu0 %2425, %v2090
        %v2427 = vpop.permute.xlu0 %2426
        %2429 = vset.pattern.permute.xlu0 1
        %2430 = vperm.xlu0 %2429, %v2091
        %v2431 = vpop.permute.xlu0 %2430
        %2433 = vset.pattern.permute.xlu0 1
        %2434 = vperm.xlu0 %2433, %v2092
        %v2435 = vpop.permute.xlu0 %2434
        %2437 = vset.pattern.permute.xlu0 1
        %2438 = vperm.xlu0 %2437, %v2093
        %v2439 = vpop.permute.xlu0 %2438
        %2441 = vset.pattern.permute.xlu0 1
        %2442 = vperm.xlu0 %2441, %v2094
        %v2443 = vpop.permute.xlu0 %2442
        %2445 = vset.pattern.permute.xlu0 1
        %2446 = vperm.xlu0 %2445, %v2095
        %v2447 = vpop.permute.xlu0 %2446
        %2449 = vset.pattern.permute.xlu0 1
        %2450 = vperm.xlu0 %2449, %v2096
        %v2451 = vpop.permute.xlu0 %2450
        %2453 = vset.pattern.permute.xlu0 1
        %2454 = vperm.xlu0 %2453, %v2097
        %v2455 = vpop.permute.xlu0 %2454
        %2457 = vset.pattern.permute.xlu0 1
        %2458 = vperm.xlu0 %2457, %v2098
        %v2459 = vpop.permute.xlu0 %2458
        %2461 = vset.pattern.permute.xlu0 1
        %2462 = vperm.xlu0 %2461, %v2099
        %v2463 = vpop.permute.xlu0 %2462
        %2465 = vset.pattern.permute.xlu0 1
        %2466 = vperm.xlu0 %2465, %v2100
        %v2467 = vpop.permute.xlu0 %2466
        %2469 = vset.pattern.permute.xlu0 1
        %2470 = vperm.xlu0 %2469, %v2101
        %v2471 = vpop.permute.xlu0 %2470
        %v2473 = vlaneseq
        %v2474 = vshrl.u32 %v2473, 7
        %v2475 = vsub.s32 1, %v2474
        %v2476 = vrot.slane %v2068, %v2475
        %v2477 = vlaneseq
        %v2478 = vshrl.u32 %v2477, 7
        %v2479 = vsub.s32 5, %v2478
        %v2480 = vrot.slane %v2068, %v2479
        %v2483 = vlaneseq
        %v2484 = vshrl.u32 %v2483, 7
        %v2485 = vsub.s32 1, %v2484
        %v2486 = vrot.slane %v2476, %v2485
        %v2487 = vlaneseq
        %v2488 = vshrl.u32 %v2487, 7
        %v2489 = vsub.s32 1, %v2488
        %v2490 = vrot.slane %v2480, %v2489
        %v2491 = vmul.f32 %v2347, %v2486
        %v2492 = vmul.f32 %v2347, %v2490
        %v2493 = vmul.f32 %v2351, %v2486
        %v2494 = vmul.f32 %v2351, %v2490
        %v2495 = vmul.f32 %v2355, %v2486
        %v2496 = vmul.f32 %v2355, %v2490
        %v2497 = vmul.f32 %v2359, %v2486
        %v2498 = vmul.f32 %v2359, %v2490
        %v2499 = vmul.f32 %v2363, %v2486
        %v2500 = vmul.f32 %v2363, %v2490
        %v2501 = vmul.f32 %v2367, %v2486
        %v2502 = vmul.f32 %v2367, %v2490
        %v2503 = vmul.f32 %v2371, %v2486
        %v2504 = vmul.f32 %v2371, %v2490
        %v2505 = vmul.f32 %v2375, %v2486
        %v2506 = vmul.f32 %v2375, %v2490
        %v2507 = vmul.f32 %v2379, %v2486
        %v2508 = vmul.f32 %v2379, %v2490
        %v2509 = vmul.f32 %v2383, %v2486
        %v2510 = vmul.f32 %v2383, %v2490
        %v2511 = vmul.f32 %v2387, %v2486
        %v2512 = vmul.f32 %v2387, %v2490
        %v2513 = vmul.f32 %v2391, %v2486
        %v2514 = vmul.f32 %v2391, %v2490
        %v2515 = vmul.f32 %v2395, %v2486
        %v2516 = vmul.f32 %v2395, %v2490
        %v2517 = vmul.f32 %v2399, %v2486
        %v2518 = vmul.f32 %v2399, %v2490
        %v2519 = vmul.f32 %v2403, %v2486
        %v2520 = vmul.f32 %v2403, %v2490
        %v2521 = vmul.f32 %v2407, %v2486
        %v2522 = vmul.f32 %v2407, %v2490
        %v2523 = vmul.f32 %v2411, %v2486
        %v2524 = vmul.f32 %v2411, %v2490
        %v2525 = vmul.f32 %v2415, %v2486
        %v2526 = vmul.f32 %v2415, %v2490
        %v2527 = vmul.f32 %v2419, %v2486
        %v2528 = vmul.f32 %v2419, %v2490
        %v2529 = vmul.f32 %v2423, %v2486
        %v2530 = vmul.f32 %v2423, %v2490
        %v2531 = vmul.f32 %v2427, %v2486
        %v2532 = vmul.f32 %v2427, %v2490
        %v2533 = vmul.f32 %v2431, %v2486
        %v2534 = vmul.f32 %v2431, %v2490
        %v2535 = vmul.f32 %v2435, %v2486
        %v2536 = vmul.f32 %v2435, %v2490
        %v2537 = vmul.f32 %v2439, %v2486
        %v2538 = vmul.f32 %v2439, %v2490
        %v2539 = vmul.f32 %v2443, %v2486
        %v2540 = vmul.f32 %v2443, %v2490
        %v2541 = vmul.f32 %v2447, %v2486
        %v2542 = vmul.f32 %v2447, %v2490
        %v2543 = vmul.f32 %v2451, %v2486
        %v2544 = vmul.f32 %v2451, %v2490
        %v2545 = vmul.f32 %v2455, %v2486
        %v2546 = vmul.f32 %v2455, %v2490
        %v2547 = vmul.f32 %v2459, %v2486
        %v2548 = vmul.f32 %v2459, %v2490
        %v2549 = vmul.f32 %v2463, %v2486
        %v2550 = vmul.f32 %v2463, %v2490
        %v2551 = vmul.f32 %v2467, %v2486
        %v2552 = vmul.f32 %v2467, %v2490
        %v2553 = vmul.f32 %v2471, %v2486
        %v2554 = vmul.f32 %v2471, %v2490
        %v2555 = vadd.f32 %v2281, %v2491
        %v2556 = vadd.f32 %v2282, %v2492
        %v2557 = vadd.f32 %v2283, %v2493
        %v2558 = vadd.f32 %v2284, %v2494
        %v2559 = vadd.f32 %v2285, %v2495
        %v2560 = vadd.f32 %v2286, %v2496
        %v2561 = vadd.f32 %v2287, %v2497
        %v2562 = vadd.f32 %v2288, %v2498
        %v2563 = vadd.f32 %v2289, %v2499
        %v2564 = vadd.f32 %v2290, %v2500
        %v2565 = vadd.f32 %v2291, %v2501
        %v2566 = vadd.f32 %v2292, %v2502
        %v2567 = vadd.f32 %v2293, %v2503
        %v2568 = vadd.f32 %v2294, %v2504
        %v2569 = vadd.f32 %v2295, %v2505
        %v2570 = vadd.f32 %v2296, %v2506
        %v2571 = vadd.f32 %v2297, %v2507
        %v2572 = vadd.f32 %v2298, %v2508
        %v2573 = vadd.f32 %v2299, %v2509
        %v2574 = vadd.f32 %v2300, %v2510
        %v2575 = vadd.f32 %v2301, %v2511
        %v2576 = vadd.f32 %v2302, %v2512
        %v2577 = vadd.f32 %v2303, %v2513
        %v2578 = vadd.f32 %v2304, %v2514
        %v2579 = vadd.f32 %v2305, %v2515
        %v2580 = vadd.f32 %v2306, %v2516
        %v2581 = vadd.f32 %v2307, %v2517
        %v2582 = vadd.f32 %v2308, %v2518
        %v2583 = vadd.f32 %v2309, %v2519
        %v2584 = vadd.f32 %v2310, %v2520
        %v2585 = vadd.f32 %v2311, %v2521
        %v2586 = vadd.f32 %v2312, %v2522
        %v2587 = vadd.f32 %v2313, %v2523
        %v2588 = vadd.f32 %v2314, %v2524
        %v2589 = vadd.f32 %v2315, %v2525
        %v2590 = vadd.f32 %v2316, %v2526
        %v2591 = vadd.f32 %v2317, %v2527
        %v2592 = vadd.f32 %v2318, %v2528
        %v2593 = vadd.f32 %v2319, %v2529
        %v2594 = vadd.f32 %v2320, %v2530
        %v2595 = vadd.f32 %v2321, %v2531
        %v2596 = vadd.f32 %v2322, %v2532
        %v2597 = vadd.f32 %v2323, %v2533
        %v2598 = vadd.f32 %v2324, %v2534
        %v2599 = vadd.f32 %v2325, %v2535
        %v2600 = vadd.f32 %v2326, %v2536
        %v2601 = vadd.f32 %v2327, %v2537
        %v2602 = vadd.f32 %v2328, %v2538
        %v2603 = vadd.f32 %v2329, %v2539
        %v2604 = vadd.f32 %v2330, %v2540
        %v2605 = vadd.f32 %v2331, %v2541
        %v2606 = vadd.f32 %v2332, %v2542
        %v2607 = vadd.f32 %v2333, %v2543
        %v2608 = vadd.f32 %v2334, %v2544
        %v2609 = vadd.f32 %v2335, %v2545
        %v2610 = vadd.f32 %v2336, %v2546
        %v2611 = vadd.f32 %v2337, %v2547
        %v2612 = vadd.f32 %v2338, %v2548
        %v2613 = vadd.f32 %v2339, %v2549
        %v2614 = vadd.f32 %v2340, %v2550
        %v2615 = vadd.f32 %v2341, %v2551
        %v2616 = vadd.f32 %v2342, %v2552
        %v2617 = vadd.f32 %v2343, %v2553
        %v2618 = vadd.f32 %v2344, %v2554
        %2619 = vset.pattern.permute.xlu0 2
        %2620 = vperm.xlu0 %2619, %v2070
        %v2621 = vpop.permute.xlu0 %2620
        %2623 = vset.pattern.permute.xlu0 2
        %2624 = vperm.xlu0 %2623, %v2071
        %v2625 = vpop.permute.xlu0 %2624
        %2627 = vset.pattern.permute.xlu0 2
        %2628 = vperm.xlu0 %2627, %v2072
        %v2629 = vpop.permute.xlu0 %2628
        %2631 = vset.pattern.permute.xlu0 2
        %2632 = vperm.xlu0 %2631, %v2073
        %v2633 = vpop.permute.xlu0 %2632
        %2635 = vset.pattern.permute.xlu0 2
        %2636 = vperm.xlu0 %2635, %v2074
        %v2637 = vpop.permute.xlu0 %2636
        %2639 = vset.pattern.permute.xlu0 2
        %2640 = vperm.xlu0 %2639, %v2075
        %v2641 = vpop.permute.xlu0 %2640
        %2643 = vset.pattern.permute.xlu0 2
        %2644 = vperm.xlu0 %2643, %v2076
        %v2645 = vpop.permute.xlu0 %2644
        %2647 = vset.pattern.permute.xlu0 2
        %2648 = vperm.xlu0 %2647, %v2077
        %v2649 = vpop.permute.xlu0 %2648
        %2651 = vset.pattern.permute.xlu0 2
        %2652 = vperm.xlu0 %2651, %v2078
        %v2653 = vpop.permute.xlu0 %2652
        %2655 = vset.pattern.permute.xlu0 2
        %2656 = vperm.xlu0 %2655, %v2079
        %v2657 = vpop.permute.xlu0 %2656
        %2659 = vset.pattern.permute.xlu0 2
        %2660 = vperm.xlu0 %2659, %v2080
        %v2661 = vpop.permute.xlu0 %2660
        %2663 = vset.pattern.permute.xlu0 2
        %2664 = vperm.xlu0 %2663, %v2081
        %v2665 = vpop.permute.xlu0 %2664
        %2667 = vset.pattern.permute.xlu0 2
        %2668 = vperm.xlu0 %2667, %v2082
        %v2669 = vpop.permute.xlu0 %2668
        %2671 = vset.pattern.permute.xlu0 2
        %2672 = vperm.xlu0 %2671, %v2083
        %v2673 = vpop.permute.xlu0 %2672
        %2675 = vset.pattern.permute.xlu0 2
        %2676 = vperm.xlu0 %2675, %v2084
        %v2677 = vpop.permute.xlu0 %2676
        %2679 = vset.pattern.permute.xlu0 2
        %2680 = vperm.xlu0 %2679, %v2085
        %v2681 = vpop.permute.xlu0 %2680
        %2683 = vset.pattern.permute.xlu0 2
        %2684 = vperm.xlu0 %2683, %v2086
        %v2685 = vpop.permute.xlu0 %2684
        %2687 = vset.pattern.permute.xlu0 2
        %2688 = vperm.xlu0 %2687, %v2087
        %v2689 = vpop.permute.xlu0 %2688
        %2691 = vset.pattern.permute.xlu0 2
        %2692 = vperm.xlu0 %2691, %v2088
        %v2693 = vpop.permute.xlu0 %2692
        %2695 = vset.pattern.permute.xlu0 2
        %2696 = vperm.xlu0 %2695, %v2089
        %v2697 = vpop.permute.xlu0 %2696
        %2699 = vset.pattern.permute.xlu0 2
        %2700 = vperm.xlu0 %2699, %v2090
        %v2701 = vpop.permute.xlu0 %2700
        %2703 = vset.pattern.permute.xlu0 2
        %2704 = vperm.xlu0 %2703, %v2091
        %v2705 = vpop.permute.xlu0 %2704
        %2707 = vset.pattern.permute.xlu0 2
        %2708 = vperm.xlu0 %2707, %v2092
        %v2709 = vpop.permute.xlu0 %2708
        %2711 = vset.pattern.permute.xlu0 2
        %2712 = vperm.xlu0 %2711, %v2093
        %v2713 = vpop.permute.xlu0 %2712
        %2715 = vset.pattern.permute.xlu0 2
        %2716 = vperm.xlu0 %2715, %v2094
        %v2717 = vpop.permute.xlu0 %2716
        %2719 = vset.pattern.permute.xlu0 2
        %2720 = vperm.xlu0 %2719, %v2095
        %v2721 = vpop.permute.xlu0 %2720
        %2723 = vset.pattern.permute.xlu0 2
        %2724 = vperm.xlu0 %2723, %v2096
        %v2725 = vpop.permute.xlu0 %2724
        %2727 = vset.pattern.permute.xlu0 2
        %2728 = vperm.xlu0 %2727, %v2097
        %v2729 = vpop.permute.xlu0 %2728
        %2731 = vset.pattern.permute.xlu0 2
        %2732 = vperm.xlu0 %2731, %v2098
        %v2733 = vpop.permute.xlu0 %2732
        %2735 = vset.pattern.permute.xlu0 2
        %2736 = vperm.xlu0 %2735, %v2099
        %v2737 = vpop.permute.xlu0 %2736
        %2739 = vset.pattern.permute.xlu0 2
        %2740 = vperm.xlu0 %2739, %v2100
        %v2741 = vpop.permute.xlu0 %2740
        %2743 = vset.pattern.permute.xlu0 2
        %2744 = vperm.xlu0 %2743, %v2101
        %v2745 = vpop.permute.xlu0 %2744
        %v2747 = vlaneseq
        %v2748 = vshrl.u32 %v2747, 7
        %v2749 = vsub.s32 2, %v2748
        %v2750 = vrot.slane %v2068, %v2749
        %v2751 = vlaneseq
        %v2752 = vshrl.u32 %v2751, 7
        %v2753 = vsub.s32 6, %v2752
        %v2754 = vrot.slane %v2068, %v2753
        %v2757 = vlaneseq
        %v2758 = vshrl.u32 %v2757, 7
        %v2759 = vsub.s32 2, %v2758
        %v2760 = vrot.slane %v2750, %v2759
        %v2761 = vlaneseq
        %v2762 = vshrl.u32 %v2761, 7
        %v2763 = vsub.s32 2, %v2762
        %v2764 = vrot.slane %v2754, %v2763
        %v2765 = vmul.f32 %v2621, %v2760
        %v2766 = vmul.f32 %v2621, %v2764
        %v2767 = vmul.f32 %v2625, %v2760
        %v2768 = vmul.f32 %v2625, %v2764
        %v2769 = vmul.f32 %v2629, %v2760
        %v2770 = vmul.f32 %v2629, %v2764
        %v2771 = vmul.f32 %v2633, %v2760
        %v2772 = vmul.f32 %v2633, %v2764
        %v2773 = vmul.f32 %v2637, %v2760
        %v2774 = vmul.f32 %v2637, %v2764
        %v2775 = vmul.f32 %v2641, %v2760
        %v2776 = vmul.f32 %v2641, %v2764
        %v2777 = vmul.f32 %v2645, %v2760
        %v2778 = vmul.f32 %v2645, %v2764
        %v2779 = vmul.f32 %v2649, %v2760
        %v2780 = vmul.f32 %v2649, %v2764
        %v2781 = vmul.f32 %v2653, %v2760
        %v2782 = vmul.f32 %v2653, %v2764
        %v2783 = vmul.f32 %v2657, %v2760
        %v2784 = vmul.f32 %v2657, %v2764
        %v2785 = vmul.f32 %v2661, %v2760
        %v2786 = vmul.f32 %v2661, %v2764
        %v2787 = vmul.f32 %v2665, %v2760
        %v2788 = vmul.f32 %v2665, %v2764
        %v2789 = vmul.f32 %v2669, %v2760
        %v2790 = vmul.f32 %v2669, %v2764
        %v2791 = vmul.f32 %v2673, %v2760
        %v2792 = vmul.f32 %v2673, %v2764
        %v2793 = vmul.f32 %v2677, %v2760
        %v2794 = vmul.f32 %v2677, %v2764
        %v2795 = vmul.f32 %v2681, %v2760
        %v2796 = vmul.f32 %v2681, %v2764
        %v2797 = vmul.f32 %v2685, %v2760
        %v2798 = vmul.f32 %v2685, %v2764
        %v2799 = vmul.f32 %v2689, %v2760
        %v2800 = vmul.f32 %v2689, %v2764
        %v2801 = vmul.f32 %v2693, %v2760
        %v2802 = vmul.f32 %v2693, %v2764
        %v2803 = vmul.f32 %v2697, %v2760
        %v2804 = vmul.f32 %v2697, %v2764
        %v2805 = vmul.f32 %v2701, %v2760
        %v2806 = vmul.f32 %v2701, %v2764
        %v2807 = vmul.f32 %v2705, %v2760
        %v2808 = vmul.f32 %v2705, %v2764
        %v2809 = vmul.f32 %v2709, %v2760
        %v2810 = vmul.f32 %v2709, %v2764
        %v2811 = vmul.f32 %v2713, %v2760
        %v2812 = vmul.f32 %v2713, %v2764
        %v2813 = vmul.f32 %v2717, %v2760
        %v2814 = vmul.f32 %v2717, %v2764
        %v2815 = vmul.f32 %v2721, %v2760
        %v2816 = vmul.f32 %v2721, %v2764
        %v2817 = vmul.f32 %v2725, %v2760
        %v2818 = vmul.f32 %v2725, %v2764
        %v2819 = vmul.f32 %v2729, %v2760
        %v2820 = vmul.f32 %v2729, %v2764
        %v2821 = vmul.f32 %v2733, %v2760
        %v2822 = vmul.f32 %v2733, %v2764
        %v2823 = vmul.f32 %v2737, %v2760
        %v2824 = vmul.f32 %v2737, %v2764
        %v2825 = vmul.f32 %v2741, %v2760
        %v2826 = vmul.f32 %v2741, %v2764
        %v2827 = vmul.f32 %v2745, %v2760
        %v2828 = vmul.f32 %v2745, %v2764
        %v2829 = vadd.f32 %v2555, %v2765
        %v2830 = vadd.f32 %v2556, %v2766
        %v2831 = vadd.f32 %v2557, %v2767
        %v2832 = vadd.f32 %v2558, %v2768
        %v2833 = vadd.f32 %v2559, %v2769
        %v2834 = vadd.f32 %v2560, %v2770
        %v2835 = vadd.f32 %v2561, %v2771
        %v2836 = vadd.f32 %v2562, %v2772
        %v2837 = vadd.f32 %v2563, %v2773
        %v2838 = vadd.f32 %v2564, %v2774
        %v2839 = vadd.f32 %v2565, %v2775
        %v2840 = vadd.f32 %v2566, %v2776
        %v2841 = vadd.f32 %v2567, %v2777
        %v2842 = vadd.f32 %v2568, %v2778
        %v2843 = vadd.f32 %v2569, %v2779
        %v2844 = vadd.f32 %v2570, %v2780
        %v2845 = vadd.f32 %v2571, %v2781
        %v2846 = vadd.f32 %v2572, %v2782
        %v2847 = vadd.f32 %v2573, %v2783
        %v2848 = vadd.f32 %v2574, %v2784
        %v2849 = vadd.f32 %v2575, %v2785
        %v2850 = vadd.f32 %v2576, %v2786
        %v2851 = vadd.f32 %v2577, %v2787
        %v2852 = vadd.f32 %v2578, %v2788
        %v2853 = vadd.f32 %v2579, %v2789
        %v2854 = vadd.f32 %v2580, %v2790
        %v2855 = vadd.f32 %v2581, %v2791
        %v2856 = vadd.f32 %v2582, %v2792
        %v2857 = vadd.f32 %v2583, %v2793
        %v2858 = vadd.f32 %v2584, %v2794
        %v2859 = vadd.f32 %v2585, %v2795
        %v2860 = vadd.f32 %v2586, %v2796
        %v2861 = vadd.f32 %v2587, %v2797
        %v2862 = vadd.f32 %v2588, %v2798
        %v2863 = vadd.f32 %v2589, %v2799
        %v2864 = vadd.f32 %v2590, %v2800
        %v2865 = vadd.f32 %v2591, %v2801
        %v2866 = vadd.f32 %v2592, %v2802
        %v2867 = vadd.f32 %v2593, %v2803
        %v2868 = vadd.f32 %v2594, %v2804
        %v2869 = vadd.f32 %v2595, %v2805
        %v2870 = vadd.f32 %v2596, %v2806
        %v2871 = vadd.f32 %v2597, %v2807
        %v2872 = vadd.f32 %v2598, %v2808
        %v2873 = vadd.f32 %v2599, %v2809
        %v2874 = vadd.f32 %v2600, %v2810
        %v2875 = vadd.f32 %v2601, %v2811
        %v2876 = vadd.f32 %v2602, %v2812
        %v2877 = vadd.f32 %v2603, %v2813
        %v2878 = vadd.f32 %v2604, %v2814
        %v2879 = vadd.f32 %v2605, %v2815
        %v2880 = vadd.f32 %v2606, %v2816
        %v2881 = vadd.f32 %v2607, %v2817
        %v2882 = vadd.f32 %v2608, %v2818
        %v2883 = vadd.f32 %v2609, %v2819
        %v2884 = vadd.f32 %v2610, %v2820
        %v2885 = vadd.f32 %v2611, %v2821
        %v2886 = vadd.f32 %v2612, %v2822
        %v2887 = vadd.f32 %v2613, %v2823
        %v2888 = vadd.f32 %v2614, %v2824
        %v2889 = vadd.f32 %v2615, %v2825
        %v2890 = vadd.f32 %v2616, %v2826
        %v2891 = vadd.f32 %v2617, %v2827
        %v2892 = vadd.f32 %v2618, %v2828
        %s2893 = scalar_lea.vmem %s3, 256
        %v2894 = vld [vmem:[%s2893] sm:$0xff]
        %v2895 = vld [vmem:[%s2893 + $0x8] sm:$0xff]
        %v2896 = vld [vmem:[%s2893 + $0x10] sm:$0xff]
        %v2897 = vld [vmem:[%s2893 + $0x18] sm:$0xff]
        %v2898 = vld [vmem:[%s2893 + $0x20] sm:$0xff]
        %v2899 = vld [vmem:[%s2893 + $0x28] sm:$0xff]
        %v2900 = vld [vmem:[%s2893 + $0x30] sm:$0xff]
        %v2901 = vld [vmem:[%s2893 + $0x38] sm:$0xff]
        %v2902 = vld [vmem:[%s2893 + $0x40] sm:$0xff]
        %v2903 = vld [vmem:[%s2893 + $0x48] sm:$0xff]
        %v2904 = vld [vmem:[%s2893 + $0x50] sm:$0xff]
        %v2905 = vld [vmem:[%s2893 + $0x58] sm:$0xff]
        %v2906 = vld [vmem:[%s2893 + $0x60] sm:$0xff]
        %v2907 = vld [vmem:[%s2893 + $0x68] sm:$0xff]
        %v2908 = vld [vmem:[%s2893 + $0x70] sm:$0xff]
        %v2909 = vld [vmem:[%s2893 + $0x78] sm:$0xff]
        %v2910 = vld [vmem:[%s2893 + $0x80] sm:$0xff]
        %v2911 = vld [vmem:[%s2893 + $0x88] sm:$0xff]
        %v2912 = vld [vmem:[%s2893 + $0x90] sm:$0xff]
        %v2913 = vld [vmem:[%s2893 + $0x98] sm:$0xff]
        %v2914 = vld [vmem:[%s2893 + $0xa0] sm:$0xff]
        %v2915 = vld [vmem:[%s2893 + $0xa8] sm:$0xff]
        %v2916 = vld [vmem:[%s2893 + $0xb0] sm:$0xff]
        %v2917 = vld [vmem:[%s2893 + $0xb8] sm:$0xff]
        %v2918 = vld [vmem:[%s2893 + $0xc0] sm:$0xff]
        %v2919 = vld [vmem:[%s2893 + $0xc8] sm:$0xff]
        %v2920 = vld [vmem:[%s2893 + $0xd0] sm:$0xff]
        %v2921 = vld [vmem:[%s2893 + $0xd8] sm:$0xff]
        %v2922 = vld [vmem:[%s2893 + $0xe0] sm:$0xff]
        %v2923 = vld [vmem:[%s2893 + $0xe8] sm:$0xff]
        %v2924 = vld [vmem:[%s2893 + $0xf0] sm:$0xff]
        %v2925 = vld [vmem:[%s2893 + $0xf8] sm:$0xff]
        %2927 = vset.pattern.permute.xlu0 0
        %2928 = vperm.xlu0 %2927, %v2894
        %v2929 = vpop.permute.xlu0 %2928
        %2932 = vset.pattern.permute.xlu0 0
        %2933 = vperm.xlu0 %2932, %v2895
        %v2934 = vpop.permute.xlu0 %2933
        %2937 = vset.pattern.permute.xlu0 0
        %2938 = vperm.xlu0 %2937, %v2896
        %v2939 = vpop.permute.xlu0 %2938
        %2942 = vset.pattern.permute.xlu0 0
        %2943 = vperm.xlu0 %2942, %v2897
        %v2944 = vpop.permute.xlu0 %2943
        %2947 = vset.pattern.permute.xlu0 0
        %2948 = vperm.xlu0 %2947, %v2898
        %v2949 = vpop.permute.xlu0 %2948
        %2952 = vset.pattern.permute.xlu0 0
        %2953 = vperm.xlu0 %2952, %v2899
        %v2954 = vpop.permute.xlu0 %2953
        %2957 = vset.pattern.permute.xlu0 0
        %2958 = vperm.xlu0 %2957, %v2900
        %v2959 = vpop.permute.xlu0 %2958
        %2962 = vset.pattern.permute.xlu0 0
        %2963 = vperm.xlu0 %2962, %v2901
        %v2964 = vpop.permute.xlu0 %2963
        %2967 = vset.pattern.permute.xlu0 0
        %2968 = vperm.xlu0 %2967, %v2902
        %v2969 = vpop.permute.xlu0 %2968
        %2972 = vset.pattern.permute.xlu0 0
        %2973 = vperm.xlu0 %2972, %v2903
        %v2974 = vpop.permute.xlu0 %2973
        %2977 = vset.pattern.permute.xlu0 0
        %2978 = vperm.xlu0 %2977, %v2904
        %v2979 = vpop.permute.xlu0 %2978
        %2982 = vset.pattern.permute.xlu0 0
        %2983 = vperm.xlu0 %2982, %v2905
        %v2984 = vpop.permute.xlu0 %2983
        %2987 = vset.pattern.permute.xlu0 0
        %2988 = vperm.xlu0 %2987, %v2906
        %v2989 = vpop.permute.xlu0 %2988
        %2992 = vset.pattern.permute.xlu0 0
        %2993 = vperm.xlu0 %2992, %v2907
        %v2994 = vpop.permute.xlu0 %2993
        %2997 = vset.pattern.permute.xlu0 0
        %2998 = vperm.xlu0 %2997, %v2908
        %v2999 = vpop.permute.xlu0 %2998
        %3002 = vset.pattern.permute.xlu0 0
        %3003 = vperm.xlu0 %3002, %v2909
        %v3004 = vpop.permute.xlu0 %3003
        %3007 = vset.pattern.permute.xlu0 0
        %3008 = vperm.xlu0 %3007, %v2910
        %v3009 = vpop.permute.xlu0 %3008
        %3012 = vset.pattern.permute.xlu0 0
        %3013 = vperm.xlu0 %3012, %v2911
        %v3014 = vpop.permute.xlu0 %3013
        %3017 = vset.pattern.permute.xlu0 0
        %3018 = vperm.xlu0 %3017, %v2912
        %v3019 = vpop.permute.xlu0 %3018
        %3022 = vset.pattern.permute.xlu0 0
        %3023 = vperm.xlu0 %3022, %v2913
        %v3024 = vpop.permute.xlu0 %3023
        %3027 = vset.pattern.permute.xlu0 0
        %3028 = vperm.xlu0 %3027, %v2914
        %v3029 = vpop.permute.xlu0 %3028
        %3032 = vset.pattern.permute.xlu0 0
        %3033 = vperm.xlu0 %3032, %v2915
        %v3034 = vpop.permute.xlu0 %3033
        %3037 = vset.pattern.permute.xlu0 0
        %3038 = vperm.xlu0 %3037, %v2916
        %v3039 = vpop.permute.xlu0 %3038
        %3042 = vset.pattern.permute.xlu0 0
        %3043 = vperm.xlu0 %3042, %v2917
        %v3044 = vpop.permute.xlu0 %3043
        %3047 = vset.pattern.permute.xlu0 0
        %3048 = vperm.xlu0 %3047, %v2918
        %v3049 = vpop.permute.xlu0 %3048
        %3052 = vset.pattern.permute.xlu0 0
        %3053 = vperm.xlu0 %3052, %v2919
        %v3054 = vpop.permute.xlu0 %3053
        %3057 = vset.pattern.permute.xlu0 0
        %3058 = vperm.xlu0 %3057, %v2920
        %v3059 = vpop.permute.xlu0 %3058
        %3062 = vset.pattern.permute.xlu0 0
        %3063 = vperm.xlu0 %3062, %v2921
        %v3064 = vpop.permute.xlu0 %3063
        %3067 = vset.pattern.permute.xlu0 0
        %3068 = vperm.xlu0 %3067, %v2922
        %v3069 = vpop.permute.xlu0 %3068
        %3072 = vset.pattern.permute.xlu0 0
        %3073 = vperm.xlu0 %3072, %v2923
        %v3074 = vpop.permute.xlu0 %3073
        %3077 = vset.pattern.permute.xlu0 0
        %3078 = vperm.xlu0 %3077, %v2924
        %v3079 = vpop.permute.xlu0 %3078
        %3082 = vset.pattern.permute.xlu0 0
        %3083 = vperm.xlu0 %3082, %v2925
        %v3084 = vpop.permute.xlu0 %3083
        %v3086 = vadd.f32 %v2829, %v2929
        %v3087 = vadd.f32 %v2830, %v2929
        %v3088 = vadd.f32 %v2831, %v2934
        %v3089 = vadd.f32 %v2832, %v2934
        %v3090 = vadd.f32 %v2833, %v2939
        %v3091 = vadd.f32 %v2834, %v2939
        %v3092 = vadd.f32 %v2835, %v2944
        %v3093 = vadd.f32 %v2836, %v2944
        %v3094 = vadd.f32 %v2837, %v2949
        %v3095 = vadd.f32 %v2838, %v2949
        %v3096 = vadd.f32 %v2839, %v2954
        %v3097 = vadd.f32 %v2840, %v2954
        %v3098 = vadd.f32 %v2841, %v2959
        %v3099 = vadd.f32 %v2842, %v2959
        %v3100 = vadd.f32 %v2843, %v2964
        %v3101 = vadd.f32 %v2844, %v2964
        %v3102 = vadd.f32 %v2845, %v2969
        %v3103 = vadd.f32 %v2846, %v2969
        %v3104 = vadd.f32 %v2847, %v2974
        %v3105 = vadd.f32 %v2848, %v2974
        %v3106 = vadd.f32 %v2849, %v2979
        %v3107 = vadd.f32 %v2850, %v2979
        %v3108 = vadd.f32 %v2851, %v2984
        %v3109 = vadd.f32 %v2852, %v2984
        %v3110 = vadd.f32 %v2853, %v2989
        %v3111 = vadd.f32 %v2854, %v2989
        %v3112 = vadd.f32 %v2855, %v2994
        %v3113 = vadd.f32 %v2856, %v2994
        %v3114 = vadd.f32 %v2857, %v2999
        %v3115 = vadd.f32 %v2858, %v2999
        %v3116 = vadd.f32 %v2859, %v3004
        %v3117 = vadd.f32 %v2860, %v3004
        %v3118 = vadd.f32 %v2861, %v3009
        %v3119 = vadd.f32 %v2862, %v3009
        %v3120 = vadd.f32 %v2863, %v3014
        %v3121 = vadd.f32 %v2864, %v3014
        %v3122 = vadd.f32 %v2865, %v3019
        %v3123 = vadd.f32 %v2866, %v3019
        %v3124 = vadd.f32 %v2867, %v3024
        %v3125 = vadd.f32 %v2868, %v3024
        %v3126 = vadd.f32 %v2869, %v3029
        %v3127 = vadd.f32 %v2870, %v3029
        %v3128 = vadd.f32 %v2871, %v3034
        %v3129 = vadd.f32 %v2872, %v3034
        %v3130 = vadd.f32 %v2873, %v3039
        %v3131 = vadd.f32 %v2874, %v3039
        %v3132 = vadd.f32 %v2875, %v3044
        %v3133 = vadd.f32 %v2876, %v3044
        %v3134 = vadd.f32 %v2877, %v3049
        %v3135 = vadd.f32 %v2878, %v3049
        %v3136 = vadd.f32 %v2879, %v3054
        %v3137 = vadd.f32 %v2880, %v3054
        %v3138 = vadd.f32 %v2881, %v3059
        %v3139 = vadd.f32 %v2882, %v3059
        %v3140 = vadd.f32 %v2883, %v3064
        %v3141 = vadd.f32 %v2884, %v3064
        %v3142 = vadd.f32 %v2885, %v3069
        %v3143 = vadd.f32 %v2886, %v3069
        %v3144 = vadd.f32 %v2887, %v3074
        %v3145 = vadd.f32 %v2888, %v3074
        %v3146 = vadd.f32 %v2889, %v3079
        %v3147 = vadd.f32 %v2890, %v3079
        %v3148 = vadd.f32 %v2891, %v3084
        %v3149 = vadd.f32 %v2892, %v3084
        %vm3150 = vcmp.gt.f32.partialorder %v3086, 0.0
        %vm3151 = vcmp.gt.f32.partialorder %v3087, 0.0
        %vm3152 = vcmp.gt.f32.partialorder %v3088, 0.0
        %vm3153 = vcmp.gt.f32.partialorder %v3089, 0.0
        %vm3154 = vcmp.gt.f32.partialorder %v3090, 0.0
        %vm3155 = vcmp.gt.f32.partialorder %v3091, 0.0
        %vm3156 = vcmp.gt.f32.partialorder %v3092, 0.0
        %vm3157 = vcmp.gt.f32.partialorder %v3093, 0.0
        %vm3158 = vcmp.gt.f32.partialorder %v3094, 0.0
        %vm3159 = vcmp.gt.f32.partialorder %v3095, 0.0
        %vm3160 = vcmp.gt.f32.partialorder %v3096, 0.0
        %vm3161 = vcmp.gt.f32.partialorder %v3097, 0.0
        %vm3162 = vcmp.gt.f32.partialorder %v3098, 0.0
        %vm3163 = vcmp.gt.f32.partialorder %v3099, 0.0
        %vm3164 = vcmp.gt.f32.partialorder %v3100, 0.0
        %vm3165 = vcmp.gt.f32.partialorder %v3101, 0.0
        %vm3166 = vcmp.gt.f32.partialorder %v3102, 0.0
        %vm3167 = vcmp.gt.f32.partialorder %v3103, 0.0
        %vm3168 = vcmp.gt.f32.partialorder %v3104, 0.0
        %vm3169 = vcmp.gt.f32.partialorder %v3105, 0.0
        %vm3170 = vcmp.gt.f32.partialorder %v3106, 0.0
        %vm3171 = vcmp.gt.f32.partialorder %v3107, 0.0
        %vm3172 = vcmp.gt.f32.partialorder %v3108, 0.0
        %vm3173 = vcmp.gt.f32.partialorder %v3109, 0.0
        %vm3174 = vcmp.gt.f32.partialorder %v3110, 0.0
        %vm3175 = vcmp.gt.f32.partialorder %v3111, 0.0
        %vm3176 = vcmp.gt.f32.partialorder %v3112, 0.0
        %vm3177 = vcmp.gt.f32.partialorder %v3113, 0.0
        %vm3178 = vcmp.gt.f32.partialorder %v3114, 0.0
        %vm3179 = vcmp.gt.f32.partialorder %v3115, 0.0
        %vm3180 = vcmp.gt.f32.partialorder %v3116, 0.0
        %vm3181 = vcmp.gt.f32.partialorder %v3117, 0.0
        %vm3182 = vcmp.gt.f32.partialorder %v3118, 0.0
        %vm3183 = vcmp.gt.f32.partialorder %v3119, 0.0
        %vm3184 = vcmp.gt.f32.partialorder %v3120, 0.0
        %vm3185 = vcmp.gt.f32.partialorder %v3121, 0.0
        %vm3186 = vcmp.gt.f32.partialorder %v3122, 0.0
        %vm3187 = vcmp.gt.f32.partialorder %v3123, 0.0
        %vm3188 = vcmp.gt.f32.partialorder %v3124, 0.0
        %vm3189 = vcmp.gt.f32.partialorder %v3125, 0.0
        %vm3190 = vcmp.gt.f32.partialorder %v3126, 0.0
        %vm3191 = vcmp.gt.f32.partialorder %v3127, 0.0
        %vm3192 = vcmp.gt.f32.partialorder %v3128, 0.0
        %vm3193 = vcmp.gt.f32.partialorder %v3129, 0.0
        %vm3194 = vcmp.gt.f32.partialorder %v3130, 0.0
        %vm3195 = vcmp.gt.f32.partialorder %v3131, 0.0
        %vm3196 = vcmp.gt.f32.partialorder %v3132, 0.0
        %vm3197 = vcmp.gt.f32.partialorder %v3133, 0.0
        %vm3198 = vcmp.gt.f32.partialorder %v3134, 0.0
        %vm3199 = vcmp.gt.f32.partialorder %v3135, 0.0
        %vm3200 = vcmp.gt.f32.partialorder %v3136, 0.0
        %vm3201 = vcmp.gt.f32.partialorder %v3137, 0.0
        %vm3202 = vcmp.gt.f32.partialorder %v3138, 0.0
        %vm3203 = vcmp.gt.f32.partialorder %v3139, 0.0
        %vm3204 = vcmp.gt.f32.partialorder %v3140, 0.0
        %vm3205 = vcmp.gt.f32.partialorder %v3141, 0.0
        %vm3206 = vcmp.gt.f32.partialorder %v3142, 0.0
        %vm3207 = vcmp.gt.f32.partialorder %v3143, 0.0
        %vm3208 = vcmp.gt.f32.partialorder %v3144, 0.0
        %vm3209 = vcmp.gt.f32.partialorder %v3145, 0.0
        %vm3210 = vcmp.gt.f32.partialorder %v3146, 0.0
        %vm3211 = vcmp.gt.f32.partialorder %v3147, 0.0
        %vm3212 = vcmp.gt.f32.partialorder %v3148, 0.0
        %vm3213 = vcmp.gt.f32.partialorder %v3149, 0.0
        %v3214 = vmul.f32 %v3086, 0.01
        %v3215 = vmul.f32 %v3087, 0.01
        %v3216 = vmul.f32 %v3088, 0.01
        %v3217 = vmul.f32 %v3089, 0.01
        %v3218 = vmul.f32 %v3090, 0.01
        %v3219 = vmul.f32 %v3091, 0.01
        %v3220 = vmul.f32 %v3092, 0.01
        %v3221 = vmul.f32 %v3093, 0.01
        %v3222 = vmul.f32 %v3094, 0.01
        %v3223 = vmul.f32 %v3095, 0.01
        %v3224 = vmul.f32 %v3096, 0.01
        %v3225 = vmul.f32 %v3097, 0.01
        %v3226 = vmul.f32 %v3098, 0.01
        %v3227 = vmul.f32 %v3099, 0.01
        %v3228 = vmul.f32 %v3100, 0.01
        %v3229 = vmul.f32 %v3101, 0.01
        %v3230 = vmul.f32 %v3102, 0.01
        %v3231 = vmul.f32 %v3103, 0.01
        %v3232 = vmul.f32 %v3104, 0.01
        %v3233 = vmul.f32 %v3105, 0.01
        %v3234 = vmul.f32 %v3106, 0.01
        %v3235 = vmul.f32 %v3107, 0.01
        %v3236 = vmul.f32 %v3108, 0.01
        %v3237 = vmul.f32 %v3109, 0.01
        %v3238 = vmul.f32 %v3110, 0.01
        %v3239 = vmul.f32 %v3111, 0.01
        %v3240 = vmul.f32 %v3112, 0.01
        %v3241 = vmul.f32 %v3113, 0.01
        %v3242 = vmul.f32 %v3114, 0.01
        %v3243 = vmul.f32 %v3115, 0.01
        %v3244 = vmul.f32 %v3116, 0.01
        %v3245 = vmul.f32 %v3117, 0.01
        %v3246 = vmul.f32 %v3118, 0.01
        %v3247 = vmul.f32 %v3119, 0.01
        %v3248 = vmul.f32 %v3120, 0.01
        %v3249 = vmul.f32 %v3121, 0.01
        %v3250 = vmul.f32 %v3122, 0.01
        %v3251 = vmul.f32 %v3123, 0.01
        %v3252 = vmul.f32 %v3124, 0.01
        %v3253 = vmul.f32 %v3125, 0.01
        %v3254 = vmul.f32 %v3126, 0.01
        %v3255 = vmul.f32 %v3127, 0.01
        %v3256 = vmul.f32 %v3128, 0.01
        %v3257 = vmul.f32 %v3129, 0.01
        %v3258 = vmul.f32 %v3130, 0.01
        %v3259 = vmul.f32 %v3131, 0.01
        %v3260 = vmul.f32 %v3132, 0.01
        %v3261 = vmul.f32 %v3133, 0.01
        %v3262 = vmul.f32 %v3134, 0.01
        %v3263 = vmul.f32 %v3135, 0.01
        %v3264 = vmul.f32 %v3136, 0.01
        %v3265 = vmul.f32 %v3137, 0.01
        %v3266 = vmul.f32 %v3138, 0.01
        %v3267 = vmul.f32 %v3139, 0.01
        %v3268 = vmul.f32 %v3140, 0.01
        %v3269 = vmul.f32 %v3141, 0.01
        %v3270 = vmul.f32 %v3142, 0.01
        %v3271 = vmul.f32 %v3143, 0.01
        %v3272 = vmul.f32 %v3144, 0.01
        %v3273 = vmul.f32 %v3145, 0.01
        %v3274 = vmul.f32 %v3146, 0.01
        %v3275 = vmul.f32 %v3147, 0.01
        %v3276 = vmul.f32 %v3148, 0.01
        %v3277 = vmul.f32 %v3149, 0.01
        %v3278 = vsel %vm3150, %v3086, %v3214
        %v3279 = vsel %vm3151, %v3087, %v3215
        %v3280 = vsel %vm3152, %v3088, %v3216
        %v3281 = vsel %vm3153, %v3089, %v3217
        %v3282 = vsel %vm3154, %v3090, %v3218
        %v3283 = vsel %vm3155, %v3091, %v3219
        %v3284 = vsel %vm3156, %v3092, %v3220
        %v3285 = vsel %vm3157, %v3093, %v3221
        %v3286 = vsel %vm3158, %v3094, %v3222
        %v3287 = vsel %vm3159, %v3095, %v3223
        %v3288 = vsel %vm3160, %v3096, %v3224
        %v3289 = vsel %vm3161, %v3097, %v3225
        %v3290 = vsel %vm3162, %v3098, %v3226
        %v3291 = vsel %vm3163, %v3099, %v3227
        %v3292 = vsel %vm3164, %v3100, %v3228
        %v3293 = vsel %vm3165, %v3101, %v3229
        %v3294 = vsel %vm3166, %v3102, %v3230
        %v3295 = vsel %vm3167, %v3103, %v3231
        %v3296 = vsel %vm3168, %v3104, %v3232
        %v3297 = vsel %vm3169, %v3105, %v3233
        %v3298 = vsel %vm3170, %v3106, %v3234
        %v3299 = vsel %vm3171, %v3107, %v3235
        %v3300 = vsel %vm3172, %v3108, %v3236
        %v3301 = vsel %vm3173, %v3109, %v3237
        %v3302 = vsel %vm3174, %v3110, %v3238
        %v3303 = vsel %vm3175, %v3111, %v3239
        %v3304 = vsel %vm3176, %v3112, %v3240
        %v3305 = vsel %vm3177, %v3113, %v3241
        %v3306 = vsel %vm3178, %v3114, %v3242
        %v3307 = vsel %vm3179, %v3115, %v3243
        %v3308 = vsel %vm3180, %v3116, %v3244
        %v3309 = vsel %vm3181, %v3117, %v3245
        %v3310 = vsel %vm3182, %v3118, %v3246
        %v3311 = vsel %vm3183, %v3119, %v3247
        %v3312 = vsel %vm3184, %v3120, %v3248
        %v3313 = vsel %vm3185, %v3121, %v3249
        %v3314 = vsel %vm3186, %v3122, %v3250
        %v3315 = vsel %vm3187, %v3123, %v3251
        %v3316 = vsel %vm3188, %v3124, %v3252
        %v3317 = vsel %vm3189, %v3125, %v3253
        %v3318 = vsel %vm3190, %v3126, %v3254
        %v3319 = vsel %vm3191, %v3127, %v3255
        %v3320 = vsel %vm3192, %v3128, %v3256
        %v3321 = vsel %vm3193, %v3129, %v3257
        %v3322 = vsel %vm3194, %v3130, %v3258
        %v3323 = vsel %vm3195, %v3131, %v3259
        %v3324 = vsel %vm3196, %v3132, %v3260
        %v3325 = vsel %vm3197, %v3133, %v3261
        %v3326 = vsel %vm3198, %v3134, %v3262
        %v3327 = vsel %vm3199, %v3135, %v3263
        %v3328 = vsel %vm3200, %v3136, %v3264
        %v3329 = vsel %vm3201, %v3137, %v3265
        %v3330 = vsel %vm3202, %v3138, %v3266
        %v3331 = vsel %vm3203, %v3139, %v3267
        %v3332 = vsel %vm3204, %v3140, %v3268
        %v3333 = vsel %vm3205, %v3141, %v3269
        %v3334 = vsel %vm3206, %v3142, %v3270
        %v3335 = vsel %vm3207, %v3143, %v3271
        %v3336 = vsel %vm3208, %v3144, %v3272
        %v3337 = vsel %vm3209, %v3145, %v3273
        %v3338 = vsel %vm3210, %v3146, %v3274
        %v3339 = vsel %vm3211, %v3147, %v3275
        %v3340 = vsel %vm3212, %v3148, %v3276
        %v3341 = vsel %vm3213, %v3149, %v3277
        %s3342 = scalar_lea.vmem %s4, 128
        %v3343 = vld [vmem:[%s3342] sm:$0xff]
        %v3344 = vld [vmem:[%s3342 + $0x8] sm:$0xff]
        %v3345 = vld [vmem:[%s3342 + $0x10] sm:$0xff]
        %v3346 = vld [vmem:[%s3342 + $0x18] sm:$0xff]
        %v3347 = vld [vmem:[%s3342 + $0x20] sm:$0xff]
        %v3348 = vld [vmem:[%s3342 + $0x28] sm:$0xff]
        %v3349 = vld [vmem:[%s3342 + $0x30] sm:$0xff]
        %v3350 = vld [vmem:[%s3342 + $0x38] sm:$0xff]
        %v3351 = vld [vmem:[%s3342 + $0x40] sm:$0xff]
        %v3352 = vld [vmem:[%s3342 + $0x48] sm:$0xff]
        %v3353 = vld [vmem:[%s3342 + $0x50] sm:$0xff]
        %v3354 = vld [vmem:[%s3342 + $0x58] sm:$0xff]
        %v3355 = vld [vmem:[%s3342 + $0x60] sm:$0xff]
        %v3356 = vld [vmem:[%s3342 + $0x68] sm:$0xff]
        %v3357 = vld [vmem:[%s3342 + $0x70] sm:$0xff]
        %v3358 = vld [vmem:[%s3342 + $0x78] sm:$0xff]
        %s3359 = scalar_lea.vmem %s5, 64
        %v3360 = vld [vmem:[%s3359] sm:$0xff]
        %v3361 = vld [vmem:[%s3359 + $0x8] sm:$0xff]
        %v3362 = vld [vmem:[%s3359 + $0x10] sm:$0xff]
        %v3363 = vld [vmem:[%s3359 + $0x18] sm:$0xff]
        %v3364 = vld [vmem:[%s3359 + $0x20] sm:$0xff]
        %v3365 = vld [vmem:[%s3359 + $0x28] sm:$0xff]
        %v3366 = vld [vmem:[%s3359 + $0x30] sm:$0xff]
        %v3367 = vld [vmem:[%s3359 + $0x38] sm:$0xff]
        %3369 = vset.pattern.permute.xlu0 0
        %3370 = vperm.xlu0 %3369, %v3360
        %v3371 = vpop.permute.xlu0 %3370
        %3374 = vset.pattern.permute.xlu0 0
        %3375 = vperm.xlu0 %3374, %v3361
        %v3376 = vpop.permute.xlu0 %3375
        %3379 = vset.pattern.permute.xlu0 0
        %3380 = vperm.xlu0 %3379, %v3362
        %v3381 = vpop.permute.xlu0 %3380
        %3384 = vset.pattern.permute.xlu0 0
        %3385 = vperm.xlu0 %3384, %v3363
        %v3386 = vpop.permute.xlu0 %3385
        %3389 = vset.pattern.permute.xlu0 0
        %3390 = vperm.xlu0 %3389, %v3364
        %v3391 = vpop.permute.xlu0 %3390
        %3394 = vset.pattern.permute.xlu0 0
        %3395 = vperm.xlu0 %3394, %v3365
        %v3396 = vpop.permute.xlu0 %3395
        %3399 = vset.pattern.permute.xlu0 0
        %3400 = vperm.xlu0 %3399, %v3366
        %v3401 = vpop.permute.xlu0 %3400
        %3404 = vset.pattern.permute.xlu0 0
        %3405 = vperm.xlu0 %3404, %v3367
        %v3406 = vpop.permute.xlu0 %3405
        %3408 = vmatprep.subr.mxu0 %v3309
        %3409 = vmatpush1.msra.mxu0 %v3308
        %3410 = vmatprep.subr.mxu0 %v3307
        %3411 = vmatpush1.msra.mxu0 %v3306
        %3412 = vmatprep.subr.mxu0 %v3305
        %3413 = vmatpush1.msra.mxu0 %v3304
        %3414 = vmatprep.subr.mxu0 %v3303
        %3415 = vmatpush1.msra.mxu0 %v3302
        %3416 = vmatprep.subr.mxu0 %v3301
        %3417 = vmatpush1.msra.mxu0 %v3300
        %3418 = vmatprep.subr.mxu0 %v3299
        %3419 = vmatpush1.msra.mxu0 %v3298
        %3420 = vmatprep.subr.mxu0 %v3297
        %3421 = vmatpush1.msra.mxu0 %v3296
        %3422 = vmatprep.subr.mxu0 %v3295
        %3423 = vmatpush1.msra.mxu0 %v3294
        %3424 = vmatprep.subr.mxu0 %v3293
        %3425 = vmatpush1.msra.mxu0 %v3292
        %3426 = vmatprep.subr.mxu0 %v3291
        %3427 = vmatpush1.msra.mxu0 %v3290
        %3428 = vmatprep.subr.mxu0 %v3289
        %3429 = vmatpush1.msra.mxu0 %v3288
        %3430 = vmatprep.subr.mxu0 %v3287
        %3431 = vmatpush1.msra.mxu0 %v3286
        %3432 = vmatprep.subr.mxu0 %v3285
        %3433 = vmatpush1.msra.mxu0 %v3284
        %3434 = vmatprep.subr.mxu0 %v3283
        %3435 = vmatpush1.msra.mxu0 %v3282
        %3436 = vmatprep.subr.mxu0 %v3281
        %3437 = vmatpush1.msra.mxu0 %v3280
        %3438 = vmatprep.subr.mxu0 %v3279
        %3439 = vmatpush1.msra.mxu0 %v3278
        %3440 = vmatprep.subr.mxu0 %v3341
        %3441 = vmatpush2.msra.mxu0 %v3340
        %3442 = vmatprep.subr.mxu0 %v3339
        %3443 = vmatpush2.msra.mxu0 %v3338
        %3444 = vmatprep.subr.mxu0 %v3337
        %3445 = vmatpush2.msra.mxu0 %v3336
        %3446 = vmatprep.subr.mxu0 %v3335
        %3447 = vmatpush2.msra.mxu0 %v3334
        %3448 = vmatprep.subr.mxu0 %v3333
        %3449 = vmatpush2.msra.mxu0 %v3332
        %3450 = vmatprep.subr.mxu0 %v3331
        %3451 = vmatpush2.msra.mxu0 %v3330
        %3452 = vmatprep.subr.mxu0 %v3329
        %3453 = vmatpush2.msra.mxu0 %v3328
        %3454 = vmatprep.subr.mxu0 %v3327
        %3455 = vmatpush2.msra.mxu0 %v3326
        %3456 = vmatprep.subr.mxu0 %v3325
        %3457 = vmatpush2.msra.mxu0 %v3324
        %3458 = vmatprep.subr.mxu0 %v3323
        %3459 = vmatpush2.msra.mxu0 %v3322
        %3460 = vmatprep.subr.mxu0 %v3321
        %3461 = vmatpush2.msra.mxu0 %v3320
        %3462 = vmatprep.subr.mxu0 %v3319
        %3463 = vmatpush2.msra.mxu0 %v3318
        %3464 = vmatprep.subr.mxu0 %v3317
        %3465 = vmatpush2.msra.mxu0 %v3316
        %3466 = vmatprep.subr.mxu0 %v3315
        %3467 = vmatpush2.msra.mxu0 %v3314
        %3468 = vmatprep.subr.mxu0 %v3313
        %3469 = vmatpush2.msra.mxu0 %v3312
        %3470 = vmatprep.subr.mxu0 %v3311
        %3471 = vmatpush2.msra.mxu0 %v3310
        %3472 = vmatprep.mubr.f32.mxu0 %v3344
        %3473 = vmatmul.mubr.f32.gmra.mxu0 %v3343
        %v3474 = vpop.f32.mrf.mxu0
        %v3475 = vadd.f32 %v3371, %v3474
        %v3476 = vpop.f32.mrf.mxu0
        %v3477 = vadd.f32 %v3371, %v3476
        %3478 = vmatprep.mubr.f32.mxu0 %v3346
        %3479 = vmatmul.mubr.f32.gmra.mxu0 %v3345
        %v3480 = vpop.f32.mrf.mxu0
        %v3481 = vadd.f32 %v3376, %v3480
        %v3482 = vpop.f32.mrf.mxu0
        %v3483 = vadd.f32 %v3376, %v3482
        %3484 = vmatprep.mubr.f32.mxu0 %v3348
        %3485 = vmatmul.mubr.f32.gmra.mxu0 %v3347
        %v3486 = vpop.f32.mrf.mxu0
        %v3487 = vadd.f32 %v3381, %v3486
        %v3488 = vpop.f32.mrf.mxu0
        %v3489 = vadd.f32 %v3381, %v3488
        %3490 = vmatprep.mubr.f32.mxu0 %v3350
        %3491 = vmatmul.mubr.f32.gmra.mxu0 %v3349
        %v3492 = vpop.f32.mrf.mxu0
        %v3493 = vadd.f32 %v3386, %v3492
        %v3494 = vpop.f32.mrf.mxu0
        %v3495 = vadd.f32 %v3386, %v3494
        %3496 = vmatprep.mubr.f32.mxu0 %v3352
        %3497 = vmatmul.mubr.f32.gmra.mxu0 %v3351
        %v3498 = vpop.f32.mrf.mxu0
        %v3499 = vadd.f32 %v3391, %v3498
        %v3500 = vpop.f32.mrf.mxu0
        %v3501 = vadd.f32 %v3391, %v3500
        %3502 = vmatprep.mubr.f32.mxu0 %v3354
        %3503 = vmatmul.mubr.f32.gmra.mxu0 %v3353
        %v3504 = vpop.f32.mrf.mxu0
        %v3505 = vadd.f32 %v3396, %v3504
        %v3506 = vpop.f32.mrf.mxu0
        %v3507 = vadd.f32 %v3396, %v3506
        %3508 = vmatprep.mubr.f32.mxu0 %v3356
        %3509 = vmatmul.mubr.f32.gmra.mxu0 %v3355
        %v3510 = vpop.f32.mrf.mxu0
        %v3511 = vadd.f32 %v3401, %v3510
        %v3512 = vpop.f32.mrf.mxu0
        %v3513 = vadd.f32 %v3401, %v3512
        %3514 = vmatprep.mubr.f32.mxu0 %v3358
        %3515 = vmatmul.mubr.f32.gmra.mxu0 %v3357
        %v3516 = vpop.f32.mrf.mxu0
        %v3517 = vadd.f32 %v3406, %v3516
        %v3518 = vpop.f32.mrf.mxu0
        %v3519 = vadd.f32 %v3406, %v3518
        %3520 = vdwg.mxu0
        %vm3521 = vcmp.gt.f32.partialorder %v3475, 0.0
        %vm3522 = vcmp.gt.f32.partialorder %v3477, 0.0
        %vm3523 = vcmp.gt.f32.partialorder %v3481, 0.0
        %vm3524 = vcmp.gt.f32.partialorder %v3483, 0.0
        %vm3525 = vcmp.gt.f32.partialorder %v3487, 0.0
        %vm3526 = vcmp.gt.f32.partialorder %v3489, 0.0
        %vm3527 = vcmp.gt.f32.partialorder %v3493, 0.0
        %vm3528 = vcmp.gt.f32.partialorder %v3495, 0.0
        %vm3529 = vcmp.gt.f32.partialorder %v3499, 0.0
        %vm3530 = vcmp.gt.f32.partialorder %v3501, 0.0
        %vm3531 = vcmp.gt.f32.partialorder %v3505, 0.0
        %vm3532 = vcmp.gt.f32.partialorder %v3507, 0.0
        %vm3533 = vcmp.gt.f32.partialorder %v3511, 0.0
        %vm3534 = vcmp.gt.f32.partialorder %v3513, 0.0
        %vm3535 = vcmp.gt.f32.partialorder %v3517, 0.0
        %vm3536 = vcmp.gt.f32.partialorder %v3519, 0.0
        %v3537 = vmul.f32 %v3475, 0.01
        %v3538 = vmul.f32 %v3477, 0.01
        %v3539 = vmul.f32 %v3481, 0.01
        %v3540 = vmul.f32 %v3483, 0.01
        %v3541 = vmul.f32 %v3487, 0.01
        %v3542 = vmul.f32 %v3489, 0.01
        %v3543 = vmul.f32 %v3493, 0.01
        %v3544 = vmul.f32 %v3495, 0.01
        %v3545 = vmul.f32 %v3499, 0.01
        %v3546 = vmul.f32 %v3501, 0.01
        %v3547 = vmul.f32 %v3505, 0.01
        %v3548 = vmul.f32 %v3507, 0.01
        %v3549 = vmul.f32 %v3511, 0.01
        %v3550 = vmul.f32 %v3513, 0.01
        %v3551 = vmul.f32 %v3517, 0.01
        %v3552 = vmul.f32 %v3519, 0.01
        %v3553 = vsel %vm3521, %v3475, %v3537
        %v3554 = vsel %vm3522, %v3477, %v3538
        %v3555 = vsel %vm3523, %v3481, %v3539
        %v3556 = vsel %vm3524, %v3483, %v3540
        %v3557 = vsel %vm3525, %v3487, %v3541
        %v3558 = vsel %vm3526, %v3489, %v3542
        %v3559 = vsel %vm3527, %v3493, %v3543
        %v3560 = vsel %vm3528, %v3495, %v3544
        %v3561 = vsel %vm3529, %v3499, %v3545
        %v3562 = vsel %vm3530, %v3501, %v3546
        %v3563 = vsel %vm3531, %v3505, %v3547
        %v3564 = vsel %vm3532, %v3507, %v3548
        %v3565 = vsel %vm3533, %v3511, %v3549
        %v3566 = vsel %vm3534, %v3513, %v3550
        %v3567 = vsel %vm3535, %v3517, %v3551
        %v3568 = vsel %vm3536, %v3519, %v3552
        %s3569 = scalar_lea.vmem %s6, 64
        %v3570 = vld [vmem:[%s3569] sm:$0xff]
        %v3571 = vld [vmem:[%s3569 + $0x8] sm:$0xff]
        %v3572 = vld [vmem:[%s3569 + $0x10] sm:$0xff]
        %v3573 = vld [vmem:[%s3569 + $0x18] sm:$0xff]
        %v3574 = vld [vmem:[%s3569 + $0x20] sm:$0xff]
        %v3575 = vld [vmem:[%s3569 + $0x28] sm:$0xff]
        %v3576 = vld [vmem:[%s3569 + $0x30] sm:$0xff]
        %v3577 = vld [vmem:[%s3569 + $0x38] sm:$0xff]
        %3579 = vset.pattern.permute.xlu0 0
        %3580 = vperm.xlu0 %3579, %v3570
        %v3581 = vpop.permute.xlu0 %3580
        %3584 = vset.pattern.permute.xlu0 0
        %3585 = vperm.xlu0 %3584, %v3571
        %v3586 = vpop.permute.xlu0 %3585
        %3589 = vset.pattern.permute.xlu0 0
        %3590 = vperm.xlu0 %3589, %v3572
        %v3591 = vpop.permute.xlu0 %3590
        %3594 = vset.pattern.permute.xlu0 0
        %3595 = vperm.xlu0 %3594, %v3573
        %v3596 = vpop.permute.xlu0 %3595
        %3599 = vset.pattern.permute.xlu0 0
        %3600 = vperm.xlu0 %3599, %v3574
        %v3601 = vpop.permute.xlu0 %3600
        %3604 = vset.pattern.permute.xlu0 0
        %3605 = vperm.xlu0 %3604, %v3575
        %v3606 = vpop.permute.xlu0 %3605
        %3609 = vset.pattern.permute.xlu0 0
        %3610 = vperm.xlu0 %3609, %v3576
        %v3611 = vpop.permute.xlu0 %3610
        %3614 = vset.pattern.permute.xlu0 0
        %3615 = vperm.xlu0 %3614, %v3577
        %v3616 = vpop.permute.xlu0 %3615
        %v3618 = vmul.f32 %v3553, %v3581
        %v3619 = vmul.f32 %v3554, %v3581
        %v3620 = vmul.f32 %v3555, %v3586
        %v3621 = vmul.f32 %v3556, %v3586
        %v3622 = vmul.f32 %v3557, %v3591
        %v3623 = vmul.f32 %v3558, %v3591
        %v3624 = vmul.f32 %v3559, %v3596
        %v3625 = vmul.f32 %v3560, %v3596
        %v3626 = vmul.f32 %v3561, %v3601
        %v3627 = vmul.f32 %v3562, %v3601
        %v3628 = vmul.f32 %v3563, %v3606
        %v3629 = vmul.f32 %v3564, %v3606
        %v3630 = vmul.f32 %v3565, %v3611
        %v3631 = vmul.f32 %v3566, %v3611
        %v3632 = vmul.f32 %v3567, %v3616
        %v3633 = vmul.f32 %v3568, %v3616
        %v3634 = vadd.f32 %v3618, %v3620
        %v3635 = vadd.f32 %v3634, %v3622
        %v3636 = vadd.f32 %v3635, %v3624
        %v3637 = vadd.f32 %v3636, %v3626
        %v3638 = vadd.f32 %v3637, %v3628
        %v3639 = vadd.f32 %v3638, %v3630
        %v3640 = vadd.f32 %v3639, %v3632
        %v3641 = vrot.slane %v3640, 4
        %v3642 = vadd.f32 %v3640, %v3641
        %v3643 = vrot.slane %v3642, 2
        %v3644 = vadd.f32 %v3642, %v3643
        %v3645 = vrot.slane %v3644, 1
        %v3646 = vadd.f32 %v3644, %v3645
        %v3647 = vadd.f32 %v3619, %v3621
        %v3648 = vadd.f32 %v3647, %v3623
        %v3649 = vadd.f32 %v3648, %v3625
        %v3650 = vadd.f32 %v3649, %v3627
        %v3651 = vadd.f32 %v3650, %v3629
        %v3652 = vadd.f32 %v3651, %v3631
        %v3653 = vadd.f32 %v3652, %v3633
        %v3654 = vrot.slane %v3653, 4
        %v3655 = vadd.f32 %v3653, %v3654
        %v3656 = vrot.slane %v3655, 2
        %v3657 = vadd.f32 %v3655, %v3656
        %v3658 = vrot.slane %v3657, 1
        %v3659 = vadd.f32 %v3657, %v3658
        %s3660 = scalar_lea.vmem %s7, 1
        %v3661 = vld [vmem:[%s3660] sm:$0x1]
        %3663 = vset.pattern.permute.xlu0 0
        %3664 = vperm.xlu0 %3663, %v3661
        %v3665 = vpop.permute.xlu0 %3664
        %v3667 = vlaneseq
        %v3668 = vshrl.u32 %v3667, 7
        %v3669 = vsub.s32 0, %v3668
        %v3670 = vrot.slane %v3665, %v3669
        %v3671 = vadd.f32 %v3646, %v3670
        %v3672 = vadd.f32 %v3659, %v3670
        %v3673 = vxor.u32 %v3671, 2147483648
        %v3674 = vxor.u32 %v3672, 2147483648
        %v3675 = vmul.f32 %v3673, 1.442695
        %v3676 = vpow.pop %v3675
        %v3677 = vmul.f32 %v3674, 1.442695
        %v3678 = vpow.pop %v3677
        %v3679 = vadd.f32 %v3676, 1.0
        %v3680 = vadd.f32 %v3678, 1.0
        %v3681 = vrcp.pop %v3679
        %v3682 = vmul.f32 1.0, %v3681
        %v3683 = vrcp.pop %v3680
        %v3684 = vmul.f32 1.0, %v3683
        %v3685 = vmax.f32 %v2061, %v3682
        %v3686 = vmax.f32 %v2063, %v3684
        %s3687 = scalar_lea.vmem %s389, 16 [#allocation2]
        %v3688 = vld [vmem:[%s3687] sm:$0x77]
        %v3689 = vadd.f32 %v449, %v3688
        %v3690 = vmax.f32 %v3689, -0.5
        %v3691 = vmin.f32 %v3690, 0.5
        %s3692 = scalar_lea.vmem %s2, 512
        %v3693 = vld [vmem:[%s3692] sm:$0xff]
        %v3694 = vld [vmem:[%s3692 + $0x8] sm:$0xff]
        %v3695 = vld [vmem:[%s3692 + $0x10] sm:$0xff]
        %v3696 = vld [vmem:[%s3692 + $0x18] sm:$0xff]
        %v3697 = vld [vmem:[%s3692 + $0x20] sm:$0xff]
        %v3698 = vld [vmem:[%s3692 + $0x28] sm:$0xff]
        %v3699 = vld [vmem:[%s3692 + $0x30] sm:$0xff]
        %v3700 = vld [vmem:[%s3692 + $0x38] sm:$0xff]
        %v3701 = vld [vmem:[%s3692 + $0x40] sm:$0xff]
        %v3702 = vld [vmem:[%s3692 + $0x48] sm:$0xff]
        %v3703 = vld [vmem:[%s3692 + $0x50] sm:$0xff]
        %v3704 = vld [vmem:[%s3692 + $0x58] sm:$0xff]
        %v3705 = vld [vmem:[%s3692 + $0x60] sm:$0xff]
        %v3706 = vld [vmem:[%s3692 + $0x68] sm:$0xff]
        %v3707 = vld [vmem:[%s3692 + $0x70] sm:$0xff]
        %v3708 = vld [vmem:[%s3692 + $0x78] sm:$0xff]
        %v3709 = vld [vmem:[%s3692 + $0x80] sm:$0xff]
        %v3710 = vld [vmem:[%s3692 + $0x88] sm:$0xff]
        %v3711 = vld [vmem:[%s3692 + $0x90] sm:$0xff]
        %v3712 = vld [vmem:[%s3692 + $0x98] sm:$0xff]
        %v3713 = vld [vmem:[%s3692 + $0xa0] sm:$0xff]
        %v3714 = vld [vmem:[%s3692 + $0xa8] sm:$0xff]
        %v3715 = vld [vmem:[%s3692 + $0xb0] sm:$0xff]
        %v3716 = vld [vmem:[%s3692 + $0xb8] sm:$0xff]
        %v3717 = vld [vmem:[%s3692 + $0xc0] sm:$0xff]
        %v3718 = vld [vmem:[%s3692 + $0xc8] sm:$0xff]
        %v3719 = vld [vmem:[%s3692 + $0xd0] sm:$0xff]
        %v3720 = vld [vmem:[%s3692 + $0xd8] sm:$0xff]
        %v3721 = vld [vmem:[%s3692 + $0xe0] sm:$0xff]
        %v3722 = vld [vmem:[%s3692 + $0xe8] sm:$0xff]
        %v3723 = vld [vmem:[%s3692 + $0xf0] sm:$0xff]
        %v3724 = vld [vmem:[%s3692 + $0xf8] sm:$0xff]
        %3726 = vset.pattern.permute.xlu0 0
        %3727 = vperm.xlu0 %3726, %v3693
        %v3728 = vpop.permute.xlu0 %3727
        %3731 = vset.pattern.permute.xlu0 0
        %3732 = vperm.xlu0 %3731, %v3694
        %v3733 = vpop.permute.xlu0 %3732
        %3736 = vset.pattern.permute.xlu0 0
        %3737 = vperm.xlu0 %3736, %v3695
        %v3738 = vpop.permute.xlu0 %3737
        %3741 = vset.pattern.permute.xlu0 0
        %3742 = vperm.xlu0 %3741, %v3696
        %v3743 = vpop.permute.xlu0 %3742
        %3746 = vset.pattern.permute.xlu0 0
        %3747 = vperm.xlu0 %3746, %v3697
        %v3748 = vpop.permute.xlu0 %3747
        %3751 = vset.pattern.permute.xlu0 0
        %3752 = vperm.xlu0 %3751, %v3698
        %v3753 = vpop.permute.xlu0 %3752
        %3756 = vset.pattern.permute.xlu0 0
        %3757 = vperm.xlu0 %3756, %v3699
        %v3758 = vpop.permute.xlu0 %3757
        %3761 = vset.pattern.permute.xlu0 0
        %3762 = vperm.xlu0 %3761, %v3700
        %v3763 = vpop.permute.xlu0 %3762
        %3766 = vset.pattern.permute.xlu0 0
        %3767 = vperm.xlu0 %3766, %v3701
        %v3768 = vpop.permute.xlu0 %3767
        %3771 = vset.pattern.permute.xlu0 0
        %3772 = vperm.xlu0 %3771, %v3702
        %v3773 = vpop.permute.xlu0 %3772
        %3776 = vset.pattern.permute.xlu0 0
        %3777 = vperm.xlu0 %3776, %v3703
        %v3778 = vpop.permute.xlu0 %3777
        %3781 = vset.pattern.permute.xlu0 0
        %3782 = vperm.xlu0 %3781, %v3704
        %v3783 = vpop.permute.xlu0 %3782
        %3786 = vset.pattern.permute.xlu0 0
        %3787 = vperm.xlu0 %3786, %v3705
        %v3788 = vpop.permute.xlu0 %3787
        %3791 = vset.pattern.permute.xlu0 0
        %3792 = vperm.xlu0 %3791, %v3706
        %v3793 = vpop.permute.xlu0 %3792
        %3796 = vset.pattern.permute.xlu0 0
        %3797 = vperm.xlu0 %3796, %v3707
        %v3798 = vpop.permute.xlu0 %3797
        %3801 = vset.pattern.permute.xlu0 0
        %3802 = vperm.xlu0 %3801, %v3708
        %v3803 = vpop.permute.xlu0 %3802
        %3806 = vset.pattern.permute.xlu0 0
        %3807 = vperm.xlu0 %3806, %v3709
        %v3808 = vpop.permute.xlu0 %3807
        %3811 = vset.pattern.permute.xlu0 0
        %3812 = vperm.xlu0 %3811, %v3710
        %v3813 = vpop.permute.xlu0 %3812
        %3816 = vset.pattern.permute.xlu0 0
        %3817 = vperm.xlu0 %3816, %v3711
        %v3818 = vpop.permute.xlu0 %3817
        %3821 = vset.pattern.permute.xlu0 0
        %3822 = vperm.xlu0 %3821, %v3712
        %v3823 = vpop.permute.xlu0 %3822
        %3826 = vset.pattern.permute.xlu0 0
        %3827 = vperm.xlu0 %3826, %v3713
        %v3828 = vpop.permute.xlu0 %3827
        %3831 = vset.pattern.permute.xlu0 0
        %3832 = vperm.xlu0 %3831, %v3714
        %v3833 = vpop.permute.xlu0 %3832
        %3836 = vset.pattern.permute.xlu0 0
        %3837 = vperm.xlu0 %3836, %v3715
        %v3838 = vpop.permute.xlu0 %3837
        %3841 = vset.pattern.permute.xlu0 0
        %3842 = vperm.xlu0 %3841, %v3716
        %v3843 = vpop.permute.xlu0 %3842
        %3846 = vset.pattern.permute.xlu0 0
        %3847 = vperm.xlu0 %3846, %v3717
        %v3848 = vpop.permute.xlu0 %3847
        %3851 = vset.pattern.permute.xlu0 0
        %3852 = vperm.xlu0 %3851, %v3718
        %v3853 = vpop.permute.xlu0 %3852
        %3856 = vset.pattern.permute.xlu0 0
        %3857 = vperm.xlu0 %3856, %v3719
        %v3858 = vpop.permute.xlu0 %3857
        %3861 = vset.pattern.permute.xlu0 0
        %3862 = vperm.xlu0 %3861, %v3720
        %v3863 = vpop.permute.xlu0 %3862
        %3866 = vset.pattern.permute.xlu0 0
        %3867 = vperm.xlu0 %3866, %v3721
        %v3868 = vpop.permute.xlu0 %3867
        %3871 = vset.pattern.permute.xlu0 0
        %3872 = vperm.xlu0 %3871, %v3722
        %v3873 = vpop.permute.xlu0 %3872
        %3876 = vset.pattern.permute.xlu0 0
        %3877 = vperm.xlu0 %3876, %v3723
        %v3878 = vpop.permute.xlu0 %3877
        %3881 = vset.pattern.permute.xlu0 0
        %3882 = vperm.xlu0 %3881, %v3724
        %v3883 = vpop.permute.xlu0 %3882
        %v3886 = vlaneseq
        %v3887 = vshrl.u32 %v3886, 7
        %v3888 = vsub.s32 0, %v3887
        %v3889 = vrot.slane %v3691, %v3888
        %v3890 = vlaneseq
        %v3891 = vshrl.u32 %v3890, 7
        %v3892 = vsub.s32 4, %v3891
        %v3893 = vrot.slane %v3691, %v3892
        %v3896 = vlaneseq
        %v3897 = vshrl.u32 %v3896, 7
        %v3898 = vsub.s32 0, %v3897
        %v3899 = vrot.slane %v3889, %v3898
        %v3900 = vlaneseq
        %v3901 = vshrl.u32 %v3900, 7
        %v3902 = vsub.s32 0, %v3901
        %v3903 = vrot.slane %v3893, %v3902
        %v3904 = vmul.f32 %v3728, %v3899
        %v3905 = vmul.f32 %v3728, %v3903
        %v3906 = vmul.f32 %v3733, %v3899
        %v3907 = vmul.f32 %v3733, %v3903
        %v3908 = vmul.f32 %v3738, %v3899
        %v3909 = vmul.f32 %v3738, %v3903
        %v3910 = vmul.f32 %v3743, %v3899
        %v3911 = vmul.f32 %v3743, %v3903
        %v3912 = vmul.f32 %v3748, %v3899
        %v3913 = vmul.f32 %v3748, %v3903
        %v3914 = vmul.f32 %v3753, %v3899
        %v3915 = vmul.f32 %v3753, %v3903
        %v3916 = vmul.f32 %v3758, %v3899
        %v3917 = vmul.f32 %v3758, %v3903
        %v3918 = vmul.f32 %v3763, %v3899
        %v3919 = vmul.f32 %v3763, %v3903
        %v3920 = vmul.f32 %v3768, %v3899
        %v3921 = vmul.f32 %v3768, %v3903
        %v3922 = vmul.f32 %v3773, %v3899
        %v3923 = vmul.f32 %v3773, %v3903
        %v3924 = vmul.f32 %v3778, %v3899
        %v3925 = vmul.f32 %v3778, %v3903
        %v3926 = vmul.f32 %v3783, %v3899
        %v3927 = vmul.f32 %v3783, %v3903
        %v3928 = vmul.f32 %v3788, %v3899
        %v3929 = vmul.f32 %v3788, %v3903
        %v3930 = vmul.f32 %v3793, %v3899
        %v3931 = vmul.f32 %v3793, %v3903
        %v3932 = vmul.f32 %v3798, %v3899
        %v3933 = vmul.f32 %v3798, %v3903
        %v3934 = vmul.f32 %v3803, %v3899
        %v3935 = vmul.f32 %v3803, %v3903
        %v3936 = vmul.f32 %v3808, %v3899
        %v3937 = vmul.f32 %v3808, %v3903
        %v3938 = vmul.f32 %v3813, %v3899
        %v3939 = vmul.f32 %v3813, %v3903
        %v3940 = vmul.f32 %v3818, %v3899
        %v3941 = vmul.f32 %v3818, %v3903
        %v3942 = vmul.f32 %v3823, %v3899
        %v3943 = vmul.f32 %v3823, %v3903
        %v3944 = vmul.f32 %v3828, %v3899
        %v3945 = vmul.f32 %v3828, %v3903
        %v3946 = vmul.f32 %v3833, %v3899
        %v3947 = vmul.f32 %v3833, %v3903
        %v3948 = vmul.f32 %v3838, %v3899
        %v3949 = vmul.f32 %v3838, %v3903
        %v3950 = vmul.f32 %v3843, %v3899
        %v3951 = vmul.f32 %v3843, %v3903
        %v3952 = vmul.f32 %v3848, %v3899
        %v3953 = vmul.f32 %v3848, %v3903
        %v3954 = vmul.f32 %v3853, %v3899
        %v3955 = vmul.f32 %v3853, %v3903
        %v3956 = vmul.f32 %v3858, %v3899
        %v3957 = vmul.f32 %v3858, %v3903
        %v3958 = vmul.f32 %v3863, %v3899
        %v3959 = vmul.f32 %v3863, %v3903
        %v3960 = vmul.f32 %v3868, %v3899
        %v3961 = vmul.f32 %v3868, %v3903
        %v3962 = vmul.f32 %v3873, %v3899
        %v3963 = vmul.f32 %v3873, %v3903
        %v3964 = vmul.f32 %v3878, %v3899
        %v3965 = vmul.f32 %v3878, %v3903
        %v3966 = vmul.f32 %v3883, %v3899
        %v3967 = vmul.f32 %v3883, %v3903
        %3968 = vset.pattern.permute.xlu0 1
        %3969 = vperm.xlu0 %3968, %v3693
        %v3970 = vpop.permute.xlu0 %3969
        %3972 = vset.pattern.permute.xlu0 1
        %3973 = vperm.xlu0 %3972, %v3694
        %v3974 = vpop.permute.xlu0 %3973
        %3976 = vset.pattern.permute.xlu0 1
        %3977 = vperm.xlu0 %3976, %v3695
        %v3978 = vpop.permute.xlu0 %3977
        %3980 = vset.pattern.permute.xlu0 1
        %3981 = vperm.xlu0 %3980, %v3696
        %v3982 = vpop.permute.xlu0 %3981
        %3984 = vset.pattern.permute.xlu0 1
        %3985 = vperm.xlu0 %3984, %v3697
        %v3986 = vpop.permute.xlu0 %3985
        %3988 = vset.pattern.permute.xlu0 1
        %3989 = vperm.xlu0 %3988, %v3698
        %v3990 = vpop.permute.xlu0 %3989
        %3992 = vset.pattern.permute.xlu0 1
        %3993 = vperm.xlu0 %3992, %v3699
        %v3994 = vpop.permute.xlu0 %3993
        %3996 = vset.pattern.permute.xlu0 1
        %3997 = vperm.xlu0 %3996, %v3700
        %v3998 = vpop.permute.xlu0 %3997
        %4000 = vset.pattern.permute.xlu0 1
        %4001 = vperm.xlu0 %4000, %v3701
        %v4002 = vpop.permute.xlu0 %4001
        %4004 = vset.pattern.permute.xlu0 1
        %4005 = vperm.xlu0 %4004, %v3702
        %v4006 = vpop.permute.xlu0 %4005
        %4008 = vset.pattern.permute.xlu0 1
        %4009 = vperm.xlu0 %4008, %v3703
        %v4010 = vpop.permute.xlu0 %4009
        %4012 = vset.pattern.permute.xlu0 1
        %4013 = vperm.xlu0 %4012, %v3704
        %v4014 = vpop.permute.xlu0 %4013
        %4016 = vset.pattern.permute.xlu0 1
        %4017 = vperm.xlu0 %4016, %v3705
        %v4018 = vpop.permute.xlu0 %4017
        %4020 = vset.pattern.permute.xlu0 1
        %4021 = vperm.xlu0 %4020, %v3706
        %v4022 = vpop.permute.xlu0 %4021
        %4024 = vset.pattern.permute.xlu0 1
        %4025 = vperm.xlu0 %4024, %v3707
        %v4026 = vpop.permute.xlu0 %4025
        %4028 = vset.pattern.permute.xlu0 1
        %4029 = vperm.xlu0 %4028, %v3708
        %v4030 = vpop.permute.xlu0 %4029
        %4032 = vset.pattern.permute.xlu0 1
        %4033 = vperm.xlu0 %4032, %v3709
        %v4034 = vpop.permute.xlu0 %4033
        %4036 = vset.pattern.permute.xlu0 1
        %4037 = vperm.xlu0 %4036, %v3710
        %v4038 = vpop.permute.xlu0 %4037
        %4040 = vset.pattern.permute.xlu0 1
        %4041 = vperm.xlu0 %4040, %v3711
        %v4042 = vpop.permute.xlu0 %4041
        %4044 = vset.pattern.permute.xlu0 1
        %4045 = vperm.xlu0 %4044, %v3712
        %v4046 = vpop.permute.xlu0 %4045
        %4048 = vset.pattern.permute.xlu0 1
        %4049 = vperm.xlu0 %4048, %v3713
        %v4050 = vpop.permute.xlu0 %4049
        %4052 = vset.pattern.permute.xlu0 1
        %4053 = vperm.xlu0 %4052, %v3714
        %v4054 = vpop.permute.xlu0 %4053
        %4056 = vset.pattern.permute.xlu0 1
        %4057 = vperm.xlu0 %4056, %v3715
        %v4058 = vpop.permute.xlu0 %4057
        %4060 = vset.pattern.permute.xlu0 1
        %4061 = vperm.xlu0 %4060, %v3716
        %v4062 = vpop.permute.xlu0 %4061
        %4064 = vset.pattern.permute.xlu0 1
        %4065 = vperm.xlu0 %4064, %v3717
        %v4066 = vpop.permute.xlu0 %4065
        %4068 = vset.pattern.permute.xlu0 1
        %4069 = vperm.xlu0 %4068, %v3718
        %v4070 = vpop.permute.xlu0 %4069
        %4072 = vset.pattern.permute.xlu0 1
        %4073 = vperm.xlu0 %4072, %v3719
        %v4074 = vpop.permute.xlu0 %4073
        %4076 = vset.pattern.permute.xlu0 1
        %4077 = vperm.xlu0 %4076, %v3720
        %v4078 = vpop.permute.xlu0 %4077
        %4080 = vset.pattern.permute.xlu0 1
        %4081 = vperm.xlu0 %4080, %v3721
        %v4082 = vpop.permute.xlu0 %4081
        %4084 = vset.pattern.permute.xlu0 1
        %4085 = vperm.xlu0 %4084, %v3722
        %v4086 = vpop.permute.xlu0 %4085
        %4088 = vset.pattern.permute.xlu0 1
        %4089 = vperm.xlu0 %4088, %v3723
        %v4090 = vpop.permute.xlu0 %4089
        %4092 = vset.pattern.permute.xlu0 1
        %4093 = vperm.xlu0 %4092, %v3724
        %v4094 = vpop.permute.xlu0 %4093
        %v4096 = vlaneseq
        %v4097 = vshrl.u32 %v4096, 7
        %v4098 = vsub.s32 1, %v4097
        %v4099 = vrot.slane %v3691, %v4098
        %v4100 = vlaneseq
        %v4101 = vshrl.u32 %v4100, 7
        %v4102 = vsub.s32 5, %v4101
        %v4103 = vrot.slane %v3691, %v4102
        %v4106 = vlaneseq
        %v4107 = vshrl.u32 %v4106, 7
        %v4108 = vsub.s32 1, %v4107
        %v4109 = vrot.slane %v4099, %v4108
        %v4110 = vlaneseq
        %v4111 = vshrl.u32 %v4110, 7
        %v4112 = vsub.s32 1, %v4111
        %v4113 = vrot.slane %v4103, %v4112
        %v4114 = vmul.f32 %v3970, %v4109
        %v4115 = vmul.f32 %v3970, %v4113
        %v4116 = vmul.f32 %v3974, %v4109
        %v4117 = vmul.f32 %v3974, %v4113
        %v4118 = vmul.f32 %v3978, %v4109
        %v4119 = vmul.f32 %v3978, %v4113
        %v4120 = vmul.f32 %v3982, %v4109
        %v4121 = vmul.f32 %v3982, %v4113
        %v4122 = vmul.f32 %v3986, %v4109
        %v4123 = vmul.f32 %v3986, %v4113
        %v4124 = vmul.f32 %v3990, %v4109
        %v4125 = vmul.f32 %v3990, %v4113
        %v4126 = vmul.f32 %v3994, %v4109
        %v4127 = vmul.f32 %v3994, %v4113
        %v4128 = vmul.f32 %v3998, %v4109
        %v4129 = vmul.f32 %v3998, %v4113
        %v4130 = vmul.f32 %v4002, %v4109
        %v4131 = vmul.f32 %v4002, %v4113
        %v4132 = vmul.f32 %v4006, %v4109
        %v4133 = vmul.f32 %v4006, %v4113
        %v4134 = vmul.f32 %v4010, %v4109
        %v4135 = vmul.f32 %v4010, %v4113
        %v4136 = vmul.f32 %v4014, %v4109
        %v4137 = vmul.f32 %v4014, %v4113
        %v4138 = vmul.f32 %v4018, %v4109
        %v4139 = vmul.f32 %v4018, %v4113
        %v4140 = vmul.f32 %v4022, %v4109
        %v4141 = vmul.f32 %v4022, %v4113
        %v4142 = vmul.f32 %v4026, %v4109
        %v4143 = vmul.f32 %v4026, %v4113
        %v4144 = vmul.f32 %v4030, %v4109
        %v4145 = vmul.f32 %v4030, %v4113
        %v4146 = vmul.f32 %v4034, %v4109
        %v4147 = vmul.f32 %v4034, %v4113
        %v4148 = vmul.f32 %v4038, %v4109
        %v4149 = vmul.f32 %v4038, %v4113
        %v4150 = vmul.f32 %v4042, %v4109
        %v4151 = vmul.f32 %v4042, %v4113
        %v4152 = vmul.f32 %v4046, %v4109
        %v4153 = vmul.f32 %v4046, %v4113
        %v4154 = vmul.f32 %v4050, %v4109
        %v4155 = vmul.f32 %v4050, %v4113
        %v4156 = vmul.f32 %v4054, %v4109
        %v4157 = vmul.f32 %v4054, %v4113
        %v4158 = vmul.f32 %v4058, %v4109
        %v4159 = vmul.f32 %v4058, %v4113
        %v4160 = vmul.f32 %v4062, %v4109
        %v4161 = vmul.f32 %v4062, %v4113
        %v4162 = vmul.f32 %v4066, %v4109
        %v4163 = vmul.f32 %v4066, %v4113
        %v4164 = vmul.f32 %v4070, %v4109
        %v4165 = vmul.f32 %v4070, %v4113
        %v4166 = vmul.f32 %v4074, %v4109
        %v4167 = vmul.f32 %v4074, %v4113
        %v4168 = vmul.f32 %v4078, %v4109
        %v4169 = vmul.f32 %v4078, %v4113
        %v4170 = vmul.f32 %v4082, %v4109
        %v4171 = vmul.f32 %v4082, %v4113
        %v4172 = vmul.f32 %v4086, %v4109
        %v4173 = vmul.f32 %v4086, %v4113
        %v4174 = vmul.f32 %v4090, %v4109
        %v4175 = vmul.f32 %v4090, %v4113
        %v4176 = vmul.f32 %v4094, %v4109
        %v4177 = vmul.f32 %v4094, %v4113
        %v4178 = vadd.f32 %v3904, %v4114
        %v4179 = vadd.f32 %v3905, %v4115
        %v4180 = vadd.f32 %v3906, %v4116
        %v4181 = vadd.f32 %v3907, %v4117
        %v4182 = vadd.f32 %v3908, %v4118
        %v4183 = vadd.f32 %v3909, %v4119
        %v4184 = vadd.f32 %v3910, %v4120
        %v4185 = vadd.f32 %v3911, %v4121
        %v4186 = vadd.f32 %v3912, %v4122
        %v4187 = vadd.f32 %v3913, %v4123
        %v4188 = vadd.f32 %v3914, %v4124
        %v4189 = vadd.f32 %v3915, %v4125
        %v4190 = vadd.f32 %v3916, %v4126
        %v4191 = vadd.f32 %v3917, %v4127
        %v4192 = vadd.f32 %v3918, %v4128
        %v4193 = vadd.f32 %v3919, %v4129
        %v4194 = vadd.f32 %v3920, %v4130
        %v4195 = vadd.f32 %v3921, %v4131
        %v4196 = vadd.f32 %v3922, %v4132
        %v4197 = vadd.f32 %v3923, %v4133
        %v4198 = vadd.f32 %v3924, %v4134
        %v4199 = vadd.f32 %v3925, %v4135
        %v4200 = vadd.f32 %v3926, %v4136
        %v4201 = vadd.f32 %v3927, %v4137
        %v4202 = vadd.f32 %v3928, %v4138
        %v4203 = vadd.f32 %v3929, %v4139
        %v4204 = vadd.f32 %v3930, %v4140
        %v4205 = vadd.f32 %v3931, %v4141
        %v4206 = vadd.f32 %v3932, %v4142
        %v4207 = vadd.f32 %v3933, %v4143
        %v4208 = vadd.f32 %v3934, %v4144
        %v4209 = vadd.f32 %v3935, %v4145
        %v4210 = vadd.f32 %v3936, %v4146
        %v4211 = vadd.f32 %v3937, %v4147
        %v4212 = vadd.f32 %v3938, %v4148
        %v4213 = vadd.f32 %v3939, %v4149
        %v4214 = vadd.f32 %v3940, %v4150
        %v4215 = vadd.f32 %v3941, %v4151
        %v4216 = vadd.f32 %v3942, %v4152
        %v4217 = vadd.f32 %v3943, %v4153
        %v4218 = vadd.f32 %v3944, %v4154
        %v4219 = vadd.f32 %v3945, %v4155
        %v4220 = vadd.f32 %v3946, %v4156
        %v4221 = vadd.f32 %v3947, %v4157
        %v4222 = vadd.f32 %v3948, %v4158
        %v4223 = vadd.f32 %v3949, %v4159
        %v4224 = vadd.f32 %v3950, %v4160
        %v4225 = vadd.f32 %v3951, %v4161
        %v4226 = vadd.f32 %v3952, %v4162
        %v4227 = vadd.f32 %v3953, %v4163
        %v4228 = vadd.f32 %v3954, %v4164
        %v4229 = vadd.f32 %v3955, %v4165
        %v4230 = vadd.f32 %v3956, %v4166
        %v4231 = vadd.f32 %v3957, %v4167
        %v4232 = vadd.f32 %v3958, %v4168
        %v4233 = vadd.f32 %v3959, %v4169
        %v4234 = vadd.f32 %v3960, %v4170
        %v4235 = vadd.f32 %v3961, %v4171
        %v4236 = vadd.f32 %v3962, %v4172
        %v4237 = vadd.f32 %v3963, %v4173
        %v4238 = vadd.f32 %v3964, %v4174
        %v4239 = vadd.f32 %v3965, %v4175
        %v4240 = vadd.f32 %v3966, %v4176
        %v4241 = vadd.f32 %v3967, %v4177
        %4242 = vset.pattern.permute.xlu0 2
        %4243 = vperm.xlu0 %4242, %v3693
        %v4244 = vpop.permute.xlu0 %4243
        %4246 = vset.pattern.permute.xlu0 2
        %4247 = vperm.xlu0 %4246, %v3694
        %v4248 = vpop.permute.xlu0 %4247
        %4250 = vset.pattern.permute.xlu0 2
        %4251 = vperm.xlu0 %4250, %v3695
        %v4252 = vpop.permute.xlu0 %4251
        %4254 = vset.pattern.permute.xlu0 2
        %4255 = vperm.xlu0 %4254, %v3696
        %v4256 = vpop.permute.xlu0 %4255
        %4258 = vset.pattern.permute.xlu0 2
        %4259 = vperm.xlu0 %4258, %v3697
        %v4260 = vpop.permute.xlu0 %4259
        %4262 = vset.pattern.permute.xlu0 2
        %4263 = vperm.xlu0 %4262, %v3698
        %v4264 = vpop.permute.xlu0 %4263
        %4266 = vset.pattern.permute.xlu0 2
        %4267 = vperm.xlu0 %4266, %v3699
        %v4268 = vpop.permute.xlu0 %4267
        %4270 = vset.pattern.permute.xlu0 2
        %4271 = vperm.xlu0 %4270, %v3700
        %v4272 = vpop.permute.xlu0 %4271
        %4274 = vset.pattern.permute.xlu0 2
        %4275 = vperm.xlu0 %4274, %v3701
        %v4276 = vpop.permute.xlu0 %4275
        %4278 = vset.pattern.permute.xlu0 2
        %4279 = vperm.xlu0 %4278, %v3702
        %v4280 = vpop.permute.xlu0 %4279
        %4282 = vset.pattern.permute.xlu0 2
        %4283 = vperm.xlu0 %4282, %v3703
        %v4284 = vpop.permute.xlu0 %4283
        %4286 = vset.pattern.permute.xlu0 2
        %4287 = vperm.xlu0 %4286, %v3704
        %v4288 = vpop.permute.xlu0 %4287
        %4290 = vset.pattern.permute.xlu0 2
        %4291 = vperm.xlu0 %4290, %v3705
        %v4292 = vpop.permute.xlu0 %4291
        %4294 = vset.pattern.permute.xlu0 2
        %4295 = vperm.xlu0 %4294, %v3706
        %v4296 = vpop.permute.xlu0 %4295
        %4298 = vset.pattern.permute.xlu0 2
        %4299 = vperm.xlu0 %4298, %v3707
        %v4300 = vpop.permute.xlu0 %4299
        %4302 = vset.pattern.permute.xlu0 2
        %4303 = vperm.xlu0 %4302, %v3708
        %v4304 = vpop.permute.xlu0 %4303
        %4306 = vset.pattern.permute.xlu0 2
        %4307 = vperm.xlu0 %4306, %v3709
        %v4308 = vpop.permute.xlu0 %4307
        %4310 = vset.pattern.permute.xlu0 2
        %4311 = vperm.xlu0 %4310, %v3710
        %v4312 = vpop.permute.xlu0 %4311
        %4314 = vset.pattern.permute.xlu0 2
        %4315 = vperm.xlu0 %4314, %v3711
        %v4316 = vpop.permute.xlu0 %4315
        %4318 = vset.pattern.permute.xlu0 2
        %4319 = vperm.xlu0 %4318, %v3712
        %v4320 = vpop.permute.xlu0 %4319
        %4322 = vset.pattern.permute.xlu0 2
        %4323 = vperm.xlu0 %4322, %v3713
        %v4324 = vpop.permute.xlu0 %4323
        %4326 = vset.pattern.permute.xlu0 2
        %4327 = vperm.xlu0 %4326, %v3714
        %v4328 = vpop.permute.xlu0 %4327
        %4330 = vset.pattern.permute.xlu0 2
        %4331 = vperm.xlu0 %4330, %v3715
        %v4332 = vpop.permute.xlu0 %4331
        %4334 = vset.pattern.permute.xlu0 2
        %4335 = vperm.xlu0 %4334, %v3716
        %v4336 = vpop.permute.xlu0 %4335
        %4338 = vset.pattern.permute.xlu0 2
        %4339 = vperm.xlu0 %4338, %v3717
        %v4340 = vpop.permute.xlu0 %4339
        %4342 = vset.pattern.permute.xlu0 2
        %4343 = vperm.xlu0 %4342, %v3718
        %v4344 = vpop.permute.xlu0 %4343
        %4346 = vset.pattern.permute.xlu0 2
        %4347 = vperm.xlu0 %4346, %v3719
        %v4348 = vpop.permute.xlu0 %4347
        %4350 = vset.pattern.permute.xlu0 2
        %4351 = vperm.xlu0 %4350, %v3720
        %v4352 = vpop.permute.xlu0 %4351
        %4354 = vset.pattern.permute.xlu0 2
        %4355 = vperm.xlu0 %4354, %v3721
        %v4356 = vpop.permute.xlu0 %4355
        %4358 = vset.pattern.permute.xlu0 2
        %4359 = vperm.xlu0 %4358, %v3722
        %v4360 = vpop.permute.xlu0 %4359
        %4362 = vset.pattern.permute.xlu0 2
        %4363 = vperm.xlu0 %4362, %v3723
        %v4364 = vpop.permute.xlu0 %4363
        %4366 = vset.pattern.permute.xlu0 2
        %4367 = vperm.xlu0 %4366, %v3724
        %v4368 = vpop.permute.xlu0 %4367
        %v4370 = vlaneseq
        %v4371 = vshrl.u32 %v4370, 7
        %v4372 = vsub.s32 2, %v4371
        %v4373 = vrot.slane %v3691, %v4372
        %v4374 = vlaneseq
        %v4375 = vshrl.u32 %v4374, 7
        %v4376 = vsub.s32 6, %v4375
        %v4377 = vrot.slane %v3691, %v4376
        %v4380 = vlaneseq
        %v4381 = vshrl.u32 %v4380, 7
        %v4382 = vsub.s32 2, %v4381
        %v4383 = vrot.slane %v4373, %v4382
        %v4384 = vlaneseq
        %v4385 = vshrl.u32 %v4384, 7
        %v4386 = vsub.s32 2, %v4385
        %v4387 = vrot.slane %v4377, %v4386
        %v4388 = vmul.f32 %v4244, %v4383
        %v4389 = vmul.f32 %v4244, %v4387
        %v4390 = vmul.f32 %v4248, %v4383
        %v4391 = vmul.f32 %v4248, %v4387
        %v4392 = vmul.f32 %v4252, %v4383
        %v4393 = vmul.f32 %v4252, %v4387
        %v4394 = vmul.f32 %v4256, %v4383
        %v4395 = vmul.f32 %v4256, %v4387
        %v4396 = vmul.f32 %v4260, %v4383
        %v4397 = vmul.f32 %v4260, %v4387
        %v4398 = vmul.f32 %v4264, %v4383
        %v4399 = vmul.f32 %v4264, %v4387
        %v4400 = vmul.f32 %v4268, %v4383
        %v4401 = vmul.f32 %v4268, %v4387
        %v4402 = vmul.f32 %v4272, %v4383
        %v4403 = vmul.f32 %v4272, %v4387
        %v4404 = vmul.f32 %v4276, %v4383
        %v4405 = vmul.f32 %v4276, %v4387
        %v4406 = vmul.f32 %v4280, %v4383
        %v4407 = vmul.f32 %v4280, %v4387
        %v4408 = vmul.f32 %v4284, %v4383
        %v4409 = vmul.f32 %v4284, %v4387
        %v4410 = vmul.f32 %v4288, %v4383
        %v4411 = vmul.f32 %v4288, %v4387
        %v4412 = vmul.f32 %v4292, %v4383
        %v4413 = vmul.f32 %v4292, %v4387
        %v4414 = vmul.f32 %v4296, %v4383
        %v4415 = vmul.f32 %v4296, %v4387
        %v4416 = vmul.f32 %v4300, %v4383
        %v4417 = vmul.f32 %v4300, %v4387
        %v4418 = vmul.f32 %v4304, %v4383
        %v4419 = vmul.f32 %v4304, %v4387
        %v4420 = vmul.f32 %v4308, %v4383
        %v4421 = vmul.f32 %v4308, %v4387
        %v4422 = vmul.f32 %v4312, %v4383
        %v4423 = vmul.f32 %v4312, %v4387
        %v4424 = vmul.f32 %v4316, %v4383
        %v4425 = vmul.f32 %v4316, %v4387
        %v4426 = vmul.f32 %v4320, %v4383
        %v4427 = vmul.f32 %v4320, %v4387
        %v4428 = vmul.f32 %v4324, %v4383
        %v4429 = vmul.f32 %v4324, %v4387
        %v4430 = vmul.f32 %v4328, %v4383
        %v4431 = vmul.f32 %v4328, %v4387
        %v4432 = vmul.f32 %v4332, %v4383
        %v4433 = vmul.f32 %v4332, %v4387
        %v4434 = vmul.f32 %v4336, %v4383
        %v4435 = vmul.f32 %v4336, %v4387
        %v4436 = vmul.f32 %v4340, %v4383
        %v4437 = vmul.f32 %v4340, %v4387
        %v4438 = vmul.f32 %v4344, %v4383
        %v4439 = vmul.f32 %v4344, %v4387
        %v4440 = vmul.f32 %v4348, %v4383
        %v4441 = vmul.f32 %v4348, %v4387
        %v4442 = vmul.f32 %v4352, %v4383
        %v4443 = vmul.f32 %v4352, %v4387
        %v4444 = vmul.f32 %v4356, %v4383
        %v4445 = vmul.f32 %v4356, %v4387
        %v4446 = vmul.f32 %v4360, %v4383
        %v4447 = vmul.f32 %v4360, %v4387
        %v4448 = vmul.f32 %v4364, %v4383
        %v4449 = vmul.f32 %v4364, %v4387
        %v4450 = vmul.f32 %v4368, %v4383
        %v4451 = vmul.f32 %v4368, %v4387
        %v4452 = vadd.f32 %v4178, %v4388
        %v4453 = vadd.f32 %v4179, %v4389
        %v4454 = vadd.f32 %v4180, %v4390
        %v4455 = vadd.f32 %v4181, %v4391
        %v4456 = vadd.f32 %v4182, %v4392
        %v4457 = vadd.f32 %v4183, %v4393
        %v4458 = vadd.f32 %v4184, %v4394
        %v4459 = vadd.f32 %v4185, %v4395
        %v4460 = vadd.f32 %v4186, %v4396
        %v4461 = vadd.f32 %v4187, %v4397
        %v4462 = vadd.f32 %v4188, %v4398
        %v4463 = vadd.f32 %v4189, %v4399
        %v4464 = vadd.f32 %v4190, %v4400
        %v4465 = vadd.f32 %v4191, %v4401
        %v4466 = vadd.f32 %v4192, %v4402
        %v4467 = vadd.f32 %v4193, %v4403
        %v4468 = vadd.f32 %v4194, %v4404
        %v4469 = vadd.f32 %v4195, %v4405
        %v4470 = vadd.f32 %v4196, %v4406
        %v4471 = vadd.f32 %v4197, %v4407
        %v4472 = vadd.f32 %v4198, %v4408
        %v4473 = vadd.f32 %v4199, %v4409
        %v4474 = vadd.f32 %v4200, %v4410
        %v4475 = vadd.f32 %v4201, %v4411
        %v4476 = vadd.f32 %v4202, %v4412
        %v4477 = vadd.f32 %v4203, %v4413
        %v4478 = vadd.f32 %v4204, %v4414
        %v4479 = vadd.f32 %v4205, %v4415
        %v4480 = vadd.f32 %v4206, %v4416
        %v4481 = vadd.f32 %v4207, %v4417
        %v4482 = vadd.f32 %v4208, %v4418
        %v4483 = vadd.f32 %v4209, %v4419
        %v4484 = vadd.f32 %v4210, %v4420
        %v4485 = vadd.f32 %v4211, %v4421
        %v4486 = vadd.f32 %v4212, %v4422
        %v4487 = vadd.f32 %v4213, %v4423
        %v4488 = vadd.f32 %v4214, %v4424
        %v4489 = vadd.f32 %v4215, %v4425
        %v4490 = vadd.f32 %v4216, %v4426
        %v4491 = vadd.f32 %v4217, %v4427
        %v4492 = vadd.f32 %v4218, %v4428
        %v4493 = vadd.f32 %v4219, %v4429
        %v4494 = vadd.f32 %v4220, %v4430
        %v4495 = vadd.f32 %v4221, %v4431
        %v4496 = vadd.f32 %v4222, %v4432
        %v4497 = vadd.f32 %v4223, %v4433
        %v4498 = vadd.f32 %v4224, %v4434
        %v4499 = vadd.f32 %v4225, %v4435
        %v4500 = vadd.f32 %v4226, %v4436
        %v4501 = vadd.f32 %v4227, %v4437
        %v4502 = vadd.f32 %v4228, %v4438
        %v4503 = vadd.f32 %v4229, %v4439
        %v4504 = vadd.f32 %v4230, %v4440
        %v4505 = vadd.f32 %v4231, %v4441
        %v4506 = vadd.f32 %v4232, %v4442
        %v4507 = vadd.f32 %v4233, %v4443
        %v4508 = vadd.f32 %v4234, %v4444
        %v4509 = vadd.f32 %v4235, %v4445
        %v4510 = vadd.f32 %v4236, %v4446
        %v4511 = vadd.f32 %v4237, %v4447
        %v4512 = vadd.f32 %v4238, %v4448
        %v4513 = vadd.f32 %v4239, %v4449
        %v4514 = vadd.f32 %v4240, %v4450
        %v4515 = vadd.f32 %v4241, %v4451
        %s4516 = scalar_lea.vmem %s3, 512
        %v4517 = vld [vmem:[%s4516] sm:$0xff]
        %v4518 = vld [vmem:[%s4516 + $0x8] sm:$0xff]
        %v4519 = vld [vmem:[%s4516 + $0x10] sm:$0xff]
        %v4520 = vld [vmem:[%s4516 + $0x18] sm:$0xff]
        %v4521 = vld [vmem:[%s4516 + $0x20] sm:$0xff]
        %v4522 = vld [vmem:[%s4516 + $0x28] sm:$0xff]
        %v4523 = vld [vmem:[%s4516 + $0x30] sm:$0xff]
        %v4524 = vld [vmem:[%s4516 + $0x38] sm:$0xff]
        %v4525 = vld [vmem:[%s4516 + $0x40] sm:$0xff]
        %v4526 = vld [vmem:[%s4516 + $0x48] sm:$0xff]
        %v4527 = vld [vmem:[%s4516 + $0x50] sm:$0xff]
        %v4528 = vld [vmem:[%s4516 + $0x58] sm:$0xff]
        %v4529 = vld [vmem:[%s4516 + $0x60] sm:$0xff]
        %v4530 = vld [vmem:[%s4516 + $0x68] sm:$0xff]
        %v4531 = vld [vmem:[%s4516 + $0x70] sm:$0xff]
        %v4532 = vld [vmem:[%s4516 + $0x78] sm:$0xff]
        %v4533 = vld [vmem:[%s4516 + $0x80] sm:$0xff]
        %v4534 = vld [vmem:[%s4516 + $0x88] sm:$0xff]
        %v4535 = vld [vmem:[%s4516 + $0x90] sm:$0xff]
        %v4536 = vld [vmem:[%s4516 + $0x98] sm:$0xff]
        %v4537 = vld [vmem:[%s4516 + $0xa0] sm:$0xff]
        %v4538 = vld [vmem:[%s4516 + $0xa8] sm:$0xff]
        %v4539 = vld [vmem:[%s4516 + $0xb0] sm:$0xff]
        %v4540 = vld [vmem:[%s4516 + $0xb8] sm:$0xff]
        %v4541 = vld [vmem:[%s4516 + $0xc0] sm:$0xff]
        %v4542 = vld [vmem:[%s4516 + $0xc8] sm:$0xff]
        %v4543 = vld [vmem:[%s4516 + $0xd0] sm:$0xff]
        %v4544 = vld [vmem:[%s4516 + $0xd8] sm:$0xff]
        %v4545 = vld [vmem:[%s4516 + $0xe0] sm:$0xff]
        %v4546 = vld [vmem:[%s4516 + $0xe8] sm:$0xff]
        %v4547 = vld [vmem:[%s4516 + $0xf0] sm:$0xff]
        %v4548 = vld [vmem:[%s4516 + $0xf8] sm:$0xff]
        %4550 = vset.pattern.permute.xlu0 0
        %4551 = vperm.xlu0 %4550, %v4517
        %v4552 = vpop.permute.xlu0 %4551
        %4555 = vset.pattern.permute.xlu0 0
        %4556 = vperm.xlu0 %4555, %v4518
        %v4557 = vpop.permute.xlu0 %4556
        %4560 = vset.pattern.permute.xlu0 0
        %4561 = vperm.xlu0 %4560, %v4519
        %v4562 = vpop.permute.xlu0 %4561
        %4565 = vset.pattern.permute.xlu0 0
        %4566 = vperm.xlu0 %4565, %v4520
        %v4567 = vpop.permute.xlu0 %4566
        %4570 = vset.pattern.permute.xlu0 0
        %4571 = vperm.xlu0 %4570, %v4521
        %v4572 = vpop.permute.xlu0 %4571
        %4575 = vset.pattern.permute.xlu0 0
        %4576 = vperm.xlu0 %4575, %v4522
        %v4577 = vpop.permute.xlu0 %4576
        %4580 = vset.pattern.permute.xlu0 0
        %4581 = vperm.xlu0 %4580, %v4523
        %v4582 = vpop.permute.xlu0 %4581
        %4585 = vset.pattern.permute.xlu0 0
        %4586 = vperm.xlu0 %4585, %v4524
        %v4587 = vpop.permute.xlu0 %4586
        %4590 = vset.pattern.permute.xlu0 0
        %4591 = vperm.xlu0 %4590, %v4525
        %v4592 = vpop.permute.xlu0 %4591
        %4595 = vset.pattern.permute.xlu0 0
        %4596 = vperm.xlu0 %4595, %v4526
        %v4597 = vpop.permute.xlu0 %4596
        %4600 = vset.pattern.permute.xlu0 0
        %4601 = vperm.xlu0 %4600, %v4527
        %v4602 = vpop.permute.xlu0 %4601
        %4605 = vset.pattern.permute.xlu0 0
        %4606 = vperm.xlu0 %4605, %v4528
        %v4607 = vpop.permute.xlu0 %4606
        %4610 = vset.pattern.permute.xlu0 0
        %4611 = vperm.xlu0 %4610, %v4529
        %v4612 = vpop.permute.xlu0 %4611
        %4615 = vset.pattern.permute.xlu0 0
        %4616 = vperm.xlu0 %4615, %v4530
        %v4617 = vpop.permute.xlu0 %4616
        %4620 = vset.pattern.permute.xlu0 0
        %4621 = vperm.xlu0 %4620, %v4531
        %v4622 = vpop.permute.xlu0 %4621
        %4625 = vset.pattern.permute.xlu0 0
        %4626 = vperm.xlu0 %4625, %v4532
        %v4627 = vpop.permute.xlu0 %4626
        %4630 = vset.pattern.permute.xlu0 0
        %4631 = vperm.xlu0 %4630, %v4533
        %v4632 = vpop.permute.xlu0 %4631
        %4635 = vset.pattern.permute.xlu0 0
        %4636 = vperm.xlu0 %4635, %v4534
        %v4637 = vpop.permute.xlu0 %4636
        %4640 = vset.pattern.permute.xlu0 0
        %4641 = vperm.xlu0 %4640, %v4535
        %v4642 = vpop.permute.xlu0 %4641
        %4645 = vset.pattern.permute.xlu0 0
        %4646 = vperm.xlu0 %4645, %v4536
        %v4647 = vpop.permute.xlu0 %4646
        %4650 = vset.pattern.permute.xlu0 0
        %4651 = vperm.xlu0 %4650, %v4537
        %v4652 = vpop.permute.xlu0 %4651
        %4655 = vset.pattern.permute.xlu0 0
        %4656 = vperm.xlu0 %4655, %v4538
        %v4657 = vpop.permute.xlu0 %4656
        %4660 = vset.pattern.permute.xlu0 0
        %4661 = vperm.xlu0 %4660, %v4539
        %v4662 = vpop.permute.xlu0 %4661
        %4665 = vset.pattern.permute.xlu0 0
        %4666 = vperm.xlu0 %4665, %v4540
        %v4667 = vpop.permute.xlu0 %4666
        %4670 = vset.pattern.permute.xlu0 0
        %4671 = vperm.xlu0 %4670, %v4541
        %v4672 = vpop.permute.xlu0 %4671
        %4675 = vset.pattern.permute.xlu0 0
        %4676 = vperm.xlu0 %4675, %v4542
        %v4677 = vpop.permute.xlu0 %4676
        %4680 = vset.pattern.permute.xlu0 0
        %4681 = vperm.xlu0 %4680, %v4543
        %v4682 = vpop.permute.xlu0 %4681
        %4685 = vset.pattern.permute.xlu0 0
        %4686 = vperm.xlu0 %4685, %v4544
        %v4687 = vpop.permute.xlu0 %4686
        %4690 = vset.pattern.permute.xlu0 0
        %4691 = vperm.xlu0 %4690, %v4545
        %v4692 = vpop.permute.xlu0 %4691
        %4695 = vset.pattern.permute.xlu0 0
        %4696 = vperm.xlu0 %4695, %v4546
        %v4697 = vpop.permute.xlu0 %4696
        %4700 = vset.pattern.permute.xlu0 0
        %4701 = vperm.xlu0 %4700, %v4547
        %v4702 = vpop.permute.xlu0 %4701
        %4705 = vset.pattern.permute.xlu0 0
        %4706 = vperm.xlu0 %4705, %v4548
        %v4707 = vpop.permute.xlu0 %4706
        %v4709 = vadd.f32 %v4452, %v4552
        %v4710 = vadd.f32 %v4453, %v4552
        %v4711 = vadd.f32 %v4454, %v4557
        %v4712 = vadd.f32 %v4455, %v4557
        %v4713 = vadd.f32 %v4456, %v4562
        %v4714 = vadd.f32 %v4457, %v4562
        %v4715 = vadd.f32 %v4458, %v4567
        %v4716 = vadd.f32 %v4459, %v4567
        %v4717 = vadd.f32 %v4460, %v4572
        %v4718 = vadd.f32 %v4461, %v4572
        %v4719 = vadd.f32 %v4462, %v4577
        %v4720 = vadd.f32 %v4463, %v4577
        %v4721 = vadd.f32 %v4464, %v4582
        %v4722 = vadd.f32 %v4465, %v4582
        %v4723 = vadd.f32 %v4466, %v4587
        %v4724 = vadd.f32 %v4467, %v4587
        %v4725 = vadd.f32 %v4468, %v4592
        %v4726 = vadd.f32 %v4469, %v4592
        %v4727 = vadd.f32 %v4470, %v4597
        %v4728 = vadd.f32 %v4471, %v4597
        %v4729 = vadd.f32 %v4472, %v4602
        %v4730 = vadd.f32 %v4473, %v4602
        %v4731 = vadd.f32 %v4474, %v4607
        %v4732 = vadd.f32 %v4475, %v4607
        %v4733 = vadd.f32 %v4476, %v4612
        %v4734 = vadd.f32 %v4477, %v4612
        %v4735 = vadd.f32 %v4478, %v4617
        %v4736 = vadd.f32 %v4479, %v4617
        %v4737 = vadd.f32 %v4480, %v4622
        %v4738 = vadd.f32 %v4481, %v4622
        %v4739 = vadd.f32 %v4482, %v4627
        %v4740 = vadd.f32 %v4483, %v4627
        %v4741 = vadd.f32 %v4484, %v4632
        %v4742 = vadd.f32 %v4485, %v4632
        %v4743 = vadd.f32 %v4486, %v4637
        %v4744 = vadd.f32 %v4487, %v4637
        %v4745 = vadd.f32 %v4488, %v4642
        %v4746 = vadd.f32 %v4489, %v4642
        %v4747 = vadd.f32 %v4490, %v4647
        %v4748 = vadd.f32 %v4491, %v4647
        %v4749 = vadd.f32 %v4492, %v4652
        %v4750 = vadd.f32 %v4493, %v4652
        %v4751 = vadd.f32 %v4494, %v4657
        %v4752 = vadd.f32 %v4495, %v4657
        %v4753 = vadd.f32 %v4496, %v4662
        %v4754 = vadd.f32 %v4497, %v4662
        %v4755 = vadd.f32 %v4498, %v4667
        %v4756 = vadd.f32 %v4499, %v4667
        %v4757 = vadd.f32 %v4500, %v4672
        %v4758 = vadd.f32 %v4501, %v4672
        %v4759 = vadd.f32 %v4502, %v4677
        %v4760 = vadd.f32 %v4503, %v4677
        %v4761 = vadd.f32 %v4504, %v4682
        %v4762 = vadd.f32 %v4505, %v4682
        %v4763 = vadd.f32 %v4506, %v4687
        %v4764 = vadd.f32 %v4507, %v4687
        %v4765 = vadd.f32 %v4508, %v4692
        %v4766 = vadd.f32 %v4509, %v4692
        %v4767 = vadd.f32 %v4510, %v4697
        %v4768 = vadd.f32 %v4511, %v4697
        %v4769 = vadd.f32 %v4512, %v4702
        %v4770 = vadd.f32 %v4513, %v4702
        %v4771 = vadd.f32 %v4514, %v4707
        %v4772 = vadd.f32 %v4515, %v4707
        %vm4773 = vcmp.gt.f32.partialorder %v4709, 0.0
        %vm4774 = vcmp.gt.f32.partialorder %v4710, 0.0
        %vm4775 = vcmp.gt.f32.partialorder %v4711, 0.0
        %vm4776 = vcmp.gt.f32.partialorder %v4712, 0.0
        %vm4777 = vcmp.gt.f32.partialorder %v4713, 0.0
        %vm4778 = vcmp.gt.f32.partialorder %v4714, 0.0
        %vm4779 = vcmp.gt.f32.partialorder %v4715, 0.0
        %vm4780 = vcmp.gt.f32.partialorder %v4716, 0.0
        %vm4781 = vcmp.gt.f32.partialorder %v4717, 0.0
        %vm4782 = vcmp.gt.f32.partialorder %v4718, 0.0
        %vm4783 = vcmp.gt.f32.partialorder %v4719, 0.0
        %vm4784 = vcmp.gt.f32.partialorder %v4720, 0.0
        %vm4785 = vcmp.gt.f32.partialorder %v4721, 0.0
        %vm4786 = vcmp.gt.f32.partialorder %v4722, 0.0
        %vm4787 = vcmp.gt.f32.partialorder %v4723, 0.0
        %vm4788 = vcmp.gt.f32.partialorder %v4724, 0.0
        %vm4789 = vcmp.gt.f32.partialorder %v4725, 0.0
        %vm4790 = vcmp.gt.f32.partialorder %v4726, 0.0
        %vm4791 = vcmp.gt.f32.partialorder %v4727, 0.0
        %vm4792 = vcmp.gt.f32.partialorder %v4728, 0.0
        %vm4793 = vcmp.gt.f32.partialorder %v4729, 0.0
        %vm4794 = vcmp.gt.f32.partialorder %v4730, 0.0
        %vm4795 = vcmp.gt.f32.partialorder %v4731, 0.0
        %vm4796 = vcmp.gt.f32.partialorder %v4732, 0.0
        %vm4797 = vcmp.gt.f32.partialorder %v4733, 0.0
        %vm4798 = vcmp.gt.f32.partialorder %v4734, 0.0
        %vm4799 = vcmp.gt.f32.partialorder %v4735, 0.0
        %vm4800 = vcmp.gt.f32.partialorder %v4736, 0.0
        %vm4801 = vcmp.gt.f32.partialorder %v4737, 0.0
        %vm4802 = vcmp.gt.f32.partialorder %v4738, 0.0
        %vm4803 = vcmp.gt.f32.partialorder %v4739, 0.0
        %vm4804 = vcmp.gt.f32.partialorder %v4740, 0.0
        %vm4805 = vcmp.gt.f32.partialorder %v4741, 0.0
        %vm4806 = vcmp.gt.f32.partialorder %v4742, 0.0
        %vm4807 = vcmp.gt.f32.partialorder %v4743, 0.0
        %vm4808 = vcmp.gt.f32.partialorder %v4744, 0.0
        %vm4809 = vcmp.gt.f32.partialorder %v4745, 0.0
        %vm4810 = vcmp.gt.f32.partialorder %v4746, 0.0
        %vm4811 = vcmp.gt.f32.partialorder %v4747, 0.0
        %vm4812 = vcmp.gt.f32.partialorder %v4748, 0.0
        %vm4813 = vcmp.gt.f32.partialorder %v4749, 0.0
        %vm4814 = vcmp.gt.f32.partialorder %v4750, 0.0
        %vm4815 = vcmp.gt.f32.partialorder %v4751, 0.0
        %vm4816 = vcmp.gt.f32.partialorder %v4752, 0.0
        %vm4817 = vcmp.gt.f32.partialorder %v4753, 0.0
        %vm4818 = vcmp.gt.f32.partialorder %v4754, 0.0
        %vm4819 = vcmp.gt.f32.partialorder %v4755, 0.0
        %vm4820 = vcmp.gt.f32.partialorder %v4756, 0.0
        %vm4821 = vcmp.gt.f32.partialorder %v4757, 0.0
        %vm4822 = vcmp.gt.f32.partialorder %v4758, 0.0
        %vm4823 = vcmp.gt.f32.partialorder %v4759, 0.0
        %vm4824 = vcmp.gt.f32.partialorder %v4760, 0.0
        %vm4825 = vcmp.gt.f32.partialorder %v4761, 0.0
        %vm4826 = vcmp.gt.f32.partialorder %v4762, 0.0
        %vm4827 = vcmp.gt.f32.partialorder %v4763, 0.0
        %vm4828 = vcmp.gt.f32.partialorder %v4764, 0.0
        %vm4829 = vcmp.gt.f32.partialorder %v4765, 0.0
        %vm4830 = vcmp.gt.f32.partialorder %v4766, 0.0
        %vm4831 = vcmp.gt.f32.partialorder %v4767, 0.0
        %vm4832 = vcmp.gt.f32.partialorder %v4768, 0.0
        %vm4833 = vcmp.gt.f32.partialorder %v4769, 0.0
        %vm4834 = vcmp.gt.f32.partialorder %v4770, 0.0
        %vm4835 = vcmp.gt.f32.partialorder %v4771, 0.0
        %vm4836 = vcmp.gt.f32.partialorder %v4772, 0.0
        %v4837 = vmul.f32 %v4709, 0.01
        %v4838 = vmul.f32 %v4710, 0.01
        %v4839 = vmul.f32 %v4711, 0.01
        %v4840 = vmul.f32 %v4712, 0.01
        %v4841 = vmul.f32 %v4713, 0.01
        %v4842 = vmul.f32 %v4714, 0.01
        %v4843 = vmul.f32 %v4715, 0.01
        %v4844 = vmul.f32 %v4716, 0.01
        %v4845 = vmul.f32 %v4717, 0.01
        %v4846 = vmul.f32 %v4718, 0.01
        %v4847 = vmul.f32 %v4719, 0.01
        %v4848 = vmul.f32 %v4720, 0.01
        %v4849 = vmul.f32 %v4721, 0.01
        %v4850 = vmul.f32 %v4722, 0.01
        %v4851 = vmul.f32 %v4723, 0.01
        %v4852 = vmul.f32 %v4724, 0.01
        %v4853 = vmul.f32 %v4725, 0.01
        %v4854 = vmul.f32 %v4726, 0.01
        %v4855 = vmul.f32 %v4727, 0.01
        %v4856 = vmul.f32 %v4728, 0.01
        %v4857 = vmul.f32 %v4729, 0.01
        %v4858 = vmul.f32 %v4730, 0.01
        %v4859 = vmul.f32 %v4731, 0.01
        %v4860 = vmul.f32 %v4732, 0.01
        %v4861 = vmul.f32 %v4733, 0.01
        %v4862 = vmul.f32 %v4734, 0.01
        %v4863 = vmul.f32 %v4735, 0.01
        %v4864 = vmul.f32 %v4736, 0.01
        %v4865 = vmul.f32 %v4737, 0.01
        %v4866 = vmul.f32 %v4738, 0.01
        %v4867 = vmul.f32 %v4739, 0.01
        %v4868 = vmul.f32 %v4740, 0.01
        %v4869 = vmul.f32 %v4741, 0.01
        %v4870 = vmul.f32 %v4742, 0.01
        %v4871 = vmul.f32 %v4743, 0.01
        %v4872 = vmul.f32 %v4744, 0.01
        %v4873 = vmul.f32 %v4745, 0.01
        %v4874 = vmul.f32 %v4746, 0.01
        %v4875 = vmul.f32 %v4747, 0.01
        %v4876 = vmul.f32 %v4748, 0.01
        %v4877 = vmul.f32 %v4749, 0.01
        %v4878 = vmul.f32 %v4750, 0.01
        %v4879 = vmul.f32 %v4751, 0.01
        %v4880 = vmul.f32 %v4752, 0.01
        %v4881 = vmul.f32 %v4753, 0.01
        %v4882 = vmul.f32 %v4754, 0.01
        %v4883 = vmul.f32 %v4755, 0.01
        %v4884 = vmul.f32 %v4756, 0.01
        %v4885 = vmul.f32 %v4757, 0.01
        %v4886 = vmul.f32 %v4758, 0.01
        %v4887 = vmul.f32 %v4759, 0.01
        %v4888 = vmul.f32 %v4760, 0.01
        %v4889 = vmul.f32 %v4761, 0.01
        %v4890 = vmul.f32 %v4762, 0.01
        %v4891 = vmul.f32 %v4763, 0.01
        %v4892 = vmul.f32 %v4764, 0.01
        %v4893 = vmul.f32 %v4765, 0.01
        %v4894 = vmul.f32 %v4766, 0.01
        %v4895 = vmul.f32 %v4767, 0.01
        %v4896 = vmul.f32 %v4768, 0.01
        %v4897 = vmul.f32 %v4769, 0.01
        %v4898 = vmul.f32 %v4770, 0.01
        %v4899 = vmul.f32 %v4771, 0.01
        %v4900 = vmul.f32 %v4772, 0.01
        %v4901 = vsel %vm4773, %v4709, %v4837
        %v4902 = vsel %vm4774, %v4710, %v4838
        %v4903 = vsel %vm4775, %v4711, %v4839
        %v4904 = vsel %vm4776, %v4712, %v4840
        %v4905 = vsel %vm4777, %v4713, %v4841
        %v4906 = vsel %vm4778, %v4714, %v4842
        %v4907 = vsel %vm4779, %v4715, %v4843
        %v4908 = vsel %vm4780, %v4716, %v4844
        %v4909 = vsel %vm4781, %v4717, %v4845
        %v4910 = vsel %vm4782, %v4718, %v4846
        %v4911 = vsel %vm4783, %v4719, %v4847
        %v4912 = vsel %vm4784, %v4720, %v4848
        %v4913 = vsel %vm4785, %v4721, %v4849
        %v4914 = vsel %vm4786, %v4722, %v4850
        %v4915 = vsel %vm4787, %v4723, %v4851
        %v4916 = vsel %vm4788, %v4724, %v4852
        %v4917 = vsel %vm4789, %v4725, %v4853
        %v4918 = vsel %vm4790, %v4726, %v4854
        %v4919 = vsel %vm4791, %v4727, %v4855
        %v4920 = vsel %vm4792, %v4728, %v4856
        %v4921 = vsel %vm4793, %v4729, %v4857
        %v4922 = vsel %vm4794, %v4730, %v4858
        %v4923 = vsel %vm4795, %v4731, %v4859
        %v4924 = vsel %vm4796, %v4732, %v4860
        %v4925 = vsel %vm4797, %v4733, %v4861
        %v4926 = vsel %vm4798, %v4734, %v4862
        %v4927 = vsel %vm4799, %v4735, %v4863
        %v4928 = vsel %vm4800, %v4736, %v4864
        %v4929 = vsel %vm4801, %v4737, %v4865
        %v4930 = vsel %vm4802, %v4738, %v4866
        %v4931 = vsel %vm4803, %v4739, %v4867
        %v4932 = vsel %vm4804, %v4740, %v4868
        %v4933 = vsel %vm4805, %v4741, %v4869
        %v4934 = vsel %vm4806, %v4742, %v4870
        %v4935 = vsel %vm4807, %v4743, %v4871
        %v4936 = vsel %vm4808, %v4744, %v4872
        %v4937 = vsel %vm4809, %v4745, %v4873
        %v4938 = vsel %vm4810, %v4746, %v4874
        %v4939 = vsel %vm4811, %v4747, %v4875
        %v4940 = vsel %vm4812, %v4748, %v4876
        %v4941 = vsel %vm4813, %v4749, %v4877
        %v4942 = vsel %vm4814, %v4750, %v4878
        %v4943 = vsel %vm4815, %v4751, %v4879
        %v4944 = vsel %vm4816, %v4752, %v4880
        %v4945 = vsel %vm4817, %v4753, %v4881
        %v4946 = vsel %vm4818, %v4754, %v4882
        %v4947 = vsel %vm4819, %v4755, %v4883
        %v4948 = vsel %vm4820, %v4756, %v4884
        %v4949 = vsel %vm4821, %v4757, %v4885
        %v4950 = vsel %vm4822, %v4758, %v4886
        %v4951 = vsel %vm4823, %v4759, %v4887
        %v4952 = vsel %vm4824, %v4760, %v4888
        %v4953 = vsel %vm4825, %v4761, %v4889
        %v4954 = vsel %vm4826, %v4762, %v4890
        %v4955 = vsel %vm4827, %v4763, %v4891
        %v4956 = vsel %vm4828, %v4764, %v4892
        %v4957 = vsel %vm4829, %v4765, %v4893
        %v4958 = vsel %vm4830, %v4766, %v4894
        %v4959 = vsel %vm4831, %v4767, %v4895
        %v4960 = vsel %vm4832, %v4768, %v4896
        %v4961 = vsel %vm4833, %v4769, %v4897
        %v4962 = vsel %vm4834, %v4770, %v4898
        %v4963 = vsel %vm4835, %v4771, %v4899
        %v4964 = vsel %vm4836, %v4772, %v4900
        %s4965 = scalar_lea.vmem %s4, 256
        %v4966 = vld [vmem:[%s4965] sm:$0xff]
        %v4967 = vld [vmem:[%s4965 + $0x8] sm:$0xff]
        %v4968 = vld [vmem:[%s4965 + $0x10] sm:$0xff]
        %v4969 = vld [vmem:[%s4965 + $0x18] sm:$0xff]
        %v4970 = vld [vmem:[%s4965 + $0x20] sm:$0xff]
        %v4971 = vld [vmem:[%s4965 + $0x28] sm:$0xff]
        %v4972 = vld [vmem:[%s4965 + $0x30] sm:$0xff]
        %v4973 = vld [vmem:[%s4965 + $0x38] sm:$0xff]
        %v4974 = vld [vmem:[%s4965 + $0x40] sm:$0xff]
        %v4975 = vld [vmem:[%s4965 + $0x48] sm:$0xff]
        %v4976 = vld [vmem:[%s4965 + $0x50] sm:$0xff]
        %v4977 = vld [vmem:[%s4965 + $0x58] sm:$0xff]
        %v4978 = vld [vmem:[%s4965 + $0x60] sm:$0xff]
        %v4979 = vld [vmem:[%s4965 + $0x68] sm:$0xff]
        %v4980 = vld [vmem:[%s4965 + $0x70] sm:$0xff]
        %v4981 = vld [vmem:[%s4965 + $0x78] sm:$0xff]
        %s4982 = scalar_lea.vmem %s5, 128
        %v4983 = vld [vmem:[%s4982] sm:$0xff]
        %v4984 = vld [vmem:[%s4982 + $0x8] sm:$0xff]
        %v4985 = vld [vmem:[%s4982 + $0x10] sm:$0xff]
        %v4986 = vld [vmem:[%s4982 + $0x18] sm:$0xff]
        %v4987 = vld [vmem:[%s4982 + $0x20] sm:$0xff]
        %v4988 = vld [vmem:[%s4982 + $0x28] sm:$0xff]
        %v4989 = vld [vmem:[%s4982 + $0x30] sm:$0xff]
        %v4990 = vld [vmem:[%s4982 + $0x38] sm:$0xff]
        %4992 = vset.pattern.permute.xlu0 0
        %4993 = vperm.xlu0 %4992, %v4983
        %v4994 = vpop.permute.xlu0 %4993
        %4997 = vset.pattern.permute.xlu0 0
        %4998 = vperm.xlu0 %4997, %v4984
        %v4999 = vpop.permute.xlu0 %4998
        %5002 = vset.pattern.permute.xlu0 0
        %5003 = vperm.xlu0 %5002, %v4985
        %v5004 = vpop.permute.xlu0 %5003
        %5007 = vset.pattern.permute.xlu0 0
        %5008 = vperm.xlu0 %5007, %v4986
        %v5009 = vpop.permute.xlu0 %5008
        %5012 = vset.pattern.permute.xlu0 0
        %5013 = vperm.xlu0 %5012, %v4987
        %v5014 = vpop.permute.xlu0 %5013
        %5017 = vset.pattern.permute.xlu0 0
        %5018 = vperm.xlu0 %5017, %v4988
        %v5019 = vpop.permute.xlu0 %5018
        %5022 = vset.pattern.permute.xlu0 0
        %5023 = vperm.xlu0 %5022, %v4989
        %v5024 = vpop.permute.xlu0 %5023
        %5027 = vset.pattern.permute.xlu0 0
        %5028 = vperm.xlu0 %5027, %v4990
        %v5029 = vpop.permute.xlu0 %5028
        %5031 = vmatprep.subr.mxu0 %v4932
        %5032 = vmatpush1.msra.mxu0 %v4931
        %5033 = vmatprep.subr.mxu0 %v4930
        %5034 = vmatpush1.msra.mxu0 %v4929
        %5035 = vmatprep.subr.mxu0 %v4928
        %5036 = vmatpush1.msra.mxu0 %v4927
        %5037 = vmatprep.subr.mxu0 %v4926
        %5038 = vmatpush1.msra.mxu0 %v4925
        %5039 = vmatprep.subr.mxu0 %v4924
        %5040 = vmatpush1.msra.mxu0 %v4923
        %5041 = vmatprep.subr.mxu0 %v4922
        %5042 = vmatpush1.msra.mxu0 %v4921
        %5043 = vmatprep.subr.mxu0 %v4920
        %5044 = vmatpush1.msra.mxu0 %v4919
        %5045 = vmatprep.subr.mxu0 %v4918
        %5046 = vmatpush1.msra.mxu0 %v4917
        %5047 = vmatprep.subr.mxu0 %v4916
        %5048 = vmatpush1.msra.mxu0 %v4915
        %5049 = vmatprep.subr.mxu0 %v4914
        %5050 = vmatpush1.msra.mxu0 %v4913
        %5051 = vmatprep.subr.mxu0 %v4912
        %5052 = vmatpush1.msra.mxu0 %v4911
        %5053 = vmatprep.subr.mxu0 %v4910
        %5054 = vmatpush1.msra.mxu0 %v4909
        %5055 = vmatprep.subr.mxu0 %v4908
        %5056 = vmatpush1.msra.mxu0 %v4907
        %5057 = vmatprep.subr.mxu0 %v4906
        %5058 = vmatpush1.msra.mxu0 %v4905
        %5059 = vmatprep.subr.mxu0 %v4904
        %5060 = vmatpush1.msra.mxu0 %v4903
        %5061 = vmatprep.subr.mxu0 %v4902
        %5062 = vmatpush1.msra.mxu0 %v4901
        %5063 = vmatprep.subr.mxu0 %v4964
        %5064 = vmatpush2.msra.mxu0 %v4963
        %5065 = vmatprep.subr.mxu0 %v4962
        %5066 = vmatpush2.msra.mxu0 %v4961
        %5067 = vmatprep.subr.mxu0 %v4960
        %5068 = vmatpush2.msra.mxu0 %v4959
        %5069 = vmatprep.subr.mxu0 %v4958
        %5070 = vmatpush2.msra.mxu0 %v4957
        %5071 = vmatprep.subr.mxu0 %v4956
        %5072 = vmatpush2.msra.mxu0 %v4955
        %5073 = vmatprep.subr.mxu0 %v4954
        %5074 = vmatpush2.msra.mxu0 %v4953
        %5075 = vmatprep.subr.mxu0 %v4952
        %5076 = vmatpush2.msra.mxu0 %v4951
        %5077 = vmatprep.subr.mxu0 %v4950
        %5078 = vmatpush2.msra.mxu0 %v4949
        %5079 = vmatprep.subr.mxu0 %v4948
        %5080 = vmatpush2.msra.mxu0 %v4947
        %5081 = vmatprep.subr.mxu0 %v4946
        %5082 = vmatpush2.msra.mxu0 %v4945
        %5083 = vmatprep.subr.mxu0 %v4944
        %5084 = vmatpush2.msra.mxu0 %v4943
        %5085 = vmatprep.subr.mxu0 %v4942
        %5086 = vmatpush2.msra.mxu0 %v4941
        %5087 = vmatprep.subr.mxu0 %v4940
        %5088 = vmatpush2.msra.mxu0 %v4939
        %5089 = vmatprep.subr.mxu0 %v4938
        %5090 = vmatpush2.msra.mxu0 %v4937
        %5091 = vmatprep.subr.mxu0 %v4936
        %5092 = vmatpush2.msra.mxu0 %v4935
        %5093 = vmatprep.subr.mxu0 %v4934
        %5094 = vmatpush2.msra.mxu0 %v4933
        %5095 = vmatprep.mubr.f32.mxu0 %v4967
        %5096 = vmatmul.mubr.f32.gmra.mxu0 %v4966
        %v5097 = vpop.f32.mrf.mxu0
        %v5098 = vadd.f32 %v4994, %v5097
        %v5099 = vpop.f32.mrf.mxu0
        %v5100 = vadd.f32 %v4994, %v5099
        %5101 = vmatprep.mubr.f32.mxu0 %v4969
        %5102 = vmatmul.mubr.f32.gmra.mxu0 %v4968
        %v5103 = vpop.f32.mrf.mxu0
        %v5104 = vadd.f32 %v4999, %v5103
        %v5105 = vpop.f32.mrf.mxu0
        %v5106 = vadd.f32 %v4999, %v5105
        %5107 = vmatprep.mubr.f32.mxu0 %v4971
        %5108 = vmatmul.mubr.f32.gmra.mxu0 %v4970
        %v5109 = vpop.f32.mrf.mxu0
        %v5110 = vadd.f32 %v5004, %v5109
        %v5111 = vpop.f32.mrf.mxu0
        %v5112 = vadd.f32 %v5004, %v5111
        %5113 = vmatprep.mubr.f32.mxu0 %v4973
        %5114 = vmatmul.mubr.f32.gmra.mxu0 %v4972
        %v5115 = vpop.f32.mrf.mxu0
        %v5116 = vadd.f32 %v5009, %v5115
        %v5117 = vpop.f32.mrf.mxu0
        %v5118 = vadd.f32 %v5009, %v5117
        %5119 = vmatprep.mubr.f32.mxu0 %v4975
        %5120 = vmatmul.mubr.f32.gmra.mxu0 %v4974
        %v5121 = vpop.f32.mrf.mxu0
        %v5122 = vadd.f32 %v5014, %v5121
        %v5123 = vpop.f32.mrf.mxu0
        %v5124 = vadd.f32 %v5014, %v5123
        %5125 = vmatprep.mubr.f32.mxu0 %v4977
        %5126 = vmatmul.mubr.f32.gmra.mxu0 %v4976
        %v5127 = vpop.f32.mrf.mxu0
        %v5128 = vadd.f32 %v5019, %v5127
        %v5129 = vpop.f32.mrf.mxu0
        %v5130 = vadd.f32 %v5019, %v5129
        %5131 = vmatprep.mubr.f32.mxu0 %v4979
        %5132 = vmatmul.mubr.f32.gmra.mxu0 %v4978
        %v5133 = vpop.f32.mrf.mxu0
        %v5134 = vadd.f32 %v5024, %v5133
        %v5135 = vpop.f32.mrf.mxu0
        %v5136 = vadd.f32 %v5024, %v5135
        %5137 = vmatprep.mubr.f32.mxu0 %v4981
        %5138 = vmatmul.mubr.f32.gmra.mxu0 %v4980
        %v5139 = vpop.f32.mrf.mxu0
        %v5140 = vadd.f32 %v5029, %v5139
        %v5141 = vpop.f32.mrf.mxu0
        %v5142 = vadd.f32 %v5029, %v5141
        %5143 = vdwg.mxu0
        %vm5144 = vcmp.gt.f32.partialorder %v5098, 0.0
        %vm5145 = vcmp.gt.f32.partialorder %v5100, 0.0
        %vm5146 = vcmp.gt.f32.partialorder %v5104, 0.0
        %vm5147 = vcmp.gt.f32.partialorder %v5106, 0.0
        %vm5148 = vcmp.gt.f32.partialorder %v5110, 0.0
        %vm5149 = vcmp.gt.f32.partialorder %v5112, 0.0
        %vm5150 = vcmp.gt.f32.partialorder %v5116, 0.0
        %vm5151 = vcmp.gt.f32.partialorder %v5118, 0.0
        %vm5152 = vcmp.gt.f32.partialorder %v5122, 0.0
        %vm5153 = vcmp.gt.f32.partialorder %v5124, 0.0
        %vm5154 = vcmp.gt.f32.partialorder %v5128, 0.0
        %vm5155 = vcmp.gt.f32.partialorder %v5130, 0.0
        %vm5156 = vcmp.gt.f32.partialorder %v5134, 0.0
        %vm5157 = vcmp.gt.f32.partialorder %v5136, 0.0
        %vm5158 = vcmp.gt.f32.partialorder %v5140, 0.0
        %vm5159 = vcmp.gt.f32.partialorder %v5142, 0.0
        %v5160 = vmul.f32 %v5098, 0.01
        %v5161 = vmul.f32 %v5100, 0.01
        %v5162 = vmul.f32 %v5104, 0.01
        %v5163 = vmul.f32 %v5106, 0.01
        %v5164 = vmul.f32 %v5110, 0.01
        %v5165 = vmul.f32 %v5112, 0.01
        %v5166 = vmul.f32 %v5116, 0.01
        %v5167 = vmul.f32 %v5118, 0.01
        %v5168 = vmul.f32 %v5122, 0.01
        %v5169 = vmul.f32 %v5124, 0.01
        %v5170 = vmul.f32 %v5128, 0.01
        %v5171 = vmul.f32 %v5130, 0.01
        %v5172 = vmul.f32 %v5134, 0.01
        %v5173 = vmul.f32 %v5136, 0.01
        %v5174 = vmul.f32 %v5140, 0.01
        %v5175 = vmul.f32 %v5142, 0.01
        %v5176 = vsel %vm5144, %v5098, %v5160
        %v5177 = vsel %vm5145, %v5100, %v5161
        %v5178 = vsel %vm5146, %v5104, %v5162
        %v5179 = vsel %vm5147, %v5106, %v5163
        %v5180 = vsel %vm5148, %v5110, %v5164
        %v5181 = vsel %vm5149, %v5112, %v5165
        %v5182 = vsel %vm5150, %v5116, %v5166
        %v5183 = vsel %vm5151, %v5118, %v5167
        %v5184 = vsel %vm5152, %v5122, %v5168
        %v5185 = vsel %vm5153, %v5124, %v5169
        %v5186 = vsel %vm5154, %v5128, %v5170
        %v5187 = vsel %vm5155, %v5130, %v5171
        %v5188 = vsel %vm5156, %v5134, %v5172
        %v5189 = vsel %vm5157, %v5136, %v5173
        %v5190 = vsel %vm5158, %v5140, %v5174
        %v5191 = vsel %vm5159, %v5142, %v5175
        %s5192 = scalar_lea.vmem %s6, 128
        %v5193 = vld [vmem:[%s5192] sm:$0xff]
        %v5194 = vld [vmem:[%s5192 + $0x8] sm:$0xff]
        %v5195 = vld [vmem:[%s5192 + $0x10] sm:$0xff]
        %v5196 = vld [vmem:[%s5192 + $0x18] sm:$0xff]
        %v5197 = vld [vmem:[%s5192 + $0x20] sm:$0xff]
        %v5198 = vld [vmem:[%s5192 + $0x28] sm:$0xff]
        %v5199 = vld [vmem:[%s5192 + $0x30] sm:$0xff]
        %v5200 = vld [vmem:[%s5192 + $0x38] sm:$0xff]
        %5202 = vset.pattern.permute.xlu0 0
        %5203 = vperm.xlu0 %5202, %v5193
        %v5204 = vpop.permute.xlu0 %5203
        %5207 = vset.pattern.permute.xlu0 0
        %5208 = vperm.xlu0 %5207, %v5194
        %v5209 = vpop.permute.xlu0 %5208
        %5212 = vset.pattern.permute.xlu0 0
        %5213 = vperm.xlu0 %5212, %v5195
        %v5214 = vpop.permute.xlu0 %5213
        %5217 = vset.pattern.permute.xlu0 0
        %5218 = vperm.xlu0 %5217, %v5196
        %v5219 = vpop.permute.xlu0 %5218
        %5222 = vset.pattern.permute.xlu0 0
        %5223 = vperm.xlu0 %5222, %v5197
        %v5224 = vpop.permute.xlu0 %5223
        %5227 = vset.pattern.permute.xlu0 0
        %5228 = vperm.xlu0 %5227, %v5198
        %v5229 = vpop.permute.xlu0 %5228
        %5232 = vset.pattern.permute.xlu0 0
        %5233 = vperm.xlu0 %5232, %v5199
        %v5234 = vpop.permute.xlu0 %5233
        %5237 = vset.pattern.permute.xlu0 0
        %5238 = vperm.xlu0 %5237, %v5200
        %v5239 = vpop.permute.xlu0 %5238
        %v5241 = vmul.f32 %v5176, %v5204
        %v5242 = vmul.f32 %v5177, %v5204
        %v5243 = vmul.f32 %v5178, %v5209
        %v5244 = vmul.f32 %v5179, %v5209
        %v5245 = vmul.f32 %v5180, %v5214
        %v5246 = vmul.f32 %v5181, %v5214
        %v5247 = vmul.f32 %v5182, %v5219
        %v5248 = vmul.f32 %v5183, %v5219
        %v5249 = vmul.f32 %v5184, %v5224
        %v5250 = vmul.f32 %v5185, %v5224
        %v5251 = vmul.f32 %v5186, %v5229
        %v5252 = vmul.f32 %v5187, %v5229
        %v5253 = vmul.f32 %v5188, %v5234
        %v5254 = vmul.f32 %v5189, %v5234
        %v5255 = vmul.f32 %v5190, %v5239
        %v5256 = vmul.f32 %v5191, %v5239
        %v5257 = vadd.f32 %v5241, %v5243
        %v5258 = vadd.f32 %v5257, %v5245
        %v5259 = vadd.f32 %v5258, %v5247
        %v5260 = vadd.f32 %v5259, %v5249
        %v5261 = vadd.f32 %v5260, %v5251
        %v5262 = vadd.f32 %v5261, %v5253
        %v5263 = vadd.f32 %v5262, %v5255
        %v5264 = vrot.slane %v5263, 4
        %v5265 = vadd.f32 %v5263, %v5264
        %v5266 = vrot.slane %v5265, 2
        %v5267 = vadd.f32 %v5265, %v5266
        %v5268 = vrot.slane %v5267, 1
        %v5269 = vadd.f32 %v5267, %v5268
        %v5270 = vadd.f32 %v5242, %v5244
        %v5271 = vadd.f32 %v5270, %v5246
        %v5272 = vadd.f32 %v5271, %v5248
        %v5273 = vadd.f32 %v5272, %v5250
        %v5274 = vadd.f32 %v5273, %v5252
        %v5275 = vadd.f32 %v5274, %v5254
        %v5276 = vadd.f32 %v5275, %v5256
        %v5277 = vrot.slane %v5276, 4
        %v5278 = vadd.f32 %v5276, %v5277
        %v5279 = vrot.slane %v5278, 2
        %v5280 = vadd.f32 %v5278, %v5279
        %v5281 = vrot.slane %v5280, 1
        %v5282 = vadd.f32 %v5280, %v5281
        %s5283 = scalar_lea.vmem %s7, 2
        %v5284 = vld [vmem:[%s5283] sm:$0x1]
        %5286 = vset.pattern.permute.xlu0 0
        %5287 = vperm.xlu0 %5286, %v5284
        %v5288 = vpop.permute.xlu0 %5287
        %v5290 = vlaneseq
        %v5291 = vshrl.u32 %v5290, 7
        %v5292 = vsub.s32 0, %v5291
        %v5293 = vrot.slane %v5288, %v5292
        %v5294 = vadd.f32 %v5269, %v5293
        %v5295 = vadd.f32 %v5282, %v5293
        %v5296 = vxor.u32 %v5294, 2147483648
        %v5297 = vxor.u32 %v5295, 2147483648
        %v5298 = vmul.f32 %v5296, 1.442695
        %v5299 = vpow.pop %v5298
        %v5300 = vmul.f32 %v5297, 1.442695
        %v5301 = vpow.pop %v5300
        %v5302 = vadd.f32 %v5299, 1.0
        %v5303 = vadd.f32 %v5301, 1.0
        %v5304 = vrcp.pop %v5302
        %v5305 = vmul.f32 1.0, %v5304
        %v5306 = vrcp.pop %v5303
        %v5307 = vmul.f32 1.0, %v5306
        %v5308 = vmax.f32 %v3685, %v5305
        %v5309 = vmax.f32 %v3686, %v5307
        %s5310 = scalar_lea.vmem %s389, 24 [#allocation2]
        %v5311 = vld [vmem:[%s5310] sm:$0x77]
        %v5312 = vadd.f32 %v449, %v5311
        %v5313 = vmax.f32 %v5312, -0.5
        %v5314 = vmin.f32 %v5313, 0.5
        %s5315 = scalar_lea.vmem %s2, 768
        %v5316 = vld [vmem:[%s5315] sm:$0xff]
        %v5317 = vld [vmem:[%s5315 + $0x8] sm:$0xff]
        %v5318 = vld [vmem:[%s5315 + $0x10] sm:$0xff]
        %v5319 = vld [vmem:[%s5315 + $0x18] sm:$0xff]
        %v5320 = vld [vmem:[%s5315 + $0x20] sm:$0xff]
        %v5321 = vld [vmem:[%s5315 + $0x28] sm:$0xff]
        %v5322 = vld [vmem:[%s5315 + $0x30] sm:$0xff]
        %v5323 = vld [vmem:[%s5315 + $0x38] sm:$0xff]
        %v5324 = vld [vmem:[%s5315 + $0x40] sm:$0xff]
        %v5325 = vld [vmem:[%s5315 + $0x48] sm:$0xff]
        %v5326 = vld [vmem:[%s5315 + $0x50] sm:$0xff]
        %v5327 = vld [vmem:[%s5315 + $0x58] sm:$0xff]
        %v5328 = vld [vmem:[%s5315 + $0x60] sm:$0xff]
        %v5329 = vld [vmem:[%s5315 + $0x68] sm:$0xff]
        %v5330 = vld [vmem:[%s5315 + $0x70] sm:$0xff]
        %v5331 = vld [vmem:[%s5315 + $0x78] sm:$0xff]
        %v5332 = vld [vmem:[%s5315 + $0x80] sm:$0xff]
        %v5333 = vld [vmem:[%s5315 + $0x88] sm:$0xff]
        %v5334 = vld [vmem:[%s5315 + $0x90] sm:$0xff]
        %v5335 = vld [vmem:[%s5315 + $0x98] sm:$0xff]
        %v5336 = vld [vmem:[%s5315 + $0xa0] sm:$0xff]
        %v5337 = vld [vmem:[%s5315 + $0xa8] sm:$0xff]
        %v5338 = vld [vmem:[%s5315 + $0xb0] sm:$0xff]
        %v5339 = vld [vmem:[%s5315 + $0xb8] sm:$0xff]
        %v5340 = vld [vmem:[%s5315 + $0xc0] sm:$0xff]
        %v5341 = vld [vmem:[%s5315 + $0xc8] sm:$0xff]
        %v5342 = vld [vmem:[%s5315 + $0xd0] sm:$0xff]
        %v5343 = vld [vmem:[%s5315 + $0xd8] sm:$0xff]
        %v5344 = vld [vmem:[%s5315 + $0xe0] sm:$0xff]
        %v5345 = vld [vmem:[%s5315 + $0xe8] sm:$0xff]
        %v5346 = vld [vmem:[%s5315 + $0xf0] sm:$0xff]
        %v5347 = vld [vmem:[%s5315 + $0xf8] sm:$0xff]
        %5349 = vset.pattern.permute.xlu0 0
        %5350 = vperm.xlu0 %5349, %v5316
        %v5351 = vpop.permute.xlu0 %5350
        %5354 = vset.pattern.permute.xlu0 0
        %5355 = vperm.xlu0 %5354, %v5317
        %v5356 = vpop.permute.xlu0 %5355
        %5359 = vset.pattern.permute.xlu0 0
        %5360 = vperm.xlu0 %5359, %v5318
        %v5361 = vpop.permute.xlu0 %5360
        %5364 = vset.pattern.permute.xlu0 0
        %5365 = vperm.xlu0 %5364, %v5319
        %v5366 = vpop.permute.xlu0 %5365
        %5369 = vset.pattern.permute.xlu0 0
        %5370 = vperm.xlu0 %5369, %v5320
        %v5371 = vpop.permute.xlu0 %5370
        %5374 = vset.pattern.permute.xlu0 0
        %5375 = vperm.xlu0 %5374, %v5321
        %v5376 = vpop.permute.xlu0 %5375
        %5379 = vset.pattern.permute.xlu0 0
        %5380 = vperm.xlu0 %5379, %v5322
        %v5381 = vpop.permute.xlu0 %5380
        %5384 = vset.pattern.permute.xlu0 0
        %5385 = vperm.xlu0 %5384, %v5323
        %v5386 = vpop.permute.xlu0 %5385
        %5389 = vset.pattern.permute.xlu0 0
        %5390 = vperm.xlu0 %5389, %v5324
        %v5391 = vpop.permute.xlu0 %5390
        %5394 = vset.pattern.permute.xlu0 0
        %5395 = vperm.xlu0 %5394, %v5325
        %v5396 = vpop.permute.xlu0 %5395
        %5399 = vset.pattern.permute.xlu0 0
        %5400 = vperm.xlu0 %5399, %v5326
        %v5401 = vpop.permute.xlu0 %5400
        %5404 = vset.pattern.permute.xlu0 0
        %5405 = vperm.xlu0 %5404, %v5327
        %v5406 = vpop.permute.xlu0 %5405
        %5409 = vset.pattern.permute.xlu0 0
        %5410 = vperm.xlu0 %5409, %v5328
        %v5411 = vpop.permute.xlu0 %5410
        %5414 = vset.pattern.permute.xlu0 0
        %5415 = vperm.xlu0 %5414, %v5329
        %v5416 = vpop.permute.xlu0 %5415
        %5419 = vset.pattern.permute.xlu0 0
        %5420 = vperm.xlu0 %5419, %v5330
        %v5421 = vpop.permute.xlu0 %5420
        %5424 = vset.pattern.permute.xlu0 0
        %5425 = vperm.xlu0 %5424, %v5331
        %v5426 = vpop.permute.xlu0 %5425
        %5429 = vset.pattern.permute.xlu0 0
        %5430 = vperm.xlu0 %5429, %v5332
        %v5431 = vpop.permute.xlu0 %5430
        %5434 = vset.pattern.permute.xlu0 0
        %5435 = vperm.xlu0 %5434, %v5333
        %v5436 = vpop.permute.xlu0 %5435
        %5439 = vset.pattern.permute.xlu0 0
        %5440 = vperm.xlu0 %5439, %v5334
        %v5441 = vpop.permute.xlu0 %5440
        %5444 = vset.pattern.permute.xlu0 0
        %5445 = vperm.xlu0 %5444, %v5335
        %v5446 = vpop.permute.xlu0 %5445
        %5449 = vset.pattern.permute.xlu0 0
        %5450 = vperm.xlu0 %5449, %v5336
        %v5451 = vpop.permute.xlu0 %5450
        %5454 = vset.pattern.permute.xlu0 0
        %5455 = vperm.xlu0 %5454, %v5337
        %v5456 = vpop.permute.xlu0 %5455
        %5459 = vset.pattern.permute.xlu0 0
        %5460 = vperm.xlu0 %5459, %v5338
        %v5461 = vpop.permute.xlu0 %5460
        %5464 = vset.pattern.permute.xlu0 0
        %5465 = vperm.xlu0 %5464, %v5339
        %v5466 = vpop.permute.xlu0 %5465
        %5469 = vset.pattern.permute.xlu0 0
        %5470 = vperm.xlu0 %5469, %v5340
        %v5471 = vpop.permute.xlu0 %5470
        %5474 = vset.pattern.permute.xlu0 0
        %5475 = vperm.xlu0 %5474, %v5341
        %v5476 = vpop.permute.xlu0 %5475
        %5479 = vset.pattern.permute.xlu0 0
        %5480 = vperm.xlu0 %5479, %v5342
        %v5481 = vpop.permute.xlu0 %5480
        %5484 = vset.pattern.permute.xlu0 0
        %5485 = vperm.xlu0 %5484, %v5343
        %v5486 = vpop.permute.xlu0 %5485
        %5489 = vset.pattern.permute.xlu0 0
        %5490 = vperm.xlu0 %5489, %v5344
        %v5491 = vpop.permute.xlu0 %5490
        %5494 = vset.pattern.permute.xlu0 0
        %5495 = vperm.xlu0 %5494, %v5345
        %v5496 = vpop.permute.xlu0 %5495
        %5499 = vset.pattern.permute.xlu0 0
        %5500 = vperm.xlu0 %5499, %v5346
        %v5501 = vpop.permute.xlu0 %5500
        %5504 = vset.pattern.permute.xlu0 0
        %5505 = vperm.xlu0 %5504, %v5347
        %v5506 = vpop.permute.xlu0 %5505
        %v5509 = vlaneseq
        %v5510 = vshrl.u32 %v5509, 7
        %v5511 = vsub.s32 0, %v5510
        %v5512 = vrot.slane %v5314, %v5511
        %v5513 = vlaneseq
        %v5514 = vshrl.u32 %v5513, 7
        %v5515 = vsub.s32 4, %v5514
        %v5516 = vrot.slane %v5314, %v5515
        %v5519 = vlaneseq
        %v5520 = vshrl.u32 %v5519, 7
        %v5521 = vsub.s32 0, %v5520
        %v5522 = vrot.slane %v5512, %v5521
        %v5523 = vlaneseq
        %v5524 = vshrl.u32 %v5523, 7
        %v5525 = vsub.s32 0, %v5524
        %v5526 = vrot.slane %v5516, %v5525
        %v5527 = vmul.f32 %v5351, %v5522
        %v5528 = vmul.f32 %v5351, %v5526
        %v5529 = vmul.f32 %v5356, %v5522
        %v5530 = vmul.f32 %v5356, %v5526
        %v5531 = vmul.f32 %v5361, %v5522
        %v5532 = vmul.f32 %v5361, %v5526
        %v5533 = vmul.f32 %v5366, %v5522
        %v5534 = vmul.f32 %v5366, %v5526
        %v5535 = vmul.f32 %v5371, %v5522
        %v5536 = vmul.f32 %v5371, %v5526
        %v5537 = vmul.f32 %v5376, %v5522
        %v5538 = vmul.f32 %v5376, %v5526
        %v5539 = vmul.f32 %v5381, %v5522
        %v5540 = vmul.f32 %v5381, %v5526
        %v5541 = vmul.f32 %v5386, %v5522
        %v5542 = vmul.f32 %v5386, %v5526
        %v5543 = vmul.f32 %v5391, %v5522
        %v5544 = vmul.f32 %v5391, %v5526
        %v5545 = vmul.f32 %v5396, %v5522
        %v5546 = vmul.f32 %v5396, %v5526
        %v5547 = vmul.f32 %v5401, %v5522
        %v5548 = vmul.f32 %v5401, %v5526
        %v5549 = vmul.f32 %v5406, %v5522
        %v5550 = vmul.f32 %v5406, %v5526
        %v5551 = vmul.f32 %v5411, %v5522
        %v5552 = vmul.f32 %v5411, %v5526
        %v5553 = vmul.f32 %v5416, %v5522
        %v5554 = vmul.f32 %v5416, %v5526
        %v5555 = vmul.f32 %v5421, %v5522
        %v5556 = vmul.f32 %v5421, %v5526
        %v5557 = vmul.f32 %v5426, %v5522
        %v5558 = vmul.f32 %v5426, %v5526
        %v5559 = vmul.f32 %v5431, %v5522
        %v5560 = vmul.f32 %v5431, %v5526
        %v5561 = vmul.f32 %v5436, %v5522
        %v5562 = vmul.f32 %v5436, %v5526
        %v5563 = vmul.f32 %v5441, %v5522
        %v5564 = vmul.f32 %v5441, %v5526
        %v5565 = vmul.f32 %v5446, %v5522
        %v5566 = vmul.f32 %v5446, %v5526
        %v5567 = vmul.f32 %v5451, %v5522
        %v5568 = vmul.f32 %v5451, %v5526
        %v5569 = vmul.f32 %v5456, %v5522
        %v5570 = vmul.f32 %v5456, %v5526
        %v5571 = vmul.f32 %v5461, %v5522
        %v5572 = vmul.f32 %v5461, %v5526
        %v5573 = vmul.f32 %v5466, %v5522
        %v5574 = vmul.f32 %v5466, %v5526
        %v5575 = vmul.f32 %v5471, %v5522
        %v5576 = vmul.f32 %v5471, %v5526
        %v5577 = vmul.f32 %v5476, %v5522
        %v5578 = vmul.f32 %v5476, %v5526
        %v5579 = vmul.f32 %v5481, %v5522
        %v5580 = vmul.f32 %v5481, %v5526
        %v5581 = vmul.f32 %v5486, %v5522
        %v5582 = vmul.f32 %v5486, %v5526
        %v5583 = vmul.f32 %v5491, %v5522
        %v5584 = vmul.f32 %v5491, %v5526
        %v5585 = vmul.f32 %v5496, %v5522
        %v5586 = vmul.f32 %v5496, %v5526
        %v5587 = vmul.f32 %v5501, %v5522
        %v5588 = vmul.f32 %v5501, %v5526
        %v5589 = vmul.f32 %v5506, %v5522
        %v5590 = vmul.f32 %v5506, %v5526
        %5591 = vset.pattern.permute.xlu0 1
        %5592 = vperm.xlu0 %5591, %v5316
        %v5593 = vpop.permute.xlu0 %5592
        %5595 = vset.pattern.permute.xlu0 1
        %5596 = vperm.xlu0 %5595, %v5317
        %v5597 = vpop.permute.xlu0 %5596
        %5599 = vset.pattern.permute.xlu0 1
        %5600 = vperm.xlu0 %5599, %v5318
        %v5601 = vpop.permute.xlu0 %5600
        %5603 = vset.pattern.permute.xlu0 1
        %5604 = vperm.xlu0 %5603, %v5319
        %v5605 = vpop.permute.xlu0 %5604
        %5607 = vset.pattern.permute.xlu0 1
        %5608 = vperm.xlu0 %5607, %v5320
        %v5609 = vpop.permute.xlu0 %5608
        %5611 = vset.pattern.permute.xlu0 1
        %5612 = vperm.xlu0 %5611, %v5321
        %v5613 = vpop.permute.xlu0 %5612
        %5615 = vset.pattern.permute.xlu0 1
        %5616 = vperm.xlu0 %5615, %v5322
        %v5617 = vpop.permute.xlu0 %5616
        %5619 = vset.pattern.permute.xlu0 1
        %5620 = vperm.xlu0 %5619, %v5323
        %v5621 = vpop.permute.xlu0 %5620
        %5623 = vset.pattern.permute.xlu0 1
        %5624 = vperm.xlu0 %5623, %v5324
        %v5625 = vpop.permute.xlu0 %5624
        %5627 = vset.pattern.permute.xlu0 1
        %5628 = vperm.xlu0 %5627, %v5325
        %v5629 = vpop.permute.xlu0 %5628
        %5631 = vset.pattern.permute.xlu0 1
        %5632 = vperm.xlu0 %5631, %v5326
        %v5633 = vpop.permute.xlu0 %5632
        %5635 = vset.pattern.permute.xlu0 1
        %5636 = vperm.xlu0 %5635, %v5327
        %v5637 = vpop.permute.xlu0 %5636
        %5639 = vset.pattern.permute.xlu0 1
        %5640 = vperm.xlu0 %5639, %v5328
        %v5641 = vpop.permute.xlu0 %5640
        %5643 = vset.pattern.permute.xlu0 1
        %5644 = vperm.xlu0 %5643, %v5329
        %v5645 = vpop.permute.xlu0 %5644
        %5647 = vset.pattern.permute.xlu0 1
        %5648 = vperm.xlu0 %5647, %v5330
        %v5649 = vpop.permute.xlu0 %5648
        %5651 = vset.pattern.permute.xlu0 1
        %5652 = vperm.xlu0 %5651, %v5331
        %v5653 = vpop.permute.xlu0 %5652
        %5655 = vset.pattern.permute.xlu0 1
        %5656 = vperm.xlu0 %5655, %v5332
        %v5657 = vpop.permute.xlu0 %5656
        %5659 = vset.pattern.permute.xlu0 1
        %5660 = vperm.xlu0 %5659, %v5333
        %v5661 = vpop.permute.xlu0 %5660
        %5663 = vset.pattern.permute.xlu0 1
        %5664 = vperm.xlu0 %5663, %v5334
        %v5665 = vpop.permute.xlu0 %5664
        %5667 = vset.pattern.permute.xlu0 1
        %5668 = vperm.xlu0 %5667, %v5335
        %v5669 = vpop.permute.xlu0 %5668
        %5671 = vset.pattern.permute.xlu0 1
        %5672 = vperm.xlu0 %5671, %v5336
        %v5673 = vpop.permute.xlu0 %5672
        %5675 = vset.pattern.permute.xlu0 1
        %5676 = vperm.xlu0 %5675, %v5337
        %v5677 = vpop.permute.xlu0 %5676
        %5679 = vset.pattern.permute.xlu0 1
        %5680 = vperm.xlu0 %5679, %v5338
        %v5681 = vpop.permute.xlu0 %5680
        %5683 = vset.pattern.permute.xlu0 1
        %5684 = vperm.xlu0 %5683, %v5339
        %v5685 = vpop.permute.xlu0 %5684
        %5687 = vset.pattern.permute.xlu0 1
        %5688 = vperm.xlu0 %5687, %v5340
        %v5689 = vpop.permute.xlu0 %5688
        %5691 = vset.pattern.permute.xlu0 1
        %5692 = vperm.xlu0 %5691, %v5341
        %v5693 = vpop.permute.xlu0 %5692
        %5695 = vset.pattern.permute.xlu0 1
        %5696 = vperm.xlu0 %5695, %v5342
        %v5697 = vpop.permute.xlu0 %5696
        %5699 = vset.pattern.permute.xlu0 1
        %5700 = vperm.xlu0 %5699, %v5343
        %v5701 = vpop.permute.xlu0 %5700
        %5703 = vset.pattern.permute.xlu0 1
        %5704 = vperm.xlu0 %5703, %v5344
        %v5705 = vpop.permute.xlu0 %5704
        %5707 = vset.pattern.permute.xlu0 1
        %5708 = vperm.xlu0 %5707, %v5345
        %v5709 = vpop.permute.xlu0 %5708
        %5711 = vset.pattern.permute.xlu0 1
        %5712 = vperm.xlu0 %5711, %v5346
        %v5713 = vpop.permute.xlu0 %5712
        %5715 = vset.pattern.permute.xlu0 1
        %5716 = vperm.xlu0 %5715, %v5347
        %v5717 = vpop.permute.xlu0 %5716
        %v5719 = vlaneseq
        %v5720 = vshrl.u32 %v5719, 7
        %v5721 = vsub.s32 1, %v5720
        %v5722 = vrot.slane %v5314, %v5721
        %v5723 = vlaneseq
        %v5724 = vshrl.u32 %v5723, 7
        %v5725 = vsub.s32 5, %v5724
        %v5726 = vrot.slane %v5314, %v5725
        %v5729 = vlaneseq
        %v5730 = vshrl.u32 %v5729, 7
        %v5731 = vsub.s32 1, %v5730
        %v5732 = vrot.slane %v5722, %v5731
        %v5733 = vlaneseq
        %v5734 = vshrl.u32 %v5733, 7
        %v5735 = vsub.s32 1, %v5734
        %v5736 = vrot.slane %v5726, %v5735
        %v5737 = vmul.f32 %v5593, %v5732
        %v5738 = vmul.f32 %v5593, %v5736
        %v5739 = vmul.f32 %v5597, %v5732
        %v5740 = vmul.f32 %v5597, %v5736
        %v5741 = vmul.f32 %v5601, %v5732
        %v5742 = vmul.f32 %v5601, %v5736
        %v5743 = vmul.f32 %v5605, %v5732
        %v5744 = vmul.f32 %v5605, %v5736
        %v5745 = vmul.f32 %v5609, %v5732
        %v5746 = vmul.f32 %v5609, %v5736
        %v5747 = vmul.f32 %v5613, %v5732
        %v5748 = vmul.f32 %v5613, %v5736
        %v5749 = vmul.f32 %v5617, %v5732
        %v5750 = vmul.f32 %v5617, %v5736
        %v5751 = vmul.f32 %v5621, %v5732
        %v5752 = vmul.f32 %v5621, %v5736
        %v5753 = vmul.f32 %v5625, %v5732
        %v5754 = vmul.f32 %v5625, %v5736
        %v5755 = vmul.f32 %v5629, %v5732
        %v5756 = vmul.f32 %v5629, %v5736
        %v5757 = vmul.f32 %v5633, %v5732
        %v5758 = vmul.f32 %v5633, %v5736
        %v5759 = vmul.f32 %v5637, %v5732
        %v5760 = vmul.f32 %v5637, %v5736
        %v5761 = vmul.f32 %v5641, %v5732
        %v5762 = vmul.f32 %v5641, %v5736
        %v5763 = vmul.f32 %v5645, %v5732
        %v5764 = vmul.f32 %v5645, %v5736
        %v5765 = vmul.f32 %v5649, %v5732
        %v5766 = vmul.f32 %v5649, %v5736
        %v5767 = vmul.f32 %v5653, %v5732
        %v5768 = vmul.f32 %v5653, %v5736
        %v5769 = vmul.f32 %v5657, %v5732
        %v5770 = vmul.f32 %v5657, %v5736
        %v5771 = vmul.f32 %v5661, %v5732
        %v5772 = vmul.f32 %v5661, %v5736
        %v5773 = vmul.f32 %v5665, %v5732
        %v5774 = vmul.f32 %v5665, %v5736
        %v5775 = vmul.f32 %v5669, %v5732
        %v5776 = vmul.f32 %v5669, %v5736
        %v5777 = vmul.f32 %v5673, %v5732
        %v5778 = vmul.f32 %v5673, %v5736
        %v5779 = vmul.f32 %v5677, %v5732
        %v5780 = vmul.f32 %v5677, %v5736
        %v5781 = vmul.f32 %v5681, %v5732
        %v5782 = vmul.f32 %v5681, %v5736
        %v5783 = vmul.f32 %v5685, %v5732
        %v5784 = vmul.f32 %v5685, %v5736
        %v5785 = vmul.f32 %v5689, %v5732
        %v5786 = vmul.f32 %v5689, %v5736
        %v5787 = vmul.f32 %v5693, %v5732
        %v5788 = vmul.f32 %v5693, %v5736
        %v5789 = vmul.f32 %v5697, %v5732
        %v5790 = vmul.f32 %v5697, %v5736
        %v5791 = vmul.f32 %v5701, %v5732
        %v5792 = vmul.f32 %v5701, %v5736
        %v5793 = vmul.f32 %v5705, %v5732
        %v5794 = vmul.f32 %v5705, %v5736
        %v5795 = vmul.f32 %v5709, %v5732
        %v5796 = vmul.f32 %v5709, %v5736
        %v5797 = vmul.f32 %v5713, %v5732
        %v5798 = vmul.f32 %v5713, %v5736
        %v5799 = vmul.f32 %v5717, %v5732
        %v5800 = vmul.f32 %v5717, %v5736
        %v5801 = vadd.f32 %v5527, %v5737
        %v5802 = vadd.f32 %v5528, %v5738
        %v5803 = vadd.f32 %v5529, %v5739
        %v5804 = vadd.f32 %v5530, %v5740
        %v5805 = vadd.f32 %v5531, %v5741
        %v5806 = vadd.f32 %v5532, %v5742
        %v5807 = vadd.f32 %v5533, %v5743
        %v5808 = vadd.f32 %v5534, %v5744
        %v5809 = vadd.f32 %v5535, %v5745
        %v5810 = vadd.f32 %v5536, %v5746
        %v5811 = vadd.f32 %v5537, %v5747
        %v5812 = vadd.f32 %v5538, %v5748
        %v5813 = vadd.f32 %v5539, %v5749
        %v5814 = vadd.f32 %v5540, %v5750
        %v5815 = vadd.f32 %v5541, %v5751
        %v5816 = vadd.f32 %v5542, %v5752
        %v5817 = vadd.f32 %v5543, %v5753
        %v5818 = vadd.f32 %v5544, %v5754
        %v5819 = vadd.f32 %v5545, %v5755
        %v5820 = vadd.f32 %v5546, %v5756
        %v5821 = vadd.f32 %v5547, %v5757
        %v5822 = vadd.f32 %v5548, %v5758
        %v5823 = vadd.f32 %v5549, %v5759
        %v5824 = vadd.f32 %v5550, %v5760
        %v5825 = vadd.f32 %v5551, %v5761
        %v5826 = vadd.f32 %v5552, %v5762
        %v5827 = vadd.f32 %v5553, %v5763
        %v5828 = vadd.f32 %v5554, %v5764
        %v5829 = vadd.f32 %v5555, %v5765
        %v5830 = vadd.f32 %v5556, %v5766
        %v5831 = vadd.f32 %v5557, %v5767
        %v5832 = vadd.f32 %v5558, %v5768
        %v5833 = vadd.f32 %v5559, %v5769
        %v5834 = vadd.f32 %v5560, %v5770
        %v5835 = vadd.f32 %v5561, %v5771
        %v5836 = vadd.f32 %v5562, %v5772
        %v5837 = vadd.f32 %v5563, %v5773
        %v5838 = vadd.f32 %v5564, %v5774
        %v5839 = vadd.f32 %v5565, %v5775
        %v5840 = vadd.f32 %v5566, %v5776
        %v5841 = vadd.f32 %v5567, %v5777
        %v5842 = vadd.f32 %v5568, %v5778
        %v5843 = vadd.f32 %v5569, %v5779
        %v5844 = vadd.f32 %v5570, %v5780
        %v5845 = vadd.f32 %v5571, %v5781
        %v5846 = vadd.f32 %v5572, %v5782
        %v5847 = vadd.f32 %v5573, %v5783
        %v5848 = vadd.f32 %v5574, %v5784
        %v5849 = vadd.f32 %v5575, %v5785
        %v5850 = vadd.f32 %v5576, %v5786
        %v5851 = vadd.f32 %v5577, %v5787
        %v5852 = vadd.f32 %v5578, %v5788
        %v5853 = vadd.f32 %v5579, %v5789
        %v5854 = vadd.f32 %v5580, %v5790
        %v5855 = vadd.f32 %v5581, %v5791
        %v5856 = vadd.f32 %v5582, %v5792
        %v5857 = vadd.f32 %v5583, %v5793
        %v5858 = vadd.f32 %v5584, %v5794
        %v5859 = vadd.f32 %v5585, %v5795
        %v5860 = vadd.f32 %v5586, %v5796
        %v5861 = vadd.f32 %v5587, %v5797
        %v5862 = vadd.f32 %v5588, %v5798
        %v5863 = vadd.f32 %v5589, %v5799
        %v5864 = vadd.f32 %v5590, %v5800
        %5865 = vset.pattern.permute.xlu0 2
        %5866 = vperm.xlu0 %5865, %v5316
        %v5867 = vpop.permute.xlu0 %5866
        %5869 = vset.pattern.permute.xlu0 2
        %5870 = vperm.xlu0 %5869, %v5317
        %v5871 = vpop.permute.xlu0 %5870
        %5873 = vset.pattern.permute.xlu0 2
        %5874 = vperm.xlu0 %5873, %v5318
        %v5875 = vpop.permute.xlu0 %5874
        %5877 = vset.pattern.permute.xlu0 2
        %5878 = vperm.xlu0 %5877, %v5319
        %v5879 = vpop.permute.xlu0 %5878
        %5881 = vset.pattern.permute.xlu0 2
        %5882 = vperm.xlu0 %5881, %v5320
        %v5883 = vpop.permute.xlu0 %5882
        %5885 = vset.pattern.permute.xlu0 2
        %5886 = vperm.xlu0 %5885, %v5321
        %v5887 = vpop.permute.xlu0 %5886
        %5889 = vset.pattern.permute.xlu0 2
        %5890 = vperm.xlu0 %5889, %v5322
        %v5891 = vpop.permute.xlu0 %5890
        %5893 = vset.pattern.permute.xlu0 2
        %5894 = vperm.xlu0 %5893, %v5323
        %v5895 = vpop.permute.xlu0 %5894
        %5897 = vset.pattern.permute.xlu0 2
        %5898 = vperm.xlu0 %5897, %v5324
        %v5899 = vpop.permute.xlu0 %5898
        %5901 = vset.pattern.permute.xlu0 2
        %5902 = vperm.xlu0 %5901, %v5325
        %v5903 = vpop.permute.xlu0 %5902
        %5905 = vset.pattern.permute.xlu0 2
        %5906 = vperm.xlu0 %5905, %v5326
        %v5907 = vpop.permute.xlu0 %5906
        %5909 = vset.pattern.permute.xlu0 2
        %5910 = vperm.xlu0 %5909, %v5327
        %v5911 = vpop.permute.xlu0 %5910
        %5913 = vset.pattern.permute.xlu0 2
        %5914 = vperm.xlu0 %5913, %v5328
        %v5915 = vpop.permute.xlu0 %5914
        %5917 = vset.pattern.permute.xlu0 2
        %5918 = vperm.xlu0 %5917, %v5329
        %v5919 = vpop.permute.xlu0 %5918
        %5921 = vset.pattern.permute.xlu0 2
        %5922 = vperm.xlu0 %5921, %v5330
        %v5923 = vpop.permute.xlu0 %5922
        %5925 = vset.pattern.permute.xlu0 2
        %5926 = vperm.xlu0 %5925, %v5331
        %v5927 = vpop.permute.xlu0 %5926
        %5929 = vset.pattern.permute.xlu0 2
        %5930 = vperm.xlu0 %5929, %v5332
        %v5931 = vpop.permute.xlu0 %5930
        %5933 = vset.pattern.permute.xlu0 2
        %5934 = vperm.xlu0 %5933, %v5333
        %v5935 = vpop.permute.xlu0 %5934
        %5937 = vset.pattern.permute.xlu0 2
        %5938 = vperm.xlu0 %5937, %v5334
        %v5939 = vpop.permute.xlu0 %5938
        %5941 = vset.pattern.permute.xlu0 2
        %5942 = vperm.xlu0 %5941, %v5335
        %v5943 = vpop.permute.xlu0 %5942
        %5945 = vset.pattern.permute.xlu0 2
        %5946 = vperm.xlu0 %5945, %v5336
        %v5947 = vpop.permute.xlu0 %5946
        %5949 = vset.pattern.permute.xlu0 2
        %5950 = vperm.xlu0 %5949, %v5337
        %v5951 = vpop.permute.xlu0 %5950
        %5953 = vset.pattern.permute.xlu0 2
        %5954 = vperm.xlu0 %5953, %v5338
        %v5955 = vpop.permute.xlu0 %5954
        %5957 = vset.pattern.permute.xlu0 2
        %5958 = vperm.xlu0 %5957, %v5339
        %v5959 = vpop.permute.xlu0 %5958
        %5961 = vset.pattern.permute.xlu0 2
        %5962 = vperm.xlu0 %5961, %v5340
        %v5963 = vpop.permute.xlu0 %5962
        %5965 = vset.pattern.permute.xlu0 2
        %5966 = vperm.xlu0 %5965, %v5341
        %v5967 = vpop.permute.xlu0 %5966
        %5969 = vset.pattern.permute.xlu0 2
        %5970 = vperm.xlu0 %5969, %v5342
        %v5971 = vpop.permute.xlu0 %5970
        %5973 = vset.pattern.permute.xlu0 2
        %5974 = vperm.xlu0 %5973, %v5343
        %v5975 = vpop.permute.xlu0 %5974
        %5977 = vset.pattern.permute.xlu0 2
        %5978 = vperm.xlu0 %5977, %v5344
        %v5979 = vpop.permute.xlu0 %5978
        %5981 = vset.pattern.permute.xlu0 2
        %5982 = vperm.xlu0 %5981, %v5345
        %v5983 = vpop.permute.xlu0 %5982
        %5985 = vset.pattern.permute.xlu0 2
        %5986 = vperm.xlu0 %5985, %v5346
        %v5987 = vpop.permute.xlu0 %5986
        %5989 = vset.pattern.permute.xlu0 2
        %5990 = vperm.xlu0 %5989, %v5347
        %v5991 = vpop.permute.xlu0 %5990
        %v5993 = vlaneseq
        %v5994 = vshrl.u32 %v5993, 7
        %v5995 = vsub.s32 2, %v5994
        %v5996 = vrot.slane %v5314, %v5995
        %v5997 = vlaneseq
        %v5998 = vshrl.u32 %v5997, 7
        %v5999 = vsub.s32 6, %v5998
        %v6000 = vrot.slane %v5314, %v5999
        %v6003 = vlaneseq
        %v6004 = vshrl.u32 %v6003, 7
        %v6005 = vsub.s32 2, %v6004
        %v6006 = vrot.slane %v5996, %v6005
        %v6007 = vlaneseq
        %v6008 = vshrl.u32 %v6007, 7
        %v6009 = vsub.s32 2, %v6008
        %v6010 = vrot.slane %v6000, %v6009
        %v6011 = vmul.f32 %v5867, %v6006
        %v6012 = vmul.f32 %v5867, %v6010
        %v6013 = vmul.f32 %v5871, %v6006
        %v6014 = vmul.f32 %v5871, %v6010
        %v6015 = vmul.f32 %v5875, %v6006
        %v6016 = vmul.f32 %v5875, %v6010
        %v6017 = vmul.f32 %v5879, %v6006
        %v6018 = vmul.f32 %v5879, %v6010
        %v6019 = vmul.f32 %v5883, %v6006
        %v6020 = vmul.f32 %v5883, %v6010
        %v6021 = vmul.f32 %v5887, %v6006
        %v6022 = vmul.f32 %v5887, %v6010
        %v6023 = vmul.f32 %v5891, %v6006
        %v6024 = vmul.f32 %v5891, %v6010
        %v6025 = vmul.f32 %v5895, %v6006
        %v6026 = vmul.f32 %v5895, %v6010
        %v6027 = vmul.f32 %v5899, %v6006
        %v6028 = vmul.f32 %v5899, %v6010
        %v6029 = vmul.f32 %v5903, %v6006
        %v6030 = vmul.f32 %v5903, %v6010
        %v6031 = vmul.f32 %v5907, %v6006
        %v6032 = vmul.f32 %v5907, %v6010
        %v6033 = vmul.f32 %v5911, %v6006
        %v6034 = vmul.f32 %v5911, %v6010
        %v6035 = vmul.f32 %v5915, %v6006
        %v6036 = vmul.f32 %v5915, %v6010
        %v6037 = vmul.f32 %v5919, %v6006
        %v6038 = vmul.f32 %v5919, %v6010
        %v6039 = vmul.f32 %v5923, %v6006
        %v6040 = vmul.f32 %v5923, %v6010
        %v6041 = vmul.f32 %v5927, %v6006
        %v6042 = vmul.f32 %v5927, %v6010
        %v6043 = vmul.f32 %v5931, %v6006
        %v6044 = vmul.f32 %v5931, %v6010
        %v6045 = vmul.f32 %v5935, %v6006
        %v6046 = vmul.f32 %v5935, %v6010
        %v6047 = vmul.f32 %v5939, %v6006
        %v6048 = vmul.f32 %v5939, %v6010
        %v6049 = vmul.f32 %v5943, %v6006
        %v6050 = vmul.f32 %v5943, %v6010
        %v6051 = vmul.f32 %v5947, %v6006
        %v6052 = vmul.f32 %v5947, %v6010
        %v6053 = vmul.f32 %v5951, %v6006
        %v6054 = vmul.f32 %v5951, %v6010
        %v6055 = vmul.f32 %v5955, %v6006
        %v6056 = vmul.f32 %v5955, %v6010
        %v6057 = vmul.f32 %v5959, %v6006
        %v6058 = vmul.f32 %v5959, %v6010
        %v6059 = vmul.f32 %v5963, %v6006
        %v6060 = vmul.f32 %v5963, %v6010
        %v6061 = vmul.f32 %v5967, %v6006
        %v6062 = vmul.f32 %v5967, %v6010
        %v6063 = vmul.f32 %v5971, %v6006
        %v6064 = vmul.f32 %v5971, %v6010
        %v6065 = vmul.f32 %v5975, %v6006
        %v6066 = vmul.f32 %v5975, %v6010
        %v6067 = vmul.f32 %v5979, %v6006
        %v6068 = vmul.f32 %v5979, %v6010
        %v6069 = vmul.f32 %v5983, %v6006
        %v6070 = vmul.f32 %v5983, %v6010
        %v6071 = vmul.f32 %v5987, %v6006
        %v6072 = vmul.f32 %v5987, %v6010
        %v6073 = vmul.f32 %v5991, %v6006
        %v6074 = vmul.f32 %v5991, %v6010
        %v6075 = vadd.f32 %v5801, %v6011
        %v6076 = vadd.f32 %v5802, %v6012
        %v6077 = vadd.f32 %v5803, %v6013
        %v6078 = vadd.f32 %v5804, %v6014
        %v6079 = vadd.f32 %v5805, %v6015
        %v6080 = vadd.f32 %v5806, %v6016
        %v6081 = vadd.f32 %v5807, %v6017
        %v6082 = vadd.f32 %v5808, %v6018
        %v6083 = vadd.f32 %v5809, %v6019
        %v6084 = vadd.f32 %v5810, %v6020
        %v6085 = vadd.f32 %v5811, %v6021
        %v6086 = vadd.f32 %v5812, %v6022
        %v6087 = vadd.f32 %v5813, %v6023
        %v6088 = vadd.f32 %v5814, %v6024
        %v6089 = vadd.f32 %v5815, %v6025
        %v6090 = vadd.f32 %v5816, %v6026
        %v6091 = vadd.f32 %v5817, %v6027
        %v6092 = vadd.f32 %v5818, %v6028
        %v6093 = vadd.f32 %v5819, %v6029
        %v6094 = vadd.f32 %v5820, %v6030
        %v6095 = vadd.f32 %v5821, %v6031
        %v6096 = vadd.f32 %v5822, %v6032
        %v6097 = vadd.f32 %v5823, %v6033
        %v6098 = vadd.f32 %v5824, %v6034
        %v6099 = vadd.f32 %v5825, %v6035
        %v6100 = vadd.f32 %v5826, %v6036
        %v6101 = vadd.f32 %v5827, %v6037
        %v6102 = vadd.f32 %v5828, %v6038
        %v6103 = vadd.f32 %v5829, %v6039
        %v6104 = vadd.f32 %v5830, %v6040
        %v6105 = vadd.f32 %v5831, %v6041
        %v6106 = vadd.f32 %v5832, %v6042
        %v6107 = vadd.f32 %v5833, %v6043
        %v6108 = vadd.f32 %v5834, %v6044
        %v6109 = vadd.f32 %v5835, %v6045
        %v6110 = vadd.f32 %v5836, %v6046
        %v6111 = vadd.f32 %v5837, %v6047
        %v6112 = vadd.f32 %v5838, %v6048
        %v6113 = vadd.f32 %v5839, %v6049
        %v6114 = vadd.f32 %v5840, %v6050
        %v6115 = vadd.f32 %v5841, %v6051
        %v6116 = vadd.f32 %v5842, %v6052
        %v6117 = vadd.f32 %v5843, %v6053
        %v6118 = vadd.f32 %v5844, %v6054
        %v6119 = vadd.f32 %v5845, %v6055
        %v6120 = vadd.f32 %v5846, %v6056
        %v6121 = vadd.f32 %v5847, %v6057
        %v6122 = vadd.f32 %v5848, %v6058
        %v6123 = vadd.f32 %v5849, %v6059
        %v6124 = vadd.f32 %v5850, %v6060
        %v6125 = vadd.f32 %v5851, %v6061
        %v6126 = vadd.f32 %v5852, %v6062
        %v6127 = vadd.f32 %v5853, %v6063
        %v6128 = vadd.f32 %v5854, %v6064
        %v6129 = vadd.f32 %v5855, %v6065
        %v6130 = vadd.f32 %v5856, %v6066
        %v6131 = vadd.f32 %v5857, %v6067
        %v6132 = vadd.f32 %v5858, %v6068
        %v6133 = vadd.f32 %v5859, %v6069
        %v6134 = vadd.f32 %v5860, %v6070
        %v6135 = vadd.f32 %v5861, %v6071
        %v6136 = vadd.f32 %v5862, %v6072
        %v6137 = vadd.f32 %v5863, %v6073
        %v6138 = vadd.f32 %v5864, %v6074
        %s6139 = scalar_lea.vmem %s3, 768
        %v6140 = vld [vmem:[%s6139] sm:$0xff]
        %v6141 = vld [vmem:[%s6139 + $0x8] sm:$0xff]
        %v6142 = vld [vmem:[%s6139 + $0x10] sm:$0xff]
        %v6143 = vld [vmem:[%s6139 + $0x18] sm:$0xff]
        %v6144 = vld [vmem:[%s6139 + $0x20] sm:$0xff]
        %v6145 = vld [vmem:[%s6139 + $0x28] sm:$0xff]
        %v6146 = vld [vmem:[%s6139 + $0x30] sm:$0xff]
        %v6147 = vld [vmem:[%s6139 + $0x38] sm:$0xff]
        %v6148 = vld [vmem:[%s6139 + $0x40] sm:$0xff]
        %v6149 = vld [vmem:[%s6139 + $0x48] sm:$0xff]
        %v6150 = vld [vmem:[%s6139 + $0x50] sm:$0xff]
        %v6151 = vld [vmem:[%s6139 + $0x58] sm:$0xff]
        %v6152 = vld [vmem:[%s6139 + $0x60] sm:$0xff]
        %v6153 = vld [vmem:[%s6139 + $0x68] sm:$0xff]
        %v6154 = vld [vmem:[%s6139 + $0x70] sm:$0xff]
        %v6155 = vld [vmem:[%s6139 + $0x78] sm:$0xff]
        %v6156 = vld [vmem:[%s6139 + $0x80] sm:$0xff]
        %v6157 = vld [vmem:[%s6139 + $0x88] sm:$0xff]
        %v6158 = vld [vmem:[%s6139 + $0x90] sm:$0xff]
        %v6159 = vld [vmem:[%s6139 + $0x98] sm:$0xff]
        %v6160 = vld [vmem:[%s6139 + $0xa0] sm:$0xff]
        %v6161 = vld [vmem:[%s6139 + $0xa8] sm:$0xff]
        %v6162 = vld [vmem:[%s6139 + $0xb0] sm:$0xff]
        %v6163 = vld [vmem:[%s6139 + $0xb8] sm:$0xff]
        %v6164 = vld [vmem:[%s6139 + $0xc0] sm:$0xff]
        %v6165 = vld [vmem:[%s6139 + $0xc8] sm:$0xff]
        %v6166 = vld [vmem:[%s6139 + $0xd0] sm:$0xff]
        %v6167 = vld [vmem:[%s6139 + $0xd8] sm:$0xff]
        %v6168 = vld [vmem:[%s6139 + $0xe0] sm:$0xff]
        %v6169 = vld [vmem:[%s6139 + $0xe8] sm:$0xff]
        %v6170 = vld [vmem:[%s6139 + $0xf0] sm:$0xff]
        %v6171 = vld [vmem:[%s6139 + $0xf8] sm:$0xff]
        %6173 = vset.pattern.permute.xlu0 0
        %6174 = vperm.xlu0 %6173, %v6140
        %v6175 = vpop.permute.xlu0 %6174
        %6178 = vset.pattern.permute.xlu0 0
        %6179 = vperm.xlu0 %6178, %v6141
        %v6180 = vpop.permute.xlu0 %6179
        %6183 = vset.pattern.permute.xlu0 0
        %6184 = vperm.xlu0 %6183, %v6142
        %v6185 = vpop.permute.xlu0 %6184
        %6188 = vset.pattern.permute.xlu0 0
        %6189 = vperm.xlu0 %6188, %v6143
        %v6190 = vpop.permute.xlu0 %6189
        %6193 = vset.pattern.permute.xlu0 0
        %6194 = vperm.xlu0 %6193, %v6144
        %v6195 = vpop.permute.xlu0 %6194
        %6198 = vset.pattern.permute.xlu0 0
        %6199 = vperm.xlu0 %6198, %v6145
        %v6200 = vpop.permute.xlu0 %6199
        %6203 = vset.pattern.permute.xlu0 0
        %6204 = vperm.xlu0 %6203, %v6146
        %v6205 = vpop.permute.xlu0 %6204
        %6208 = vset.pattern.permute.xlu0 0
        %6209 = vperm.xlu0 %6208, %v6147
        %v6210 = vpop.permute.xlu0 %6209
        %6213 = vset.pattern.permute.xlu0 0
        %6214 = vperm.xlu0 %6213, %v6148
        %v6215 = vpop.permute.xlu0 %6214
        %6218 = vset.pattern.permute.xlu0 0
        %6219 = vperm.xlu0 %6218, %v6149
        %v6220 = vpop.permute.xlu0 %6219
        %6223 = vset.pattern.permute.xlu0 0
        %6224 = vperm.xlu0 %6223, %v6150
        %v6225 = vpop.permute.xlu0 %6224
        %6228 = vset.pattern.permute.xlu0 0
        %6229 = vperm.xlu0 %6228, %v6151
        %v6230 = vpop.permute.xlu0 %6229
        %6233 = vset.pattern.permute.xlu0 0
        %6234 = vperm.xlu0 %6233, %v6152
        %v6235 = vpop.permute.xlu0 %6234
        %6238 = vset.pattern.permute.xlu0 0
        %6239 = vperm.xlu0 %6238, %v6153
        %v6240 = vpop.permute.xlu0 %6239
        %6243 = vset.pattern.permute.xlu0 0
        %6244 = vperm.xlu0 %6243, %v6154
        %v6245 = vpop.permute.xlu0 %6244
        %6248 = vset.pattern.permute.xlu0 0
        %6249 = vperm.xlu0 %6248, %v6155
        %v6250 = vpop.permute.xlu0 %6249
        %6253 = vset.pattern.permute.xlu0 0
        %6254 = vperm.xlu0 %6253, %v6156
        %v6255 = vpop.permute.xlu0 %6254
        %6258 = vset.pattern.permute.xlu0 0
        %6259 = vperm.xlu0 %6258, %v6157
        %v6260 = vpop.permute.xlu0 %6259
        %6263 = vset.pattern.permute.xlu0 0
        %6264 = vperm.xlu0 %6263, %v6158
        %v6265 = vpop.permute.xlu0 %6264
        %6268 = vset.pattern.permute.xlu0 0
        %6269 = vperm.xlu0 %6268, %v6159
        %v6270 = vpop.permute.xlu0 %6269
        %6273 = vset.pattern.permute.xlu0 0
        %6274 = vperm.xlu0 %6273, %v6160
        %v6275 = vpop.permute.xlu0 %6274
        %6278 = vset.pattern.permute.xlu0 0
        %6279 = vperm.xlu0 %6278, %v6161
        %v6280 = vpop.permute.xlu0 %6279
        %6283 = vset.pattern.permute.xlu0 0
        %6284 = vperm.xlu0 %6283, %v6162
        %v6285 = vpop.permute.xlu0 %6284
        %6288 = vset.pattern.permute.xlu0 0
        %6289 = vperm.xlu0 %6288, %v6163
        %v6290 = vpop.permute.xlu0 %6289
        %6293 = vset.pattern.permute.xlu0 0
        %6294 = vperm.xlu0 %6293, %v6164
        %v6295 = vpop.permute.xlu0 %6294
        %6298 = vset.pattern.permute.xlu0 0
        %6299 = vperm.xlu0 %6298, %v6165
        %v6300 = vpop.permute.xlu0 %6299
        %6303 = vset.pattern.permute.xlu0 0
        %6304 = vperm.xlu0 %6303, %v6166
        %v6305 = vpop.permute.xlu0 %6304
        %6308 = vset.pattern.permute.xlu0 0
        %6309 = vperm.xlu0 %6308, %v6167
        %v6310 = vpop.permute.xlu0 %6309
        %6313 = vset.pattern.permute.xlu0 0
        %6314 = vperm.xlu0 %6313, %v6168
        %v6315 = vpop.permute.xlu0 %6314
        %6318 = vset.pattern.permute.xlu0 0
        %6319 = vperm.xlu0 %6318, %v6169
        %v6320 = vpop.permute.xlu0 %6319
        %6323 = vset.pattern.permute.xlu0 0
        %6324 = vperm.xlu0 %6323, %v6170
        %v6325 = vpop.permute.xlu0 %6324
        %6328 = vset.pattern.permute.xlu0 0
        %6329 = vperm.xlu0 %6328, %v6171
        %v6330 = vpop.permute.xlu0 %6329
        %v6332 = vadd.f32 %v6075, %v6175
        %v6333 = vadd.f32 %v6076, %v6175
        %v6334 = vadd.f32 %v6077, %v6180
        %v6335 = vadd.f32 %v6078, %v6180
        %v6336 = vadd.f32 %v6079, %v6185
        %v6337 = vadd.f32 %v6080, %v6185
        %v6338 = vadd.f32 %v6081, %v6190
        %v6339 = vadd.f32 %v6082, %v6190
        %v6340 = vadd.f32 %v6083, %v6195
        %v6341 = vadd.f32 %v6084, %v6195
        %v6342 = vadd.f32 %v6085, %v6200
        %v6343 = vadd.f32 %v6086, %v6200
        %v6344 = vadd.f32 %v6087, %v6205
        %v6345 = vadd.f32 %v6088, %v6205
        %v6346 = vadd.f32 %v6089, %v6210
        %v6347 = vadd.f32 %v6090, %v6210
        %v6348 = vadd.f32 %v6091, %v6215
        %v6349 = vadd.f32 %v6092, %v6215
        %v6350 = vadd.f32 %v6093, %v6220
        %v6351 = vadd.f32 %v6094, %v6220
        %v6352 = vadd.f32 %v6095, %v6225
        %v6353 = vadd.f32 %v6096, %v6225
        %v6354 = vadd.f32 %v6097, %v6230
        %v6355 = vadd.f32 %v6098, %v6230
        %v6356 = vadd.f32 %v6099, %v6235
        %v6357 = vadd.f32 %v6100, %v6235
        %v6358 = vadd.f32 %v6101, %v6240
        %v6359 = vadd.f32 %v6102, %v6240
        %v6360 = vadd.f32 %v6103, %v6245
        %v6361 = vadd.f32 %v6104, %v6245
        %v6362 = vadd.f32 %v6105, %v6250
        %v6363 = vadd.f32 %v6106, %v6250
        %v6364 = vadd.f32 %v6107, %v6255
        %v6365 = vadd.f32 %v6108, %v6255
        %v6366 = vadd.f32 %v6109, %v6260
        %v6367 = vadd.f32 %v6110, %v6260
        %v6368 = vadd.f32 %v6111, %v6265
        %v6369 = vadd.f32 %v6112, %v6265
        %v6370 = vadd.f32 %v6113, %v6270
        %v6371 = vadd.f32 %v6114, %v6270
        %v6372 = vadd.f32 %v6115, %v6275
        %v6373 = vadd.f32 %v6116, %v6275
        %v6374 = vadd.f32 %v6117, %v6280
        %v6375 = vadd.f32 %v6118, %v6280
        %v6376 = vadd.f32 %v6119, %v6285
        %v6377 = vadd.f32 %v6120, %v6285
        %v6378 = vadd.f32 %v6121, %v6290
        %v6379 = vadd.f32 %v6122, %v6290
        %v6380 = vadd.f32 %v6123, %v6295
        %v6381 = vadd.f32 %v6124, %v6295
        %v6382 = vadd.f32 %v6125, %v6300
        %v6383 = vadd.f32 %v6126, %v6300
        %v6384 = vadd.f32 %v6127, %v6305
        %v6385 = vadd.f32 %v6128, %v6305
        %v6386 = vadd.f32 %v6129, %v6310
        %v6387 = vadd.f32 %v6130, %v6310
        %v6388 = vadd.f32 %v6131, %v6315
        %v6389 = vadd.f32 %v6132, %v6315
        %v6390 = vadd.f32 %v6133, %v6320
        %v6391 = vadd.f32 %v6134, %v6320
        %v6392 = vadd.f32 %v6135, %v6325
        %v6393 = vadd.f32 %v6136, %v6325
        %v6394 = vadd.f32 %v6137, %v6330
        %v6395 = vadd.f32 %v6138, %v6330
        %vm6396 = vcmp.gt.f32.partialorder %v6332, 0.0
        %vm6397 = vcmp.gt.f32.partialorder %v6333, 0.0
        %vm6398 = vcmp.gt.f32.partialorder %v6334, 0.0
        %vm6399 = vcmp.gt.f32.partialorder %v6335, 0.0
        %vm6400 = vcmp.gt.f32.partialorder %v6336, 0.0
        %vm6401 = vcmp.gt.f32.partialorder %v6337, 0.0
        %vm6402 = vcmp.gt.f32.partialorder %v6338, 0.0
        %vm6403 = vcmp.gt.f32.partialorder %v6339, 0.0
        %vm6404 = vcmp.gt.f32.partialorder %v6340, 0.0
        %vm6405 = vcmp.gt.f32.partialorder %v6341, 0.0
        %vm6406 = vcmp.gt.f32.partialorder %v6342, 0.0
        %vm6407 = vcmp.gt.f32.partialorder %v6343, 0.0
        %vm6408 = vcmp.gt.f32.partialorder %v6344, 0.0
        %vm6409 = vcmp.gt.f32.partialorder %v6345, 0.0
        %vm6410 = vcmp.gt.f32.partialorder %v6346, 0.0
        %vm6411 = vcmp.gt.f32.partialorder %v6347, 0.0
        %vm6412 = vcmp.gt.f32.partialorder %v6348, 0.0
        %vm6413 = vcmp.gt.f32.partialorder %v6349, 0.0
        %vm6414 = vcmp.gt.f32.partialorder %v6350, 0.0
        %vm6415 = vcmp.gt.f32.partialorder %v6351, 0.0
        %vm6416 = vcmp.gt.f32.partialorder %v6352, 0.0
        %vm6417 = vcmp.gt.f32.partialorder %v6353, 0.0
        %vm6418 = vcmp.gt.f32.partialorder %v6354, 0.0
        %vm6419 = vcmp.gt.f32.partialorder %v6355, 0.0
        %vm6420 = vcmp.gt.f32.partialorder %v6356, 0.0
        %vm6421 = vcmp.gt.f32.partialorder %v6357, 0.0
        %vm6422 = vcmp.gt.f32.partialorder %v6358, 0.0
        %vm6423 = vcmp.gt.f32.partialorder %v6359, 0.0
        %vm6424 = vcmp.gt.f32.partialorder %v6360, 0.0
        %vm6425 = vcmp.gt.f32.partialorder %v6361, 0.0
        %vm6426 = vcmp.gt.f32.partialorder %v6362, 0.0
        %vm6427 = vcmp.gt.f32.partialorder %v6363, 0.0
        %vm6428 = vcmp.gt.f32.partialorder %v6364, 0.0
        %vm6429 = vcmp.gt.f32.partialorder %v6365, 0.0
        %vm6430 = vcmp.gt.f32.partialorder %v6366, 0.0
        %vm6431 = vcmp.gt.f32.partialorder %v6367, 0.0
        %vm6432 = vcmp.gt.f32.partialorder %v6368, 0.0
        %vm6433 = vcmp.gt.f32.partialorder %v6369, 0.0
        %vm6434 = vcmp.gt.f32.partialorder %v6370, 0.0
        %vm6435 = vcmp.gt.f32.partialorder %v6371, 0.0
        %vm6436 = vcmp.gt.f32.partialorder %v6372, 0.0
        %vm6437 = vcmp.gt.f32.partialorder %v6373, 0.0
        %vm6438 = vcmp.gt.f32.partialorder %v6374, 0.0
        %vm6439 = vcmp.gt.f32.partialorder %v6375, 0.0
        %vm6440 = vcmp.gt.f32.partialorder %v6376, 0.0
        %vm6441 = vcmp.gt.f32.partialorder %v6377, 0.0
        %vm6442 = vcmp.gt.f32.partialorder %v6378, 0.0
        %vm6443 = vcmp.gt.f32.partialorder %v6379, 0.0
        %vm6444 = vcmp.gt.f32.partialorder %v6380, 0.0
        %vm6445 = vcmp.gt.f32.partialorder %v6381, 0.0
        %vm6446 = vcmp.gt.f32.partialorder %v6382, 0.0
        %vm6447 = vcmp.gt.f32.partialorder %v6383, 0.0
        %vm6448 = vcmp.gt.f32.partialorder %v6384, 0.0
        %vm6449 = vcmp.gt.f32.partialorder %v6385, 0.0
        %vm6450 = vcmp.gt.f32.partialorder %v6386, 0.0
        %vm6451 = vcmp.gt.f32.partialorder %v6387, 0.0
        %vm6452 = vcmp.gt.f32.partialorder %v6388, 0.0
        %vm6453 = vcmp.gt.f32.partialorder %v6389, 0.0
        %vm6454 = vcmp.gt.f32.partialorder %v6390, 0.0
        %vm6455 = vcmp.gt.f32.partialorder %v6391, 0.0
        %vm6456 = vcmp.gt.f32.partialorder %v6392, 0.0
        %vm6457 = vcmp.gt.f32.partialorder %v6393, 0.0
        %vm6458 = vcmp.gt.f32.partialorder %v6394, 0.0
        %vm6459 = vcmp.gt.f32.partialorder %v6395, 0.0
        %v6460 = vmul.f32 %v6332, 0.01
        %v6461 = vmul.f32 %v6333, 0.01
        %v6462 = vmul.f32 %v6334, 0.01
        %v6463 = vmul.f32 %v6335, 0.01
        %v6464 = vmul.f32 %v6336, 0.01
        %v6465 = vmul.f32 %v6337, 0.01
        %v6466 = vmul.f32 %v6338, 0.01
        %v6467 = vmul.f32 %v6339, 0.01
        %v6468 = vmul.f32 %v6340, 0.01
        %v6469 = vmul.f32 %v6341, 0.01
        %v6470 = vmul.f32 %v6342, 0.01
        %v6471 = vmul.f32 %v6343, 0.01
        %v6472 = vmul.f32 %v6344, 0.01
        %v6473 = vmul.f32 %v6345, 0.01
        %v6474 = vmul.f32 %v6346, 0.01
        %v6475 = vmul.f32 %v6347, 0.01
        %v6476 = vmul.f32 %v6348, 0.01
        %v6477 = vmul.f32 %v6349, 0.01
        %v6478 = vmul.f32 %v6350, 0.01
        %v6479 = vmul.f32 %v6351, 0.01
        %v6480 = vmul.f32 %v6352, 0.01
        %v6481 = vmul.f32 %v6353, 0.01
        %v6482 = vmul.f32 %v6354, 0.01
        %v6483 = vmul.f32 %v6355, 0.01
        %v6484 = vmul.f32 %v6356, 0.01
        %v6485 = vmul.f32 %v6357, 0.01
        %v6486 = vmul.f32 %v6358, 0.01
        %v6487 = vmul.f32 %v6359, 0.01
        %v6488 = vmul.f32 %v6360, 0.01
        %v6489 = vmul.f32 %v6361, 0.01
        %v6490 = vmul.f32 %v6362, 0.01
        %v6491 = vmul.f32 %v6363, 0.01
        %v6492 = vmul.f32 %v6364, 0.01
        %v6493 = vmul.f32 %v6365, 0.01
        %v6494 = vmul.f32 %v6366, 0.01
        %v6495 = vmul.f32 %v6367, 0.01
        %v6496 = vmul.f32 %v6368, 0.01
        %v6497 = vmul.f32 %v6369, 0.01
        %v6498 = vmul.f32 %v6370, 0.01
        %v6499 = vmul.f32 %v6371, 0.01
        %v6500 = vmul.f32 %v6372, 0.01
        %v6501 = vmul.f32 %v6373, 0.01
        %v6502 = vmul.f32 %v6374, 0.01
        %v6503 = vmul.f32 %v6375, 0.01
        %v6504 = vmul.f32 %v6376, 0.01
        %v6505 = vmul.f32 %v6377, 0.01
        %v6506 = vmul.f32 %v6378, 0.01
        %v6507 = vmul.f32 %v6379, 0.01
        %v6508 = vmul.f32 %v6380, 0.01
        %v6509 = vmul.f32 %v6381, 0.01
        %v6510 = vmul.f32 %v6382, 0.01
        %v6511 = vmul.f32 %v6383, 0.01
        %v6512 = vmul.f32 %v6384, 0.01
        %v6513 = vmul.f32 %v6385, 0.01
        %v6514 = vmul.f32 %v6386, 0.01
        %v6515 = vmul.f32 %v6387, 0.01
        %v6516 = vmul.f32 %v6388, 0.01
        %v6517 = vmul.f32 %v6389, 0.01
        %v6518 = vmul.f32 %v6390, 0.01
        %v6519 = vmul.f32 %v6391, 0.01
        %v6520 = vmul.f32 %v6392, 0.01
        %v6521 = vmul.f32 %v6393, 0.01
        %v6522 = vmul.f32 %v6394, 0.01
        %v6523 = vmul.f32 %v6395, 0.01
        %v6524 = vsel %vm6396, %v6332, %v6460
        %v6525 = vsel %vm6397, %v6333, %v6461
        %v6526 = vsel %vm6398, %v6334, %v6462
        %v6527 = vsel %vm6399, %v6335, %v6463
        %v6528 = vsel %vm6400, %v6336, %v6464
        %v6529 = vsel %vm6401, %v6337, %v6465
        %v6530 = vsel %vm6402, %v6338, %v6466
        %v6531 = vsel %vm6403, %v6339, %v6467
        %v6532 = vsel %vm6404, %v6340, %v6468
        %v6533 = vsel %vm6405, %v6341, %v6469
        %v6534 = vsel %vm6406, %v6342, %v6470
        %v6535 = vsel %vm6407, %v6343, %v6471
        %v6536 = vsel %vm6408, %v6344, %v6472
        %v6537 = vsel %vm6409, %v6345, %v6473
        %v6538 = vsel %vm6410, %v6346, %v6474
        %v6539 = vsel %vm6411, %v6347, %v6475
        %v6540 = vsel %vm6412, %v6348, %v6476
        %v6541 = vsel %vm6413, %v6349, %v6477
        %v6542 = vsel %vm6414, %v6350, %v6478
        %v6543 = vsel %vm6415, %v6351, %v6479
        %v6544 = vsel %vm6416, %v6352, %v6480
        %v6545 = vsel %vm6417, %v6353, %v6481
        %v6546 = vsel %vm6418, %v6354, %v6482
        %v6547 = vsel %vm6419, %v6355, %v6483
        %v6548 = vsel %vm6420, %v6356, %v6484
        %v6549 = vsel %vm6421, %v6357, %v6485
        %v6550 = vsel %vm6422, %v6358, %v6486
        %v6551 = vsel %vm6423, %v6359, %v6487
        %v6552 = vsel %vm6424, %v6360, %v6488
        %v6553 = vsel %vm6425, %v6361, %v6489
        %v6554 = vsel %vm6426, %v6362, %v6490
        %v6555 = vsel %vm6427, %v6363, %v6491
        %v6556 = vsel %vm6428, %v6364, %v6492
        %v6557 = vsel %vm6429, %v6365, %v6493
        %v6558 = vsel %vm6430, %v6366, %v6494
        %v6559 = vsel %vm6431, %v6367, %v6495
        %v6560 = vsel %vm6432, %v6368, %v6496
        %v6561 = vsel %vm6433, %v6369, %v6497
        %v6562 = vsel %vm6434, %v6370, %v6498
        %v6563 = vsel %vm6435, %v6371, %v6499
        %v6564 = vsel %vm6436, %v6372, %v6500
        %v6565 = vsel %vm6437, %v6373, %v6501
        %v6566 = vsel %vm6438, %v6374, %v6502
        %v6567 = vsel %vm6439, %v6375, %v6503
        %v6568 = vsel %vm6440, %v6376, %v6504
        %v6569 = vsel %vm6441, %v6377, %v6505
        %v6570 = vsel %vm6442, %v6378, %v6506
        %v6571 = vsel %vm6443, %v6379, %v6507
        %v6572 = vsel %vm6444, %v6380, %v6508
        %v6573 = vsel %vm6445, %v6381, %v6509
        %v6574 = vsel %vm6446, %v6382, %v6510
        %v6575 = vsel %vm6447, %v6383, %v6511
        %v6576 = vsel %vm6448, %v6384, %v6512
        %v6577 = vsel %vm6449, %v6385, %v6513
        %v6578 = vsel %vm6450, %v6386, %v6514
        %v6579 = vsel %vm6451, %v6387, %v6515
        %v6580 = vsel %vm6452, %v6388, %v6516
        %v6581 = vsel %vm6453, %v6389, %v6517
        %v6582 = vsel %vm6454, %v6390, %v6518
        %v6583 = vsel %vm6455, %v6391, %v6519
        %v6584 = vsel %vm6456, %v6392, %v6520
        %v6585 = vsel %vm6457, %v6393, %v6521
        %v6586 = vsel %vm6458, %v6394, %v6522
        %v6587 = vsel %vm6459, %v6395, %v6523
        %s6588 = scalar_lea.vmem %s4, 384
        %v6589 = vld [vmem:[%s6588] sm:$0xff]
        %v6590 = vld [vmem:[%s6588 + $0x8] sm:$0xff]
        %v6591 = vld [vmem:[%s6588 + $0x10] sm:$0xff]
        %v6592 = vld [vmem:[%s6588 + $0x18] sm:$0xff]
        %v6593 = vld [vmem:[%s6588 + $0x20] sm:$0xff]
        %v6594 = vld [vmem:[%s6588 + $0x28] sm:$0xff]
        %v6595 = vld [vmem:[%s6588 + $0x30] sm:$0xff]
        %v6596 = vld [vmem:[%s6588 + $0x38] sm:$0xff]
        %v6597 = vld [vmem:[%s6588 + $0x40] sm:$0xff]
        %v6598 = vld [vmem:[%s6588 + $0x48] sm:$0xff]
        %v6599 = vld [vmem:[%s6588 + $0x50] sm:$0xff]
        %v6600 = vld [vmem:[%s6588 + $0x58] sm:$0xff]
        %v6601 = vld [vmem:[%s6588 + $0x60] sm:$0xff]
        %v6602 = vld [vmem:[%s6588 + $0x68] sm:$0xff]
        %v6603 = vld [vmem:[%s6588 + $0x70] sm:$0xff]
        %v6604 = vld [vmem:[%s6588 + $0x78] sm:$0xff]
        %s6605 = scalar_lea.vmem %s5, 192
        %v6606 = vld [vmem:[%s6605] sm:$0xff]
        %v6607 = vld [vmem:[%s6605 + $0x8] sm:$0xff]
        %v6608 = vld [vmem:[%s6605 + $0x10] sm:$0xff]
        %v6609 = vld [vmem:[%s6605 + $0x18] sm:$0xff]
        %v6610 = vld [vmem:[%s6605 + $0x20] sm:$0xff]
        %v6611 = vld [vmem:[%s6605 + $0x28] sm:$0xff]
        %v6612 = vld [vmem:[%s6605 + $0x30] sm:$0xff]
        %v6613 = vld [vmem:[%s6605 + $0x38] sm:$0xff]
        %6615 = vset.pattern.permute.xlu0 0
        %6616 = vperm.xlu0 %6615, %v6606
        %v6617 = vpop.permute.xlu0 %6616
        %6620 = vset.pattern.permute.xlu0 0
        %6621 = vperm.xlu0 %6620, %v6607
        %v6622 = vpop.permute.xlu0 %6621
        %6625 = vset.pattern.permute.xlu0 0
        %6626 = vperm.xlu0 %6625, %v6608
        %v6627 = vpop.permute.xlu0 %6626
        %6630 = vset.pattern.permute.xlu0 0
        %6631 = vperm.xlu0 %6630, %v6609
        %v6632 = vpop.permute.xlu0 %6631
        %6635 = vset.pattern.permute.xlu0 0
        %6636 = vperm.xlu0 %6635, %v6610
        %v6637 = vpop.permute.xlu0 %6636
        %6640 = vset.pattern.permute.xlu0 0
        %6641 = vperm.xlu0 %6640, %v6611
        %v6642 = vpop.permute.xlu0 %6641
        %6645 = vset.pattern.permute.xlu0 0
        %6646 = vperm.xlu0 %6645, %v6612
        %v6647 = vpop.permute.xlu0 %6646
        %6650 = vset.pattern.permute.xlu0 0
        %6651 = vperm.xlu0 %6650, %v6613
        %v6652 = vpop.permute.xlu0 %6651
        %6654 = vmatprep.subr.mxu0 %v6555
        %6655 = vmatpush1.msra.mxu0 %v6554
        %6656 = vmatprep.subr.mxu0 %v6553
        %6657 = vmatpush1.msra.mxu0 %v6552
        %6658 = vmatprep.subr.mxu0 %v6551
        %6659 = vmatpush1.msra.mxu0 %v6550
        %6660 = vmatprep.subr.mxu0 %v6549
        %6661 = vmatpush1.msra.mxu0 %v6548
        %6662 = vmatprep.subr.mxu0 %v6547
        %6663 = vmatpush1.msra.mxu0 %v6546
        %6664 = vmatprep.subr.mxu0 %v6545
        %6665 = vmatpush1.msra.mxu0 %v6544
        %6666 = vmatprep.subr.mxu0 %v6543
        %6667 = vmatpush1.msra.mxu0 %v6542
        %6668 = vmatprep.subr.mxu0 %v6541
        %6669 = vmatpush1.msra.mxu0 %v6540
        %6670 = vmatprep.subr.mxu0 %v6539
        %6671 = vmatpush1.msra.mxu0 %v6538
        %6672 = vmatprep.subr.mxu0 %v6537
        %6673 = vmatpush1.msra.mxu0 %v6536
        %6674 = vmatprep.subr.mxu0 %v6535
        %6675 = vmatpush1.msra.mxu0 %v6534
        %6676 = vmatprep.subr.mxu0 %v6533
        %6677 = vmatpush1.msra.mxu0 %v6532
        %6678 = vmatprep.subr.mxu0 %v6531
        %6679 = vmatpush1.msra.mxu0 %v6530
        %6680 = vmatprep.subr.mxu0 %v6529
        %6681 = vmatpush1.msra.mxu0 %v6528
        %6682 = vmatprep.subr.mxu0 %v6527
        %6683 = vmatpush1.msra.mxu0 %v6526
        %6684 = vmatprep.subr.mxu0 %v6525
        %6685 = vmatpush1.msra.mxu0 %v6524
        %6686 = vmatprep.subr.mxu0 %v6587
        %6687 = vmatpush2.msra.mxu0 %v6586
        %6688 = vmatprep.subr.mxu0 %v6585
        %6689 = vmatpush2.msra.mxu0 %v6584
        %6690 = vmatprep.subr.mxu0 %v6583
        %6691 = vmatpush2.msra.mxu0 %v6582
        %6692 = vmatprep.subr.mxu0 %v6581
        %6693 = vmatpush2.msra.mxu0 %v6580
        %6694 = vmatprep.subr.mxu0 %v6579
        %6695 = vmatpush2.msra.mxu0 %v6578
        %6696 = vmatprep.subr.mxu0 %v6577
        %6697 = vmatpush2.msra.mxu0 %v6576
        %6698 = vmatprep.subr.mxu0 %v6575
        %6699 = vmatpush2.msra.mxu0 %v6574
        %6700 = vmatprep.subr.mxu0 %v6573
        %6701 = vmatpush2.msra.mxu0 %v6572
        %6702 = vmatprep.subr.mxu0 %v6571
        %6703 = vmatpush2.msra.mxu0 %v6570
        %6704 = vmatprep.subr.mxu0 %v6569
        %6705 = vmatpush2.msra.mxu0 %v6568
        %6706 = vmatprep.subr.mxu0 %v6567
        %6707 = vmatpush2.msra.mxu0 %v6566
        %6708 = vmatprep.subr.mxu0 %v6565
        %6709 = vmatpush2.msra.mxu0 %v6564
        %6710 = vmatprep.subr.mxu0 %v6563
        %6711 = vmatpush2.msra.mxu0 %v6562
        %6712 = vmatprep.subr.mxu0 %v6561
        %6713 = vmatpush2.msra.mxu0 %v6560
        %6714 = vmatprep.subr.mxu0 %v6559
        %6715 = vmatpush2.msra.mxu0 %v6558
        %6716 = vmatprep.subr.mxu0 %v6557
        %6717 = vmatpush2.msra.mxu0 %v6556
        %6718 = vmatprep.mubr.f32.mxu0 %v6590
        %6719 = vmatmul.mubr.f32.gmra.mxu0 %v6589
        %v6720 = vpop.f32.mrf.mxu0
        %v6721 = vadd.f32 %v6617, %v6720
        %v6722 = vpop.f32.mrf.mxu0
        %v6723 = vadd.f32 %v6617, %v6722
        %6724 = vmatprep.mubr.f32.mxu0 %v6592
        %6725 = vmatmul.mubr.f32.gmra.mxu0 %v6591
        %v6726 = vpop.f32.mrf.mxu0
        %v6727 = vadd.f32 %v6622, %v6726
        %v6728 = vpop.f32.mrf.mxu0
        %v6729 = vadd.f32 %v6622, %v6728
        %6730 = vmatprep.mubr.f32.mxu0 %v6594
        %6731 = vmatmul.mubr.f32.gmra.mxu0 %v6593
        %v6732 = vpop.f32.mrf.mxu0
        %v6733 = vadd.f32 %v6627, %v6732
        %v6734 = vpop.f32.mrf.mxu0
        %v6735 = vadd.f32 %v6627, %v6734
        %6736 = vmatprep.mubr.f32.mxu0 %v6596
        %6737 = vmatmul.mubr.f32.gmra.mxu0 %v6595
        %v6738 = vpop.f32.mrf.mxu0
        %v6739 = vadd.f32 %v6632, %v6738
        %v6740 = vpop.f32.mrf.mxu0
        %v6741 = vadd.f32 %v6632, %v6740
        %6742 = vmatprep.mubr.f32.mxu0 %v6598
        %6743 = vmatmul.mubr.f32.gmra.mxu0 %v6597
        %v6744 = vpop.f32.mrf.mxu0
        %v6745 = vadd.f32 %v6637, %v6744
        %v6746 = vpop.f32.mrf.mxu0
        %v6747 = vadd.f32 %v6637, %v6746
        %6748 = vmatprep.mubr.f32.mxu0 %v6600
        %6749 = vmatmul.mubr.f32.gmra.mxu0 %v6599
        %v6750 = vpop.f32.mrf.mxu0
        %v6751 = vadd.f32 %v6642, %v6750
        %v6752 = vpop.f32.mrf.mxu0
        %v6753 = vadd.f32 %v6642, %v6752
        %6754 = vmatprep.mubr.f32.mxu0 %v6602
        %6755 = vmatmul.mubr.f32.gmra.mxu0 %v6601
        %v6756 = vpop.f32.mrf.mxu0
        %v6757 = vadd.f32 %v6647, %v6756
        %v6758 = vpop.f32.mrf.mxu0
        %v6759 = vadd.f32 %v6647, %v6758
        %6760 = vmatprep.mubr.f32.mxu0 %v6604
        %6761 = vmatmul.mubr.f32.gmra.mxu0 %v6603
        %v6762 = vpop.f32.mrf.mxu0
        %v6763 = vadd.f32 %v6652, %v6762
        %v6764 = vpop.f32.mrf.mxu0
        %v6765 = vadd.f32 %v6652, %v6764
        %6766 = vdwg.mxu0
        %vm6767 = vcmp.gt.f32.partialorder %v6721, 0.0
        %vm6768 = vcmp.gt.f32.partialorder %v6723, 0.0
        %vm6769 = vcmp.gt.f32.partialorder %v6727, 0.0
        %vm6770 = vcmp.gt.f32.partialorder %v6729, 0.0
        %vm6771 = vcmp.gt.f32.partialorder %v6733, 0.0
        %vm6772 = vcmp.gt.f32.partialorder %v6735, 0.0
        %vm6773 = vcmp.gt.f32.partialorder %v6739, 0.0
        %vm6774 = vcmp.gt.f32.partialorder %v6741, 0.0
        %vm6775 = vcmp.gt.f32.partialorder %v6745, 0.0
        %vm6776 = vcmp.gt.f32.partialorder %v6747, 0.0
        %vm6777 = vcmp.gt.f32.partialorder %v6751, 0.0
        %vm6778 = vcmp.gt.f32.partialorder %v6753, 0.0
        %vm6779 = vcmp.gt.f32.partialorder %v6757, 0.0
        %vm6780 = vcmp.gt.f32.partialorder %v6759, 0.0
        %vm6781 = vcmp.gt.f32.partialorder %v6763, 0.0
        %vm6782 = vcmp.gt.f32.partialorder %v6765, 0.0
        %v6783 = vmul.f32 %v6721, 0.01
        %v6784 = vmul.f32 %v6723, 0.01
        %v6785 = vmul.f32 %v6727, 0.01
        %v6786 = vmul.f32 %v6729, 0.01
        %v6787 = vmul.f32 %v6733, 0.01
        %v6788 = vmul.f32 %v6735, 0.01
        %v6789 = vmul.f32 %v6739, 0.01
        %v6790 = vmul.f32 %v6741, 0.01
        %v6791 = vmul.f32 %v6745, 0.01
        %v6792 = vmul.f32 %v6747, 0.01
        %v6793 = vmul.f32 %v6751, 0.01
        %v6794 = vmul.f32 %v6753, 0.01
        %v6795 = vmul.f32 %v6757, 0.01
        %v6796 = vmul.f32 %v6759, 0.01
        %v6797 = vmul.f32 %v6763, 0.01
        %v6798 = vmul.f32 %v6765, 0.01
        %v6799 = vsel %vm6767, %v6721, %v6783
        %v6800 = vsel %vm6768, %v6723, %v6784
        %v6801 = vsel %vm6769, %v6727, %v6785
        %v6802 = vsel %vm6770, %v6729, %v6786
        %v6803 = vsel %vm6771, %v6733, %v6787
        %v6804 = vsel %vm6772, %v6735, %v6788
        %v6805 = vsel %vm6773, %v6739, %v6789
        %v6806 = vsel %vm6774, %v6741, %v6790
        %v6807 = vsel %vm6775, %v6745, %v6791
        %v6808 = vsel %vm6776, %v6747, %v6792
        %v6809 = vsel %vm6777, %v6751, %v6793
        %v6810 = vsel %vm6778, %v6753, %v6794
        %v6811 = vsel %vm6779, %v6757, %v6795
        %v6812 = vsel %vm6780, %v6759, %v6796
        %v6813 = vsel %vm6781, %v6763, %v6797
        %v6814 = vsel %vm6782, %v6765, %v6798
        %s6815 = scalar_lea.vmem %s6, 192
        %v6816 = vld [vmem:[%s6815] sm:$0xff]
        %v6817 = vld [vmem:[%s6815 + $0x8] sm:$0xff]
        %v6818 = vld [vmem:[%s6815 + $0x10] sm:$0xff]
        %v6819 = vld [vmem:[%s6815 + $0x18] sm:$0xff]
        %v6820 = vld [vmem:[%s6815 + $0x20] sm:$0xff]
        %v6821 = vld [vmem:[%s6815 + $0x28] sm:$0xff]
        %v6822 = vld [vmem:[%s6815 + $0x30] sm:$0xff]
        %v6823 = vld [vmem:[%s6815 + $0x38] sm:$0xff]
        %6825 = vset.pattern.permute.xlu0 0
        %6826 = vperm.xlu0 %6825, %v6816
        %v6827 = vpop.permute.xlu0 %6826
        %6830 = vset.pattern.permute.xlu0 0
        %6831 = vperm.xlu0 %6830, %v6817
        %v6832 = vpop.permute.xlu0 %6831
        %6835 = vset.pattern.permute.xlu0 0
        %6836 = vperm.xlu0 %6835, %v6818
        %v6837 = vpop.permute.xlu0 %6836
        %6840 = vset.pattern.permute.xlu0 0
        %6841 = vperm.xlu0 %6840, %v6819
        %v6842 = vpop.permute.xlu0 %6841
        %6845 = vset.pattern.permute.xlu0 0
        %6846 = vperm.xlu0 %6845, %v6820
        %v6847 = vpop.permute.xlu0 %6846
        %6850 = vset.pattern.permute.xlu0 0
        %6851 = vperm.xlu0 %6850, %v6821
        %v6852 = vpop.permute.xlu0 %6851
        %6855 = vset.pattern.permute.xlu0 0
        %6856 = vperm.xlu0 %6855, %v6822
        %v6857 = vpop.permute.xlu0 %6856
        %6860 = vset.pattern.permute.xlu0 0
        %6861 = vperm.xlu0 %6860, %v6823
        %v6862 = vpop.permute.xlu0 %6861
        %v6864 = vmul.f32 %v6799, %v6827
        %v6865 = vmul.f32 %v6800, %v6827
        %v6866 = vmul.f32 %v6801, %v6832
        %v6867 = vmul.f32 %v6802, %v6832
        %v6868 = vmul.f32 %v6803, %v6837
        %v6869 = vmul.f32 %v6804, %v6837
        %v6870 = vmul.f32 %v6805, %v6842
        %v6871 = vmul.f32 %v6806, %v6842
        %v6872 = vmul.f32 %v6807, %v6847
        %v6873 = vmul.f32 %v6808, %v6847
        %v6874 = vmul.f32 %v6809, %v6852
        %v6875 = vmul.f32 %v6810, %v6852
        %v6876 = vmul.f32 %v6811, %v6857
        %v6877 = vmul.f32 %v6812, %v6857
        %v6878 = vmul.f32 %v6813, %v6862
        %v6879 = vmul.f32 %v6814, %v6862
        %v6880 = vadd.f32 %v6864, %v6866
        %v6881 = vadd.f32 %v6880, %v6868
        %v6882 = vadd.f32 %v6881, %v6870
        %v6883 = vadd.f32 %v6882, %v6872
        %v6884 = vadd.f32 %v6883, %v6874
        %v6885 = vadd.f32 %v6884, %v6876
        %v6886 = vadd.f32 %v6885, %v6878
        %v6887 = vrot.slane %v6886, 4
        %v6888 = vadd.f32 %v6886, %v6887
        %v6889 = vrot.slane %v6888, 2
        %v6890 = vadd.f32 %v6888, %v6889
        %v6891 = vrot.slane %v6890, 1
        %v6892 = vadd.f32 %v6890, %v6891
        %v6893 = vadd.f32 %v6865, %v6867
        %v6894 = vadd.f32 %v6893, %v6869
        %v6895 = vadd.f32 %v6894, %v6871
        %v6896 = vadd.f32 %v6895, %v6873
        %v6897 = vadd.f32 %v6896, %v6875
        %v6898 = vadd.f32 %v6897, %v6877
        %v6899 = vadd.f32 %v6898, %v6879
        %v6900 = vrot.slane %v6899, 4
        %v6901 = vadd.f32 %v6899, %v6900
        %v6902 = vrot.slane %v6901, 2
        %v6903 = vadd.f32 %v6901, %v6902
        %v6904 = vrot.slane %v6903, 1
        %v6905 = vadd.f32 %v6903, %v6904
        %s6906 = scalar_lea.vmem %s7, 3
        %v6907 = vld [vmem:[%s6906] sm:$0x1]
        %6909 = vset.pattern.permute.xlu0 0
        %6910 = vperm.xlu0 %6909, %v6907
        %v6911 = vpop.permute.xlu0 %6910
        %v6913 = vlaneseq
        %v6914 = vshrl.u32 %v6913, 7
        %v6915 = vsub.s32 0, %v6914
        %v6916 = vrot.slane %v6911, %v6915
        %v6917 = vadd.f32 %v6892, %v6916
        %v6918 = vadd.f32 %v6905, %v6916
        %v6919 = vxor.u32 %v6917, 2147483648
        %v6920 = vxor.u32 %v6918, 2147483648
        %v6921 = vmul.f32 %v6919, 1.442695
        %v6922 = vpow.pop %v6921
        %v6923 = vmul.f32 %v6920, 1.442695
        %v6924 = vpow.pop %v6923
        %v6925 = vadd.f32 %v6922, 1.0
        %v6926 = vadd.f32 %v6924, 1.0
        %v6927 = vrcp.pop %v6925
        %v6928 = vmul.f32 1.0, %v6927
        %v6929 = vrcp.pop %v6926
        %v6930 = vmul.f32 1.0, %v6929
        %v6931 = vmax.f32 %v5308, %v6928
        %v6932 = vmax.f32 %v5309, %v6930
        %vm6933 = vcmask 1040384
        %v6934 = vsel %vm6933, %v2061, %v3682
        %v6935 = vsel %vm6933, %v2063, %v3684
        %vm6936 = vcmask 1041408
        %v6937 = vsel %vm6936, %v6934, %v5305
        %v6938 = vsel %vm6936, %v6935, %v5307
        %vm6939 = vcmask 1042432
        %v6940 = vsel %vm6939, %v6937, %v6928
        %v6941 = vsel %vm6939, %v6938, %v6930
        %v6944 = vcombine.low %v6940, %v6941
        %6946 = vst [vmem:[%s428] sm:$0xff] %v6944
        %v6949 = vcombine.low %v6931, %v6932
        %v6951 = vunpack.c.l.s4 1966171168
        %v6952 = vunpack.c.0.s8 %v6951
        %v6953 = vlaneseq
        %v6954 = vshrl.u32 %v6953, 7
        %v6955 = vsub.s32 %v6952, %v6954
        %v6956 = vrot.slane %v6949, %v6955
        %v6958 = vunpack.c.l.s4 1966171168
        %v6959 = vunpack.c.0.s8 %v6958
        %v6960 = vlaneseq
        %v6961 = vshrl.u32 %v6960, 7
        %v6962 = vsub.s32 %v6959, %v6961
        %v6963 = vrot.slane %v6956, %v6962
        %v6965 = vlaneseq
        %vm6966 = vcmp.ge.s32.totalorder %v6965, 0
        %vm6967 = vcmp.lt.s32.totalorder %v6965, 256
        %vm6968 = vmand %vm6966, %vm6967
        %6969 = vst.msk [vmem:[%s435] sm:$0x3] %vm6968, %v6963
        %s6970 = sand.u32 %s231, 1
        %s6971 = scalar_lea.sflag [#allocation4], %s6970
        %s6972 = sand.u32 %s231, 1
        %s6973 = smul.addr %s6972, 8
        %s6974 = scalar_lea.vmem [#allocation3], %s6973
        %s6975 = sand.u32 %s259, 1
        %s6976 = scalar_lea.sflag [#allocation6], %s6975
        %s6977 = sand.u32 %s259, 1
        %s6978 = smul.addr %s6977, 2
        %s6979 = scalar_lea.vmem [#allocation5], %s6978
        // Predicated region
        $region91: #{tpu_custom_call.1} parent=85 // pred_check
          %p6980 = pneg %p241
        $region92: #{tpu_custom_call.1} parent=85 // pred_check_branch
          %6982 = sbr.rel (%p6980) target = $region94
        $region93: #{tpu_custom_call.1} parent=85 // pred_region
          %s6983 = smul.u32 2, %s32
          %s6985 = ssub.s32 128, 128
          %6986 = vsyncadd %s6971, %s6985
          %s6987 = smul.addr %s31, 4
          %s6988 = sadd.s32 %s6983, %s6987
          %s6989 = smul.addr %s6988, 64
          %s6990 = scalar_lea.hbm %s8, %s6989
          %s6992 = sshll.u32 %s6974, 4
          %s6993 = int_to_ptr.vmem [resolvable:$true] %s6992
          %6995 = dma.vmem_to_hbm [thread:$0]  %s6993, 128, %s6990, %s6971
        $region94: #{tpu_custom_call.1} parent=85 // pred_fallthru
          _
        // Predicated region
        $region95: #{tpu_custom_call.1} parent=85 // pred_check
          %p6996 = pneg %p269
        $region96: #{tpu_custom_call.1} parent=85 // pred_check_branch
          %6998 = sbr.rel (%p6996) target = $region98
        $region97: #{tpu_custom_call.1} parent=85 // pred_region
          %s6999 = smul.u32 2, %s32
          %s7001 = ssub.s32 32, 32
          %7002 = vsyncadd %s6976, %s7001
          %s7003 = smul.addr %s31, 4
          %s7004 = sadd.s32 %s6999, %s7003
          %s7005 = smul.addr %s7004, 16
          %s7006 = scalar_lea.hbm %s9, %s7005
          %s7008 = sshll.u32 %s6979, 4
          %s7009 = int_to_ptr.vmem [resolvable:$true] %s7008
          %7011 = dma.vmem_to_hbm [thread:$0]  %s7009, 32, %s7006, %s6976
        $region98: #{tpu_custom_call.1} parent=85 // pred_fallthru
          _
      $region86: #{tpu_custom_call.1} parent=5 // pred_fallthru
        _
      %p7012 = scmp.le.s32.totalorder 2, %s22
      // Predicated region
      $region99: #{tpu_custom_call.1} parent=5 // pred_check
        %p7013 = pneg %p7012
      $region100: #{tpu_custom_call.1} parent=5 // pred_check_branch
        %7015 = sbr.rel (%p7013) target = $region102
      $region101: #{tpu_custom_call.1} parent=5 // pred_region
        %s7016 = ssub.s32 %s22, 2
        // Predicated region
        $region103: #{tpu_custom_call.1} parent=101 // pred_check
          %p7017 = pneg %p247
        $region104: #{tpu_custom_call.1} parent=101 // pred_check_branch
          %7019 = sbr.rel (%p7017) target = $region106
        $region105: #{tpu_custom_call.1} parent=101 // pred_region
          %s7020 = sand.u32 %s232, 1
          %s7021 = scalar_lea.sflag [#allocation4], %s7020
          %s7022 = sand.u32 %s232, 1
          %s7023 = smul.addr %s7022, 8
          %s7024 = scalar_lea.vmem [#allocation3], %s7023
          %7025 = dma.done %s7021, 128
        $region106: #{tpu_custom_call.1} parent=101 // pred_fallthru
          _
        // Predicated region
        $region107: #{tpu_custom_call.1} parent=101 // pred_check
          %p7026 = pneg %p275
        $region108: #{tpu_custom_call.1} parent=101 // pred_check_branch
          %7028 = sbr.rel (%p7026) target = $region110
        $region109: #{tpu_custom_call.1} parent=101 // pred_region
          %s7029 = sand.u32 %s260, 1
          %s7030 = scalar_lea.sflag [#allocation6], %s7029
          %s7031 = sand.u32 %s260, 1
          %s7032 = smul.addr %s7031, 2
          %s7033 = scalar_lea.vmem [#allocation5], %s7032
          %7034 = dma.done %s7030, 32
        $region110: #{tpu_custom_call.1} parent=101 // pred_fallthru
          _
      $region102: #{tpu_custom_call.1} parent=5 // pred_fallthru
        _
    $region6: #{tpu_custom_call.1} parent=1 // loop_footer
      %s26 = sadd.s32 1, %s22
    $region7: #{tpu_custom_call.1} parent=1 // loop_footer_branch
      %21 = sbr.rel target = $region3
    $region8: #{tpu_custom_call.1} parent=1 // loop_exit
      _
    %7035 = vsyncpa [#allocation4], 1
    %s7036 = scalar_lea.sflag [#allocation4], 1
    %7037 = vsyncpa %s7036, 1
    %7038 = vsyncpa [#allocation6], 1
    %s7039 = scalar_lea.sflag [#allocation6], 1
    %7040 = vsyncpa %s7039, 1

</llo_original>
